<compile_context>
chip_gen: v6e
topology: v6e:2x2x1
jax: 0.10.0
libtpu: 0.0.40
codegen_flags: <defaults>
</compile_context>

<pallas_src>
import functools

import jax
import jax.numpy as jnp
from jax.experimental import pallas as pl
from jax.experimental.pallas import tpu as pltpu


def _round_up(x, m):
    return (x + m - 1) // m * m


def _upconv_taps_kernel(x_ref, w_ref, b_ref, o_ref, *, K, row_pitch, out_w):
    # x_ref: (Cin, flat_in)    flattened reflect-padded upsampled images,
    #                          batch folded into lanes with pitch flat_seg.
    # w_ref: (K*K, Cout, Cin)  one small weight matrix per conv tap.
    # b_ref: (Cout, 1)         f32 bias.
    # o_ref: (Cout, out_w)     dense stride-1 conv output, lane-dense f32.
    acc = jnp.zeros(o_ref.shape, jnp.float32)
    for kh in range(K):                       # K is tiny/static -> unrolled
        for kw in range(K):
            tap = kh * K + kw
            off = kh * row_pitch + kw         # static lane offset of this tap
            acc = acc + jnp.dot(
                w_ref[tap], x_ref[:, off:off + out_w],
                preferred_element_type=jnp.float32)
    o_ref[...] = (acc + b_ref[...]).astype(o_ref.dtype)


@functools.partial(jax.jit, static_argnames=("kernel_size", "stride",
                                             "scale_factor", "mxu_dtype"))
def upsample_conv_layer(x_nchw, weight_oikk, bias, *, kernel_size, stride,
                        scale_factor, mxu_dtype=jnp.float32):
    """Forward of UpsampleConvLayer.

    x_nchw:       (N, Cin, H, W)    float32 (PyTorch NCHW convention)
    weight_oikk:  (Cout, Cin, K, K) PyTorch Conv2d weight layout
    bias:         (Cout,)
    mxu_dtype:    dtype of MXU operands (f32 exact; bf16 fast path on v6e/v7x,
                  accumulation stays f32)
    returns:      (N, Cout, Ho, Wo) in NCHW, matching the PyTorch module.
    """
    N, Cin, H, W = x_nchw.shape
    Cout = weight_oikk.shape[0]
    K = kernel_size
    pad = K // 2

    # --- XLA glue (index shuffling only, stays NCHW; fused under jit) -------
    x = jnp.repeat(jnp.repeat(x_nchw, scale_factor, axis=2), scale_factor, axis=3)
    x = jnp.pad(x, ((0, 0), (0, 0), (pad, pad), (pad, pad)), mode="reflect")
    Hp, Wp = x.shape[2], x.shape[3]
    Ho = (Hp - K) // stride + 1
    Wo = (Wp - K) // stride + 1
    Hd = Hp - K + 1                    # dense (stride-1) rows the kernel computes

    # Lane-align the row pitch only for wide images (cuts K*K -> K XLU lane
    # rotations); at small Wp the lane inflation would dominate.
    row_pitch = _round_up(Wp, 128) if Wp >= 512 else Wp
    if row_pitch != Wp:
        x = jnp.pad(x, ((0, 0), (0, 0), (0, 0), (0, row_pitch - Wp)))

    # Flatten each image and fold the batch into the lane axis with a
    # 128-aligned per-image pitch flat_seg: one wide MXU RHS / output.
    flat_seg = _round_up(Hp * row_pitch, 128)
    x_flat = x.reshape(N, Cin, Hp * row_pitch)
    x_flat = jnp.pad(x_flat, ((0, 0), (0, 0), (0, flat_seg - Hp * row_pitch)))
    x_flat = jnp.transpose(x_flat, (1, 0, 2)).reshape(Cin, N * flat_seg)

    out_w = N * flat_seg                          # multiple of 128 -> unmasked vst
    max_off = (K - 1) * row_pitch + (K - 1)       # deepest tap offset
    flat_in = _round_up(out_w + max_off, 128)
    x_flat = jnp.pad(x_flat, ((0, 0), (0, flat_in - out_w)))

    # Correctness invariant tying flat layout, max tap offset and the crop:
    # every KEPT output column of batch n (row <= Hp-K, col <= Wp-K after the
    # wrapper crop) reads, at the deepest tap, at most element
    # n*flat_seg + (Hp-1)*row_pitch + (Wp-1) -- the last REAL element of batch
    # n's segment, never the zero tail or the next batch.  Columns that do
    # bleed (segment tail / pad-column overcompute) are dropped below.
    assert (Hp - 1) * row_pitch + (Wp - 1) < Hp * row_pitch <= flat_seg
    assert out_w + max_off <= flat_in             # kernel tap slices never OOB

    # (Cout, Cin, K, K) -> (K*K, Cout, Cin): one small matrix per tap (tiny).
    w_taps = jnp.transpose(weight_oikk, (2, 3, 0, 1)).reshape(K * K, Cout, Cin)
    w_taps = w_taps.astype(mxu_dtype)
    x_flat = x_flat.astype(mxu_dtype)
    b2 = bias.reshape(Cout, 1).astype(jnp.float32)

    kernel = functools.partial(_upconv_taps_kernel, K=K, row_pitch=row_pitch,
                               out_w=out_w)

    out_flat = pl.pallas_call(
        kernel,
        out_shape=jax.ShapeDtypeStruct((Cout, out_w), jnp.float32),
        grid_spec=pltpu.PrefetchScalarGridSpec(
            num_scalar_prefetch=0,
            grid=(1,),
            in_specs=[
                pl.BlockSpec((Cin, flat_in), lambda i: (0, 0)),
                pl.BlockSpec((K * K, Cout, Cin), lambda i: (0, 0, 0)),
                pl.BlockSpec((Cout, 1), lambda i: (0, 0)),
            ],
            out_specs=pl.BlockSpec((Cout, out_w), lambda i: (0, 0)),
        ),
        compiler_params=pltpu.CompilerParams(
            dimension_semantics=("arbitrary",)),
    )(x_flat, w_taps, b2)

    # Unfold the batch, drop the overcomputed columns, apply stride by
    # decimation (shipped configs use stride=1 -> no overcompute).
    dense = out_flat.reshape(Cout, N, flat_seg)[:, :, :Hd * row_pitch]
    dense = dense.reshape(Cout, N, Hd, row_pitch)
    dense = jnp.transpose(dense, (1, 0, 2, 3))
    out = dense[:, :, ::stride, ::stride][:, :, :Ho, :Wo]
    return out


def _reference(x_nchw, weight_oikk, bias, *, kernel_size, stride, scale_factor):
    pad = kernel_size // 2
    x = jnp.repeat(jnp.repeat(x_nchw, scale_factor, axis=2), scale_factor, axis=3)
    x = jnp.pad(x, ((0, 0), (0, 0), (pad, pad), (pad, pad)), mode="reflect")
    out = jax.lax.conv_general_dilated(
        x, weight_oikk, window_strides=(stride, stride), padding="VALID",
        dimension_numbers=("NCHW", "OIHW", "NCHW"))
    return out + bias.reshape(1, -1, 1, 1)


if __name__ == "__main__":
    key = jax.random.PRNGKey(0)
    k1, k2, k3 = jax.random.split(key, 3)

    # UpsampleConvLayer(in_channels=4, out_channels=8, kernel_size=3,
    #                   stride=1, scale_factor=2)
    N, Cin, H, W = 2, 4, 16, 16
    Cout, K, stride, scale = 8, 3, 1, 2

    x = jax.random.normal(k1, (N, Cin, H, W), dtype=jnp.float32)
    weight = jax.random.normal(k2, (Cout, Cin, K, K), dtype=jnp.float32) * 0.1
    bias = jax.random.normal(k3, (Cout,), dtype=jnp.float32) * 0.1

    ref = _reference(x, weight, bias, kernel_size=K, stride=stride,
                     scale_factor=scale)

    # Exact path: f32 MXU operands (also the v5e default).
    out = upsample_conv_layer(x, weight, bias, kernel_size=K, stride=stride,
                              scale_factor=scale)
    out = jax.block_until_ready(out)
    assert out.shape == ref.shape == (N, Cout, H * scale, W * scale)
    assert jnp.allclose(out, ref, atol=1e-4, rtol=1e-4)

    # v6e/v7x fast path: bf16 MXU operands, f32 accumulation (looser tolerance
    # against the f32 reference, as noted in the review).
    out_bf16 = upsample_conv_layer(x, weight, bias, kernel_size=K,
                                   stride=stride, scale_factor=scale,
                                   mxu_dtype=jnp.bfloat16)
    out_bf16 = jax.block_until_ready(out_bf16)
    assert jnp.allclose(out_bf16, ref, atol=5e-2, rtol=5e-2)

    print("KERNEL_OK")
</pallas_src>

<mosaic_0001>
module attributes {stable_mosaic.version = 11 : i64} {
  func.func @_upconv_taps_kernel(%arg0: i32, %arg1: memref<4x2688xf32, #tpu.memory_space<vmem>>, %arg2: memref<9x8x4xf32, #tpu.memory_space<vmem>>, %arg3: memref<8x1xf32, #tpu.memory_space<vmem>>, %arg4: memref<8x2560xf32, #tpu.memory_space<vmem>>) attributes {dimension_semantics = [#tpu.dimension_semantics<arbitrary>], iteration_bounds = array<i64: 1>, scalar_prefetch = 0 : i64, scratch_operands = 0 : i64, tpu.core_type = #tpu.core_type<tc>, window_params = [{pipeline_mode = #tpu.pipeline_mode<synchronous>, transform_indices = @transform_0, window_bounds = array<i64: 4, 2688>}, {pipeline_mode = #tpu.pipeline_mode<synchronous>, transform_indices = @transform_1, window_bounds = array<i64: 9, 8, 4>}, {pipeline_mode = #tpu.pipeline_mode<synchronous>, transform_indices = @transform_2, window_bounds = array<i64: 8, 1>}, {pipeline_mode = #tpu.pipeline_mode<synchronous>, transform_indices = @transform_3, window_bounds = array<i64: 8, 2560>}]} {
    %cst = arith.constant 0.000000e+00 : f32
    %0 = vector.broadcast %cst : f32 to vector<8x2560xf32>
    %c0 = arith.constant 0 : index
    %c0_0 = arith.constant 0 : index
    %c0_1 = arith.constant 0 : index
    %1 = vector.load %arg2[%c0, %c0_0, %c0_1] : memref<9x8x4xf32, #tpu.memory_space<vmem>>, vector<1x8x4xf32>
    %2 = vector.shape_cast %1 : vector<1x8x4xf32> to vector<8x4xf32>
    %c0_2 = arith.constant 0 : index
    %c0_3 = arith.constant 0 : index
    %3 = vector.load %arg1[%c0_2, %c0_3] : memref<4x2688xf32, #tpu.memory_space<vmem>>, vector<4x2560xf32>
    %cst_4 = arith.constant dense<0.000000e+00> : vector<8x2560xf32>
    %4 = tpu.matmul %2, %3, %cst_4 {dimension_numbers = #tpu.dot_dimension_numbers<[1], [0], [0], [1], [0, 0, 1, 1], [], []>} : vector<8x4xf32>, vector<4x2560xf32>, vector<8x2560xf32> -> vector<8x2560xf32>
    %5 = arith.addf %0, %4 : vector<8x2560xf32>
    %c1 = arith.constant 1 : index
    %c0_5 = arith.constant 0 : index
    %c0_6 = arith.constant 0 : index
    %6 = vector.load %arg2[%c1, %c0_5, %c0_6] : memref<9x8x4xf32, #tpu.memory_space<vmem>>, vector<1x8x4xf32>
    %7 = vector.shape_cast %6 : vector<1x8x4xf32> to vector<8x4xf32>
    %c0_7 = arith.constant 0 : index
    %c1_8 = arith.constant 1 : index
    %8 = vector.load %arg1[%c0_7, %c1_8] : memref<4x2688xf32, #tpu.memory_space<vmem>>, vector<4x2560xf32>
    %cst_9 = arith.constant dense<0.000000e+00> : vector<8x2560xf32>
    %9 = tpu.matmul %7, %8, %cst_9 {dimension_numbers = #tpu.dot_dimension_numbers<[1], [0], [0], [1], [0, 0, 1, 1], [], []>} : vector<8x4xf32>, vector<4x2560xf32>, vector<8x2560xf32> -> vector<8x2560xf32>
    %10 = arith.addf %5, %9 : vector<8x2560xf32>
    %c2 = arith.constant 2 : index
    %c0_10 = arith.constant 0 : index
    %c0_11 = arith.constant 0 : index
    %11 = vector.load %arg2[%c2, %c0_10, %c0_11] : memref<9x8x4xf32, #tpu.memory_space<vmem>>, vector<1x8x4xf32>
    %12 = vector.shape_cast %11 : vector<1x8x4xf32> to vector<8x4xf32>
    %c0_12 = arith.constant 0 : index
    %c2_13 = arith.constant 2 : index
    %13 = vector.load %arg1[%c0_12, %c2_13] : memref<4x2688xf32, #tpu.memory_space<vmem>>, vector<4x2560xf32>
    %cst_14 = arith.constant dense<0.000000e+00> : vector<8x2560xf32>
    %14 = tpu.matmul %12, %13, %cst_14 {dimension_numbers = #tpu.dot_dimension_numbers<[1], [0], [0], [1], [0, 0, 1, 1], [], []>} : vector<8x4xf32>, vector<4x2560xf32>, vector<8x2560xf32> -> vector<8x2560xf32>
    %15 = arith.addf %10, %14 : vector<8x2560xf32>
    %c3 = arith.constant 3 : index
    %c0_15 = arith.constant 0 : index
    %c0_16 = arith.constant 0 : index
    %16 = vector.load %arg2[%c3, %c0_15, %c0_16] : memref<9x8x4xf32, #tpu.memory_space<vmem>>, vector<1x8x4xf32>
    %17 = vector.shape_cast %16 : vector<1x8x4xf32> to vector<8x4xf32>
    %c0_17 = arith.constant 0 : index
    %c34 = arith.constant 34 : index
    %18 = vector.load %arg1[%c0_17, %c34] : memref<4x2688xf32, #tpu.memory_space<vmem>>, vector<4x2560xf32>
    %cst_18 = arith.constant dense<0.000000e+00> : vector<8x2560xf32>
    %19 = tpu.matmul %17, %18, %cst_18 {dimension_numbers = #tpu.dot_dimension_numbers<[1], [0], [0], [1], [0, 0, 1, 1], [], []>} : vector<8x4xf32>, vector<4x2560xf32>, vector<8x2560xf32> -> vector<8x2560xf32>
    %20 = arith.addf %15, %19 : vector<8x2560xf32>
    %c4 = arith.constant 4 : index
    %c0_19 = arith.constant 0 : index
    %c0_20 = arith.constant 0 : index
    %21 = vector.load %arg2[%c4, %c0_19, %c0_20] : memref<9x8x4xf32, #tpu.memory_space<vmem>>, vector<1x8x4xf32>
    %22 = vector.shape_cast %21 : vector<1x8x4xf32> to vector<8x4xf32>
    %c0_21 = arith.constant 0 : index
    %c35 = arith.constant 35 : index
    %23 = vector.load %arg1[%c0_21, %c35] : memref<4x2688xf32, #tpu.memory_space<vmem>>, vector<4x2560xf32>
    %cst_22 = arith.constant dense<0.000000e+00> : vector<8x2560xf32>
    %24 = tpu.matmul %22, %23, %cst_22 {dimension_numbers = #tpu.dot_dimension_numbers<[1], [0], [0], [1], [0, 0, 1, 1], [], []>} : vector<8x4xf32>, vector<4x2560xf32>, vector<8x2560xf32> -> vector<8x2560xf32>
    %25 = arith.addf %20, %24 : vector<8x2560xf32>
    %c5 = arith.constant 5 : index
    %c0_23 = arith.constant 0 : index
    %c0_24 = arith.constant 0 : index
    %26 = vector.load %arg2[%c5, %c0_23, %c0_24] : memref<9x8x4xf32, #tpu.memory_space<vmem>>, vector<1x8x4xf32>
    %27 = vector.shape_cast %26 : vector<1x8x4xf32> to vector<8x4xf32>
    %c0_25 = arith.constant 0 : index
    %c36 = arith.constant 36 : index
    %28 = vector.load %arg1[%c0_25, %c36] : memref<4x2688xf32, #tpu.memory_space<vmem>>, vector<4x2560xf32>
    %cst_26 = arith.constant dense<0.000000e+00> : vector<8x2560xf32>
    %29 = tpu.matmul %27, %28, %cst_26 {dimension_numbers = #tpu.dot_dimension_numbers<[1], [0], [0], [1], [0, 0, 1, 1], [], []>} : vector<8x4xf32>, vector<4x2560xf32>, vector<8x2560xf32> -> vector<8x2560xf32>
    %30 = arith.addf %25, %29 : vector<8x2560xf32>
    %c6 = arith.constant 6 : index
    %c0_27 = arith.constant 0 : index
    %c0_28 = arith.constant 0 : index
    %31 = vector.load %arg2[%c6, %c0_27, %c0_28] : memref<9x8x4xf32, #tpu.memory_space<vmem>>, vector<1x8x4xf32>
    %32 = vector.shape_cast %31 : vector<1x8x4xf32> to vector<8x4xf32>
    %c0_29 = arith.constant 0 : index
    %c68 = arith.constant 68 : index
    %33 = vector.load %arg1[%c0_29, %c68] : memref<4x2688xf32, #tpu.memory_space<vmem>>, vector<4x2560xf32>
    %cst_30 = arith.constant dense<0.000000e+00> : vector<8x2560xf32>
    %34 = tpu.matmul %32, %33, %cst_30 {dimension_numbers = #tpu.dot_dimension_numbers<[1], [0], [0], [1], [0, 0, 1, 1], [], []>} : vector<8x4xf32>, vector<4x2560xf32>, vector<8x2560xf32> -> vector<8x2560xf32>
    %35 = arith.addf %30, %34 : vector<8x2560xf32>
    %c7 = arith.constant 7 : index
    %c0_31 = arith.constant 0 : index
    %c0_32 = arith.constant 0 : index
    %36 = vector.load %arg2[%c7, %c0_31, %c0_32] : memref<9x8x4xf32, #tpu.memory_space<vmem>>, vector<1x8x4xf32>
    %37 = vector.shape_cast %36 : vector<1x8x4xf32> to vector<8x4xf32>
    %c0_33 = arith.constant 0 : index
    %c69 = arith.constant 69 : index
    %38 = vector.load %arg1[%c0_33, %c69] : memref<4x2688xf32, #tpu.memory_space<vmem>>, vector<4x2560xf32>
    %cst_34 = arith.constant dense<0.000000e+00> : vector<8x2560xf32>
    %39 = tpu.matmul %37, %38, %cst_34 {dimension_numbers = #tpu.dot_dimension_numbers<[1], [0], [0], [1], [0, 0, 1, 1], [], []>} : vector<8x4xf32>, vector<4x2560xf32>, vector<8x2560xf32> -> vector<8x2560xf32>
    %40 = arith.addf %35, %39 : vector<8x2560xf32>
    %c8 = arith.constant 8 : index
    %c0_35 = arith.constant 0 : index
    %c0_36 = arith.constant 0 : index
    %41 = vector.load %arg2[%c8, %c0_35, %c0_36] : memref<9x8x4xf32, #tpu.memory_space<vmem>>, vector<1x8x4xf32>
    %42 = vector.shape_cast %41 : vector<1x8x4xf32> to vector<8x4xf32>
    %c0_37 = arith.constant 0 : index
    %c70 = arith.constant 70 : index
    %43 = vector.load %arg1[%c0_37, %c70] : memref<4x2688xf32, #tpu.memory_space<vmem>>, vector<4x2560xf32>
    %cst_38 = arith.constant dense<0.000000e+00> : vector<8x2560xf32>
    %44 = tpu.matmul %42, %43, %cst_38 {dimension_numbers = #tpu.dot_dimension_numbers<[1], [0], [0], [1], [0, 0, 1, 1], [], []>} : vector<8x4xf32>, vector<4x2560xf32>, vector<8x2560xf32> -> vector<8x2560xf32>
    %45 = arith.addf %40, %44 : vector<8x2560xf32>
    %c0_39 = arith.constant 0 : index
    %c0_40 = arith.constant 0 : index
    %46 = vector.load %arg3[%c0_39, %c0_40] : memref<8x1xf32, #tpu.memory_space<vmem>>, vector<8x1xf32>
    %47 = vector.broadcast %46 : vector<8x1xf32> to vector<8x2560xf32>
    %48 = arith.addf %45, %47 : vector<8x2560xf32>
    %c0_41 = arith.constant 0 : index
    %c0_42 = arith.constant 0 : index
    %49 = vector.load %arg4[%c0_41, %c0_42] : memref<8x2560xf32, #tpu.memory_space<vmem>>, vector<8x2560xf32>
    tpu.vector_store %arg4[%c0_41, %c0_42], %48 {strides = array<i32>} : memref<8x2560xf32, #tpu.memory_space<vmem>>, vector<8x2560xf32>,
    return
  }
  func.func @transform_0(%arg0: i32) -> (i32, i32) {
    %c0_i32 = arith.constant 0 : i32
    %c0_i32_0 = arith.constant 0 : i32
    %c0_i32_1 = arith.constant 0 : i32
    return %c0_i32, %c0_i32_0 : i32, i32
  }
  func.func @transform_1(%arg0: i32) -> (i32, i32, i32) {
    %c0_i32 = arith.constant 0 : i32
    %c0_i32_0 = arith.constant 0 : i32
    %c0_i32_1 = arith.constant 0 : i32
    %c0_i32_2 = arith.constant 0 : i32
    return %c0_i32, %c0_i32_0, %c0_i32_1 : i32, i32, i32
  }
  func.func @transform_2(%arg0: i32) -> (i32, i32) {
    %c0_i32 = arith.constant 0 : i32
    %c0_i32_0 = arith.constant 0 : i32
    %c0_i32_1 = arith.constant 0 : i32
    return %c0_i32, %c0_i32_0 : i32, i32
  }
  func.func @transform_3(%arg0: i32) -> (i32, i32) {
    %c0_i32 = arith.constant 0 : i32
    %c0_i32_0 = arith.constant 0 : i32
    %c0_i32_1 = arith.constant 0 : i32
    return %c0_i32, %c0_i32_0 : i32, i32
  }
}

</mosaic_0001>

<llo_original>
// kernel: upsample_conv_layer.1
$region0: #{upsample_conv_layer.1}
  #allocation0 [shape = 'u32[]', space=smem, size = 0x4, offset = 0x4, fixed_abs, tag = 'smem constant byte address 0x4 - core index']
  #allocation1 [shape = 'u32[144,128]{1,0:T(1,128)}', space=vmem, size = 0x12000, scoped, tag = 'internal scratch']
  %s0 = inlined_call_operand.vmem [shape: f32[4,2688], index: 0, kind: input, shape index: {}]
  %s1 = inlined_call_operand.vmem [shape: f32[9,8,4], index: 1, kind: input, shape index: {}]
  %s2 = inlined_call_operand.vmem [shape: f32[8,1], index: 2, kind: input, shape index: {}]
  %s3 = inlined_call_operand.vmem [shape: f32[8,2560], index: 3, kind: output, shape index: {}]
  %s4 = sld [smem:[#allocation0]]
  $region22: #{upsample_conv_layer.1} parent=0
    _
  %s6 = ssub.s32 1, %s4
  %s7 = scalar_select 0, %s6, %s4
  // Predicated region
  $region2: #{upsample_conv_layer.1} parent=0 // pred_check
    _
  $region3: #{upsample_conv_layer.1} parent=0 // pred_check_branch
    %9 = sbr.rel (0) target = $region5
  $region4: #{upsample_conv_layer.1} parent=0 // pred_region
    _
  $region5: #{upsample_conv_layer.1} parent=0 // pred_fallthru
    _
  // Predicated region
  $region6: #{upsample_conv_layer.1} parent=0 // pred_check
    _
  $region7: #{upsample_conv_layer.1} parent=0 // pred_check_branch
    %11 = sbr.rel (0) target = $region9
  $region8: #{upsample_conv_layer.1} parent=0 // pred_region
    _
  $region9: #{upsample_conv_layer.1} parent=0 // pred_fallthru
    _
  // Predicated region
  $region10: #{upsample_conv_layer.1} parent=0 // pred_check
    _
  $region11: #{upsample_conv_layer.1} parent=0 // pred_check_branch
    %13 = sbr.rel (0) target = $region13
  $region12: #{upsample_conv_layer.1} parent=0 // pred_region
    _
  $region13: #{upsample_conv_layer.1} parent=0 // pred_fallthru
    _
  %v14 = vld [vmem:[%s1] sm:$0xff]
  %v15 = vld [vmem:[%s0] sm:$0xff]
  %v16 = vld [vmem:[%s0 + $0x8] sm:$0xff]
  %v17 = vld [vmem:[%s0 + $0x10] sm:$0xff]
  %v18 = vld [vmem:[%s0 + $0x18] sm:$0xff]
  %v19 = vld [vmem:[%s0 + $0x20] sm:$0xff]
  %v20 = vld [vmem:[%s0 + $0x28] sm:$0xff]
  %v21 = vld [vmem:[%s0 + $0x30] sm:$0xff]
  %v22 = vld [vmem:[%s0 + $0x38] sm:$0xff]
  %v23 = vld [vmem:[%s0 + $0x40] sm:$0xff]
  %v24 = vld [vmem:[%s0 + $0x48] sm:$0xff]
  %s25 = scalar_lea.vmem %s1, 8
  %v26 = vld [vmem:[%s25] sm:$0xff]
  %v27 = vld [vmem:[%s0] sm:$0xff]
  %v28 = vld [vmem:[%s0 + $0x8] sm:$0xff]
  %v29 = vld [vmem:[%s0 + $0x10] sm:$0xff]
  %v30 = vld [vmem:[%s0 + $0x18] sm:$0xff]
  %v31 = vld [vmem:[%s0 + $0x20] sm:$0xff]
  %v32 = vld [vmem:[%s0 + $0x28] sm:$0xff]
  %v33 = vld [vmem:[%s0 + $0x30] sm:$0xff]
  %v34 = vld [vmem:[%s0 + $0x38] sm:$0xff]
  %v35 = vld [vmem:[%s0 + $0x40] sm:$0xff]
  %v36 = vld [vmem:[%s0 + $0x48] sm:$0xff]
  %v37 = vld [vmem:[%s0 + $0x50] sm:$0xf]
  %v49 = vcombine.high %v27, %v27
  %v50 = vcombine.high %v28, %v28
  %v51 = vcombine.high %v29, %v29
  %v52 = vcombine.high %v30, %v30
  %v53 = vcombine.high %v31, %v31
  %v54 = vcombine.high %v32, %v32
  %v55 = vcombine.high %v33, %v33
  %v56 = vcombine.high %v34, %v34
  %v57 = vcombine.high %v35, %v35
  %v58 = vcombine.high %v36, %v36
  %59 = vrot.lane.b32.xlu0 %v27, 127
  %v60 = vpop.permute.xlu0 %59
  %61 = vrot.lane.b32.xlu0 %v49, 127
  %v62 = vpop.permute.xlu0 %61
  %63 = vrot.lane.b32.xlu0 %v28, 127
  %v64 = vpop.permute.xlu0 %63
  %65 = vrot.lane.b32.xlu0 %v50, 127
  %v66 = vpop.permute.xlu0 %65
  %67 = vrot.lane.b32.xlu0 %v29, 127
  %v68 = vpop.permute.xlu0 %67
  %69 = vrot.lane.b32.xlu0 %v51, 127
  %v70 = vpop.permute.xlu0 %69
  %71 = vrot.lane.b32.xlu0 %v30, 127
  %v72 = vpop.permute.xlu0 %71
  %73 = vrot.lane.b32.xlu0 %v52, 127
  %v74 = vpop.permute.xlu0 %73
  %75 = vrot.lane.b32.xlu0 %v31, 127
  %v76 = vpop.permute.xlu0 %75
  %77 = vrot.lane.b32.xlu0 %v53, 127
  %v78 = vpop.permute.xlu0 %77
  %79 = vrot.lane.b32.xlu0 %v32, 127
  %v80 = vpop.permute.xlu0 %79
  %81 = vrot.lane.b32.xlu0 %v54, 127
  %v82 = vpop.permute.xlu0 %81
  %83 = vrot.lane.b32.xlu0 %v33, 127
  %v84 = vpop.permute.xlu0 %83
  %85 = vrot.lane.b32.xlu0 %v55, 127
  %v86 = vpop.permute.xlu0 %85
  %87 = vrot.lane.b32.xlu0 %v34, 127
  %v88 = vpop.permute.xlu0 %87
  %89 = vrot.lane.b32.xlu0 %v56, 127
  %v90 = vpop.permute.xlu0 %89
  %91 = vrot.lane.b32.xlu0 %v35, 127
  %v92 = vpop.permute.xlu0 %91
  %93 = vrot.lane.b32.xlu0 %v57, 127
  %v94 = vpop.permute.xlu0 %93
  %95 = vrot.lane.b32.xlu0 %v36, 127
  %v96 = vpop.permute.xlu0 %95
  %97 = vrot.lane.b32.xlu0 %v58, 127
  %v98 = vpop.permute.xlu0 %97
  %99 = vrot.lane.b32.xlu0 %v37, 127
  %v100 = vpop.permute.xlu0 %99
  %vm101 = vcmask 1039360
  %v102 = vsel %vm101, %v60, %v62
  %v103 = vsel %vm101, %v62, %v64
  %v104 = vsel %vm101, %v64, %v66
  %v105 = vsel %vm101, %v66, %v68
  %v106 = vsel %vm101, %v68, %v70
  %v107 = vsel %vm101, %v70, %v72
  %v108 = vsel %vm101, %v72, %v74
  %v109 = vsel %vm101, %v74, %v76
  %v110 = vsel %vm101, %v76, %v78
  %v111 = vsel %vm101, %v78, %v80
  %v112 = vsel %vm101, %v80, %v82
  %v113 = vsel %vm101, %v82, %v84
  %v114 = vsel %vm101, %v84, %v86
  %v115 = vsel %vm101, %v86, %v88
  %v116 = vsel %vm101, %v88, %v90
  %v117 = vsel %vm101, %v90, %v92
  %v118 = vsel %vm101, %v92, %v94
  %v119 = vsel %vm101, %v94, %v96
  %v120 = vsel %vm101, %v96, %v98
  %v121 = vsel %vm101, %v98, %v100
  %vm122 = vcmask 31744
  %v124 = vsel %vm122, %v26, 0
  %vm126 = vcmask 1043456
  %v127 = vsel %vm126, %v102, 0
  %v129 = vsel %vm126, %v103, 0
  %v131 = vsel %vm126, %v104, 0
  %v133 = vsel %vm126, %v105, 0
  %v135 = vsel %vm126, %v106, 0
  %v137 = vsel %vm126, %v107, 0
  %v139 = vsel %vm126, %v108, 0
  %v141 = vsel %vm126, %v109, 0
  %v143 = vsel %vm126, %v110, 0
  %v145 = vsel %vm126, %v111, 0
  %v147 = vsel %vm126, %v112, 0
  %v149 = vsel %vm126, %v113, 0
  %v151 = vsel %vm126, %v114, 0
  %v153 = vsel %vm126, %v115, 0
  %v155 = vsel %vm126, %v116, 0
  %v157 = vsel %vm126, %v117, 0
  %v159 = vsel %vm126, %v118, 0
  %v161 = vsel %vm126, %v119, 0
  %v163 = vsel %vm126, %v120, 0
  %v165 = vsel %vm126, %v121, 0
  %167 = vmatprep.subr.mxu0 0.0
  %168 = vmatpush1.msra.mxu0 0.0
  %169 = vmatprep.subr.mxu0 0.0
  %170 = vmatpush1.msra.mxu0 0.0
  %171 = vmatprep.subr.mxu0 0.0
  %172 = vmatpush1.msra.mxu0 0.0
  %173 = vmatprep.subr.mxu0 0.0
  %174 = vmatpush1.msra.mxu0 0.0
  %175 = vmatprep.subr.mxu0 0.0
  %176 = vmatpush1.msra.mxu0 0.0
  %177 = vmatprep.subr.mxu0 0.0
  %178 = vmatpush1.msra.mxu0 0.0
  %179 = vmatprep.subr.mxu0 0.0
  %180 = vmatpush1.msra.mxu0 0.0
  %181 = vmatprep.subr.mxu0 0.0
  %182 = vmatpush1.msra.mxu0 0.0
  %183 = vmatprep.subr.mxu0 0.0
  %184 = vmatpush1.msra.mxu0 0.0
  %185 = vmatprep.subr.mxu0 0.0
  %186 = vmatpush1.msra.mxu0 0.0
  %187 = vmatprep.subr.mxu0 0.0
  %188 = vmatpush1.msra.mxu0 0.0
  %189 = vmatprep.subr.mxu0 0.0
  %190 = vmatpush1.msra.mxu0 0.0
  %191 = vmatprep.subr.mxu0 0.0
  %192 = vmatpush1.msra.mxu0 0.0
  %193 = vmatprep.subr.mxu0 0.0
  %194 = vmatpush1.msra.mxu0 0.0
  %195 = vmatprep.subr.mxu0 0.0
  %196 = vmatpush1.msra.mxu0 0.0
  %197 = vmatprep.subr.mxu0 %v129
  %198 = vmatpush1.msra.mxu0 %v127
  %199 = vmatprep.subr.mxu0 0.0
  %200 = vmatpush2.msra.mxu0 0.0
  %201 = vmatprep.subr.mxu0 0.0
  %202 = vmatpush2.msra.mxu0 0.0
  %203 = vmatprep.subr.mxu0 0.0
  %204 = vmatpush2.msra.mxu0 0.0
  %205 = vmatprep.subr.mxu0 0.0
  %206 = vmatpush2.msra.mxu0 0.0
  %207 = vmatprep.subr.mxu0 0.0
  %208 = vmatpush2.msra.mxu0 0.0
  %209 = vmatprep.subr.mxu0 0.0
  %210 = vmatpush2.msra.mxu0 0.0
  %211 = vmatprep.subr.mxu0 0.0
  %212 = vmatpush2.msra.mxu0 0.0
  %213 = vmatprep.subr.mxu0 0.0
  %214 = vmatpush2.msra.mxu0 0.0
  %215 = vmatprep.subr.mxu0 0.0
  %216 = vmatpush2.msra.mxu0 0.0
  %217 = vmatprep.subr.mxu0 0.0
  %218 = vmatpush2.msra.mxu0 0.0
  %219 = vmatprep.subr.mxu0 0.0
  %220 = vmatpush2.msra.mxu0 0.0
  %221 = vmatprep.subr.mxu0 0.0
  %222 = vmatpush2.msra.mxu0 0.0
  %223 = vmatprep.subr.mxu0 0.0
  %224 = vmatpush2.msra.mxu0 0.0
  %225 = vmatprep.subr.mxu0 0.0
  %226 = vmatpush2.msra.mxu0 0.0
  %227 = vmatprep.subr.mxu0 0.0
  %228 = vmatpush2.msra.mxu0 0.0
  %229 = vmatprep.subr.mxu0 0.0
  %230 = vmatpush2.msra.mxu0 0.0
  %231 = vmatprep.mubr.f32.mxu0 0.0
  %232 = vmatmul.mubr.f32.gmra.mxu0 %v124
  %v233 = vpop.f32.mrf.mxu0
  %v234 = vadd.f32 0.0, %v233
  %v235 = vpop.f32.mrf.mxu0
  %v236 = vadd.f32 0.0, %v235
  %237 = vdwg.mxu0
  %238 = vmatprep.subr.mxu0 0.0
  %239 = vmatpush1.msra.mxu0 0.0
  %240 = vmatprep.subr.mxu0 0.0
  %241 = vmatpush1.msra.mxu0 0.0
  %242 = vmatprep.subr.mxu0 0.0
  %243 = vmatpush1.msra.mxu0 0.0
  %244 = vmatprep.subr.mxu0 0.0
  %245 = vmatpush1.msra.mxu0 0.0
  %246 = vmatprep.subr.mxu0 0.0
  %247 = vmatpush1.msra.mxu0 0.0
  %248 = vmatprep.subr.mxu0 0.0
  %249 = vmatpush1.msra.mxu0 0.0
  %250 = vmatprep.subr.mxu0 0.0
  %251 = vmatpush1.msra.mxu0 0.0
  %252 = vmatprep.subr.mxu0 0.0
  %253 = vmatpush1.msra.mxu0 0.0
  %254 = vmatprep.subr.mxu0 0.0
  %255 = vmatpush1.msra.mxu0 0.0
  %256 = vmatprep.subr.mxu0 0.0
  %257 = vmatpush1.msra.mxu0 0.0
  %258 = vmatprep.subr.mxu0 0.0
  %259 = vmatpush1.msra.mxu0 0.0
  %260 = vmatprep.subr.mxu0 0.0
  %261 = vmatpush1.msra.mxu0 0.0
  %262 = vmatprep.subr.mxu0 0.0
  %263 = vmatpush1.msra.mxu0 0.0
  %264 = vmatprep.subr.mxu0 0.0
  %265 = vmatpush1.msra.mxu0 0.0
  %266 = vmatprep.subr.mxu0 0.0
  %267 = vmatpush1.msra.mxu0 0.0
  %268 = vmatprep.subr.mxu0 %v133
  %269 = vmatpush1.msra.mxu0 %v131
  %270 = vmatprep.subr.mxu0 0.0
  %271 = vmatpush2.msra.mxu0 0.0
  %272 = vmatprep.subr.mxu0 0.0
  %273 = vmatpush2.msra.mxu0 0.0
  %274 = vmatprep.subr.mxu0 0.0
  %275 = vmatpush2.msra.mxu0 0.0
  %276 = vmatprep.subr.mxu0 0.0
  %277 = vmatpush2.msra.mxu0 0.0
  %278 = vmatprep.subr.mxu0 0.0
  %279 = vmatpush2.msra.mxu0 0.0
  %280 = vmatprep.subr.mxu0 0.0
  %281 = vmatpush2.msra.mxu0 0.0
  %282 = vmatprep.subr.mxu0 0.0
  %283 = vmatpush2.msra.mxu0 0.0
  %284 = vmatprep.subr.mxu0 0.0
  %285 = vmatpush2.msra.mxu0 0.0
  %286 = vmatprep.subr.mxu0 0.0
  %287 = vmatpush2.msra.mxu0 0.0
  %288 = vmatprep.subr.mxu0 0.0
  %289 = vmatpush2.msra.mxu0 0.0
  %290 = vmatprep.subr.mxu0 0.0
  %291 = vmatpush2.msra.mxu0 0.0
  %292 = vmatprep.subr.mxu0 0.0
  %293 = vmatpush2.msra.mxu0 0.0
  %294 = vmatprep.subr.mxu0 0.0
  %295 = vmatpush2.msra.mxu0 0.0
  %296 = vmatprep.subr.mxu0 0.0
  %297 = vmatpush2.msra.mxu0 0.0
  %298 = vmatprep.subr.mxu0 0.0
  %299 = vmatpush2.msra.mxu0 0.0
  %300 = vmatprep.subr.mxu0 0.0
  %301 = vmatpush2.msra.mxu0 0.0
  %302 = vmatprep.mubr.f32.mxu0 0.0
  %303 = vmatmul.mubr.f32.gmra.mxu0 %v124
  %v304 = vpop.f32.mrf.mxu0
  %v305 = vadd.f32 0.0, %v304
  %v306 = vpop.f32.mrf.mxu0
  %v307 = vadd.f32 0.0, %v306
  %308 = vdwg.mxu0
  %309 = vmatprep.subr.mxu0 0.0
  %310 = vmatpush1.msra.mxu0 0.0
  %311 = vmatprep.subr.mxu0 0.0
  %312 = vmatpush1.msra.mxu0 0.0
  %313 = vmatprep.subr.mxu0 0.0
  %314 = vmatpush1.msra.mxu0 0.0
  %315 = vmatprep.subr.mxu0 0.0
  %316 = vmatpush1.msra.mxu0 0.0
  %317 = vmatprep.subr.mxu0 0.0
  %318 = vmatpush1.msra.mxu0 0.0
  %319 = vmatprep.subr.mxu0 0.0
  %320 = vmatpush1.msra.mxu0 0.0
  %321 = vmatprep.subr.mxu0 0.0
  %322 = vmatpush1.msra.mxu0 0.0
  %323 = vmatprep.subr.mxu0 0.0
  %324 = vmatpush1.msra.mxu0 0.0
  %325 = vmatprep.subr.mxu0 0.0
  %326 = vmatpush1.msra.mxu0 0.0
  %327 = vmatprep.subr.mxu0 0.0
  %328 = vmatpush1.msra.mxu0 0.0
  %329 = vmatprep.subr.mxu0 0.0
  %330 = vmatpush1.msra.mxu0 0.0
  %331 = vmatprep.subr.mxu0 0.0
  %332 = vmatpush1.msra.mxu0 0.0
  %333 = vmatprep.subr.mxu0 0.0
  %334 = vmatpush1.msra.mxu0 0.0
  %335 = vmatprep.subr.mxu0 0.0
  %336 = vmatpush1.msra.mxu0 0.0
  %337 = vmatprep.subr.mxu0 0.0
  %338 = vmatpush1.msra.mxu0 0.0
  %339 = vmatprep.subr.mxu0 %v137
  %340 = vmatpush1.msra.mxu0 %v135
  %341 = vmatprep.subr.mxu0 0.0
  %342 = vmatpush2.msra.mxu0 0.0
  %343 = vmatprep.subr.mxu0 0.0
  %344 = vmatpush2.msra.mxu0 0.0
  %345 = vmatprep.subr.mxu0 0.0
  %346 = vmatpush2.msra.mxu0 0.0
  %347 = vmatprep.subr.mxu0 0.0
  %348 = vmatpush2.msra.mxu0 0.0
  %349 = vmatprep.subr.mxu0 0.0
  %350 = vmatpush2.msra.mxu0 0.0
  %351 = vmatprep.subr.mxu0 0.0
  %352 = vmatpush2.msra.mxu0 0.0
  %353 = vmatprep.subr.mxu0 0.0
  %354 = vmatpush2.msra.mxu0 0.0
  %355 = vmatprep.subr.mxu0 0.0
  %356 = vmatpush2.msra.mxu0 0.0
  %357 = vmatprep.subr.mxu0 0.0
  %358 = vmatpush2.msra.mxu0 0.0
  %359 = vmatprep.subr.mxu0 0.0
  %360 = vmatpush2.msra.mxu0 0.0
  %361 = vmatprep.subr.mxu0 0.0
  %362 = vmatpush2.msra.mxu0 0.0
  %363 = vmatprep.subr.mxu0 0.0
  %364 = vmatpush2.msra.mxu0 0.0
  %365 = vmatprep.subr.mxu0 0.0
  %366 = vmatpush2.msra.mxu0 0.0
  %367 = vmatprep.subr.mxu0 0.0
  %368 = vmatpush2.msra.mxu0 0.0
  %369 = vmatprep.subr.mxu0 0.0
  %370 = vmatpush2.msra.mxu0 0.0
  %371 = vmatprep.subr.mxu0 0.0
  %372 = vmatpush2.msra.mxu0 0.0
  %373 = vmatprep.mubr.f32.mxu0 0.0
  %374 = vmatmul.mubr.f32.gmra.mxu0 %v124
  %v375 = vpop.f32.mrf.mxu0
  %v376 = vadd.f32 0.0, %v375
  %v377 = vpop.f32.mrf.mxu0
  %v378 = vadd.f32 0.0, %v377
  %379 = vdwg.mxu0
  %380 = vmatprep.subr.mxu0 0.0
  %381 = vmatpush1.msra.mxu0 0.0
  %382 = vmatprep.subr.mxu0 0.0
  %383 = vmatpush1.msra.mxu0 0.0
  %384 = vmatprep.subr.mxu0 0.0
  %385 = vmatpush1.msra.mxu0 0.0
  %386 = vmatprep.subr.mxu0 0.0
  %387 = vmatpush1.msra.mxu0 0.0
  %388 = vmatprep.subr.mxu0 0.0
  %389 = vmatpush1.msra.mxu0 0.0
  %390 = vmatprep.subr.mxu0 0.0
  %391 = vmatpush1.msra.mxu0 0.0
  %392 = vmatprep.subr.mxu0 0.0
  %393 = vmatpush1.msra.mxu0 0.0
  %394 = vmatprep.subr.mxu0 0.0
  %395 = vmatpush1.msra.mxu0 0.0
  %396 = vmatprep.subr.mxu0 0.0
  %397 = vmatpush1.msra.mxu0 0.0
  %398 = vmatprep.subr.mxu0 0.0
  %399 = vmatpush1.msra.mxu0 0.0
  %400 = vmatprep.subr.mxu0 0.0
  %401 = vmatpush1.msra.mxu0 0.0
  %402 = vmatprep.subr.mxu0 0.0
  %403 = vmatpush1.msra.mxu0 0.0
  %404 = vmatprep.subr.mxu0 0.0
  %405 = vmatpush1.msra.mxu0 0.0
  %406 = vmatprep.subr.mxu0 0.0
  %407 = vmatpush1.msra.mxu0 0.0
  %408 = vmatprep.subr.mxu0 0.0
  %409 = vmatpush1.msra.mxu0 0.0
  %410 = vmatprep.subr.mxu0 %v141
  %411 = vmatpush1.msra.mxu0 %v139
  %412 = vmatprep.subr.mxu0 0.0
  %413 = vmatpush2.msra.mxu0 0.0
  %414 = vmatprep.subr.mxu0 0.0
  %415 = vmatpush2.msra.mxu0 0.0
  %416 = vmatprep.subr.mxu0 0.0
  %417 = vmatpush2.msra.mxu0 0.0
  %418 = vmatprep.subr.mxu0 0.0
  %419 = vmatpush2.msra.mxu0 0.0
  %420 = vmatprep.subr.mxu0 0.0
  %421 = vmatpush2.msra.mxu0 0.0
  %422 = vmatprep.subr.mxu0 0.0
  %423 = vmatpush2.msra.mxu0 0.0
  %424 = vmatprep.subr.mxu0 0.0
  %425 = vmatpush2.msra.mxu0 0.0
  %426 = vmatprep.subr.mxu0 0.0
  %427 = vmatpush2.msra.mxu0 0.0
  %428 = vmatprep.subr.mxu0 0.0
  %429 = vmatpush2.msra.mxu0 0.0
  %430 = vmatprep.subr.mxu0 0.0
  %431 = vmatpush2.msra.mxu0 0.0
  %432 = vmatprep.subr.mxu0 0.0
  %433 = vmatpush2.msra.mxu0 0.0
  %434 = vmatprep.subr.mxu0 0.0
  %435 = vmatpush2.msra.mxu0 0.0
  %436 = vmatprep.subr.mxu0 0.0
  %437 = vmatpush2.msra.mxu0 0.0
  %438 = vmatprep.subr.mxu0 0.0
  %439 = vmatpush2.msra.mxu0 0.0
  %440 = vmatprep.subr.mxu0 0.0
  %441 = vmatpush2.msra.mxu0 0.0
  %442 = vmatprep.subr.mxu0 0.0
  %443 = vmatpush2.msra.mxu0 0.0
  %444 = vmatprep.mubr.f32.mxu0 0.0
  %445 = vmatmul.mubr.f32.gmra.mxu0 %v124
  %v446 = vpop.f32.mrf.mxu0
  %v447 = vadd.f32 0.0, %v446
  %v448 = vpop.f32.mrf.mxu0
  %v449 = vadd.f32 0.0, %v448
  %450 = vdwg.mxu0
  %451 = vmatprep.subr.mxu0 0.0
  %452 = vmatpush1.msra.mxu0 0.0
  %453 = vmatprep.subr.mxu0 0.0
  %454 = vmatpush1.msra.mxu0 0.0
  %455 = vmatprep.subr.mxu0 0.0
  %456 = vmatpush1.msra.mxu0 0.0
  %457 = vmatprep.subr.mxu0 0.0
  %458 = vmatpush1.msra.mxu0 0.0
  %459 = vmatprep.subr.mxu0 0.0
  %460 = vmatpush1.msra.mxu0 0.0
  %461 = vmatprep.subr.mxu0 0.0
  %462 = vmatpush1.msra.mxu0 0.0
  %463 = vmatprep.subr.mxu0 0.0
  %464 = vmatpush1.msra.mxu0 0.0
  %465 = vmatprep.subr.mxu0 0.0
  %466 = vmatpush1.msra.mxu0 0.0
  %467 = vmatprep.subr.mxu0 0.0
  %468 = vmatpush1.msra.mxu0 0.0
  %469 = vmatprep.subr.mxu0 0.0
  %470 = vmatpush1.msra.mxu0 0.0
  %471 = vmatprep.subr.mxu0 0.0
  %472 = vmatpush1.msra.mxu0 0.0
  %473 = vmatprep.subr.mxu0 0.0
  %474 = vmatpush1.msra.mxu0 0.0
  %475 = vmatprep.subr.mxu0 0.0
  %476 = vmatpush1.msra.mxu0 0.0
  %477 = vmatprep.subr.mxu0 0.0
  %478 = vmatpush1.msra.mxu0 0.0
  %479 = vmatprep.subr.mxu0 0.0
  %480 = vmatpush1.msra.mxu0 0.0
  %481 = vmatprep.subr.mxu0 %v145
  %482 = vmatpush1.msra.mxu0 %v143
  %483 = vmatprep.subr.mxu0 0.0
  %484 = vmatpush2.msra.mxu0 0.0
  %485 = vmatprep.subr.mxu0 0.0
  %486 = vmatpush2.msra.mxu0 0.0
  %487 = vmatprep.subr.mxu0 0.0
  %488 = vmatpush2.msra.mxu0 0.0
  %489 = vmatprep.subr.mxu0 0.0
  %490 = vmatpush2.msra.mxu0 0.0
  %491 = vmatprep.subr.mxu0 0.0
  %492 = vmatpush2.msra.mxu0 0.0
  %493 = vmatprep.subr.mxu0 0.0
  %494 = vmatpush2.msra.mxu0 0.0
  %495 = vmatprep.subr.mxu0 0.0
  %496 = vmatpush2.msra.mxu0 0.0
  %497 = vmatprep.subr.mxu0 0.0
  %498 = vmatpush2.msra.mxu0 0.0
  %499 = vmatprep.subr.mxu0 0.0
  %500 = vmatpush2.msra.mxu0 0.0
  %501 = vmatprep.subr.mxu0 0.0
  %502 = vmatpush2.msra.mxu0 0.0
  %503 = vmatprep.subr.mxu0 0.0
  %504 = vmatpush2.msra.mxu0 0.0
  %505 = vmatprep.subr.mxu0 0.0
  %506 = vmatpush2.msra.mxu0 0.0
  %507 = vmatprep.subr.mxu0 0.0
  %508 = vmatpush2.msra.mxu0 0.0
  %509 = vmatprep.subr.mxu0 0.0
  %510 = vmatpush2.msra.mxu0 0.0
  %511 = vmatprep.subr.mxu0 0.0
  %512 = vmatpush2.msra.mxu0 0.0
  %513 = vmatprep.subr.mxu0 0.0
  %514 = vmatpush2.msra.mxu0 0.0
  %515 = vmatprep.mubr.f32.mxu0 0.0
  %516 = vmatmul.mubr.f32.gmra.mxu0 %v124
  %v517 = vpop.f32.mrf.mxu0
  %v518 = vadd.f32 0.0, %v517
  %v519 = vpop.f32.mrf.mxu0
  %v520 = vadd.f32 0.0, %v519
  %521 = vdwg.mxu0
  %522 = vmatprep.subr.mxu0 0.0
  %523 = vmatpush1.msra.mxu0 0.0
  %524 = vmatprep.subr.mxu0 0.0
  %525 = vmatpush1.msra.mxu0 0.0
  %526 = vmatprep.subr.mxu0 0.0
  %527 = vmatpush1.msra.mxu0 0.0
  %528 = vmatprep.subr.mxu0 0.0
  %529 = vmatpush1.msra.mxu0 0.0
  %530 = vmatprep.subr.mxu0 0.0
  %531 = vmatpush1.msra.mxu0 0.0
  %532 = vmatprep.subr.mxu0 0.0
  %533 = vmatpush1.msra.mxu0 0.0
  %534 = vmatprep.subr.mxu0 0.0
  %535 = vmatpush1.msra.mxu0 0.0
  %536 = vmatprep.subr.mxu0 0.0
  %537 = vmatpush1.msra.mxu0 0.0
  %538 = vmatprep.subr.mxu0 0.0
  %539 = vmatpush1.msra.mxu0 0.0
  %540 = vmatprep.subr.mxu0 0.0
  %541 = vmatpush1.msra.mxu0 0.0
  %542 = vmatprep.subr.mxu0 0.0
  %543 = vmatpush1.msra.mxu0 0.0
  %544 = vmatprep.subr.mxu0 0.0
  %545 = vmatpush1.msra.mxu0 0.0
  %546 = vmatprep.subr.mxu0 0.0
  %547 = vmatpush1.msra.mxu0 0.0
  %548 = vmatprep.subr.mxu0 0.0
  %549 = vmatpush1.msra.mxu0 0.0
  %550 = vmatprep.subr.mxu0 0.0
  %551 = vmatpush1.msra.mxu0 0.0
  %552 = vmatprep.subr.mxu0 %v149
  %553 = vmatpush1.msra.mxu0 %v147
  %554 = vmatprep.subr.mxu0 0.0
  %555 = vmatpush2.msra.mxu0 0.0
  %556 = vmatprep.subr.mxu0 0.0
  %557 = vmatpush2.msra.mxu0 0.0
  %558 = vmatprep.subr.mxu0 0.0
  %559 = vmatpush2.msra.mxu0 0.0
  %560 = vmatprep.subr.mxu0 0.0
  %561 = vmatpush2.msra.mxu0 0.0
  %562 = vmatprep.subr.mxu0 0.0
  %563 = vmatpush2.msra.mxu0 0.0
  %564 = vmatprep.subr.mxu0 0.0
  %565 = vmatpush2.msra.mxu0 0.0
  %566 = vmatprep.subr.mxu0 0.0
  %567 = vmatpush2.msra.mxu0 0.0
  %568 = vmatprep.subr.mxu0 0.0
  %569 = vmatpush2.msra.mxu0 0.0
  %570 = vmatprep.subr.mxu0 0.0
  %571 = vmatpush2.msra.mxu0 0.0
  %572 = vmatprep.subr.mxu0 0.0
  %573 = vmatpush2.msra.mxu0 0.0
  %574 = vmatprep.subr.mxu0 0.0
  %575 = vmatpush2.msra.mxu0 0.0
  %576 = vmatprep.subr.mxu0 0.0
  %577 = vmatpush2.msra.mxu0 0.0
  %578 = vmatprep.subr.mxu0 0.0
  %579 = vmatpush2.msra.mxu0 0.0
  %580 = vmatprep.subr.mxu0 0.0
  %581 = vmatpush2.msra.mxu0 0.0
  %582 = vmatprep.subr.mxu0 0.0
  %583 = vmatpush2.msra.mxu0 0.0
  %584 = vmatprep.subr.mxu0 0.0
  %585 = vmatpush2.msra.mxu0 0.0
  %586 = vmatprep.mubr.f32.mxu0 0.0
  %587 = vmatmul.mubr.f32.gmra.mxu0 %v124
  %v588 = vpop.f32.mrf.mxu0
  %v589 = vadd.f32 0.0, %v588
  %v590 = vpop.f32.mrf.mxu0
  %v591 = vadd.f32 0.0, %v590
  %592 = vdwg.mxu0
  %593 = vmatprep.subr.mxu0 0.0
  %594 = vmatpush1.msra.mxu0 0.0
  %595 = vmatprep.subr.mxu0 0.0
  %596 = vmatpush1.msra.mxu0 0.0
  %597 = vmatprep.subr.mxu0 0.0
  %598 = vmatpush1.msra.mxu0 0.0
  %599 = vmatprep.subr.mxu0 0.0
  %600 = vmatpush1.msra.mxu0 0.0
  %601 = vmatprep.subr.mxu0 0.0
  %602 = vmatpush1.msra.mxu0 0.0
  %603 = vmatprep.subr.mxu0 0.0
  %604 = vmatpush1.msra.mxu0 0.0
  %605 = vmatprep.subr.mxu0 0.0
  %606 = vmatpush1.msra.mxu0 0.0
  %607 = vmatprep.subr.mxu0 0.0
  %608 = vmatpush1.msra.mxu0 0.0
  %609 = vmatprep.subr.mxu0 0.0
  %610 = vmatpush1.msra.mxu0 0.0
  %611 = vmatprep.subr.mxu0 0.0
  %612 = vmatpush1.msra.mxu0 0.0
  %613 = vmatprep.subr.mxu0 0.0
  %614 = vmatpush1.msra.mxu0 0.0
  %615 = vmatprep.subr.mxu0 0.0
  %616 = vmatpush1.msra.mxu0 0.0
  %617 = vmatprep.subr.mxu0 0.0
  %618 = vmatpush1.msra.mxu0 0.0
  %619 = vmatprep.subr.mxu0 0.0
  %620 = vmatpush1.msra.mxu0 0.0
  %621 = vmatprep.subr.mxu0 0.0
  %622 = vmatpush1.msra.mxu0 0.0
  %623 = vmatprep.subr.mxu0 %v153
  %624 = vmatpush1.msra.mxu0 %v151
  %625 = vmatprep.subr.mxu0 0.0
  %626 = vmatpush2.msra.mxu0 0.0
  %627 = vmatprep.subr.mxu0 0.0
  %628 = vmatpush2.msra.mxu0 0.0
  %629 = vmatprep.subr.mxu0 0.0
  %630 = vmatpush2.msra.mxu0 0.0
  %631 = vmatprep.subr.mxu0 0.0
  %632 = vmatpush2.msra.mxu0 0.0
  %633 = vmatprep.subr.mxu0 0.0
  %634 = vmatpush2.msra.mxu0 0.0
  %635 = vmatprep.subr.mxu0 0.0
  %636 = vmatpush2.msra.mxu0 0.0
  %637 = vmatprep.subr.mxu0 0.0
  %638 = vmatpush2.msra.mxu0 0.0
  %639 = vmatprep.subr.mxu0 0.0
  %640 = vmatpush2.msra.mxu0 0.0
  %641 = vmatprep.subr.mxu0 0.0
  %642 = vmatpush2.msra.mxu0 0.0
  %643 = vmatprep.subr.mxu0 0.0
  %644 = vmatpush2.msra.mxu0 0.0
  %645 = vmatprep.subr.mxu0 0.0
  %646 = vmatpush2.msra.mxu0 0.0
  %647 = vmatprep.subr.mxu0 0.0
  %648 = vmatpush2.msra.mxu0 0.0
  %649 = vmatprep.subr.mxu0 0.0
  %650 = vmatpush2.msra.mxu0 0.0
  %651 = vmatprep.subr.mxu0 0.0
  %652 = vmatpush2.msra.mxu0 0.0
  %653 = vmatprep.subr.mxu0 0.0
  %654 = vmatpush2.msra.mxu0 0.0
  %655 = vmatprep.subr.mxu0 0.0
  %656 = vmatpush2.msra.mxu0 0.0
  %657 = vmatprep.mubr.f32.mxu0 0.0
  %658 = vmatmul.mubr.f32.gmra.mxu0 %v124
  %v659 = vpop.f32.mrf.mxu0
  %v660 = vadd.f32 0.0, %v659
  %v661 = vpop.f32.mrf.mxu0
  %v662 = vadd.f32 0.0, %v661
  %663 = vdwg.mxu0
  %664 = vmatprep.subr.mxu0 0.0
  %665 = vmatpush1.msra.mxu0 0.0
  %666 = vmatprep.subr.mxu0 0.0
  %667 = vmatpush1.msra.mxu0 0.0
  %668 = vmatprep.subr.mxu0 0.0
  %669 = vmatpush1.msra.mxu0 0.0
  %670 = vmatprep.subr.mxu0 0.0
  %671 = vmatpush1.msra.mxu0 0.0
  %672 = vmatprep.subr.mxu0 0.0
  %673 = vmatpush1.msra.mxu0 0.0
  %674 = vmatprep.subr.mxu0 0.0
  %675 = vmatpush1.msra.mxu0 0.0
  %676 = vmatprep.subr.mxu0 0.0
  %677 = vmatpush1.msra.mxu0 0.0
  %678 = vmatprep.subr.mxu0 0.0
  %679 = vmatpush1.msra.mxu0 0.0
  %680 = vmatprep.subr.mxu0 0.0
  %681 = vmatpush1.msra.mxu0 0.0
  %682 = vmatprep.subr.mxu0 0.0
  %683 = vmatpush1.msra.mxu0 0.0
  %684 = vmatprep.subr.mxu0 0.0
  %685 = vmatpush1.msra.mxu0 0.0
  %686 = vmatprep.subr.mxu0 0.0
  %687 = vmatpush1.msra.mxu0 0.0
  %688 = vmatprep.subr.mxu0 0.0
  %689 = vmatpush1.msra.mxu0 0.0
  %690 = vmatprep.subr.mxu0 0.0
  %691 = vmatpush1.msra.mxu0 0.0
  %692 = vmatprep.subr.mxu0 0.0
  %693 = vmatpush1.msra.mxu0 0.0
  %694 = vmatprep.subr.mxu0 %v157
  %695 = vmatpush1.msra.mxu0 %v155
  %696 = vmatprep.subr.mxu0 0.0
  %697 = vmatpush2.msra.mxu0 0.0
  %698 = vmatprep.subr.mxu0 0.0
  %699 = vmatpush2.msra.mxu0 0.0
  %700 = vmatprep.subr.mxu0 0.0
  %701 = vmatpush2.msra.mxu0 0.0
  %702 = vmatprep.subr.mxu0 0.0
  %703 = vmatpush2.msra.mxu0 0.0
  %704 = vmatprep.subr.mxu0 0.0
  %705 = vmatpush2.msra.mxu0 0.0
  %706 = vmatprep.subr.mxu0 0.0
  %707 = vmatpush2.msra.mxu0 0.0
  %708 = vmatprep.subr.mxu0 0.0
  %709 = vmatpush2.msra.mxu0 0.0
  %710 = vmatprep.subr.mxu0 0.0
  %711 = vmatpush2.msra.mxu0 0.0
  %712 = vmatprep.subr.mxu0 0.0
  %713 = vmatpush2.msra.mxu0 0.0
  %714 = vmatprep.subr.mxu0 0.0
  %715 = vmatpush2.msra.mxu0 0.0
  %716 = vmatprep.subr.mxu0 0.0
  %717 = vmatpush2.msra.mxu0 0.0
  %718 = vmatprep.subr.mxu0 0.0
  %719 = vmatpush2.msra.mxu0 0.0
  %720 = vmatprep.subr.mxu0 0.0
  %721 = vmatpush2.msra.mxu0 0.0
  %722 = vmatprep.subr.mxu0 0.0
  %723 = vmatpush2.msra.mxu0 0.0
  %724 = vmatprep.subr.mxu0 0.0
  %725 = vmatpush2.msra.mxu0 0.0
  %726 = vmatprep.subr.mxu0 0.0
  %727 = vmatpush2.msra.mxu0 0.0
  %728 = vmatprep.mubr.f32.mxu0 0.0
  %729 = vmatmul.mubr.f32.gmra.mxu0 %v124
  %v730 = vpop.f32.mrf.mxu0
  %v731 = vadd.f32 0.0, %v730
  %v732 = vpop.f32.mrf.mxu0
  %v733 = vadd.f32 0.0, %v732
  %734 = vdwg.mxu0
  %735 = vmatprep.subr.mxu0 0.0
  %736 = vmatpush1.msra.mxu0 0.0
  %737 = vmatprep.subr.mxu0 0.0
  %738 = vmatpush1.msra.mxu0 0.0
  %739 = vmatprep.subr.mxu0 0.0
  %740 = vmatpush1.msra.mxu0 0.0
  %741 = vmatprep.subr.mxu0 0.0
  %742 = vmatpush1.msra.mxu0 0.0
  %743 = vmatprep.subr.mxu0 0.0
  %744 = vmatpush1.msra.mxu0 0.0
  %745 = vmatprep.subr.mxu0 0.0
  %746 = vmatpush1.msra.mxu0 0.0
  %747 = vmatprep.subr.mxu0 0.0
  %748 = vmatpush1.msra.mxu0 0.0
  %749 = vmatprep.subr.mxu0 0.0
  %750 = vmatpush1.msra.mxu0 0.0
  %751 = vmatprep.subr.mxu0 0.0
  %752 = vmatpush1.msra.mxu0 0.0
  %753 = vmatprep.subr.mxu0 0.0
  %754 = vmatpush1.msra.mxu0 0.0
  %755 = vmatprep.subr.mxu0 0.0
  %756 = vmatpush1.msra.mxu0 0.0
  %757 = vmatprep.subr.mxu0 0.0
  %758 = vmatpush1.msra.mxu0 0.0
  %759 = vmatprep.subr.mxu0 0.0
  %760 = vmatpush1.msra.mxu0 0.0
  %761 = vmatprep.subr.mxu0 0.0
  %762 = vmatpush1.msra.mxu0 0.0
  %763 = vmatprep.subr.mxu0 0.0
  %764 = vmatpush1.msra.mxu0 0.0
  %765 = vmatprep.subr.mxu0 %v161
  %766 = vmatpush1.msra.mxu0 %v159
  %767 = vmatprep.subr.mxu0 0.0
  %768 = vmatpush2.msra.mxu0 0.0
  %769 = vmatprep.subr.mxu0 0.0
  %770 = vmatpush2.msra.mxu0 0.0
  %771 = vmatprep.subr.mxu0 0.0
  %772 = vmatpush2.msra.mxu0 0.0
  %773 = vmatprep.subr.mxu0 0.0
  %774 = vmatpush2.msra.mxu0 0.0
  %775 = vmatprep.subr.mxu0 0.0
  %776 = vmatpush2.msra.mxu0 0.0
  %777 = vmatprep.subr.mxu0 0.0
  %778 = vmatpush2.msra.mxu0 0.0
  %779 = vmatprep.subr.mxu0 0.0
  %780 = vmatpush2.msra.mxu0 0.0
  %781 = vmatprep.subr.mxu0 0.0
  %782 = vmatpush2.msra.mxu0 0.0
  %783 = vmatprep.subr.mxu0 0.0
  %784 = vmatpush2.msra.mxu0 0.0
  %785 = vmatprep.subr.mxu0 0.0
  %786 = vmatpush2.msra.mxu0 0.0
  %787 = vmatprep.subr.mxu0 0.0
  %788 = vmatpush2.msra.mxu0 0.0
  %789 = vmatprep.subr.mxu0 0.0
  %790 = vmatpush2.msra.mxu0 0.0
  %791 = vmatprep.subr.mxu0 0.0
  %792 = vmatpush2.msra.mxu0 0.0
  %793 = vmatprep.subr.mxu0 0.0
  %794 = vmatpush2.msra.mxu0 0.0
  %795 = vmatprep.subr.mxu0 0.0
  %796 = vmatpush2.msra.mxu0 0.0
  %797 = vmatprep.subr.mxu0 0.0
  %798 = vmatpush2.msra.mxu0 0.0
  %799 = vmatprep.mubr.f32.mxu0 0.0
  %800 = vmatmul.mubr.f32.gmra.mxu0 %v124
  %v801 = vpop.f32.mrf.mxu0
  %v802 = vadd.f32 0.0, %v801
  %v803 = vpop.f32.mrf.mxu0
  %v804 = vadd.f32 0.0, %v803
  %805 = vdwg.mxu0
  %806 = vmatprep.subr.mxu0 0.0
  %807 = vmatpush1.msra.mxu0 0.0
  %808 = vmatprep.subr.mxu0 0.0
  %809 = vmatpush1.msra.mxu0 0.0
  %810 = vmatprep.subr.mxu0 0.0
  %811 = vmatpush1.msra.mxu0 0.0
  %812 = vmatprep.subr.mxu0 0.0
  %813 = vmatpush1.msra.mxu0 0.0
  %814 = vmatprep.subr.mxu0 0.0
  %815 = vmatpush1.msra.mxu0 0.0
  %816 = vmatprep.subr.mxu0 0.0
  %817 = vmatpush1.msra.mxu0 0.0
  %818 = vmatprep.subr.mxu0 0.0
  %819 = vmatpush1.msra.mxu0 0.0
  %820 = vmatprep.subr.mxu0 0.0
  %821 = vmatpush1.msra.mxu0 0.0
  %822 = vmatprep.subr.mxu0 0.0
  %823 = vmatpush1.msra.mxu0 0.0
  %824 = vmatprep.subr.mxu0 0.0
  %825 = vmatpush1.msra.mxu0 0.0
  %826 = vmatprep.subr.mxu0 0.0
  %827 = vmatpush1.msra.mxu0 0.0
  %828 = vmatprep.subr.mxu0 0.0
  %829 = vmatpush1.msra.mxu0 0.0
  %830 = vmatprep.subr.mxu0 0.0
  %831 = vmatpush1.msra.mxu0 0.0
  %832 = vmatprep.subr.mxu0 0.0
  %833 = vmatpush1.msra.mxu0 0.0
  %834 = vmatprep.subr.mxu0 0.0
  %835 = vmatpush1.msra.mxu0 0.0
  %836 = vmatprep.subr.mxu0 %v165
  %837 = vmatpush1.msra.mxu0 %v163
  %838 = vmatprep.subr.mxu0 0.0
  %839 = vmatpush2.msra.mxu0 0.0
  %840 = vmatprep.subr.mxu0 0.0
  %841 = vmatpush2.msra.mxu0 0.0
  %842 = vmatprep.subr.mxu0 0.0
  %843 = vmatpush2.msra.mxu0 0.0
  %844 = vmatprep.subr.mxu0 0.0
  %845 = vmatpush2.msra.mxu0 0.0
  %846 = vmatprep.subr.mxu0 0.0
  %847 = vmatpush2.msra.mxu0 0.0
  %848 = vmatprep.subr.mxu0 0.0
  %849 = vmatpush2.msra.mxu0 0.0
  %850 = vmatprep.subr.mxu0 0.0
  %851 = vmatpush2.msra.mxu0 0.0
  %852 = vmatprep.subr.mxu0 0.0
  %853 = vmatpush2.msra.mxu0 0.0
  %854 = vmatprep.subr.mxu0 0.0
  %855 = vmatpush2.msra.mxu0 0.0
  %856 = vmatprep.subr.mxu0 0.0
  %857 = vmatpush2.msra.mxu0 0.0
  %858 = vmatprep.subr.mxu0 0.0
  %859 = vmatpush2.msra.mxu0 0.0
  %860 = vmatprep.subr.mxu0 0.0
  %861 = vmatpush2.msra.mxu0 0.0
  %862 = vmatprep.subr.mxu0 0.0
  %863 = vmatpush2.msra.mxu0 0.0
  %864 = vmatprep.subr.mxu0 0.0
  %865 = vmatpush2.msra.mxu0 0.0
  %866 = vmatprep.subr.mxu0 0.0
  %867 = vmatpush2.msra.mxu0 0.0
  %868 = vmatprep.subr.mxu0 0.0
  %869 = vmatpush2.msra.mxu0 0.0
  %870 = vmatprep.mubr.f32.mxu0 0.0
  %871 = vmatmul.mubr.f32.gmra.mxu0 %v124
  %v872 = vpop.f32.mrf.mxu0
  %v873 = vadd.f32 0.0, %v872
  %v874 = vpop.f32.mrf.mxu0
  %v875 = vadd.f32 0.0, %v874
  %876 = vdwg.mxu0
  %v887 = vcombine.high %v15, %v15
  %v888 = vcombine.high %v16, %v16
  %v889 = vcombine.high %v17, %v17
  %v890 = vcombine.high %v18, %v18
  %v891 = vcombine.high %v19, %v19
  %v892 = vcombine.high %v20, %v20
  %v893 = vcombine.high %v21, %v21
  %v894 = vcombine.high %v22, %v22
  %v895 = vcombine.high %v23, %v23
  %v896 = vcombine.high %v24, %v24
  %v898 = vsel %vm122, %v14, 0
  %v900 = vsel %vm126, %v15, 0
  %v902 = vsel %vm126, %v887, 0
  %v904 = vsel %vm126, %v16, 0
  %v906 = vsel %vm126, %v888, 0
  %v908 = vsel %vm126, %v17, 0
  %v910 = vsel %vm126, %v889, 0
  %v912 = vsel %vm126, %v18, 0
  %v914 = vsel %vm126, %v890, 0
  %v916 = vsel %vm126, %v19, 0
  %v918 = vsel %vm126, %v891, 0
  %v920 = vsel %vm126, %v20, 0
  %v922 = vsel %vm126, %v892, 0
  %v924 = vsel %vm126, %v21, 0
  %v926 = vsel %vm126, %v893, 0
  %v928 = vsel %vm126, %v22, 0
  %v930 = vsel %vm126, %v894, 0
  %v932 = vsel %vm126, %v23, 0
  %v934 = vsel %vm126, %v895, 0
  %v936 = vsel %vm126, %v24, 0
  %v938 = vsel %vm126, %v896, 0
  %940 = vmatprep.subr.mxu0 0.0
  %941 = vmatpush1.msra.mxu0 0.0
  %942 = vmatprep.subr.mxu0 0.0
  %943 = vmatpush1.msra.mxu0 0.0
  %944 = vmatprep.subr.mxu0 0.0
  %945 = vmatpush1.msra.mxu0 0.0
  %946 = vmatprep.subr.mxu0 0.0
  %947 = vmatpush1.msra.mxu0 0.0
  %948 = vmatprep.subr.mxu0 0.0
  %949 = vmatpush1.msra.mxu0 0.0
  %950 = vmatprep.subr.mxu0 0.0
  %951 = vmatpush1.msra.mxu0 0.0
  %952 = vmatprep.subr.mxu0 0.0
  %953 = vmatpush1.msra.mxu0 0.0
  %954 = vmatprep.subr.mxu0 0.0
  %955 = vmatpush1.msra.mxu0 0.0
  %956 = vmatprep.subr.mxu0 0.0
  %957 = vmatpush1.msra.mxu0 0.0
  %958 = vmatprep.subr.mxu0 0.0
  %959 = vmatpush1.msra.mxu0 0.0
  %960 = vmatprep.subr.mxu0 0.0
  %961 = vmatpush1.msra.mxu0 0.0
  %962 = vmatprep.subr.mxu0 0.0
  %963 = vmatpush1.msra.mxu0 0.0
  %964 = vmatprep.subr.mxu0 0.0
  %965 = vmatpush1.msra.mxu0 0.0
  %966 = vmatprep.subr.mxu0 0.0
  %967 = vmatpush1.msra.mxu0 0.0
  %968 = vmatprep.subr.mxu0 0.0
  %969 = vmatpush1.msra.mxu0 0.0
  %970 = vmatprep.subr.mxu0 %v902
  %971 = vmatpush1.msra.mxu0 %v900
  %972 = vmatprep.subr.mxu0 0.0
  %973 = vmatpush2.msra.mxu0 0.0
  %974 = vmatprep.subr.mxu0 0.0
  %975 = vmatpush2.msra.mxu0 0.0
  %976 = vmatprep.subr.mxu0 0.0
  %977 = vmatpush2.msra.mxu0 0.0
  %978 = vmatprep.subr.mxu0 0.0
  %979 = vmatpush2.msra.mxu0 0.0
  %980 = vmatprep.subr.mxu0 0.0
  %981 = vmatpush2.msra.mxu0 0.0
  %982 = vmatprep.subr.mxu0 0.0
  %983 = vmatpush2.msra.mxu0 0.0
  %984 = vmatprep.subr.mxu0 0.0
  %985 = vmatpush2.msra.mxu0 0.0
  %986 = vmatprep.subr.mxu0 0.0
  %987 = vmatpush2.msra.mxu0 0.0
  %988 = vmatprep.subr.mxu0 0.0
  %989 = vmatpush2.msra.mxu0 0.0
  %990 = vmatprep.subr.mxu0 0.0
  %991 = vmatpush2.msra.mxu0 0.0
  %992 = vmatprep.subr.mxu0 0.0
  %993 = vmatpush2.msra.mxu0 0.0
  %994 = vmatprep.subr.mxu0 0.0
  %995 = vmatpush2.msra.mxu0 0.0
  %996 = vmatprep.subr.mxu0 0.0
  %997 = vmatpush2.msra.mxu0 0.0
  %998 = vmatprep.subr.mxu0 0.0
  %999 = vmatpush2.msra.mxu0 0.0
  %1000 = vmatprep.subr.mxu0 0.0
  %1001 = vmatpush2.msra.mxu0 0.0
  %1002 = vmatprep.subr.mxu0 0.0
  %1003 = vmatpush2.msra.mxu0 0.0
  %1004 = vmatprep.mubr.f32.mxu0 0.0
  %1005 = vmatmul.mubr.f32.gmra.mxu0 %v898
  %v1006 = vpop.f32.mrf.mxu0
  %v1007 = vadd.f32 %v234, %v1006
  %v1008 = vpop.f32.mrf.mxu0
  %v1009 = vadd.f32 %v236, %v1008
  %1010 = vdwg.mxu0
  %1011 = vmatprep.subr.mxu0 0.0
  %1012 = vmatpush1.msra.mxu0 0.0
  %1013 = vmatprep.subr.mxu0 0.0
  %1014 = vmatpush1.msra.mxu0 0.0
  %1015 = vmatprep.subr.mxu0 0.0
  %1016 = vmatpush1.msra.mxu0 0.0
  %1017 = vmatprep.subr.mxu0 0.0
  %1018 = vmatpush1.msra.mxu0 0.0
  %1019 = vmatprep.subr.mxu0 0.0
  %1020 = vmatpush1.msra.mxu0 0.0
  %1021 = vmatprep.subr.mxu0 0.0
  %1022 = vmatpush1.msra.mxu0 0.0
  %1023 = vmatprep.subr.mxu0 0.0
  %1024 = vmatpush1.msra.mxu0 0.0
  %1025 = vmatprep.subr.mxu0 0.0
  %1026 = vmatpush1.msra.mxu0 0.0
  %1027 = vmatprep.subr.mxu0 0.0
  %1028 = vmatpush1.msra.mxu0 0.0
  %1029 = vmatprep.subr.mxu0 0.0
  %1030 = vmatpush1.msra.mxu0 0.0
  %1031 = vmatprep.subr.mxu0 0.0
  %1032 = vmatpush1.msra.mxu0 0.0
  %1033 = vmatprep.subr.mxu0 0.0
  %1034 = vmatpush1.msra.mxu0 0.0
  %1035 = vmatprep.subr.mxu0 0.0
  %1036 = vmatpush1.msra.mxu0 0.0
  %1037 = vmatprep.subr.mxu0 0.0
  %1038 = vmatpush1.msra.mxu0 0.0
  %1039 = vmatprep.subr.mxu0 0.0
  %1040 = vmatpush1.msra.mxu0 0.0
  %1041 = vmatprep.subr.mxu0 %v906
  %1042 = vmatpush1.msra.mxu0 %v904
  %1043 = vmatprep.subr.mxu0 0.0
  %1044 = vmatpush2.msra.mxu0 0.0
  %1045 = vmatprep.subr.mxu0 0.0
  %1046 = vmatpush2.msra.mxu0 0.0
  %1047 = vmatprep.subr.mxu0 0.0
  %1048 = vmatpush2.msra.mxu0 0.0
  %1049 = vmatprep.subr.mxu0 0.0
  %1050 = vmatpush2.msra.mxu0 0.0
  %1051 = vmatprep.subr.mxu0 0.0
  %1052 = vmatpush2.msra.mxu0 0.0
  %1053 = vmatprep.subr.mxu0 0.0
  %1054 = vmatpush2.msra.mxu0 0.0
  %1055 = vmatprep.subr.mxu0 0.0
  %1056 = vmatpush2.msra.mxu0 0.0
  %1057 = vmatprep.subr.mxu0 0.0
  %1058 = vmatpush2.msra.mxu0 0.0
  %1059 = vmatprep.subr.mxu0 0.0
  %1060 = vmatpush2.msra.mxu0 0.0
  %1061 = vmatprep.subr.mxu0 0.0
  %1062 = vmatpush2.msra.mxu0 0.0
  %1063 = vmatprep.subr.mxu0 0.0
  %1064 = vmatpush2.msra.mxu0 0.0
  %1065 = vmatprep.subr.mxu0 0.0
  %1066 = vmatpush2.msra.mxu0 0.0
  %1067 = vmatprep.subr.mxu0 0.0
  %1068 = vmatpush2.msra.mxu0 0.0
  %1069 = vmatprep.subr.mxu0 0.0
  %1070 = vmatpush2.msra.mxu0 0.0
  %1071 = vmatprep.subr.mxu0 0.0
  %1072 = vmatpush2.msra.mxu0 0.0
  %1073 = vmatprep.subr.mxu0 0.0
  %1074 = vmatpush2.msra.mxu0 0.0
  %1075 = vmatprep.mubr.f32.mxu0 0.0
  %1076 = vmatmul.mubr.f32.gmra.mxu0 %v898
  %v1077 = vpop.f32.mrf.mxu0
  %v1078 = vadd.f32 %v305, %v1077
  %v1079 = vpop.f32.mrf.mxu0
  %v1080 = vadd.f32 %v307, %v1079
  %1081 = vdwg.mxu0
  %1082 = vmatprep.subr.mxu0 0.0
  %1083 = vmatpush1.msra.mxu0 0.0
  %1084 = vmatprep.subr.mxu0 0.0
  %1085 = vmatpush1.msra.mxu0 0.0
  %1086 = vmatprep.subr.mxu0 0.0
  %1087 = vmatpush1.msra.mxu0 0.0
  %1088 = vmatprep.subr.mxu0 0.0
  %1089 = vmatpush1.msra.mxu0 0.0
  %1090 = vmatprep.subr.mxu0 0.0
  %1091 = vmatpush1.msra.mxu0 0.0
  %1092 = vmatprep.subr.mxu0 0.0
  %1093 = vmatpush1.msra.mxu0 0.0
  %1094 = vmatprep.subr.mxu0 0.0
  %1095 = vmatpush1.msra.mxu0 0.0
  %1096 = vmatprep.subr.mxu0 0.0
  %1097 = vmatpush1.msra.mxu0 0.0
  %1098 = vmatprep.subr.mxu0 0.0
  %1099 = vmatpush1.msra.mxu0 0.0
  %1100 = vmatprep.subr.mxu0 0.0
  %1101 = vmatpush1.msra.mxu0 0.0
  %1102 = vmatprep.subr.mxu0 0.0
  %1103 = vmatpush1.msra.mxu0 0.0
  %1104 = vmatprep.subr.mxu0 0.0
  %1105 = vmatpush1.msra.mxu0 0.0
  %1106 = vmatprep.subr.mxu0 0.0
  %1107 = vmatpush1.msra.mxu0 0.0
  %1108 = vmatprep.subr.mxu0 0.0
  %1109 = vmatpush1.msra.mxu0 0.0
  %1110 = vmatprep.subr.mxu0 0.0
  %1111 = vmatpush1.msra.mxu0 0.0
  %1112 = vmatprep.subr.mxu0 %v910
  %1113 = vmatpush1.msra.mxu0 %v908
  %1114 = vmatprep.subr.mxu0 0.0
  %1115 = vmatpush2.msra.mxu0 0.0
  %1116 = vmatprep.subr.mxu0 0.0
  %1117 = vmatpush2.msra.mxu0 0.0
  %1118 = vmatprep.subr.mxu0 0.0
  %1119 = vmatpush2.msra.mxu0 0.0
  %1120 = vmatprep.subr.mxu0 0.0
  %1121 = vmatpush2.msra.mxu0 0.0
  %1122 = vmatprep.subr.mxu0 0.0
  %1123 = vmatpush2.msra.mxu0 0.0
  %1124 = vmatprep.subr.mxu0 0.0
  %1125 = vmatpush2.msra.mxu0 0.0
  %1126 = vmatprep.subr.mxu0 0.0
  %1127 = vmatpush2.msra.mxu0 0.0
  %1128 = vmatprep.subr.mxu0 0.0
  %1129 = vmatpush2.msra.mxu0 0.0
  %1130 = vmatprep.subr.mxu0 0.0
  %1131 = vmatpush2.msra.mxu0 0.0
  %1132 = vmatprep.subr.mxu0 0.0
  %1133 = vmatpush2.msra.mxu0 0.0
  %1134 = vmatprep.subr.mxu0 0.0
  %1135 = vmatpush2.msra.mxu0 0.0
  %1136 = vmatprep.subr.mxu0 0.0
  %1137 = vmatpush2.msra.mxu0 0.0
  %1138 = vmatprep.subr.mxu0 0.0
  %1139 = vmatpush2.msra.mxu0 0.0
  %1140 = vmatprep.subr.mxu0 0.0
  %1141 = vmatpush2.msra.mxu0 0.0
  %1142 = vmatprep.subr.mxu0 0.0
  %1143 = vmatpush2.msra.mxu0 0.0
  %1144 = vmatprep.subr.mxu0 0.0
  %1145 = vmatpush2.msra.mxu0 0.0
  %1146 = vmatprep.mubr.f32.mxu0 0.0
  %1147 = vmatmul.mubr.f32.gmra.mxu0 %v898
  %v1148 = vpop.f32.mrf.mxu0
  %v1149 = vadd.f32 %v376, %v1148
  %v1150 = vpop.f32.mrf.mxu0
  %v1151 = vadd.f32 %v378, %v1150
  %1152 = vdwg.mxu0
  %1153 = vmatprep.subr.mxu0 0.0
  %1154 = vmatpush1.msra.mxu0 0.0
  %1155 = vmatprep.subr.mxu0 0.0
  %1156 = vmatpush1.msra.mxu0 0.0
  %1157 = vmatprep.subr.mxu0 0.0
  %1158 = vmatpush1.msra.mxu0 0.0
  %1159 = vmatprep.subr.mxu0 0.0
  %1160 = vmatpush1.msra.mxu0 0.0
  %1161 = vmatprep.subr.mxu0 0.0
  %1162 = vmatpush1.msra.mxu0 0.0
  %1163 = vmatprep.subr.mxu0 0.0
  %1164 = vmatpush1.msra.mxu0 0.0
  %1165 = vmatprep.subr.mxu0 0.0
  %1166 = vmatpush1.msra.mxu0 0.0
  %1167 = vmatprep.subr.mxu0 0.0
  %1168 = vmatpush1.msra.mxu0 0.0
  %1169 = vmatprep.subr.mxu0 0.0
  %1170 = vmatpush1.msra.mxu0 0.0
  %1171 = vmatprep.subr.mxu0 0.0
  %1172 = vmatpush1.msra.mxu0 0.0
  %1173 = vmatprep.subr.mxu0 0.0
  %1174 = vmatpush1.msra.mxu0 0.0
  %1175 = vmatprep.subr.mxu0 0.0
  %1176 = vmatpush1.msra.mxu0 0.0
  %1177 = vmatprep.subr.mxu0 0.0
  %1178 = vmatpush1.msra.mxu0 0.0
  %1179 = vmatprep.subr.mxu0 0.0
  %1180 = vmatpush1.msra.mxu0 0.0
  %1181 = vmatprep.subr.mxu0 0.0
  %1182 = vmatpush1.msra.mxu0 0.0
  %1183 = vmatprep.subr.mxu0 %v914
  %1184 = vmatpush1.msra.mxu0 %v912
  %1185 = vmatprep.subr.mxu0 0.0
  %1186 = vmatpush2.msra.mxu0 0.0
  %1187 = vmatprep.subr.mxu0 0.0
  %1188 = vmatpush2.msra.mxu0 0.0
  %1189 = vmatprep.subr.mxu0 0.0
  %1190 = vmatpush2.msra.mxu0 0.0
  %1191 = vmatprep.subr.mxu0 0.0
  %1192 = vmatpush2.msra.mxu0 0.0
  %1193 = vmatprep.subr.mxu0 0.0
  %1194 = vmatpush2.msra.mxu0 0.0
  %1195 = vmatprep.subr.mxu0 0.0
  %1196 = vmatpush2.msra.mxu0 0.0
  %1197 = vmatprep.subr.mxu0 0.0
  %1198 = vmatpush2.msra.mxu0 0.0
  %1199 = vmatprep.subr.mxu0 0.0
  %1200 = vmatpush2.msra.mxu0 0.0
  %1201 = vmatprep.subr.mxu0 0.0
  %1202 = vmatpush2.msra.mxu0 0.0
  %1203 = vmatprep.subr.mxu0 0.0
  %1204 = vmatpush2.msra.mxu0 0.0
  %1205 = vmatprep.subr.mxu0 0.0
  %1206 = vmatpush2.msra.mxu0 0.0
  %1207 = vmatprep.subr.mxu0 0.0
  %1208 = vmatpush2.msra.mxu0 0.0
  %1209 = vmatprep.subr.mxu0 0.0
  %1210 = vmatpush2.msra.mxu0 0.0
  %1211 = vmatprep.subr.mxu0 0.0
  %1212 = vmatpush2.msra.mxu0 0.0
  %1213 = vmatprep.subr.mxu0 0.0
  %1214 = vmatpush2.msra.mxu0 0.0
  %1215 = vmatprep.subr.mxu0 0.0
  %1216 = vmatpush2.msra.mxu0 0.0
  %1217 = vmatprep.mubr.f32.mxu0 0.0
  %1218 = vmatmul.mubr.f32.gmra.mxu0 %v898
  %v1219 = vpop.f32.mrf.mxu0
  %v1220 = vadd.f32 %v447, %v1219
  %v1221 = vpop.f32.mrf.mxu0
  %v1222 = vadd.f32 %v449, %v1221
  %1223 = vdwg.mxu0
  %1224 = vmatprep.subr.mxu0 0.0
  %1225 = vmatpush1.msra.mxu0 0.0
  %1226 = vmatprep.subr.mxu0 0.0
  %1227 = vmatpush1.msra.mxu0 0.0
  %1228 = vmatprep.subr.mxu0 0.0
  %1229 = vmatpush1.msra.mxu0 0.0
  %1230 = vmatprep.subr.mxu0 0.0
  %1231 = vmatpush1.msra.mxu0 0.0
  %1232 = vmatprep.subr.mxu0 0.0
  %1233 = vmatpush1.msra.mxu0 0.0
  %1234 = vmatprep.subr.mxu0 0.0
  %1235 = vmatpush1.msra.mxu0 0.0
  %1236 = vmatprep.subr.mxu0 0.0
  %1237 = vmatpush1.msra.mxu0 0.0
  %1238 = vmatprep.subr.mxu0 0.0
  %1239 = vmatpush1.msra.mxu0 0.0
  %1240 = vmatprep.subr.mxu0 0.0
  %1241 = vmatpush1.msra.mxu0 0.0
  %1242 = vmatprep.subr.mxu0 0.0
  %1243 = vmatpush1.msra.mxu0 0.0
  %1244 = vmatprep.subr.mxu0 0.0
  %1245 = vmatpush1.msra.mxu0 0.0
  %1246 = vmatprep.subr.mxu0 0.0
  %1247 = vmatpush1.msra.mxu0 0.0
  %1248 = vmatprep.subr.mxu0 0.0
  %1249 = vmatpush1.msra.mxu0 0.0
  %1250 = vmatprep.subr.mxu0 0.0
  %1251 = vmatpush1.msra.mxu0 0.0
  %1252 = vmatprep.subr.mxu0 0.0
  %1253 = vmatpush1.msra.mxu0 0.0
  %1254 = vmatprep.subr.mxu0 %v918
  %1255 = vmatpush1.msra.mxu0 %v916
  %1256 = vmatprep.subr.mxu0 0.0
  %1257 = vmatpush2.msra.mxu0 0.0
  %1258 = vmatprep.subr.mxu0 0.0
  %1259 = vmatpush2.msra.mxu0 0.0
  %1260 = vmatprep.subr.mxu0 0.0
  %1261 = vmatpush2.msra.mxu0 0.0
  %1262 = vmatprep.subr.mxu0 0.0
  %1263 = vmatpush2.msra.mxu0 0.0
  %1264 = vmatprep.subr.mxu0 0.0
  %1265 = vmatpush2.msra.mxu0 0.0
  %1266 = vmatprep.subr.mxu0 0.0
  %1267 = vmatpush2.msra.mxu0 0.0
  %1268 = vmatprep.subr.mxu0 0.0
  %1269 = vmatpush2.msra.mxu0 0.0
  %1270 = vmatprep.subr.mxu0 0.0
  %1271 = vmatpush2.msra.mxu0 0.0
  %1272 = vmatprep.subr.mxu0 0.0
  %1273 = vmatpush2.msra.mxu0 0.0
  %1274 = vmatprep.subr.mxu0 0.0
  %1275 = vmatpush2.msra.mxu0 0.0
  %1276 = vmatprep.subr.mxu0 0.0
  %1277 = vmatpush2.msra.mxu0 0.0
  %1278 = vmatprep.subr.mxu0 0.0
  %1279 = vmatpush2.msra.mxu0 0.0
  %1280 = vmatprep.subr.mxu0 0.0
  %1281 = vmatpush2.msra.mxu0 0.0
  %1282 = vmatprep.subr.mxu0 0.0
  %1283 = vmatpush2.msra.mxu0 0.0
  %1284 = vmatprep.subr.mxu0 0.0
  %1285 = vmatpush2.msra.mxu0 0.0
  %1286 = vmatprep.subr.mxu0 0.0
  %1287 = vmatpush2.msra.mxu0 0.0
  %1288 = vmatprep.mubr.f32.mxu0 0.0
  %1289 = vmatmul.mubr.f32.gmra.mxu0 %v898
  %v1290 = vpop.f32.mrf.mxu0
  %v1291 = vadd.f32 %v518, %v1290
  %v1292 = vpop.f32.mrf.mxu0
  %v1293 = vadd.f32 %v520, %v1292
  %1294 = vdwg.mxu0
  %1295 = vmatprep.subr.mxu0 0.0
  %1296 = vmatpush1.msra.mxu0 0.0
  %1297 = vmatprep.subr.mxu0 0.0
  %1298 = vmatpush1.msra.mxu0 0.0
  %1299 = vmatprep.subr.mxu0 0.0
  %1300 = vmatpush1.msra.mxu0 0.0
  %1301 = vmatprep.subr.mxu0 0.0
  %1302 = vmatpush1.msra.mxu0 0.0
  %1303 = vmatprep.subr.mxu0 0.0
  %1304 = vmatpush1.msra.mxu0 0.0
  %1305 = vmatprep.subr.mxu0 0.0
  %1306 = vmatpush1.msra.mxu0 0.0
  %1307 = vmatprep.subr.mxu0 0.0
  %1308 = vmatpush1.msra.mxu0 0.0
  %1309 = vmatprep.subr.mxu0 0.0
  %1310 = vmatpush1.msra.mxu0 0.0
  %1311 = vmatprep.subr.mxu0 0.0
  %1312 = vmatpush1.msra.mxu0 0.0
  %1313 = vmatprep.subr.mxu0 0.0
  %1314 = vmatpush1.msra.mxu0 0.0
  %1315 = vmatprep.subr.mxu0 0.0
  %1316 = vmatpush1.msra.mxu0 0.0
  %1317 = vmatprep.subr.mxu0 0.0
  %1318 = vmatpush1.msra.mxu0 0.0
  %1319 = vmatprep.subr.mxu0 0.0
  %1320 = vmatpush1.msra.mxu0 0.0
  %1321 = vmatprep.subr.mxu0 0.0
  %1322 = vmatpush1.msra.mxu0 0.0
  %1323 = vmatprep.subr.mxu0 0.0
  %1324 = vmatpush1.msra.mxu0 0.0
  %1325 = vmatprep.subr.mxu0 %v922
  %1326 = vmatpush1.msra.mxu0 %v920
  %1327 = vmatprep.subr.mxu0 0.0
  %1328 = vmatpush2.msra.mxu0 0.0
  %1329 = vmatprep.subr.mxu0 0.0
  %1330 = vmatpush2.msra.mxu0 0.0
  %1331 = vmatprep.subr.mxu0 0.0
  %1332 = vmatpush2.msra.mxu0 0.0
  %1333 = vmatprep.subr.mxu0 0.0
  %1334 = vmatpush2.msra.mxu0 0.0
  %1335 = vmatprep.subr.mxu0 0.0
  %1336 = vmatpush2.msra.mxu0 0.0
  %1337 = vmatprep.subr.mxu0 0.0
  %1338 = vmatpush2.msra.mxu0 0.0
  %1339 = vmatprep.subr.mxu0 0.0
  %1340 = vmatpush2.msra.mxu0 0.0
  %1341 = vmatprep.subr.mxu0 0.0
  %1342 = vmatpush2.msra.mxu0 0.0
  %1343 = vmatprep.subr.mxu0 0.0
  %1344 = vmatpush2.msra.mxu0 0.0
  %1345 = vmatprep.subr.mxu0 0.0
  %1346 = vmatpush2.msra.mxu0 0.0
  %1347 = vmatprep.subr.mxu0 0.0
  %1348 = vmatpush2.msra.mxu0 0.0
  %1349 = vmatprep.subr.mxu0 0.0
  %1350 = vmatpush2.msra.mxu0 0.0
  %1351 = vmatprep.subr.mxu0 0.0
  %1352 = vmatpush2.msra.mxu0 0.0
  %1353 = vmatprep.subr.mxu0 0.0
  %1354 = vmatpush2.msra.mxu0 0.0
  %1355 = vmatprep.subr.mxu0 0.0
  %1356 = vmatpush2.msra.mxu0 0.0
  %1357 = vmatprep.subr.mxu0 0.0
  %1358 = vmatpush2.msra.mxu0 0.0
  %1359 = vmatprep.mubr.f32.mxu0 0.0
  %1360 = vmatmul.mubr.f32.gmra.mxu0 %v898
  %v1361 = vpop.f32.mrf.mxu0
  %v1362 = vadd.f32 %v589, %v1361
  %v1363 = vpop.f32.mrf.mxu0
  %v1364 = vadd.f32 %v591, %v1363
  %1365 = vdwg.mxu0
  %1366 = vmatprep.subr.mxu0 0.0
  %1367 = vmatpush1.msra.mxu0 0.0
  %1368 = vmatprep.subr.mxu0 0.0
  %1369 = vmatpush1.msra.mxu0 0.0
  %1370 = vmatprep.subr.mxu0 0.0
  %1371 = vmatpush1.msra.mxu0 0.0
  %1372 = vmatprep.subr.mxu0 0.0
  %1373 = vmatpush1.msra.mxu0 0.0
  %1374 = vmatprep.subr.mxu0 0.0
  %1375 = vmatpush1.msra.mxu0 0.0
  %1376 = vmatprep.subr.mxu0 0.0
  %1377 = vmatpush1.msra.mxu0 0.0
  %1378 = vmatprep.subr.mxu0 0.0
  %1379 = vmatpush1.msra.mxu0 0.0
  %1380 = vmatprep.subr.mxu0 0.0
  %1381 = vmatpush1.msra.mxu0 0.0
  %1382 = vmatprep.subr.mxu0 0.0
  %1383 = vmatpush1.msra.mxu0 0.0
  %1384 = vmatprep.subr.mxu0 0.0
  %1385 = vmatpush1.msra.mxu0 0.0
  %1386 = vmatprep.subr.mxu0 0.0
  %1387 = vmatpush1.msra.mxu0 0.0
  %1388 = vmatprep.subr.mxu0 0.0
  %1389 = vmatpush1.msra.mxu0 0.0
  %1390 = vmatprep.subr.mxu0 0.0
  %1391 = vmatpush1.msra.mxu0 0.0
  %1392 = vmatprep.subr.mxu0 0.0
  %1393 = vmatpush1.msra.mxu0 0.0
  %1394 = vmatprep.subr.mxu0 0.0
  %1395 = vmatpush1.msra.mxu0 0.0
  %1396 = vmatprep.subr.mxu0 %v926
  %1397 = vmatpush1.msra.mxu0 %v924
  %1398 = vmatprep.subr.mxu0 0.0
  %1399 = vmatpush2.msra.mxu0 0.0
  %1400 = vmatprep.subr.mxu0 0.0
  %1401 = vmatpush2.msra.mxu0 0.0
  %1402 = vmatprep.subr.mxu0 0.0
  %1403 = vmatpush2.msra.mxu0 0.0
  %1404 = vmatprep.subr.mxu0 0.0
  %1405 = vmatpush2.msra.mxu0 0.0
  %1406 = vmatprep.subr.mxu0 0.0
  %1407 = vmatpush2.msra.mxu0 0.0
  %1408 = vmatprep.subr.mxu0 0.0
  %1409 = vmatpush2.msra.mxu0 0.0
  %1410 = vmatprep.subr.mxu0 0.0
  %1411 = vmatpush2.msra.mxu0 0.0
  %1412 = vmatprep.subr.mxu0 0.0
  %1413 = vmatpush2.msra.mxu0 0.0
  %1414 = vmatprep.subr.mxu0 0.0
  %1415 = vmatpush2.msra.mxu0 0.0
  %1416 = vmatprep.subr.mxu0 0.0
  %1417 = vmatpush2.msra.mxu0 0.0
  %1418 = vmatprep.subr.mxu0 0.0
  %1419 = vmatpush2.msra.mxu0 0.0
  %1420 = vmatprep.subr.mxu0 0.0
  %1421 = vmatpush2.msra.mxu0 0.0
  %1422 = vmatprep.subr.mxu0 0.0
  %1423 = vmatpush2.msra.mxu0 0.0
  %1424 = vmatprep.subr.mxu0 0.0
  %1425 = vmatpush2.msra.mxu0 0.0
  %1426 = vmatprep.subr.mxu0 0.0
  %1427 = vmatpush2.msra.mxu0 0.0
  %1428 = vmatprep.subr.mxu0 0.0
  %1429 = vmatpush2.msra.mxu0 0.0
  %1430 = vmatprep.mubr.f32.mxu0 0.0
  %1431 = vmatmul.mubr.f32.gmra.mxu0 %v898
  %v1432 = vpop.f32.mrf.mxu0
  %v1433 = vadd.f32 %v660, %v1432
  %v1434 = vpop.f32.mrf.mxu0
  %v1435 = vadd.f32 %v662, %v1434
  %1436 = vdwg.mxu0
  %1437 = vmatprep.subr.mxu0 0.0
  %1438 = vmatpush1.msra.mxu0 0.0
  %1439 = vmatprep.subr.mxu0 0.0
  %1440 = vmatpush1.msra.mxu0 0.0
  %1441 = vmatprep.subr.mxu0 0.0
  %1442 = vmatpush1.msra.mxu0 0.0
  %1443 = vmatprep.subr.mxu0 0.0
  %1444 = vmatpush1.msra.mxu0 0.0
  %1445 = vmatprep.subr.mxu0 0.0
  %1446 = vmatpush1.msra.mxu0 0.0
  %1447 = vmatprep.subr.mxu0 0.0
  %1448 = vmatpush1.msra.mxu0 0.0
  %1449 = vmatprep.subr.mxu0 0.0
  %1450 = vmatpush1.msra.mxu0 0.0
  %1451 = vmatprep.subr.mxu0 0.0
  %1452 = vmatpush1.msra.mxu0 0.0
  %1453 = vmatprep.subr.mxu0 0.0
  %1454 = vmatpush1.msra.mxu0 0.0
  %1455 = vmatprep.subr.mxu0 0.0
  %1456 = vmatpush1.msra.mxu0 0.0
  %1457 = vmatprep.subr.mxu0 0.0
  %1458 = vmatpush1.msra.mxu0 0.0
  %1459 = vmatprep.subr.mxu0 0.0
  %1460 = vmatpush1.msra.mxu0 0.0
  %1461 = vmatprep.subr.mxu0 0.0
  %1462 = vmatpush1.msra.mxu0 0.0
  %1463 = vmatprep.subr.mxu0 0.0
  %1464 = vmatpush1.msra.mxu0 0.0
  %1465 = vmatprep.subr.mxu0 0.0
  %1466 = vmatpush1.msra.mxu0 0.0
  %1467 = vmatprep.subr.mxu0 %v930
  %1468 = vmatpush1.msra.mxu0 %v928
  %1469 = vmatprep.subr.mxu0 0.0
  %1470 = vmatpush2.msra.mxu0 0.0
  %1471 = vmatprep.subr.mxu0 0.0
  %1472 = vmatpush2.msra.mxu0 0.0
  %1473 = vmatprep.subr.mxu0 0.0
  %1474 = vmatpush2.msra.mxu0 0.0
  %1475 = vmatprep.subr.mxu0 0.0
  %1476 = vmatpush2.msra.mxu0 0.0
  %1477 = vmatprep.subr.mxu0 0.0
  %1478 = vmatpush2.msra.mxu0 0.0
  %1479 = vmatprep.subr.mxu0 0.0
  %1480 = vmatpush2.msra.mxu0 0.0
  %1481 = vmatprep.subr.mxu0 0.0
  %1482 = vmatpush2.msra.mxu0 0.0
  %1483 = vmatprep.subr.mxu0 0.0
  %1484 = vmatpush2.msra.mxu0 0.0
  %1485 = vmatprep.subr.mxu0 0.0
  %1486 = vmatpush2.msra.mxu0 0.0
  %1487 = vmatprep.subr.mxu0 0.0
  %1488 = vmatpush2.msra.mxu0 0.0
  %1489 = vmatprep.subr.mxu0 0.0
  %1490 = vmatpush2.msra.mxu0 0.0
  %1491 = vmatprep.subr.mxu0 0.0
  %1492 = vmatpush2.msra.mxu0 0.0
  %1493 = vmatprep.subr.mxu0 0.0
  %1494 = vmatpush2.msra.mxu0 0.0
  %1495 = vmatprep.subr.mxu0 0.0
  %1496 = vmatpush2.msra.mxu0 0.0
  %1497 = vmatprep.subr.mxu0 0.0
  %1498 = vmatpush2.msra.mxu0 0.0
  %1499 = vmatprep.subr.mxu0 0.0
  %1500 = vmatpush2.msra.mxu0 0.0
  %1501 = vmatprep.mubr.f32.mxu0 0.0
  %1502 = vmatmul.mubr.f32.gmra.mxu0 %v898
  %v1503 = vpop.f32.mrf.mxu0
  %v1504 = vadd.f32 %v731, %v1503
  %v1505 = vpop.f32.mrf.mxu0
  %v1506 = vadd.f32 %v733, %v1505
  %1507 = vdwg.mxu0
  %1508 = vmatprep.subr.mxu0 0.0
  %1509 = vmatpush1.msra.mxu0 0.0
  %1510 = vmatprep.subr.mxu0 0.0
  %1511 = vmatpush1.msra.mxu0 0.0
  %1512 = vmatprep.subr.mxu0 0.0
  %1513 = vmatpush1.msra.mxu0 0.0
  %1514 = vmatprep.subr.mxu0 0.0
  %1515 = vmatpush1.msra.mxu0 0.0
  %1516 = vmatprep.subr.mxu0 0.0
  %1517 = vmatpush1.msra.mxu0 0.0
  %1518 = vmatprep.subr.mxu0 0.0
  %1519 = vmatpush1.msra.mxu0 0.0
  %1520 = vmatprep.subr.mxu0 0.0
  %1521 = vmatpush1.msra.mxu0 0.0
  %1522 = vmatprep.subr.mxu0 0.0
  %1523 = vmatpush1.msra.mxu0 0.0
  %1524 = vmatprep.subr.mxu0 0.0
  %1525 = vmatpush1.msra.mxu0 0.0
  %1526 = vmatprep.subr.mxu0 0.0
  %1527 = vmatpush1.msra.mxu0 0.0
  %1528 = vmatprep.subr.mxu0 0.0
  %1529 = vmatpush1.msra.mxu0 0.0
  %1530 = vmatprep.subr.mxu0 0.0
  %1531 = vmatpush1.msra.mxu0 0.0
  %1532 = vmatprep.subr.mxu0 0.0
  %1533 = vmatpush1.msra.mxu0 0.0
  %1534 = vmatprep.subr.mxu0 0.0
  %1535 = vmatpush1.msra.mxu0 0.0
  %1536 = vmatprep.subr.mxu0 0.0
  %1537 = vmatpush1.msra.mxu0 0.0
  %1538 = vmatprep.subr.mxu0 %v934
  %1539 = vmatpush1.msra.mxu0 %v932
  %1540 = vmatprep.subr.mxu0 0.0
  %1541 = vmatpush2.msra.mxu0 0.0
  %1542 = vmatprep.subr.mxu0 0.0
  %1543 = vmatpush2.msra.mxu0 0.0
  %1544 = vmatprep.subr.mxu0 0.0
  %1545 = vmatpush2.msra.mxu0 0.0
  %1546 = vmatprep.subr.mxu0 0.0
  %1547 = vmatpush2.msra.mxu0 0.0
  %1548 = vmatprep.subr.mxu0 0.0
  %1549 = vmatpush2.msra.mxu0 0.0
  %1550 = vmatprep.subr.mxu0 0.0
  %1551 = vmatpush2.msra.mxu0 0.0
  %1552 = vmatprep.subr.mxu0 0.0
  %1553 = vmatpush2.msra.mxu0 0.0
  %1554 = vmatprep.subr.mxu0 0.0
  %1555 = vmatpush2.msra.mxu0 0.0
  %1556 = vmatprep.subr.mxu0 0.0
  %1557 = vmatpush2.msra.mxu0 0.0
  %1558 = vmatprep.subr.mxu0 0.0
  %1559 = vmatpush2.msra.mxu0 0.0
  %1560 = vmatprep.subr.mxu0 0.0
  %1561 = vmatpush2.msra.mxu0 0.0
  %1562 = vmatprep.subr.mxu0 0.0
  %1563 = vmatpush2.msra.mxu0 0.0
  %1564 = vmatprep.subr.mxu0 0.0
  %1565 = vmatpush2.msra.mxu0 0.0
  %1566 = vmatprep.subr.mxu0 0.0
  %1567 = vmatpush2.msra.mxu0 0.0
  %1568 = vmatprep.subr.mxu0 0.0
  %1569 = vmatpush2.msra.mxu0 0.0
  %1570 = vmatprep.subr.mxu0 0.0
  %1571 = vmatpush2.msra.mxu0 0.0
  %1572 = vmatprep.mubr.f32.mxu0 0.0
  %1573 = vmatmul.mubr.f32.gmra.mxu0 %v898
  %v1574 = vpop.f32.mrf.mxu0
  %v1575 = vadd.f32 %v802, %v1574
  %v1576 = vpop.f32.mrf.mxu0
  %v1577 = vadd.f32 %v804, %v1576
  %1578 = vdwg.mxu0
  %1579 = vmatprep.subr.mxu0 0.0
  %1580 = vmatpush1.msra.mxu0 0.0
  %1581 = vmatprep.subr.mxu0 0.0
  %1582 = vmatpush1.msra.mxu0 0.0
  %1583 = vmatprep.subr.mxu0 0.0
  %1584 = vmatpush1.msra.mxu0 0.0
  %1585 = vmatprep.subr.mxu0 0.0
  %1586 = vmatpush1.msra.mxu0 0.0
  %1587 = vmatprep.subr.mxu0 0.0
  %1588 = vmatpush1.msra.mxu0 0.0
  %1589 = vmatprep.subr.mxu0 0.0
  %1590 = vmatpush1.msra.mxu0 0.0
  %1591 = vmatprep.subr.mxu0 0.0
  %1592 = vmatpush1.msra.mxu0 0.0
  %1593 = vmatprep.subr.mxu0 0.0
  %1594 = vmatpush1.msra.mxu0 0.0
  %1595 = vmatprep.subr.mxu0 0.0
  %1596 = vmatpush1.msra.mxu0 0.0
  %1597 = vmatprep.subr.mxu0 0.0
  %1598 = vmatpush1.msra.mxu0 0.0
  %1599 = vmatprep.subr.mxu0 0.0
  %1600 = vmatpush1.msra.mxu0 0.0
  %1601 = vmatprep.subr.mxu0 0.0
  %1602 = vmatpush1.msra.mxu0 0.0
  %1603 = vmatprep.subr.mxu0 0.0
  %1604 = vmatpush1.msra.mxu0 0.0
  %1605 = vmatprep.subr.mxu0 0.0
  %1606 = vmatpush1.msra.mxu0 0.0
  %1607 = vmatprep.subr.mxu0 0.0
  %1608 = vmatpush1.msra.mxu0 0.0
  %1609 = vmatprep.subr.mxu0 %v938
  %1610 = vmatpush1.msra.mxu0 %v936
  %1611 = vmatprep.subr.mxu0 0.0
  %1612 = vmatpush2.msra.mxu0 0.0
  %1613 = vmatprep.subr.mxu0 0.0
  %1614 = vmatpush2.msra.mxu0 0.0
  %1615 = vmatprep.subr.mxu0 0.0
  %1616 = vmatpush2.msra.mxu0 0.0
  %1617 = vmatprep.subr.mxu0 0.0
  %1618 = vmatpush2.msra.mxu0 0.0
  %1619 = vmatprep.subr.mxu0 0.0
  %1620 = vmatpush2.msra.mxu0 0.0
  %1621 = vmatprep.subr.mxu0 0.0
  %1622 = vmatpush2.msra.mxu0 0.0
  %1623 = vmatprep.subr.mxu0 0.0
  %1624 = vmatpush2.msra.mxu0 0.0
  %1625 = vmatprep.subr.mxu0 0.0
  %1626 = vmatpush2.msra.mxu0 0.0
  %1627 = vmatprep.subr.mxu0 0.0
  %1628 = vmatpush2.msra.mxu0 0.0
  %1629 = vmatprep.subr.mxu0 0.0
  %1630 = vmatpush2.msra.mxu0 0.0
  %1631 = vmatprep.subr.mxu0 0.0
  %1632 = vmatpush2.msra.mxu0 0.0
  %1633 = vmatprep.subr.mxu0 0.0
  %1634 = vmatpush2.msra.mxu0 0.0
  %1635 = vmatprep.subr.mxu0 0.0
  %1636 = vmatpush2.msra.mxu0 0.0
  %1637 = vmatprep.subr.mxu0 0.0
  %1638 = vmatpush2.msra.mxu0 0.0
  %1639 = vmatprep.subr.mxu0 0.0
  %1640 = vmatpush2.msra.mxu0 0.0
  %1641 = vmatprep.subr.mxu0 0.0
  %1642 = vmatpush2.msra.mxu0 0.0
  %1643 = vmatprep.mubr.f32.mxu0 0.0
  %1644 = vmatmul.mubr.f32.gmra.mxu0 %v898
  %v1645 = vpop.f32.mrf.mxu0
  %v1646 = vadd.f32 %v873, %v1645
  %v1647 = vpop.f32.mrf.mxu0
  %v1648 = vadd.f32 %v875, %v1647
  %1649 = vdwg.mxu0
  %s1650 = scalar_lea.vmem %s1, 16
  %v1651 = vld [vmem:[%s1650] sm:$0xff]
  %v1652 = vld [vmem:[%s0] sm:$0xff]
  %v1653 = vld [vmem:[%s0 + $0x8] sm:$0xff]
  %v1654 = vld [vmem:[%s0 + $0x10] sm:$0xff]
  %v1655 = vld [vmem:[%s0 + $0x18] sm:$0xff]
  %v1656 = vld [vmem:[%s0 + $0x20] sm:$0xff]
  %v1657 = vld [vmem:[%s0 + $0x28] sm:$0xff]
  %v1658 = vld [vmem:[%s0 + $0x30] sm:$0xff]
  %v1659 = vld [vmem:[%s0 + $0x38] sm:$0xff]
  %v1660 = vld [vmem:[%s0 + $0x40] sm:$0xff]
  %v1661 = vld [vmem:[%s0 + $0x48] sm:$0xff]
  %v1662 = vld [vmem:[%s0 + $0x50] sm:$0xf]
  %v1674 = vcombine.high %v1652, %v1652
  %v1675 = vcombine.high %v1653, %v1653
  %v1676 = vcombine.high %v1654, %v1654
  %v1677 = vcombine.high %v1655, %v1655
  %v1678 = vcombine.high %v1656, %v1656
  %v1679 = vcombine.high %v1657, %v1657
  %v1680 = vcombine.high %v1658, %v1658
  %v1681 = vcombine.high %v1659, %v1659
  %v1682 = vcombine.high %v1660, %v1660
  %v1683 = vcombine.high %v1661, %v1661
  %1684 = vrot.lane.b32.xlu0 %v1652, 126
  %v1685 = vpop.permute.xlu0 %1684
  %1686 = vrot.lane.b32.xlu0 %v1674, 126
  %v1687 = vpop.permute.xlu0 %1686
  %1688 = vrot.lane.b32.xlu0 %v1653, 126
  %v1689 = vpop.permute.xlu0 %1688
  %1690 = vrot.lane.b32.xlu0 %v1675, 126
  %v1691 = vpop.permute.xlu0 %1690
  %1692 = vrot.lane.b32.xlu0 %v1654, 126
  %v1693 = vpop.permute.xlu0 %1692
  %1694 = vrot.lane.b32.xlu0 %v1676, 126
  %v1695 = vpop.permute.xlu0 %1694
  %1696 = vrot.lane.b32.xlu0 %v1655, 126
  %v1697 = vpop.permute.xlu0 %1696
  %1698 = vrot.lane.b32.xlu0 %v1677, 126
  %v1699 = vpop.permute.xlu0 %1698
  %1700 = vrot.lane.b32.xlu0 %v1656, 126
  %v1701 = vpop.permute.xlu0 %1700
  %1702 = vrot.lane.b32.xlu0 %v1678, 126
  %v1703 = vpop.permute.xlu0 %1702
  %1704 = vrot.lane.b32.xlu0 %v1657, 126
  %v1705 = vpop.permute.xlu0 %1704
  %1706 = vrot.lane.b32.xlu0 %v1679, 126
  %v1707 = vpop.permute.xlu0 %1706
  %1708 = vrot.lane.b32.xlu0 %v1658, 126
  %v1709 = vpop.permute.xlu0 %1708
  %1710 = vrot.lane.b32.xlu0 %v1680, 126
  %v1711 = vpop.permute.xlu0 %1710
  %1712 = vrot.lane.b32.xlu0 %v1659, 126
  %v1713 = vpop.permute.xlu0 %1712
  %1714 = vrot.lane.b32.xlu0 %v1681, 126
  %v1715 = vpop.permute.xlu0 %1714
  %1716 = vrot.lane.b32.xlu0 %v1660, 126
  %v1717 = vpop.permute.xlu0 %1716
  %1718 = vrot.lane.b32.xlu0 %v1682, 126
  %v1719 = vpop.permute.xlu0 %1718
  %1720 = vrot.lane.b32.xlu0 %v1661, 126
  %v1721 = vpop.permute.xlu0 %1720
  %1722 = vrot.lane.b32.xlu0 %v1683, 126
  %v1723 = vpop.permute.xlu0 %1722
  %1724 = vrot.lane.b32.xlu0 %v1662, 126
  %v1725 = vpop.permute.xlu0 %1724
  %vm1726 = vcmask 1031168
  %v1727 = vsel %vm1726, %v1685, %v1687
  %v1728 = vsel %vm1726, %v1687, %v1689
  %v1729 = vsel %vm1726, %v1689, %v1691
  %v1730 = vsel %vm1726, %v1691, %v1693
  %v1731 = vsel %vm1726, %v1693, %v1695
  %v1732 = vsel %vm1726, %v1695, %v1697
  %v1733 = vsel %vm1726, %v1697, %v1699
  %v1734 = vsel %vm1726, %v1699, %v1701
  %v1735 = vsel %vm1726, %v1701, %v1703
  %v1736 = vsel %vm1726, %v1703, %v1705
  %v1737 = vsel %vm1726, %v1705, %v1707
  %v1738 = vsel %vm1726, %v1707, %v1709
  %v1739 = vsel %vm1726, %v1709, %v1711
  %v1740 = vsel %vm1726, %v1711, %v1713
  %v1741 = vsel %vm1726, %v1713, %v1715
  %v1742 = vsel %vm1726, %v1715, %v1717
  %v1743 = vsel %vm1726, %v1717, %v1719
  %v1744 = vsel %vm1726, %v1719, %v1721
  %v1745 = vsel %vm1726, %v1721, %v1723
  %v1746 = vsel %vm1726, %v1723, %v1725
  %v1748 = vsel %vm122, %v1651, 0
  %v1750 = vsel %vm126, %v1727, 0
  %v1752 = vsel %vm126, %v1728, 0
  %v1754 = vsel %vm126, %v1729, 0
  %v1756 = vsel %vm126, %v1730, 0
  %v1758 = vsel %vm126, %v1731, 0
  %v1760 = vsel %vm126, %v1732, 0
  %v1762 = vsel %vm126, %v1733, 0
  %v1764 = vsel %vm126, %v1734, 0
  %v1766 = vsel %vm126, %v1735, 0
  %v1768 = vsel %vm126, %v1736, 0
  %v1770 = vsel %vm126, %v1737, 0
  %v1772 = vsel %vm126, %v1738, 0
  %v1774 = vsel %vm126, %v1739, 0
  %v1776 = vsel %vm126, %v1740, 0
  %v1778 = vsel %vm126, %v1741, 0
  %v1780 = vsel %vm126, %v1742, 0
  %v1782 = vsel %vm126, %v1743, 0
  %v1784 = vsel %vm126, %v1744, 0
  %v1786 = vsel %vm126, %v1745, 0
  %v1788 = vsel %vm126, %v1746, 0
  %1790 = vmatprep.subr.mxu0 0.0
  %1791 = vmatpush1.msra.mxu0 0.0
  %1792 = vmatprep.subr.mxu0 0.0
  %1793 = vmatpush1.msra.mxu0 0.0
  %1794 = vmatprep.subr.mxu0 0.0
  %1795 = vmatpush1.msra.mxu0 0.0
  %1796 = vmatprep.subr.mxu0 0.0
  %1797 = vmatpush1.msra.mxu0 0.0
  %1798 = vmatprep.subr.mxu0 0.0
  %1799 = vmatpush1.msra.mxu0 0.0
  %1800 = vmatprep.subr.mxu0 0.0
  %1801 = vmatpush1.msra.mxu0 0.0
  %1802 = vmatprep.subr.mxu0 0.0
  %1803 = vmatpush1.msra.mxu0 0.0
  %1804 = vmatprep.subr.mxu0 0.0
  %1805 = vmatpush1.msra.mxu0 0.0
  %1806 = vmatprep.subr.mxu0 0.0
  %1807 = vmatpush1.msra.mxu0 0.0
  %1808 = vmatprep.subr.mxu0 0.0
  %1809 = vmatpush1.msra.mxu0 0.0
  %1810 = vmatprep.subr.mxu0 0.0
  %1811 = vmatpush1.msra.mxu0 0.0
  %1812 = vmatprep.subr.mxu0 0.0
  %1813 = vmatpush1.msra.mxu0 0.0
  %1814 = vmatprep.subr.mxu0 0.0
  %1815 = vmatpush1.msra.mxu0 0.0
  %1816 = vmatprep.subr.mxu0 0.0
  %1817 = vmatpush1.msra.mxu0 0.0
  %1818 = vmatprep.subr.mxu0 0.0
  %1819 = vmatpush1.msra.mxu0 0.0
  %1820 = vmatprep.subr.mxu0 %v1752
  %1821 = vmatpush1.msra.mxu0 %v1750
  %1822 = vmatprep.subr.mxu0 0.0
  %1823 = vmatpush2.msra.mxu0 0.0
  %1824 = vmatprep.subr.mxu0 0.0
  %1825 = vmatpush2.msra.mxu0 0.0
  %1826 = vmatprep.subr.mxu0 0.0
  %1827 = vmatpush2.msra.mxu0 0.0
  %1828 = vmatprep.subr.mxu0 0.0
  %1829 = vmatpush2.msra.mxu0 0.0
  %1830 = vmatprep.subr.mxu0 0.0
  %1831 = vmatpush2.msra.mxu0 0.0
  %1832 = vmatprep.subr.mxu0 0.0
  %1833 = vmatpush2.msra.mxu0 0.0
  %1834 = vmatprep.subr.mxu0 0.0
  %1835 = vmatpush2.msra.mxu0 0.0
  %1836 = vmatprep.subr.mxu0 0.0
  %1837 = vmatpush2.msra.mxu0 0.0
  %1838 = vmatprep.subr.mxu0 0.0
  %1839 = vmatpush2.msra.mxu0 0.0
  %1840 = vmatprep.subr.mxu0 0.0
  %1841 = vmatpush2.msra.mxu0 0.0
  %1842 = vmatprep.subr.mxu0 0.0
  %1843 = vmatpush2.msra.mxu0 0.0
  %1844 = vmatprep.subr.mxu0 0.0
  %1845 = vmatpush2.msra.mxu0 0.0
  %1846 = vmatprep.subr.mxu0 0.0
  %1847 = vmatpush2.msra.mxu0 0.0
  %1848 = vmatprep.subr.mxu0 0.0
  %1849 = vmatpush2.msra.mxu0 0.0
  %1850 = vmatprep.subr.mxu0 0.0
  %1851 = vmatpush2.msra.mxu0 0.0
  %1852 = vmatprep.subr.mxu0 0.0
  %1853 = vmatpush2.msra.mxu0 0.0
  %1854 = vmatprep.mubr.f32.mxu0 0.0
  %1855 = vmatmul.mubr.f32.gmra.mxu0 %v1748
  %v1856 = vpop.f32.mrf.mxu0
  %v1857 = vadd.f32 0.0, %v1856
  %v1858 = vpop.f32.mrf.mxu0
  %v1859 = vadd.f32 0.0, %v1858
  %1860 = vdwg.mxu0
  %1861 = vmatprep.subr.mxu0 0.0
  %1862 = vmatpush1.msra.mxu0 0.0
  %1863 = vmatprep.subr.mxu0 0.0
  %1864 = vmatpush1.msra.mxu0 0.0
  %1865 = vmatprep.subr.mxu0 0.0
  %1866 = vmatpush1.msra.mxu0 0.0
  %1867 = vmatprep.subr.mxu0 0.0
  %1868 = vmatpush1.msra.mxu0 0.0
  %1869 = vmatprep.subr.mxu0 0.0
  %1870 = vmatpush1.msra.mxu0 0.0
  %1871 = vmatprep.subr.mxu0 0.0
  %1872 = vmatpush1.msra.mxu0 0.0
  %1873 = vmatprep.subr.mxu0 0.0
  %1874 = vmatpush1.msra.mxu0 0.0
  %1875 = vmatprep.subr.mxu0 0.0
  %1876 = vmatpush1.msra.mxu0 0.0
  %1877 = vmatprep.subr.mxu0 0.0
  %1878 = vmatpush1.msra.mxu0 0.0
  %1879 = vmatprep.subr.mxu0 0.0
  %1880 = vmatpush1.msra.mxu0 0.0
  %1881 = vmatprep.subr.mxu0 0.0
  %1882 = vmatpush1.msra.mxu0 0.0
  %1883 = vmatprep.subr.mxu0 0.0
  %1884 = vmatpush1.msra.mxu0 0.0
  %1885 = vmatprep.subr.mxu0 0.0
  %1886 = vmatpush1.msra.mxu0 0.0
  %1887 = vmatprep.subr.mxu0 0.0
  %1888 = vmatpush1.msra.mxu0 0.0
  %1889 = vmatprep.subr.mxu0 0.0
  %1890 = vmatpush1.msra.mxu0 0.0
  %1891 = vmatprep.subr.mxu0 %v1756
  %1892 = vmatpush1.msra.mxu0 %v1754
  %1893 = vmatprep.subr.mxu0 0.0
  %1894 = vmatpush2.msra.mxu0 0.0
  %1895 = vmatprep.subr.mxu0 0.0
  %1896 = vmatpush2.msra.mxu0 0.0
  %1897 = vmatprep.subr.mxu0 0.0
  %1898 = vmatpush2.msra.mxu0 0.0
  %1899 = vmatprep.subr.mxu0 0.0
  %1900 = vmatpush2.msra.mxu0 0.0
  %1901 = vmatprep.subr.mxu0 0.0
  %1902 = vmatpush2.msra.mxu0 0.0
  %1903 = vmatprep.subr.mxu0 0.0
  %1904 = vmatpush2.msra.mxu0 0.0
  %1905 = vmatprep.subr.mxu0 0.0
  %1906 = vmatpush2.msra.mxu0 0.0
  %1907 = vmatprep.subr.mxu0 0.0
  %1908 = vmatpush2.msra.mxu0 0.0
  %1909 = vmatprep.subr.mxu0 0.0
  %1910 = vmatpush2.msra.mxu0 0.0
  %1911 = vmatprep.subr.mxu0 0.0
  %1912 = vmatpush2.msra.mxu0 0.0
  %1913 = vmatprep.subr.mxu0 0.0
  %1914 = vmatpush2.msra.mxu0 0.0
  %1915 = vmatprep.subr.mxu0 0.0
  %1916 = vmatpush2.msra.mxu0 0.0
  %1917 = vmatprep.subr.mxu0 0.0
  %1918 = vmatpush2.msra.mxu0 0.0
  %1919 = vmatprep.subr.mxu0 0.0
  %1920 = vmatpush2.msra.mxu0 0.0
  %1921 = vmatprep.subr.mxu0 0.0
  %1922 = vmatpush2.msra.mxu0 0.0
  %1923 = vmatprep.subr.mxu0 0.0
  %1924 = vmatpush2.msra.mxu0 0.0
  %1925 = vmatprep.mubr.f32.mxu0 0.0
  %1926 = vmatmul.mubr.f32.gmra.mxu0 %v1748
  %v1927 = vpop.f32.mrf.mxu0
  %v1928 = vadd.f32 0.0, %v1927
  %v1929 = vpop.f32.mrf.mxu0
  %v1930 = vadd.f32 0.0, %v1929
  %1931 = vdwg.mxu0
  %1932 = vmatprep.subr.mxu0 0.0
  %1933 = vmatpush1.msra.mxu0 0.0
  %1934 = vmatprep.subr.mxu0 0.0
  %1935 = vmatpush1.msra.mxu0 0.0
  %1936 = vmatprep.subr.mxu0 0.0
  %1937 = vmatpush1.msra.mxu0 0.0
  %1938 = vmatprep.subr.mxu0 0.0
  %1939 = vmatpush1.msra.mxu0 0.0
  %1940 = vmatprep.subr.mxu0 0.0
  %1941 = vmatpush1.msra.mxu0 0.0
  %1942 = vmatprep.subr.mxu0 0.0
  %1943 = vmatpush1.msra.mxu0 0.0
  %1944 = vmatprep.subr.mxu0 0.0
  %1945 = vmatpush1.msra.mxu0 0.0
  %1946 = vmatprep.subr.mxu0 0.0
  %1947 = vmatpush1.msra.mxu0 0.0
  %1948 = vmatprep.subr.mxu0 0.0
  %1949 = vmatpush1.msra.mxu0 0.0
  %1950 = vmatprep.subr.mxu0 0.0
  %1951 = vmatpush1.msra.mxu0 0.0
  %1952 = vmatprep.subr.mxu0 0.0
  %1953 = vmatpush1.msra.mxu0 0.0
  %1954 = vmatprep.subr.mxu0 0.0
  %1955 = vmatpush1.msra.mxu0 0.0
  %1956 = vmatprep.subr.mxu0 0.0
  %1957 = vmatpush1.msra.mxu0 0.0
  %1958 = vmatprep.subr.mxu0 0.0
  %1959 = vmatpush1.msra.mxu0 0.0
  %1960 = vmatprep.subr.mxu0 0.0
  %1961 = vmatpush1.msra.mxu0 0.0
  %1962 = vmatprep.subr.mxu0 %v1760
  %1963 = vmatpush1.msra.mxu0 %v1758
  %1964 = vmatprep.subr.mxu0 0.0
  %1965 = vmatpush2.msra.mxu0 0.0
  %1966 = vmatprep.subr.mxu0 0.0
  %1967 = vmatpush2.msra.mxu0 0.0
  %1968 = vmatprep.subr.mxu0 0.0
  %1969 = vmatpush2.msra.mxu0 0.0
  %1970 = vmatprep.subr.mxu0 0.0
  %1971 = vmatpush2.msra.mxu0 0.0
  %1972 = vmatprep.subr.mxu0 0.0
  %1973 = vmatpush2.msra.mxu0 0.0
  %1974 = vmatprep.subr.mxu0 0.0
  %1975 = vmatpush2.msra.mxu0 0.0
  %1976 = vmatprep.subr.mxu0 0.0
  %1977 = vmatpush2.msra.mxu0 0.0
  %1978 = vmatprep.subr.mxu0 0.0
  %1979 = vmatpush2.msra.mxu0 0.0
  %1980 = vmatprep.subr.mxu0 0.0
  %1981 = vmatpush2.msra.mxu0 0.0
  %1982 = vmatprep.subr.mxu0 0.0
  %1983 = vmatpush2.msra.mxu0 0.0
  %1984 = vmatprep.subr.mxu0 0.0
  %1985 = vmatpush2.msra.mxu0 0.0
  %1986 = vmatprep.subr.mxu0 0.0
  %1987 = vmatpush2.msra.mxu0 0.0
  %1988 = vmatprep.subr.mxu0 0.0
  %1989 = vmatpush2.msra.mxu0 0.0
  %1990 = vmatprep.subr.mxu0 0.0
  %1991 = vmatpush2.msra.mxu0 0.0
  %1992 = vmatprep.subr.mxu0 0.0
  %1993 = vmatpush2.msra.mxu0 0.0
  %1994 = vmatprep.subr.mxu0 0.0
  %1995 = vmatpush2.msra.mxu0 0.0
  %1996 = vmatprep.mubr.f32.mxu0 0.0
  %1997 = vmatmul.mubr.f32.gmra.mxu0 %v1748
  %v1998 = vpop.f32.mrf.mxu0
  %v1999 = vadd.f32 0.0, %v1998
  %v2000 = vpop.f32.mrf.mxu0
  %v2001 = vadd.f32 0.0, %v2000
  %2002 = vdwg.mxu0
  %2003 = vmatprep.subr.mxu0 0.0
  %2004 = vmatpush1.msra.mxu0 0.0
  %2005 = vmatprep.subr.mxu0 0.0
  %2006 = vmatpush1.msra.mxu0 0.0
  %2007 = vmatprep.subr.mxu0 0.0
  %2008 = vmatpush1.msra.mxu0 0.0
  %2009 = vmatprep.subr.mxu0 0.0
  %2010 = vmatpush1.msra.mxu0 0.0
  %2011 = vmatprep.subr.mxu0 0.0
  %2012 = vmatpush1.msra.mxu0 0.0
  %2013 = vmatprep.subr.mxu0 0.0
  %2014 = vmatpush1.msra.mxu0 0.0
  %2015 = vmatprep.subr.mxu0 0.0
  %2016 = vmatpush1.msra.mxu0 0.0
  %2017 = vmatprep.subr.mxu0 0.0
  %2018 = vmatpush1.msra.mxu0 0.0
  %2019 = vmatprep.subr.mxu0 0.0
  %2020 = vmatpush1.msra.mxu0 0.0
  %2021 = vmatprep.subr.mxu0 0.0
  %2022 = vmatpush1.msra.mxu0 0.0
  %2023 = vmatprep.subr.mxu0 0.0
  %2024 = vmatpush1.msra.mxu0 0.0
  %2025 = vmatprep.subr.mxu0 0.0
  %2026 = vmatpush1.msra.mxu0 0.0
  %2027 = vmatprep.subr.mxu0 0.0
  %2028 = vmatpush1.msra.mxu0 0.0
  %2029 = vmatprep.subr.mxu0 0.0
  %2030 = vmatpush1.msra.mxu0 0.0
  %2031 = vmatprep.subr.mxu0 0.0
  %2032 = vmatpush1.msra.mxu0 0.0
  %2033 = vmatprep.subr.mxu0 %v1764
  %2034 = vmatpush1.msra.mxu0 %v1762
  %2035 = vmatprep.subr.mxu0 0.0
  %2036 = vmatpush2.msra.mxu0 0.0
  %2037 = vmatprep.subr.mxu0 0.0
  %2038 = vmatpush2.msra.mxu0 0.0
  %2039 = vmatprep.subr.mxu0 0.0
  %2040 = vmatpush2.msra.mxu0 0.0
  %2041 = vmatprep.subr.mxu0 0.0
  %2042 = vmatpush2.msra.mxu0 0.0
  %2043 = vmatprep.subr.mxu0 0.0
  %2044 = vmatpush2.msra.mxu0 0.0
  %2045 = vmatprep.subr.mxu0 0.0
  %2046 = vmatpush2.msra.mxu0 0.0
  %2047 = vmatprep.subr.mxu0 0.0
  %2048 = vmatpush2.msra.mxu0 0.0
  %2049 = vmatprep.subr.mxu0 0.0
  %2050 = vmatpush2.msra.mxu0 0.0
  %2051 = vmatprep.subr.mxu0 0.0
  %2052 = vmatpush2.msra.mxu0 0.0
  %2053 = vmatprep.subr.mxu0 0.0
  %2054 = vmatpush2.msra.mxu0 0.0
  %2055 = vmatprep.subr.mxu0 0.0
  %2056 = vmatpush2.msra.mxu0 0.0
  %2057 = vmatprep.subr.mxu0 0.0
  %2058 = vmatpush2.msra.mxu0 0.0
  %2059 = vmatprep.subr.mxu0 0.0
  %2060 = vmatpush2.msra.mxu0 0.0
  %2061 = vmatprep.subr.mxu0 0.0
  %2062 = vmatpush2.msra.mxu0 0.0
  %2063 = vmatprep.subr.mxu0 0.0
  %2064 = vmatpush2.msra.mxu0 0.0
  %2065 = vmatprep.subr.mxu0 0.0
  %2066 = vmatpush2.msra.mxu0 0.0
  %2067 = vmatprep.mubr.f32.mxu0 0.0
  %2068 = vmatmul.mubr.f32.gmra.mxu0 %v1748
  %v2069 = vpop.f32.mrf.mxu0
  %v2070 = vadd.f32 0.0, %v2069
  %v2071 = vpop.f32.mrf.mxu0
  %v2072 = vadd.f32 0.0, %v2071
  %2073 = vdwg.mxu0
  %2074 = vmatprep.subr.mxu0 0.0
  %2075 = vmatpush1.msra.mxu0 0.0
  %2076 = vmatprep.subr.mxu0 0.0
  %2077 = vmatpush1.msra.mxu0 0.0
  %2078 = vmatprep.subr.mxu0 0.0
  %2079 = vmatpush1.msra.mxu0 0.0
  %2080 = vmatprep.subr.mxu0 0.0
  %2081 = vmatpush1.msra.mxu0 0.0
  %2082 = vmatprep.subr.mxu0 0.0
  %2083 = vmatpush1.msra.mxu0 0.0
  %2084 = vmatprep.subr.mxu0 0.0
  %2085 = vmatpush1.msra.mxu0 0.0
  %2086 = vmatprep.subr.mxu0 0.0
  %2087 = vmatpush1.msra.mxu0 0.0
  %2088 = vmatprep.subr.mxu0 0.0
  %2089 = vmatpush1.msra.mxu0 0.0
  %2090 = vmatprep.subr.mxu0 0.0
  %2091 = vmatpush1.msra.mxu0 0.0
  %2092 = vmatprep.subr.mxu0 0.0
  %2093 = vmatpush1.msra.mxu0 0.0
  %2094 = vmatprep.subr.mxu0 0.0
  %2095 = vmatpush1.msra.mxu0 0.0
  %2096 = vmatprep.subr.mxu0 0.0
  %2097 = vmatpush1.msra.mxu0 0.0
  %2098 = vmatprep.subr.mxu0 0.0
  %2099 = vmatpush1.msra.mxu0 0.0
  %2100 = vmatprep.subr.mxu0 0.0
  %2101 = vmatpush1.msra.mxu0 0.0
  %2102 = vmatprep.subr.mxu0 0.0
  %2103 = vmatpush1.msra.mxu0 0.0
  %2104 = vmatprep.subr.mxu0 %v1768
  %2105 = vmatpush1.msra.mxu0 %v1766
  %2106 = vmatprep.subr.mxu0 0.0
  %2107 = vmatpush2.msra.mxu0 0.0
  %2108 = vmatprep.subr.mxu0 0.0
  %2109 = vmatpush2.msra.mxu0 0.0
  %2110 = vmatprep.subr.mxu0 0.0
  %2111 = vmatpush2.msra.mxu0 0.0
  %2112 = vmatprep.subr.mxu0 0.0
  %2113 = vmatpush2.msra.mxu0 0.0
  %2114 = vmatprep.subr.mxu0 0.0
  %2115 = vmatpush2.msra.mxu0 0.0
  %2116 = vmatprep.subr.mxu0 0.0
  %2117 = vmatpush2.msra.mxu0 0.0
  %2118 = vmatprep.subr.mxu0 0.0
  %2119 = vmatpush2.msra.mxu0 0.0
  %2120 = vmatprep.subr.mxu0 0.0
  %2121 = vmatpush2.msra.mxu0 0.0
  %2122 = vmatprep.subr.mxu0 0.0
  %2123 = vmatpush2.msra.mxu0 0.0
  %2124 = vmatprep.subr.mxu0 0.0
  %2125 = vmatpush2.msra.mxu0 0.0
  %2126 = vmatprep.subr.mxu0 0.0
  %2127 = vmatpush2.msra.mxu0 0.0
  %2128 = vmatprep.subr.mxu0 0.0
  %2129 = vmatpush2.msra.mxu0 0.0
  %2130 = vmatprep.subr.mxu0 0.0
  %2131 = vmatpush2.msra.mxu0 0.0
  %2132 = vmatprep.subr.mxu0 0.0
  %2133 = vmatpush2.msra.mxu0 0.0
  %2134 = vmatprep.subr.mxu0 0.0
  %2135 = vmatpush2.msra.mxu0 0.0
  %2136 = vmatprep.subr.mxu0 0.0
  %2137 = vmatpush2.msra.mxu0 0.0
  %2138 = vmatprep.mubr.f32.mxu0 0.0
  %2139 = vmatmul.mubr.f32.gmra.mxu0 %v1748
  %v2140 = vpop.f32.mrf.mxu0
  %v2141 = vadd.f32 0.0, %v2140
  %v2142 = vpop.f32.mrf.mxu0
  %v2143 = vadd.f32 0.0, %v2142
  %2144 = vdwg.mxu0
  %2145 = vmatprep.subr.mxu0 0.0
  %2146 = vmatpush1.msra.mxu0 0.0
  %2147 = vmatprep.subr.mxu0 0.0
  %2148 = vmatpush1.msra.mxu0 0.0
  %2149 = vmatprep.subr.mxu0 0.0
  %2150 = vmatpush1.msra.mxu0 0.0
  %2151 = vmatprep.subr.mxu0 0.0
  %2152 = vmatpush1.msra.mxu0 0.0
  %2153 = vmatprep.subr.mxu0 0.0
  %2154 = vmatpush1.msra.mxu0 0.0
  %2155 = vmatprep.subr.mxu0 0.0
  %2156 = vmatpush1.msra.mxu0 0.0
  %2157 = vmatprep.subr.mxu0 0.0
  %2158 = vmatpush1.msra.mxu0 0.0
  %2159 = vmatprep.subr.mxu0 0.0
  %2160 = vmatpush1.msra.mxu0 0.0
  %2161 = vmatprep.subr.mxu0 0.0
  %2162 = vmatpush1.msra.mxu0 0.0
  %2163 = vmatprep.subr.mxu0 0.0
  %2164 = vmatpush1.msra.mxu0 0.0
  %2165 = vmatprep.subr.mxu0 0.0
  %2166 = vmatpush1.msra.mxu0 0.0
  %2167 = vmatprep.subr.mxu0 0.0
  %2168 = vmatpush1.msra.mxu0 0.0
  %2169 = vmatprep.subr.mxu0 0.0
  %2170 = vmatpush1.msra.mxu0 0.0
  %2171 = vmatprep.subr.mxu0 0.0
  %2172 = vmatpush1.msra.mxu0 0.0
  %2173 = vmatprep.subr.mxu0 0.0
  %2174 = vmatpush1.msra.mxu0 0.0
  %2175 = vmatprep.subr.mxu0 %v1772
  %2176 = vmatpush1.msra.mxu0 %v1770
  %2177 = vmatprep.subr.mxu0 0.0
  %2178 = vmatpush2.msra.mxu0 0.0
  %2179 = vmatprep.subr.mxu0 0.0
  %2180 = vmatpush2.msra.mxu0 0.0
  %2181 = vmatprep.subr.mxu0 0.0
  %2182 = vmatpush2.msra.mxu0 0.0
  %2183 = vmatprep.subr.mxu0 0.0
  %2184 = vmatpush2.msra.mxu0 0.0
  %2185 = vmatprep.subr.mxu0 0.0
  %2186 = vmatpush2.msra.mxu0 0.0
  %2187 = vmatprep.subr.mxu0 0.0
  %2188 = vmatpush2.msra.mxu0 0.0
  %2189 = vmatprep.subr.mxu0 0.0
  %2190 = vmatpush2.msra.mxu0 0.0
  %2191 = vmatprep.subr.mxu0 0.0
  %2192 = vmatpush2.msra.mxu0 0.0
  %2193 = vmatprep.subr.mxu0 0.0
  %2194 = vmatpush2.msra.mxu0 0.0
  %2195 = vmatprep.subr.mxu0 0.0
  %2196 = vmatpush2.msra.mxu0 0.0
  %2197 = vmatprep.subr.mxu0 0.0
  %2198 = vmatpush2.msra.mxu0 0.0
  %2199 = vmatprep.subr.mxu0 0.0
  %2200 = vmatpush2.msra.mxu0 0.0
  %2201 = vmatprep.subr.mxu0 0.0
  %2202 = vmatpush2.msra.mxu0 0.0
  %2203 = vmatprep.subr.mxu0 0.0
  %2204 = vmatpush2.msra.mxu0 0.0
  %2205 = vmatprep.subr.mxu0 0.0
  %2206 = vmatpush2.msra.mxu0 0.0
  %2207 = vmatprep.subr.mxu0 0.0
  %2208 = vmatpush2.msra.mxu0 0.0
  %2209 = vmatprep.mubr.f32.mxu0 0.0
  %2210 = vmatmul.mubr.f32.gmra.mxu0 %v1748
  %v2211 = vpop.f32.mrf.mxu0
  %v2212 = vadd.f32 0.0, %v2211
  %v2213 = vpop.f32.mrf.mxu0
  %v2214 = vadd.f32 0.0, %v2213
  %2215 = vdwg.mxu0
  %2216 = vmatprep.subr.mxu0 0.0
  %2217 = vmatpush1.msra.mxu0 0.0
  %2218 = vmatprep.subr.mxu0 0.0
  %2219 = vmatpush1.msra.mxu0 0.0
  %2220 = vmatprep.subr.mxu0 0.0
  %2221 = vmatpush1.msra.mxu0 0.0
  %2222 = vmatprep.subr.mxu0 0.0
  %2223 = vmatpush1.msra.mxu0 0.0
  %2224 = vmatprep.subr.mxu0 0.0
  %2225 = vmatpush1.msra.mxu0 0.0
  %2226 = vmatprep.subr.mxu0 0.0
  %2227 = vmatpush1.msra.mxu0 0.0
  %2228 = vmatprep.subr.mxu0 0.0
  %2229 = vmatpush1.msra.mxu0 0.0
  %2230 = vmatprep.subr.mxu0 0.0
  %2231 = vmatpush1.msra.mxu0 0.0
  %2232 = vmatprep.subr.mxu0 0.0
  %2233 = vmatpush1.msra.mxu0 0.0
  %2234 = vmatprep.subr.mxu0 0.0
  %2235 = vmatpush1.msra.mxu0 0.0
  %2236 = vmatprep.subr.mxu0 0.0
  %2237 = vmatpush1.msra.mxu0 0.0
  %2238 = vmatprep.subr.mxu0 0.0
  %2239 = vmatpush1.msra.mxu0 0.0
  %2240 = vmatprep.subr.mxu0 0.0
  %2241 = vmatpush1.msra.mxu0 0.0
  %2242 = vmatprep.subr.mxu0 0.0
  %2243 = vmatpush1.msra.mxu0 0.0
  %2244 = vmatprep.subr.mxu0 0.0
  %2245 = vmatpush1.msra.mxu0 0.0
  %2246 = vmatprep.subr.mxu0 %v1776
  %2247 = vmatpush1.msra.mxu0 %v1774
  %2248 = vmatprep.subr.mxu0 0.0
  %2249 = vmatpush2.msra.mxu0 0.0
  %2250 = vmatprep.subr.mxu0 0.0
  %2251 = vmatpush2.msra.mxu0 0.0
  %2252 = vmatprep.subr.mxu0 0.0
  %2253 = vmatpush2.msra.mxu0 0.0
  %2254 = vmatprep.subr.mxu0 0.0
  %2255 = vmatpush2.msra.mxu0 0.0
  %2256 = vmatprep.subr.mxu0 0.0
  %2257 = vmatpush2.msra.mxu0 0.0
  %2258 = vmatprep.subr.mxu0 0.0
  %2259 = vmatpush2.msra.mxu0 0.0
  %2260 = vmatprep.subr.mxu0 0.0
  %2261 = vmatpush2.msra.mxu0 0.0
  %2262 = vmatprep.subr.mxu0 0.0
  %2263 = vmatpush2.msra.mxu0 0.0
  %2264 = vmatprep.subr.mxu0 0.0
  %2265 = vmatpush2.msra.mxu0 0.0
  %2266 = vmatprep.subr.mxu0 0.0
  %2267 = vmatpush2.msra.mxu0 0.0
  %2268 = vmatprep.subr.mxu0 0.0
  %2269 = vmatpush2.msra.mxu0 0.0
  %2270 = vmatprep.subr.mxu0 0.0
  %2271 = vmatpush2.msra.mxu0 0.0
  %2272 = vmatprep.subr.mxu0 0.0
  %2273 = vmatpush2.msra.mxu0 0.0
  %2274 = vmatprep.subr.mxu0 0.0
  %2275 = vmatpush2.msra.mxu0 0.0
  %2276 = vmatprep.subr.mxu0 0.0
  %2277 = vmatpush2.msra.mxu0 0.0
  %2278 = vmatprep.subr.mxu0 0.0
  %2279 = vmatpush2.msra.mxu0 0.0
  %2280 = vmatprep.mubr.f32.mxu0 0.0
  %2281 = vmatmul.mubr.f32.gmra.mxu0 %v1748
  %v2282 = vpop.f32.mrf.mxu0
  %v2283 = vadd.f32 0.0, %v2282
  %v2284 = vpop.f32.mrf.mxu0
  %v2285 = vadd.f32 0.0, %v2284
  %2286 = vdwg.mxu0
  %2287 = vmatprep.subr.mxu0 0.0
  %2288 = vmatpush1.msra.mxu0 0.0
  %2289 = vmatprep.subr.mxu0 0.0
  %2290 = vmatpush1.msra.mxu0 0.0
  %2291 = vmatprep.subr.mxu0 0.0
  %2292 = vmatpush1.msra.mxu0 0.0
  %2293 = vmatprep.subr.mxu0 0.0
  %2294 = vmatpush1.msra.mxu0 0.0
  %2295 = vmatprep.subr.mxu0 0.0
  %2296 = vmatpush1.msra.mxu0 0.0
  %2297 = vmatprep.subr.mxu0 0.0
  %2298 = vmatpush1.msra.mxu0 0.0
  %2299 = vmatprep.subr.mxu0 0.0
  %2300 = vmatpush1.msra.mxu0 0.0
  %2301 = vmatprep.subr.mxu0 0.0
  %2302 = vmatpush1.msra.mxu0 0.0
  %2303 = vmatprep.subr.mxu0 0.0
  %2304 = vmatpush1.msra.mxu0 0.0
  %2305 = vmatprep.subr.mxu0 0.0
  %2306 = vmatpush1.msra.mxu0 0.0
  %2307 = vmatprep.subr.mxu0 0.0
  %2308 = vmatpush1.msra.mxu0 0.0
  %2309 = vmatprep.subr.mxu0 0.0
  %2310 = vmatpush1.msra.mxu0 0.0
  %2311 = vmatprep.subr.mxu0 0.0
  %2312 = vmatpush1.msra.mxu0 0.0
  %2313 = vmatprep.subr.mxu0 0.0
  %2314 = vmatpush1.msra.mxu0 0.0
  %2315 = vmatprep.subr.mxu0 0.0
  %2316 = vmatpush1.msra.mxu0 0.0
  %2317 = vmatprep.subr.mxu0 %v1780
  %2318 = vmatpush1.msra.mxu0 %v1778
  %2319 = vmatprep.subr.mxu0 0.0
  %2320 = vmatpush2.msra.mxu0 0.0
  %2321 = vmatprep.subr.mxu0 0.0
  %2322 = vmatpush2.msra.mxu0 0.0
  %2323 = vmatprep.subr.mxu0 0.0
  %2324 = vmatpush2.msra.mxu0 0.0
  %2325 = vmatprep.subr.mxu0 0.0
  %2326 = vmatpush2.msra.mxu0 0.0
  %2327 = vmatprep.subr.mxu0 0.0
  %2328 = vmatpush2.msra.mxu0 0.0
  %2329 = vmatprep.subr.mxu0 0.0
  %2330 = vmatpush2.msra.mxu0 0.0
  %2331 = vmatprep.subr.mxu0 0.0
  %2332 = vmatpush2.msra.mxu0 0.0
  %2333 = vmatprep.subr.mxu0 0.0
  %2334 = vmatpush2.msra.mxu0 0.0
  %2335 = vmatprep.subr.mxu0 0.0
  %2336 = vmatpush2.msra.mxu0 0.0
  %2337 = vmatprep.subr.mxu0 0.0
  %2338 = vmatpush2.msra.mxu0 0.0
  %2339 = vmatprep.subr.mxu0 0.0
  %2340 = vmatpush2.msra.mxu0 0.0
  %2341 = vmatprep.subr.mxu0 0.0
  %2342 = vmatpush2.msra.mxu0 0.0
  %2343 = vmatprep.subr.mxu0 0.0
  %2344 = vmatpush2.msra.mxu0 0.0
  %2345 = vmatprep.subr.mxu0 0.0
  %2346 = vmatpush2.msra.mxu0 0.0
  %2347 = vmatprep.subr.mxu0 0.0
  %2348 = vmatpush2.msra.mxu0 0.0
  %2349 = vmatprep.subr.mxu0 0.0
  %2350 = vmatpush2.msra.mxu0 0.0
  %2351 = vmatprep.mubr.f32.mxu0 0.0
  %2352 = vmatmul.mubr.f32.gmra.mxu0 %v1748
  %v2353 = vpop.f32.mrf.mxu0
  %v2354 = vadd.f32 0.0, %v2353
  %v2355 = vpop.f32.mrf.mxu0
  %v2356 = vadd.f32 0.0, %v2355
  %2357 = vdwg.mxu0
  %2358 = vmatprep.subr.mxu0 0.0
  %2359 = vmatpush1.msra.mxu0 0.0
  %2360 = vmatprep.subr.mxu0 0.0
  %2361 = vmatpush1.msra.mxu0 0.0
  %2362 = vmatprep.subr.mxu0 0.0
  %2363 = vmatpush1.msra.mxu0 0.0
  %2364 = vmatprep.subr.mxu0 0.0
  %2365 = vmatpush1.msra.mxu0 0.0
  %2366 = vmatprep.subr.mxu0 0.0
  %2367 = vmatpush1.msra.mxu0 0.0
  %2368 = vmatprep.subr.mxu0 0.0
  %2369 = vmatpush1.msra.mxu0 0.0
  %2370 = vmatprep.subr.mxu0 0.0
  %2371 = vmatpush1.msra.mxu0 0.0
  %2372 = vmatprep.subr.mxu0 0.0
  %2373 = vmatpush1.msra.mxu0 0.0
  %2374 = vmatprep.subr.mxu0 0.0
  %2375 = vmatpush1.msra.mxu0 0.0
  %2376 = vmatprep.subr.mxu0 0.0
  %2377 = vmatpush1.msra.mxu0 0.0
  %2378 = vmatprep.subr.mxu0 0.0
  %2379 = vmatpush1.msra.mxu0 0.0
  %2380 = vmatprep.subr.mxu0 0.0
  %2381 = vmatpush1.msra.mxu0 0.0
  %2382 = vmatprep.subr.mxu0 0.0
  %2383 = vmatpush1.msra.mxu0 0.0
  %2384 = vmatprep.subr.mxu0 0.0
  %2385 = vmatpush1.msra.mxu0 0.0
  %2386 = vmatprep.subr.mxu0 0.0
  %2387 = vmatpush1.msra.mxu0 0.0
  %2388 = vmatprep.subr.mxu0 %v1784
  %2389 = vmatpush1.msra.mxu0 %v1782
  %2390 = vmatprep.subr.mxu0 0.0
  %2391 = vmatpush2.msra.mxu0 0.0
  %2392 = vmatprep.subr.mxu0 0.0
  %2393 = vmatpush2.msra.mxu0 0.0
  %2394 = vmatprep.subr.mxu0 0.0
  %2395 = vmatpush2.msra.mxu0 0.0
  %2396 = vmatprep.subr.mxu0 0.0
  %2397 = vmatpush2.msra.mxu0 0.0
  %2398 = vmatprep.subr.mxu0 0.0
  %2399 = vmatpush2.msra.mxu0 0.0
  %2400 = vmatprep.subr.mxu0 0.0
  %2401 = vmatpush2.msra.mxu0 0.0
  %2402 = vmatprep.subr.mxu0 0.0
  %2403 = vmatpush2.msra.mxu0 0.0
  %2404 = vmatprep.subr.mxu0 0.0
  %2405 = vmatpush2.msra.mxu0 0.0
  %2406 = vmatprep.subr.mxu0 0.0
  %2407 = vmatpush2.msra.mxu0 0.0
  %2408 = vmatprep.subr.mxu0 0.0
  %2409 = vmatpush2.msra.mxu0 0.0
  %2410 = vmatprep.subr.mxu0 0.0
  %2411 = vmatpush2.msra.mxu0 0.0
  %2412 = vmatprep.subr.mxu0 0.0
  %2413 = vmatpush2.msra.mxu0 0.0
  %2414 = vmatprep.subr.mxu0 0.0
  %2415 = vmatpush2.msra.mxu0 0.0
  %2416 = vmatprep.subr.mxu0 0.0
  %2417 = vmatpush2.msra.mxu0 0.0
  %2418 = vmatprep.subr.mxu0 0.0
  %2419 = vmatpush2.msra.mxu0 0.0
  %2420 = vmatprep.subr.mxu0 0.0
  %2421 = vmatpush2.msra.mxu0 0.0
  %2422 = vmatprep.mubr.f32.mxu0 0.0
  %2423 = vmatmul.mubr.f32.gmra.mxu0 %v1748
  %v2424 = vpop.f32.mrf.mxu0
  %v2425 = vadd.f32 0.0, %v2424
  %v2426 = vpop.f32.mrf.mxu0
  %v2427 = vadd.f32 0.0, %v2426
  %2428 = vdwg.mxu0
  %2429 = vmatprep.subr.mxu0 0.0
  %2430 = vmatpush1.msra.mxu0 0.0
  %2431 = vmatprep.subr.mxu0 0.0
  %2432 = vmatpush1.msra.mxu0 0.0
  %2433 = vmatprep.subr.mxu0 0.0
  %2434 = vmatpush1.msra.mxu0 0.0
  %2435 = vmatprep.subr.mxu0 0.0
  %2436 = vmatpush1.msra.mxu0 0.0
  %2437 = vmatprep.subr.mxu0 0.0
  %2438 = vmatpush1.msra.mxu0 0.0
  %2439 = vmatprep.subr.mxu0 0.0
  %2440 = vmatpush1.msra.mxu0 0.0
  %2441 = vmatprep.subr.mxu0 0.0
  %2442 = vmatpush1.msra.mxu0 0.0
  %2443 = vmatprep.subr.mxu0 0.0
  %2444 = vmatpush1.msra.mxu0 0.0
  %2445 = vmatprep.subr.mxu0 0.0
  %2446 = vmatpush1.msra.mxu0 0.0
  %2447 = vmatprep.subr.mxu0 0.0
  %2448 = vmatpush1.msra.mxu0 0.0
  %2449 = vmatprep.subr.mxu0 0.0
  %2450 = vmatpush1.msra.mxu0 0.0
  %2451 = vmatprep.subr.mxu0 0.0
  %2452 = vmatpush1.msra.mxu0 0.0
  %2453 = vmatprep.subr.mxu0 0.0
  %2454 = vmatpush1.msra.mxu0 0.0
  %2455 = vmatprep.subr.mxu0 0.0
  %2456 = vmatpush1.msra.mxu0 0.0
  %2457 = vmatprep.subr.mxu0 0.0
  %2458 = vmatpush1.msra.mxu0 0.0
  %2459 = vmatprep.subr.mxu0 %v1788
  %2460 = vmatpush1.msra.mxu0 %v1786
  %2461 = vmatprep.subr.mxu0 0.0
  %2462 = vmatpush2.msra.mxu0 0.0
  %2463 = vmatprep.subr.mxu0 0.0
  %2464 = vmatpush2.msra.mxu0 0.0
  %2465 = vmatprep.subr.mxu0 0.0
  %2466 = vmatpush2.msra.mxu0 0.0
  %2467 = vmatprep.subr.mxu0 0.0
  %2468 = vmatpush2.msra.mxu0 0.0
  %2469 = vmatprep.subr.mxu0 0.0
  %2470 = vmatpush2.msra.mxu0 0.0
  %2471 = vmatprep.subr.mxu0 0.0
  %2472 = vmatpush2.msra.mxu0 0.0
  %2473 = vmatprep.subr.mxu0 0.0
  %2474 = vmatpush2.msra.mxu0 0.0
  %2475 = vmatprep.subr.mxu0 0.0
  %2476 = vmatpush2.msra.mxu0 0.0
  %2477 = vmatprep.subr.mxu0 0.0
  %2478 = vmatpush2.msra.mxu0 0.0
  %2479 = vmatprep.subr.mxu0 0.0
  %2480 = vmatpush2.msra.mxu0 0.0
  %2481 = vmatprep.subr.mxu0 0.0
  %2482 = vmatpush2.msra.mxu0 0.0
  %2483 = vmatprep.subr.mxu0 0.0
  %2484 = vmatpush2.msra.mxu0 0.0
  %2485 = vmatprep.subr.mxu0 0.0
  %2486 = vmatpush2.msra.mxu0 0.0
  %2487 = vmatprep.subr.mxu0 0.0
  %2488 = vmatpush2.msra.mxu0 0.0
  %2489 = vmatprep.subr.mxu0 0.0
  %2490 = vmatpush2.msra.mxu0 0.0
  %2491 = vmatprep.subr.mxu0 0.0
  %2492 = vmatpush2.msra.mxu0 0.0
  %2493 = vmatprep.mubr.f32.mxu0 0.0
  %2494 = vmatmul.mubr.f32.gmra.mxu0 %v1748
  %v2495 = vpop.f32.mrf.mxu0
  %v2496 = vadd.f32 0.0, %v2495
  %v2497 = vpop.f32.mrf.mxu0
  %v2498 = vadd.f32 0.0, %v2497
  %2499 = vdwg.mxu0
  %v2500 = vadd.f32 %v1007, %v1857
  %v2501 = vadd.f32 %v1009, %v1859
  %v2502 = vadd.f32 %v1078, %v1928
  %v2503 = vadd.f32 %v1080, %v1930
  %v2504 = vadd.f32 %v1149, %v1999
  %v2505 = vadd.f32 %v1151, %v2001
  %v2506 = vadd.f32 %v1220, %v2070
  %v2507 = vadd.f32 %v1222, %v2072
  %v2508 = vadd.f32 %v1291, %v2141
  %v2509 = vadd.f32 %v1293, %v2143
  %v2510 = vadd.f32 %v1362, %v2212
  %v2511 = vadd.f32 %v1364, %v2214
  %v2512 = vadd.f32 %v1433, %v2283
  %v2513 = vadd.f32 %v1435, %v2285
  %v2514 = vadd.f32 %v1504, %v2354
  %v2515 = vadd.f32 %v1506, %v2356
  %v2516 = vadd.f32 %v1575, %v2425
  %v2517 = vadd.f32 %v1577, %v2427
  %v2518 = vadd.f32 %v1646, %v2496
  %v2519 = vadd.f32 %v1648, %v2498
  %s2520 = scalar_lea.vmem %s1, 24
  %v2521 = vld [vmem:[%s2520] sm:$0xff]
  %v2522 = vld [vmem:[%s0] sm:$0xff]
  %v2523 = vld [vmem:[%s0 + $0x8] sm:$0xff]
  %v2524 = vld [vmem:[%s0 + $0x10] sm:$0xff]
  %v2525 = vld [vmem:[%s0 + $0x18] sm:$0xff]
  %v2526 = vld [vmem:[%s0 + $0x20] sm:$0xff]
  %v2527 = vld [vmem:[%s0 + $0x28] sm:$0xff]
  %v2528 = vld [vmem:[%s0 + $0x30] sm:$0xff]
  %v2529 = vld [vmem:[%s0 + $0x38] sm:$0xff]
  %v2530 = vld [vmem:[%s0 + $0x40] sm:$0xff]
  %v2531 = vld [vmem:[%s0 + $0x48] sm:$0xff]
  %v2532 = vld [vmem:[%s0 + $0x50] sm:$0xf]
  %v2544 = vcombine.high %v2522, %v2522
  %v2545 = vcombine.high %v2523, %v2523
  %v2546 = vcombine.high %v2524, %v2524
  %v2547 = vcombine.high %v2525, %v2525
  %v2548 = vcombine.high %v2526, %v2526
  %v2549 = vcombine.high %v2527, %v2527
  %v2550 = vcombine.high %v2528, %v2528
  %v2551 = vcombine.high %v2529, %v2529
  %v2552 = vcombine.high %v2530, %v2530
  %v2553 = vcombine.high %v2531, %v2531
  %2554 = vrot.lane.b32.xlu0 %v2522, 94
  %v2555 = vpop.permute.xlu0 %2554
  %2556 = vrot.lane.b32.xlu0 %v2544, 94
  %v2557 = vpop.permute.xlu0 %2556
  %2558 = vrot.lane.b32.xlu0 %v2523, 94
  %v2559 = vpop.permute.xlu0 %2558
  %2560 = vrot.lane.b32.xlu0 %v2545, 94
  %v2561 = vpop.permute.xlu0 %2560
  %2562 = vrot.lane.b32.xlu0 %v2524, 94
  %v2563 = vpop.permute.xlu0 %2562
  %2564 = vrot.lane.b32.xlu0 %v2546, 94
  %v2565 = vpop.permute.xlu0 %2564
  %2566 = vrot.lane.b32.xlu0 %v2525, 94
  %v2567 = vpop.permute.xlu0 %2566
  %2568 = vrot.lane.b32.xlu0 %v2547, 94
  %v2569 = vpop.permute.xlu0 %2568
  %2570 = vrot.lane.b32.xlu0 %v2526, 94
  %v2571 = vpop.permute.xlu0 %2570
  %2572 = vrot.lane.b32.xlu0 %v2548, 94
  %v2573 = vpop.permute.xlu0 %2572
  %2574 = vrot.lane.b32.xlu0 %v2527, 94
  %v2575 = vpop.permute.xlu0 %2574
  %2576 = vrot.lane.b32.xlu0 %v2549, 94
  %v2577 = vpop.permute.xlu0 %2576
  %2578 = vrot.lane.b32.xlu0 %v2528, 94
  %v2579 = vpop.permute.xlu0 %2578
  %2580 = vrot.lane.b32.xlu0 %v2550, 94
  %v2581 = vpop.permute.xlu0 %2580
  %2582 = vrot.lane.b32.xlu0 %v2529, 94
  %v2583 = vpop.permute.xlu0 %2582
  %2584 = vrot.lane.b32.xlu0 %v2551, 94
  %v2585 = vpop.permute.xlu0 %2584
  %2586 = vrot.lane.b32.xlu0 %v2530, 94
  %v2587 = vpop.permute.xlu0 %2586
  %2588 = vrot.lane.b32.xlu0 %v2552, 94
  %v2589 = vpop.permute.xlu0 %2588
  %2590 = vrot.lane.b32.xlu0 %v2531, 94
  %v2591 = vpop.permute.xlu0 %2590
  %2592 = vrot.lane.b32.xlu0 %v2553, 94
  %v2593 = vpop.permute.xlu0 %2592
  %2594 = vrot.lane.b32.xlu0 %v2532, 94
  %v2595 = vpop.permute.xlu0 %2594
  %vm2596 = vcmask 769024
  %v2597 = vsel %vm2596, %v2555, %v2557
  %v2598 = vsel %vm2596, %v2557, %v2559
  %v2599 = vsel %vm2596, %v2559, %v2561
  %v2600 = vsel %vm2596, %v2561, %v2563
  %v2601 = vsel %vm2596, %v2563, %v2565
  %v2602 = vsel %vm2596, %v2565, %v2567
  %v2603 = vsel %vm2596, %v2567, %v2569
  %v2604 = vsel %vm2596, %v2569, %v2571
  %v2605 = vsel %vm2596, %v2571, %v2573
  %v2606 = vsel %vm2596, %v2573, %v2575
  %v2607 = vsel %vm2596, %v2575, %v2577
  %v2608 = vsel %vm2596, %v2577, %v2579
  %v2609 = vsel %vm2596, %v2579, %v2581
  %v2610 = vsel %vm2596, %v2581, %v2583
  %v2611 = vsel %vm2596, %v2583, %v2585
  %v2612 = vsel %vm2596, %v2585, %v2587
  %v2613 = vsel %vm2596, %v2587, %v2589
  %v2614 = vsel %vm2596, %v2589, %v2591
  %v2615 = vsel %vm2596, %v2591, %v2593
  %v2616 = vsel %vm2596, %v2593, %v2595
  %v2618 = vsel %vm122, %v2521, 0
  %v2620 = vsel %vm126, %v2597, 0
  %v2622 = vsel %vm126, %v2598, 0
  %v2624 = vsel %vm126, %v2599, 0
  %v2626 = vsel %vm126, %v2600, 0
  %v2628 = vsel %vm126, %v2601, 0
  %v2630 = vsel %vm126, %v2602, 0
  %v2632 = vsel %vm126, %v2603, 0
  %v2634 = vsel %vm126, %v2604, 0
  %v2636 = vsel %vm126, %v2605, 0
  %v2638 = vsel %vm126, %v2606, 0
  %v2640 = vsel %vm126, %v2607, 0
  %v2642 = vsel %vm126, %v2608, 0
  %v2644 = vsel %vm126, %v2609, 0
  %v2646 = vsel %vm126, %v2610, 0
  %v2648 = vsel %vm126, %v2611, 0
  %v2650 = vsel %vm126, %v2612, 0
  %v2652 = vsel %vm126, %v2613, 0
  %v2654 = vsel %vm126, %v2614, 0
  %v2656 = vsel %vm126, %v2615, 0
  %v2658 = vsel %vm126, %v2616, 0
  %2660 = vmatprep.subr.mxu0 0.0
  %2661 = vmatpush1.msra.mxu0 0.0
  %2662 = vmatprep.subr.mxu0 0.0
  %2663 = vmatpush1.msra.mxu0 0.0
  %2664 = vmatprep.subr.mxu0 0.0
  %2665 = vmatpush1.msra.mxu0 0.0
  %2666 = vmatprep.subr.mxu0 0.0
  %2667 = vmatpush1.msra.mxu0 0.0
  %2668 = vmatprep.subr.mxu0 0.0
  %2669 = vmatpush1.msra.mxu0 0.0
  %2670 = vmatprep.subr.mxu0 0.0
  %2671 = vmatpush1.msra.mxu0 0.0
  %2672 = vmatprep.subr.mxu0 0.0
  %2673 = vmatpush1.msra.mxu0 0.0
  %2674 = vmatprep.subr.mxu0 0.0
  %2675 = vmatpush1.msra.mxu0 0.0
  %2676 = vmatprep.subr.mxu0 0.0
  %2677 = vmatpush1.msra.mxu0 0.0
  %2678 = vmatprep.subr.mxu0 0.0
  %2679 = vmatpush1.msra.mxu0 0.0
  %2680 = vmatprep.subr.mxu0 0.0
  %2681 = vmatpush1.msra.mxu0 0.0
  %2682 = vmatprep.subr.mxu0 0.0
  %2683 = vmatpush1.msra.mxu0 0.0
  %2684 = vmatprep.subr.mxu0 0.0
  %2685 = vmatpush1.msra.mxu0 0.0
  %2686 = vmatprep.subr.mxu0 0.0
  %2687 = vmatpush1.msra.mxu0 0.0
  %2688 = vmatprep.subr.mxu0 0.0
  %2689 = vmatpush1.msra.mxu0 0.0
  %2690 = vmatprep.subr.mxu0 %v2622
  %2691 = vmatpush1.msra.mxu0 %v2620
  %2692 = vmatprep.subr.mxu0 0.0
  %2693 = vmatpush2.msra.mxu0 0.0
  %2694 = vmatprep.subr.mxu0 0.0
  %2695 = vmatpush2.msra.mxu0 0.0
  %2696 = vmatprep.subr.mxu0 0.0
  %2697 = vmatpush2.msra.mxu0 0.0
  %2698 = vmatprep.subr.mxu0 0.0
  %2699 = vmatpush2.msra.mxu0 0.0
  %2700 = vmatprep.subr.mxu0 0.0
  %2701 = vmatpush2.msra.mxu0 0.0
  %2702 = vmatprep.subr.mxu0 0.0
  %2703 = vmatpush2.msra.mxu0 0.0
  %2704 = vmatprep.subr.mxu0 0.0
  %2705 = vmatpush2.msra.mxu0 0.0
  %2706 = vmatprep.subr.mxu0 0.0
  %2707 = vmatpush2.msra.mxu0 0.0
  %2708 = vmatprep.subr.mxu0 0.0
  %2709 = vmatpush2.msra.mxu0 0.0
  %2710 = vmatprep.subr.mxu0 0.0
  %2711 = vmatpush2.msra.mxu0 0.0
  %2712 = vmatprep.subr.mxu0 0.0
  %2713 = vmatpush2.msra.mxu0 0.0
  %2714 = vmatprep.subr.mxu0 0.0
  %2715 = vmatpush2.msra.mxu0 0.0
  %2716 = vmatprep.subr.mxu0 0.0
  %2717 = vmatpush2.msra.mxu0 0.0
  %2718 = vmatprep.subr.mxu0 0.0
  %2719 = vmatpush2.msra.mxu0 0.0
  %2720 = vmatprep.subr.mxu0 0.0
  %2721 = vmatpush2.msra.mxu0 0.0
  %2722 = vmatprep.subr.mxu0 0.0
  %2723 = vmatpush2.msra.mxu0 0.0
  %2724 = vmatprep.mubr.f32.mxu0 0.0
  %2725 = vmatmul.mubr.f32.gmra.mxu0 %v2618
  %v2726 = vpop.f32.mrf.mxu0
  %v2727 = vadd.f32 0.0, %v2726
  %v2728 = vpop.f32.mrf.mxu0
  %v2729 = vadd.f32 0.0, %v2728
  %2730 = vdwg.mxu0
  %2731 = vmatprep.subr.mxu0 0.0
  %2732 = vmatpush1.msra.mxu0 0.0
  %2733 = vmatprep.subr.mxu0 0.0
  %2734 = vmatpush1.msra.mxu0 0.0
  %2735 = vmatprep.subr.mxu0 0.0
  %2736 = vmatpush1.msra.mxu0 0.0
  %2737 = vmatprep.subr.mxu0 0.0
  %2738 = vmatpush1.msra.mxu0 0.0
  %2739 = vmatprep.subr.mxu0 0.0
  %2740 = vmatpush1.msra.mxu0 0.0
  %2741 = vmatprep.subr.mxu0 0.0
  %2742 = vmatpush1.msra.mxu0 0.0
  %2743 = vmatprep.subr.mxu0 0.0
  %2744 = vmatpush1.msra.mxu0 0.0
  %2745 = vmatprep.subr.mxu0 0.0
  %2746 = vmatpush1.msra.mxu0 0.0
  %2747 = vmatprep.subr.mxu0 0.0
  %2748 = vmatpush1.msra.mxu0 0.0
  %2749 = vmatprep.subr.mxu0 0.0
  %2750 = vmatpush1.msra.mxu0 0.0
  %2751 = vmatprep.subr.mxu0 0.0
  %2752 = vmatpush1.msra.mxu0 0.0
  %2753 = vmatprep.subr.mxu0 0.0
  %2754 = vmatpush1.msra.mxu0 0.0
  %2755 = vmatprep.subr.mxu0 0.0
  %2756 = vmatpush1.msra.mxu0 0.0
  %2757 = vmatprep.subr.mxu0 0.0
  %2758 = vmatpush1.msra.mxu0 0.0
  %2759 = vmatprep.subr.mxu0 0.0
  %2760 = vmatpush1.msra.mxu0 0.0
  %2761 = vmatprep.subr.mxu0 %v2626
  %2762 = vmatpush1.msra.mxu0 %v2624
  %2763 = vmatprep.subr.mxu0 0.0
  %2764 = vmatpush2.msra.mxu0 0.0
  %2765 = vmatprep.subr.mxu0 0.0
  %2766 = vmatpush2.msra.mxu0 0.0
  %2767 = vmatprep.subr.mxu0 0.0
  %2768 = vmatpush2.msra.mxu0 0.0
  %2769 = vmatprep.subr.mxu0 0.0
  %2770 = vmatpush2.msra.mxu0 0.0
  %2771 = vmatprep.subr.mxu0 0.0
  %2772 = vmatpush2.msra.mxu0 0.0
  %2773 = vmatprep.subr.mxu0 0.0
  %2774 = vmatpush2.msra.mxu0 0.0
  %2775 = vmatprep.subr.mxu0 0.0
  %2776 = vmatpush2.msra.mxu0 0.0
  %2777 = vmatprep.subr.mxu0 0.0
  %2778 = vmatpush2.msra.mxu0 0.0
  %2779 = vmatprep.subr.mxu0 0.0
  %2780 = vmatpush2.msra.mxu0 0.0
  %2781 = vmatprep.subr.mxu0 0.0
  %2782 = vmatpush2.msra.mxu0 0.0
  %2783 = vmatprep.subr.mxu0 0.0
  %2784 = vmatpush2.msra.mxu0 0.0
  %2785 = vmatprep.subr.mxu0 0.0
  %2786 = vmatpush2.msra.mxu0 0.0
  %2787 = vmatprep.subr.mxu0 0.0
  %2788 = vmatpush2.msra.mxu0 0.0
  %2789 = vmatprep.subr.mxu0 0.0
  %2790 = vmatpush2.msra.mxu0 0.0
  %2791 = vmatprep.subr.mxu0 0.0
  %2792 = vmatpush2.msra.mxu0 0.0
  %2793 = vmatprep.subr.mxu0 0.0
  %2794 = vmatpush2.msra.mxu0 0.0
  %2795 = vmatprep.mubr.f32.mxu0 0.0
  %2796 = vmatmul.mubr.f32.gmra.mxu0 %v2618
  %v2797 = vpop.f32.mrf.mxu0
  %v2798 = vadd.f32 0.0, %v2797
  %v2799 = vpop.f32.mrf.mxu0
  %v2800 = vadd.f32 0.0, %v2799
  %2801 = vdwg.mxu0
  %2802 = vmatprep.subr.mxu0 0.0
  %2803 = vmatpush1.msra.mxu0 0.0
  %2804 = vmatprep.subr.mxu0 0.0
  %2805 = vmatpush1.msra.mxu0 0.0
  %2806 = vmatprep.subr.mxu0 0.0
  %2807 = vmatpush1.msra.mxu0 0.0
  %2808 = vmatprep.subr.mxu0 0.0
  %2809 = vmatpush1.msra.mxu0 0.0
  %2810 = vmatprep.subr.mxu0 0.0
  %2811 = vmatpush1.msra.mxu0 0.0
  %2812 = vmatprep.subr.mxu0 0.0
  %2813 = vmatpush1.msra.mxu0 0.0
  %2814 = vmatprep.subr.mxu0 0.0
  %2815 = vmatpush1.msra.mxu0 0.0
  %2816 = vmatprep.subr.mxu0 0.0
  %2817 = vmatpush1.msra.mxu0 0.0
  %2818 = vmatprep.subr.mxu0 0.0
  %2819 = vmatpush1.msra.mxu0 0.0
  %2820 = vmatprep.subr.mxu0 0.0
  %2821 = vmatpush1.msra.mxu0 0.0
  %2822 = vmatprep.subr.mxu0 0.0
  %2823 = vmatpush1.msra.mxu0 0.0
  %2824 = vmatprep.subr.mxu0 0.0
  %2825 = vmatpush1.msra.mxu0 0.0
  %2826 = vmatprep.subr.mxu0 0.0
  %2827 = vmatpush1.msra.mxu0 0.0
  %2828 = vmatprep.subr.mxu0 0.0
  %2829 = vmatpush1.msra.mxu0 0.0
  %2830 = vmatprep.subr.mxu0 0.0
  %2831 = vmatpush1.msra.mxu0 0.0
  %2832 = vmatprep.subr.mxu0 %v2630
  %2833 = vmatpush1.msra.mxu0 %v2628
  %2834 = vmatprep.subr.mxu0 0.0
  %2835 = vmatpush2.msra.mxu0 0.0
  %2836 = vmatprep.subr.mxu0 0.0
  %2837 = vmatpush2.msra.mxu0 0.0
  %2838 = vmatprep.subr.mxu0 0.0
  %2839 = vmatpush2.msra.mxu0 0.0
  %2840 = vmatprep.subr.mxu0 0.0
  %2841 = vmatpush2.msra.mxu0 0.0
  %2842 = vmatprep.subr.mxu0 0.0
  %2843 = vmatpush2.msra.mxu0 0.0
  %2844 = vmatprep.subr.mxu0 0.0
  %2845 = vmatpush2.msra.mxu0 0.0
  %2846 = vmatprep.subr.mxu0 0.0
  %2847 = vmatpush2.msra.mxu0 0.0
  %2848 = vmatprep.subr.mxu0 0.0
  %2849 = vmatpush2.msra.mxu0 0.0
  %2850 = vmatprep.subr.mxu0 0.0
  %2851 = vmatpush2.msra.mxu0 0.0
  %2852 = vmatprep.subr.mxu0 0.0
  %2853 = vmatpush2.msra.mxu0 0.0
  %2854 = vmatprep.subr.mxu0 0.0
  %2855 = vmatpush2.msra.mxu0 0.0
  %2856 = vmatprep.subr.mxu0 0.0
  %2857 = vmatpush2.msra.mxu0 0.0
  %2858 = vmatprep.subr.mxu0 0.0
  %2859 = vmatpush2.msra.mxu0 0.0
  %2860 = vmatprep.subr.mxu0 0.0
  %2861 = vmatpush2.msra.mxu0 0.0
  %2862 = vmatprep.subr.mxu0 0.0
  %2863 = vmatpush2.msra.mxu0 0.0
  %2864 = vmatprep.subr.mxu0 0.0
  %2865 = vmatpush2.msra.mxu0 0.0
  %2866 = vmatprep.mubr.f32.mxu0 0.0
  %2867 = vmatmul.mubr.f32.gmra.mxu0 %v2618
  %v2868 = vpop.f32.mrf.mxu0
  %v2869 = vadd.f32 0.0, %v2868
  %v2870 = vpop.f32.mrf.mxu0
  %v2871 = vadd.f32 0.0, %v2870
  %2872 = vdwg.mxu0
  %2873 = vmatprep.subr.mxu0 0.0
  %2874 = vmatpush1.msra.mxu0 0.0
  %2875 = vmatprep.subr.mxu0 0.0
  %2876 = vmatpush1.msra.mxu0 0.0
  %2877 = vmatprep.subr.mxu0 0.0
  %2878 = vmatpush1.msra.mxu0 0.0
  %2879 = vmatprep.subr.mxu0 0.0
  %2880 = vmatpush1.msra.mxu0 0.0
  %2881 = vmatprep.subr.mxu0 0.0
  %2882 = vmatpush1.msra.mxu0 0.0
  %2883 = vmatprep.subr.mxu0 0.0
  %2884 = vmatpush1.msra.mxu0 0.0
  %2885 = vmatprep.subr.mxu0 0.0
  %2886 = vmatpush1.msra.mxu0 0.0
  %2887 = vmatprep.subr.mxu0 0.0
  %2888 = vmatpush1.msra.mxu0 0.0
  %2889 = vmatprep.subr.mxu0 0.0
  %2890 = vmatpush1.msra.mxu0 0.0
  %2891 = vmatprep.subr.mxu0 0.0
  %2892 = vmatpush1.msra.mxu0 0.0
  %2893 = vmatprep.subr.mxu0 0.0
  %2894 = vmatpush1.msra.mxu0 0.0
  %2895 = vmatprep.subr.mxu0 0.0
  %2896 = vmatpush1.msra.mxu0 0.0
  %2897 = vmatprep.subr.mxu0 0.0
  %2898 = vmatpush1.msra.mxu0 0.0
  %2899 = vmatprep.subr.mxu0 0.0
  %2900 = vmatpush1.msra.mxu0 0.0
  %2901 = vmatprep.subr.mxu0 0.0
  %2902 = vmatpush1.msra.mxu0 0.0
  %2903 = vmatprep.subr.mxu0 %v2634
  %2904 = vmatpush1.msra.mxu0 %v2632
  %2905 = vmatprep.subr.mxu0 0.0
  %2906 = vmatpush2.msra.mxu0 0.0
  %2907 = vmatprep.subr.mxu0 0.0
  %2908 = vmatpush2.msra.mxu0 0.0
  %2909 = vmatprep.subr.mxu0 0.0
  %2910 = vmatpush2.msra.mxu0 0.0
  %2911 = vmatprep.subr.mxu0 0.0
  %2912 = vmatpush2.msra.mxu0 0.0
  %2913 = vmatprep.subr.mxu0 0.0
  %2914 = vmatpush2.msra.mxu0 0.0
  %2915 = vmatprep.subr.mxu0 0.0
  %2916 = vmatpush2.msra.mxu0 0.0
  %2917 = vmatprep.subr.mxu0 0.0
  %2918 = vmatpush2.msra.mxu0 0.0
  %2919 = vmatprep.subr.mxu0 0.0
  %2920 = vmatpush2.msra.mxu0 0.0
  %2921 = vmatprep.subr.mxu0 0.0
  %2922 = vmatpush2.msra.mxu0 0.0
  %2923 = vmatprep.subr.mxu0 0.0
  %2924 = vmatpush2.msra.mxu0 0.0
  %2925 = vmatprep.subr.mxu0 0.0
  %2926 = vmatpush2.msra.mxu0 0.0
  %2927 = vmatprep.subr.mxu0 0.0
  %2928 = vmatpush2.msra.mxu0 0.0
  %2929 = vmatprep.subr.mxu0 0.0
  %2930 = vmatpush2.msra.mxu0 0.0
  %2931 = vmatprep.subr.mxu0 0.0
  %2932 = vmatpush2.msra.mxu0 0.0
  %2933 = vmatprep.subr.mxu0 0.0
  %2934 = vmatpush2.msra.mxu0 0.0
  %2935 = vmatprep.subr.mxu0 0.0
  %2936 = vmatpush2.msra.mxu0 0.0
  %2937 = vmatprep.mubr.f32.mxu0 0.0
  %2938 = vmatmul.mubr.f32.gmra.mxu0 %v2618
  %v2939 = vpop.f32.mrf.mxu0
  %v2940 = vadd.f32 0.0, %v2939
  %v2941 = vpop.f32.mrf.mxu0
  %v2942 = vadd.f32 0.0, %v2941
  %2943 = vdwg.mxu0
  %2944 = vmatprep.subr.mxu0 0.0
  %2945 = vmatpush1.msra.mxu0 0.0
  %2946 = vmatprep.subr.mxu0 0.0
  %2947 = vmatpush1.msra.mxu0 0.0
  %2948 = vmatprep.subr.mxu0 0.0
  %2949 = vmatpush1.msra.mxu0 0.0
  %2950 = vmatprep.subr.mxu0 0.0
  %2951 = vmatpush1.msra.mxu0 0.0
  %2952 = vmatprep.subr.mxu0 0.0
  %2953 = vmatpush1.msra.mxu0 0.0
  %2954 = vmatprep.subr.mxu0 0.0
  %2955 = vmatpush1.msra.mxu0 0.0
  %2956 = vmatprep.subr.mxu0 0.0
  %2957 = vmatpush1.msra.mxu0 0.0
  %2958 = vmatprep.subr.mxu0 0.0
  %2959 = vmatpush1.msra.mxu0 0.0
  %2960 = vmatprep.subr.mxu0 0.0
  %2961 = vmatpush1.msra.mxu0 0.0
  %2962 = vmatprep.subr.mxu0 0.0
  %2963 = vmatpush1.msra.mxu0 0.0
  %2964 = vmatprep.subr.mxu0 0.0
  %2965 = vmatpush1.msra.mxu0 0.0
  %2966 = vmatprep.subr.mxu0 0.0
  %2967 = vmatpush1.msra.mxu0 0.0
  %2968 = vmatprep.subr.mxu0 0.0
  %2969 = vmatpush1.msra.mxu0 0.0
  %2970 = vmatprep.subr.mxu0 0.0
  %2971 = vmatpush1.msra.mxu0 0.0
  %2972 = vmatprep.subr.mxu0 0.0
  %2973 = vmatpush1.msra.mxu0 0.0
  %2974 = vmatprep.subr.mxu0 %v2638
  %2975 = vmatpush1.msra.mxu0 %v2636
  %2976 = vmatprep.subr.mxu0 0.0
  %2977 = vmatpush2.msra.mxu0 0.0
  %2978 = vmatprep.subr.mxu0 0.0
  %2979 = vmatpush2.msra.mxu0 0.0
  %2980 = vmatprep.subr.mxu0 0.0
  %2981 = vmatpush2.msra.mxu0 0.0
  %2982 = vmatprep.subr.mxu0 0.0
  %2983 = vmatpush2.msra.mxu0 0.0
  %2984 = vmatprep.subr.mxu0 0.0
  %2985 = vmatpush2.msra.mxu0 0.0
  %2986 = vmatprep.subr.mxu0 0.0
  %2987 = vmatpush2.msra.mxu0 0.0
  %2988 = vmatprep.subr.mxu0 0.0
  %2989 = vmatpush2.msra.mxu0 0.0
  %2990 = vmatprep.subr.mxu0 0.0
  %2991 = vmatpush2.msra.mxu0 0.0
  %2992 = vmatprep.subr.mxu0 0.0
  %2993 = vmatpush2.msra.mxu0 0.0
  %2994 = vmatprep.subr.mxu0 0.0
  %2995 = vmatpush2.msra.mxu0 0.0
  %2996 = vmatprep.subr.mxu0 0.0
  %2997 = vmatpush2.msra.mxu0 0.0
  %2998 = vmatprep.subr.mxu0 0.0
  %2999 = vmatpush2.msra.mxu0 0.0
  %3000 = vmatprep.subr.mxu0 0.0
  %3001 = vmatpush2.msra.mxu0 0.0
  %3002 = vmatprep.subr.mxu0 0.0
  %3003 = vmatpush2.msra.mxu0 0.0
  %3004 = vmatprep.subr.mxu0 0.0
  %3005 = vmatpush2.msra.mxu0 0.0
  %3006 = vmatprep.subr.mxu0 0.0
  %3007 = vmatpush2.msra.mxu0 0.0
  %3008 = vmatprep.mubr.f32.mxu0 0.0
  %3009 = vmatmul.mubr.f32.gmra.mxu0 %v2618
  %v3010 = vpop.f32.mrf.mxu0
  %v3011 = vadd.f32 0.0, %v3010
  %v3012 = vpop.f32.mrf.mxu0
  %v3013 = vadd.f32 0.0, %v3012
  %3014 = vdwg.mxu0
  %3015 = vmatprep.subr.mxu0 0.0
  %3016 = vmatpush1.msra.mxu0 0.0
  %3017 = vmatprep.subr.mxu0 0.0
  %3018 = vmatpush1.msra.mxu0 0.0
  %3019 = vmatprep.subr.mxu0 0.0
  %3020 = vmatpush1.msra.mxu0 0.0
  %3021 = vmatprep.subr.mxu0 0.0
  %3022 = vmatpush1.msra.mxu0 0.0
  %3023 = vmatprep.subr.mxu0 0.0
  %3024 = vmatpush1.msra.mxu0 0.0
  %3025 = vmatprep.subr.mxu0 0.0
  %3026 = vmatpush1.msra.mxu0 0.0
  %3027 = vmatprep.subr.mxu0 0.0
  %3028 = vmatpush1.msra.mxu0 0.0
  %3029 = vmatprep.subr.mxu0 0.0
  %3030 = vmatpush1.msra.mxu0 0.0
  %3031 = vmatprep.subr.mxu0 0.0
  %3032 = vmatpush1.msra.mxu0 0.0
  %3033 = vmatprep.subr.mxu0 0.0
  %3034 = vmatpush1.msra.mxu0 0.0
  %3035 = vmatprep.subr.mxu0 0.0
  %3036 = vmatpush1.msra.mxu0 0.0
  %3037 = vmatprep.subr.mxu0 0.0
  %3038 = vmatpush1.msra.mxu0 0.0
  %3039 = vmatprep.subr.mxu0 0.0
  %3040 = vmatpush1.msra.mxu0 0.0
  %3041 = vmatprep.subr.mxu0 0.0
  %3042 = vmatpush1.msra.mxu0 0.0
  %3043 = vmatprep.subr.mxu0 0.0
  %3044 = vmatpush1.msra.mxu0 0.0
  %3045 = vmatprep.subr.mxu0 %v2642
  %3046 = vmatpush1.msra.mxu0 %v2640
  %3047 = vmatprep.subr.mxu0 0.0
  %3048 = vmatpush2.msra.mxu0 0.0
  %3049 = vmatprep.subr.mxu0 0.0
  %3050 = vmatpush2.msra.mxu0 0.0
  %3051 = vmatprep.subr.mxu0 0.0
  %3052 = vmatpush2.msra.mxu0 0.0
  %3053 = vmatprep.subr.mxu0 0.0
  %3054 = vmatpush2.msra.mxu0 0.0
  %3055 = vmatprep.subr.mxu0 0.0
  %3056 = vmatpush2.msra.mxu0 0.0
  %3057 = vmatprep.subr.mxu0 0.0
  %3058 = vmatpush2.msra.mxu0 0.0
  %3059 = vmatprep.subr.mxu0 0.0
  %3060 = vmatpush2.msra.mxu0 0.0
  %3061 = vmatprep.subr.mxu0 0.0
  %3062 = vmatpush2.msra.mxu0 0.0
  %3063 = vmatprep.subr.mxu0 0.0
  %3064 = vmatpush2.msra.mxu0 0.0
  %3065 = vmatprep.subr.mxu0 0.0
  %3066 = vmatpush2.msra.mxu0 0.0
  %3067 = vmatprep.subr.mxu0 0.0
  %3068 = vmatpush2.msra.mxu0 0.0
  %3069 = vmatprep.subr.mxu0 0.0
  %3070 = vmatpush2.msra.mxu0 0.0
  %3071 = vmatprep.subr.mxu0 0.0
  %3072 = vmatpush2.msra.mxu0 0.0
  %3073 = vmatprep.subr.mxu0 0.0
  %3074 = vmatpush2.msra.mxu0 0.0
  %3075 = vmatprep.subr.mxu0 0.0
  %3076 = vmatpush2.msra.mxu0 0.0
  %3077 = vmatprep.subr.mxu0 0.0
  %3078 = vmatpush2.msra.mxu0 0.0
  %3079 = vmatprep.mubr.f32.mxu0 0.0
  %3080 = vmatmul.mubr.f32.gmra.mxu0 %v2618
  %v3081 = vpop.f32.mrf.mxu0
  %v3082 = vadd.f32 0.0, %v3081
  %v3083 = vpop.f32.mrf.mxu0
  %v3084 = vadd.f32 0.0, %v3083
  %3085 = vdwg.mxu0
  %3086 = vmatprep.subr.mxu0 0.0
  %3087 = vmatpush1.msra.mxu0 0.0
  %3088 = vmatprep.subr.mxu0 0.0
  %3089 = vmatpush1.msra.mxu0 0.0
  %3090 = vmatprep.subr.mxu0 0.0
  %3091 = vmatpush1.msra.mxu0 0.0
  %3092 = vmatprep.subr.mxu0 0.0
  %3093 = vmatpush1.msra.mxu0 0.0
  %3094 = vmatprep.subr.mxu0 0.0
  %3095 = vmatpush1.msra.mxu0 0.0
  %3096 = vmatprep.subr.mxu0 0.0
  %3097 = vmatpush1.msra.mxu0 0.0
  %3098 = vmatprep.subr.mxu0 0.0
  %3099 = vmatpush1.msra.mxu0 0.0
  %3100 = vmatprep.subr.mxu0 0.0
  %3101 = vmatpush1.msra.mxu0 0.0
  %3102 = vmatprep.subr.mxu0 0.0
  %3103 = vmatpush1.msra.mxu0 0.0
  %3104 = vmatprep.subr.mxu0 0.0
  %3105 = vmatpush1.msra.mxu0 0.0
  %3106 = vmatprep.subr.mxu0 0.0
  %3107 = vmatpush1.msra.mxu0 0.0
  %3108 = vmatprep.subr.mxu0 0.0
  %3109 = vmatpush1.msra.mxu0 0.0
  %3110 = vmatprep.subr.mxu0 0.0
  %3111 = vmatpush1.msra.mxu0 0.0
  %3112 = vmatprep.subr.mxu0 0.0
  %3113 = vmatpush1.msra.mxu0 0.0
  %3114 = vmatprep.subr.mxu0 0.0
  %3115 = vmatpush1.msra.mxu0 0.0
  %3116 = vmatprep.subr.mxu0 %v2646
  %3117 = vmatpush1.msra.mxu0 %v2644
  %3118 = vmatprep.subr.mxu0 0.0
  %3119 = vmatpush2.msra.mxu0 0.0
  %3120 = vmatprep.subr.mxu0 0.0
  %3121 = vmatpush2.msra.mxu0 0.0
  %3122 = vmatprep.subr.mxu0 0.0
  %3123 = vmatpush2.msra.mxu0 0.0
  %3124 = vmatprep.subr.mxu0 0.0
  %3125 = vmatpush2.msra.mxu0 0.0
  %3126 = vmatprep.subr.mxu0 0.0
  %3127 = vmatpush2.msra.mxu0 0.0
  %3128 = vmatprep.subr.mxu0 0.0
  %3129 = vmatpush2.msra.mxu0 0.0
  %3130 = vmatprep.subr.mxu0 0.0
  %3131 = vmatpush2.msra.mxu0 0.0
  %3132 = vmatprep.subr.mxu0 0.0
  %3133 = vmatpush2.msra.mxu0 0.0
  %3134 = vmatprep.subr.mxu0 0.0
  %3135 = vmatpush2.msra.mxu0 0.0
  %3136 = vmatprep.subr.mxu0 0.0
  %3137 = vmatpush2.msra.mxu0 0.0
  %3138 = vmatprep.subr.mxu0 0.0
  %3139 = vmatpush2.msra.mxu0 0.0
  %3140 = vmatprep.subr.mxu0 0.0
  %3141 = vmatpush2.msra.mxu0 0.0
  %3142 = vmatprep.subr.mxu0 0.0
  %3143 = vmatpush2.msra.mxu0 0.0
  %3144 = vmatprep.subr.mxu0 0.0
  %3145 = vmatpush2.msra.mxu0 0.0
  %3146 = vmatprep.subr.mxu0 0.0
  %3147 = vmatpush2.msra.mxu0 0.0
  %3148 = vmatprep.subr.mxu0 0.0
  %3149 = vmatpush2.msra.mxu0 0.0
  %3150 = vmatprep.mubr.f32.mxu0 0.0
  %3151 = vmatmul.mubr.f32.gmra.mxu0 %v2618
  %v3152 = vpop.f32.mrf.mxu0
  %v3153 = vadd.f32 0.0, %v3152
  %v3154 = vpop.f32.mrf.mxu0
  %v3155 = vadd.f32 0.0, %v3154
  %3156 = vdwg.mxu0
  %3157 = vmatprep.subr.mxu0 0.0
  %3158 = vmatpush1.msra.mxu0 0.0
  %3159 = vmatprep.subr.mxu0 0.0
  %3160 = vmatpush1.msra.mxu0 0.0
  %3161 = vmatprep.subr.mxu0 0.0
  %3162 = vmatpush1.msra.mxu0 0.0
  %3163 = vmatprep.subr.mxu0 0.0
  %3164 = vmatpush1.msra.mxu0 0.0
  %3165 = vmatprep.subr.mxu0 0.0
  %3166 = vmatpush1.msra.mxu0 0.0
  %3167 = vmatprep.subr.mxu0 0.0
  %3168 = vmatpush1.msra.mxu0 0.0
  %3169 = vmatprep.subr.mxu0 0.0
  %3170 = vmatpush1.msra.mxu0 0.0
  %3171 = vmatprep.subr.mxu0 0.0
  %3172 = vmatpush1.msra.mxu0 0.0
  %3173 = vmatprep.subr.mxu0 0.0
  %3174 = vmatpush1.msra.mxu0 0.0
  %3175 = vmatprep.subr.mxu0 0.0
  %3176 = vmatpush1.msra.mxu0 0.0
  %3177 = vmatprep.subr.mxu0 0.0
  %3178 = vmatpush1.msra.mxu0 0.0
  %3179 = vmatprep.subr.mxu0 0.0
  %3180 = vmatpush1.msra.mxu0 0.0
  %3181 = vmatprep.subr.mxu0 0.0
  %3182 = vmatpush1.msra.mxu0 0.0
  %3183 = vmatprep.subr.mxu0 0.0
  %3184 = vmatpush1.msra.mxu0 0.0
  %3185 = vmatprep.subr.mxu0 0.0
  %3186 = vmatpush1.msra.mxu0 0.0
  %3187 = vmatprep.subr.mxu0 %v2650
  %3188 = vmatpush1.msra.mxu0 %v2648
  %3189 = vmatprep.subr.mxu0 0.0
  %3190 = vmatpush2.msra.mxu0 0.0
  %3191 = vmatprep.subr.mxu0 0.0
  %3192 = vmatpush2.msra.mxu0 0.0
  %3193 = vmatprep.subr.mxu0 0.0
  %3194 = vmatpush2.msra.mxu0 0.0
  %3195 = vmatprep.subr.mxu0 0.0
  %3196 = vmatpush2.msra.mxu0 0.0
  %3197 = vmatprep.subr.mxu0 0.0
  %3198 = vmatpush2.msra.mxu0 0.0
  %3199 = vmatprep.subr.mxu0 0.0
  %3200 = vmatpush2.msra.mxu0 0.0
  %3201 = vmatprep.subr.mxu0 0.0
  %3202 = vmatpush2.msra.mxu0 0.0
  %3203 = vmatprep.subr.mxu0 0.0
  %3204 = vmatpush2.msra.mxu0 0.0
  %3205 = vmatprep.subr.mxu0 0.0
  %3206 = vmatpush2.msra.mxu0 0.0
  %3207 = vmatprep.subr.mxu0 0.0
  %3208 = vmatpush2.msra.mxu0 0.0
  %3209 = vmatprep.subr.mxu0 0.0
  %3210 = vmatpush2.msra.mxu0 0.0
  %3211 = vmatprep.subr.mxu0 0.0
  %3212 = vmatpush2.msra.mxu0 0.0
  %3213 = vmatprep.subr.mxu0 0.0
  %3214 = vmatpush2.msra.mxu0 0.0
  %3215 = vmatprep.subr.mxu0 0.0
  %3216 = vmatpush2.msra.mxu0 0.0
  %3217 = vmatprep.subr.mxu0 0.0
  %3218 = vmatpush2.msra.mxu0 0.0
  %3219 = vmatprep.subr.mxu0 0.0
  %3220 = vmatpush2.msra.mxu0 0.0
  %3221 = vmatprep.mubr.f32.mxu0 0.0
  %3222 = vmatmul.mubr.f32.gmra.mxu0 %v2618
  %v3223 = vpop.f32.mrf.mxu0
  %v3224 = vadd.f32 0.0, %v3223
  %v3225 = vpop.f32.mrf.mxu0
  %v3226 = vadd.f32 0.0, %v3225
  %3227 = vdwg.mxu0
  %3228 = vmatprep.subr.mxu0 0.0
  %3229 = vmatpush1.msra.mxu0 0.0
  %3230 = vmatprep.subr.mxu0 0.0
  %3231 = vmatpush1.msra.mxu0 0.0
  %3232 = vmatprep.subr.mxu0 0.0
  %3233 = vmatpush1.msra.mxu0 0.0
  %3234 = vmatprep.subr.mxu0 0.0
  %3235 = vmatpush1.msra.mxu0 0.0
  %3236 = vmatprep.subr.mxu0 0.0
  %3237 = vmatpush1.msra.mxu0 0.0
  %3238 = vmatprep.subr.mxu0 0.0
  %3239 = vmatpush1.msra.mxu0 0.0
  %3240 = vmatprep.subr.mxu0 0.0
  %3241 = vmatpush1.msra.mxu0 0.0
  %3242 = vmatprep.subr.mxu0 0.0
  %3243 = vmatpush1.msra.mxu0 0.0
  %3244 = vmatprep.subr.mxu0 0.0
  %3245 = vmatpush1.msra.mxu0 0.0
  %3246 = vmatprep.subr.mxu0 0.0
  %3247 = vmatpush1.msra.mxu0 0.0
  %3248 = vmatprep.subr.mxu0 0.0
  %3249 = vmatpush1.msra.mxu0 0.0
  %3250 = vmatprep.subr.mxu0 0.0
  %3251 = vmatpush1.msra.mxu0 0.0
  %3252 = vmatprep.subr.mxu0 0.0
  %3253 = vmatpush1.msra.mxu0 0.0
  %3254 = vmatprep.subr.mxu0 0.0
  %3255 = vmatpush1.msra.mxu0 0.0
  %3256 = vmatprep.subr.mxu0 0.0
  %3257 = vmatpush1.msra.mxu0 0.0
  %3258 = vmatprep.subr.mxu0 %v2654
  %3259 = vmatpush1.msra.mxu0 %v2652
  %3260 = vmatprep.subr.mxu0 0.0
  %3261 = vmatpush2.msra.mxu0 0.0
  %3262 = vmatprep.subr.mxu0 0.0
  %3263 = vmatpush2.msra.mxu0 0.0
  %3264 = vmatprep.subr.mxu0 0.0
  %3265 = vmatpush2.msra.mxu0 0.0
  %3266 = vmatprep.subr.mxu0 0.0
  %3267 = vmatpush2.msra.mxu0 0.0
  %3268 = vmatprep.subr.mxu0 0.0
  %3269 = vmatpush2.msra.mxu0 0.0
  %3270 = vmatprep.subr.mxu0 0.0
  %3271 = vmatpush2.msra.mxu0 0.0
  %3272 = vmatprep.subr.mxu0 0.0
  %3273 = vmatpush2.msra.mxu0 0.0
  %3274 = vmatprep.subr.mxu0 0.0
  %3275 = vmatpush2.msra.mxu0 0.0
  %3276 = vmatprep.subr.mxu0 0.0
  %3277 = vmatpush2.msra.mxu0 0.0
  %3278 = vmatprep.subr.mxu0 0.0
  %3279 = vmatpush2.msra.mxu0 0.0
  %3280 = vmatprep.subr.mxu0 0.0
  %3281 = vmatpush2.msra.mxu0 0.0
  %3282 = vmatprep.subr.mxu0 0.0
  %3283 = vmatpush2.msra.mxu0 0.0
  %3284 = vmatprep.subr.mxu0 0.0
  %3285 = vmatpush2.msra.mxu0 0.0
  %3286 = vmatprep.subr.mxu0 0.0
  %3287 = vmatpush2.msra.mxu0 0.0
  %3288 = vmatprep.subr.mxu0 0.0
  %3289 = vmatpush2.msra.mxu0 0.0
  %3290 = vmatprep.subr.mxu0 0.0
  %3291 = vmatpush2.msra.mxu0 0.0
  %3292 = vmatprep.mubr.f32.mxu0 0.0
  %3293 = vmatmul.mubr.f32.gmra.mxu0 %v2618
  %v3294 = vpop.f32.mrf.mxu0
  %v3295 = vadd.f32 0.0, %v3294
  %v3296 = vpop.f32.mrf.mxu0
  %v3297 = vadd.f32 0.0, %v3296
  %3298 = vdwg.mxu0
  %3299 = vmatprep.subr.mxu0 0.0
  %3300 = vmatpush1.msra.mxu0 0.0
  %3301 = vmatprep.subr.mxu0 0.0
  %3302 = vmatpush1.msra.mxu0 0.0
  %3303 = vmatprep.subr.mxu0 0.0
  %3304 = vmatpush1.msra.mxu0 0.0
  %3305 = vmatprep.subr.mxu0 0.0
  %3306 = vmatpush1.msra.mxu0 0.0
  %3307 = vmatprep.subr.mxu0 0.0
  %3308 = vmatpush1.msra.mxu0 0.0
  %3309 = vmatprep.subr.mxu0 0.0
  %3310 = vmatpush1.msra.mxu0 0.0
  %3311 = vmatprep.subr.mxu0 0.0
  %3312 = vmatpush1.msra.mxu0 0.0
  %3313 = vmatprep.subr.mxu0 0.0
  %3314 = vmatpush1.msra.mxu0 0.0
  %3315 = vmatprep.subr.mxu0 0.0
  %3316 = vmatpush1.msra.mxu0 0.0
  %3317 = vmatprep.subr.mxu0 0.0
  %3318 = vmatpush1.msra.mxu0 0.0
  %3319 = vmatprep.subr.mxu0 0.0
  %3320 = vmatpush1.msra.mxu0 0.0
  %3321 = vmatprep.subr.mxu0 0.0
  %3322 = vmatpush1.msra.mxu0 0.0
  %3323 = vmatprep.subr.mxu0 0.0
  %3324 = vmatpush1.msra.mxu0 0.0
  %3325 = vmatprep.subr.mxu0 0.0
  %3326 = vmatpush1.msra.mxu0 0.0
  %3327 = vmatprep.subr.mxu0 0.0
  %3328 = vmatpush1.msra.mxu0 0.0
  %3329 = vmatprep.subr.mxu0 %v2658
  %3330 = vmatpush1.msra.mxu0 %v2656
  %3331 = vmatprep.subr.mxu0 0.0
  %3332 = vmatpush2.msra.mxu0 0.0
  %3333 = vmatprep.subr.mxu0 0.0
  %3334 = vmatpush2.msra.mxu0 0.0
  %3335 = vmatprep.subr.mxu0 0.0
  %3336 = vmatpush2.msra.mxu0 0.0
  %3337 = vmatprep.subr.mxu0 0.0
  %3338 = vmatpush2.msra.mxu0 0.0
  %3339 = vmatprep.subr.mxu0 0.0
  %3340 = vmatpush2.msra.mxu0 0.0
  %3341 = vmatprep.subr.mxu0 0.0
  %3342 = vmatpush2.msra.mxu0 0.0
  %3343 = vmatprep.subr.mxu0 0.0
  %3344 = vmatpush2.msra.mxu0 0.0
  %3345 = vmatprep.subr.mxu0 0.0
  %3346 = vmatpush2.msra.mxu0 0.0
  %3347 = vmatprep.subr.mxu0 0.0
  %3348 = vmatpush2.msra.mxu0 0.0
  %3349 = vmatprep.subr.mxu0 0.0
  %3350 = vmatpush2.msra.mxu0 0.0
  %3351 = vmatprep.subr.mxu0 0.0
  %3352 = vmatpush2.msra.mxu0 0.0
  %3353 = vmatprep.subr.mxu0 0.0
  %3354 = vmatpush2.msra.mxu0 0.0
  %3355 = vmatprep.subr.mxu0 0.0
  %3356 = vmatpush2.msra.mxu0 0.0
  %3357 = vmatprep.subr.mxu0 0.0
  %3358 = vmatpush2.msra.mxu0 0.0
  %3359 = vmatprep.subr.mxu0 0.0
  %3360 = vmatpush2.msra.mxu0 0.0
  %3361 = vmatprep.subr.mxu0 0.0
  %3362 = vmatpush2.msra.mxu0 0.0
  %3363 = vmatprep.mubr.f32.mxu0 0.0
  %3364 = vmatmul.mubr.f32.gmra.mxu0 %v2618
  %v3365 = vpop.f32.mrf.mxu0
  %v3366 = vadd.f32 0.0, %v3365
  %v3367 = vpop.f32.mrf.mxu0
  %v3368 = vadd.f32 0.0, %v3367
  %3369 = vdwg.mxu0
  %v3370 = vadd.f32 %v2500, %v2727
  %v3371 = vadd.f32 %v2501, %v2729
  %v3372 = vadd.f32 %v2502, %v2798
  %v3373 = vadd.f32 %v2503, %v2800
  %v3374 = vadd.f32 %v2504, %v2869
  %v3375 = vadd.f32 %v2505, %v2871
  %v3376 = vadd.f32 %v2506, %v2940
  %v3377 = vadd.f32 %v2507, %v2942
  %v3378 = vadd.f32 %v2508, %v3011
  %v3379 = vadd.f32 %v2509, %v3013
  %v3380 = vadd.f32 %v2510, %v3082
  %v3381 = vadd.f32 %v2511, %v3084
  %v3382 = vadd.f32 %v2512, %v3153
  %v3383 = vadd.f32 %v2513, %v3155
  %v3384 = vadd.f32 %v2514, %v3224
  %v3385 = vadd.f32 %v2515, %v3226
  %v3386 = vadd.f32 %v2516, %v3295
  %v3387 = vadd.f32 %v2517, %v3297
  %v3388 = vadd.f32 %v2518, %v3366
  %v3389 = vadd.f32 %v2519, %v3368
  %s3390 = scalar_lea.vmem %s1, 32
  %v3391 = vld [vmem:[%s3390] sm:$0xff]
  %v3392 = vld [vmem:[%s0] sm:$0xff]
  %v3393 = vld [vmem:[%s0 + $0x8] sm:$0xff]
  %v3394 = vld [vmem:[%s0 + $0x10] sm:$0xff]
  %v3395 = vld [vmem:[%s0 + $0x18] sm:$0xff]
  %v3396 = vld [vmem:[%s0 + $0x20] sm:$0xff]
  %v3397 = vld [vmem:[%s0 + $0x28] sm:$0xff]
  %v3398 = vld [vmem:[%s0 + $0x30] sm:$0xff]
  %v3399 = vld [vmem:[%s0 + $0x38] sm:$0xff]
  %v3400 = vld [vmem:[%s0 + $0x40] sm:$0xff]
  %v3401 = vld [vmem:[%s0 + $0x48] sm:$0xff]
  %v3402 = vld [vmem:[%s0 + $0x50] sm:$0xf]
  %v3414 = vcombine.high %v3392, %v3392
  %v3415 = vcombine.high %v3393, %v3393
  %v3416 = vcombine.high %v3394, %v3394
  %v3417 = vcombine.high %v3395, %v3395
  %v3418 = vcombine.high %v3396, %v3396
  %v3419 = vcombine.high %v3397, %v3397
  %v3420 = vcombine.high %v3398, %v3398
  %v3421 = vcombine.high %v3399, %v3399
  %v3422 = vcombine.high %v3400, %v3400
  %v3423 = vcombine.high %v3401, %v3401
  %3424 = vrot.lane.b32.xlu0 %v3392, 93
  %v3425 = vpop.permute.xlu0 %3424
  %3426 = vrot.lane.b32.xlu0 %v3414, 93
  %v3427 = vpop.permute.xlu0 %3426
  %3428 = vrot.lane.b32.xlu0 %v3393, 93
  %v3429 = vpop.permute.xlu0 %3428
  %3430 = vrot.lane.b32.xlu0 %v3415, 93
  %v3431 = vpop.permute.xlu0 %3430
  %3432 = vrot.lane.b32.xlu0 %v3394, 93
  %v3433 = vpop.permute.xlu0 %3432
  %3434 = vrot.lane.b32.xlu0 %v3416, 93
  %v3435 = vpop.permute.xlu0 %3434
  %3436 = vrot.lane.b32.xlu0 %v3395, 93
  %v3437 = vpop.permute.xlu0 %3436
  %3438 = vrot.lane.b32.xlu0 %v3417, 93
  %v3439 = vpop.permute.xlu0 %3438
  %3440 = vrot.lane.b32.xlu0 %v3396, 93
  %v3441 = vpop.permute.xlu0 %3440
  %3442 = vrot.lane.b32.xlu0 %v3418, 93
  %v3443 = vpop.permute.xlu0 %3442
  %3444 = vrot.lane.b32.xlu0 %v3397, 93
  %v3445 = vpop.permute.xlu0 %3444
  %3446 = vrot.lane.b32.xlu0 %v3419, 93
  %v3447 = vpop.permute.xlu0 %3446
  %3448 = vrot.lane.b32.xlu0 %v3398, 93
  %v3449 = vpop.permute.xlu0 %3448
  %3450 = vrot.lane.b32.xlu0 %v3420, 93
  %v3451 = vpop.permute.xlu0 %3450
  %3452 = vrot.lane.b32.xlu0 %v3399, 93
  %v3453 = vpop.permute.xlu0 %3452
  %3454 = vrot.lane.b32.xlu0 %v3421, 93
  %v3455 = vpop.permute.xlu0 %3454
  %3456 = vrot.lane.b32.xlu0 %v3400, 93
  %v3457 = vpop.permute.xlu0 %3456
  %3458 = vrot.lane.b32.xlu0 %v3422, 93
  %v3459 = vpop.permute.xlu0 %3458
  %3460 = vrot.lane.b32.xlu0 %v3401, 93
  %v3461 = vpop.permute.xlu0 %3460
  %3462 = vrot.lane.b32.xlu0 %v3423, 93
  %v3463 = vpop.permute.xlu0 %3462
  %3464 = vrot.lane.b32.xlu0 %v3402, 93
  %v3465 = vpop.permute.xlu0 %3464
  %vm3466 = vcmask 760832
  %v3467 = vsel %vm3466, %v3425, %v3427
  %v3468 = vsel %vm3466, %v3427, %v3429
  %v3469 = vsel %vm3466, %v3429, %v3431
  %v3470 = vsel %vm3466, %v3431, %v3433
  %v3471 = vsel %vm3466, %v3433, %v3435
  %v3472 = vsel %vm3466, %v3435, %v3437
  %v3473 = vsel %vm3466, %v3437, %v3439
  %v3474 = vsel %vm3466, %v3439, %v3441
  %v3475 = vsel %vm3466, %v3441, %v3443
  %v3476 = vsel %vm3466, %v3443, %v3445
  %v3477 = vsel %vm3466, %v3445, %v3447
  %v3478 = vsel %vm3466, %v3447, %v3449
  %v3479 = vsel %vm3466, %v3449, %v3451
  %v3480 = vsel %vm3466, %v3451, %v3453
  %v3481 = vsel %vm3466, %v3453, %v3455
  %v3482 = vsel %vm3466, %v3455, %v3457
  %v3483 = vsel %vm3466, %v3457, %v3459
  %v3484 = vsel %vm3466, %v3459, %v3461
  %v3485 = vsel %vm3466, %v3461, %v3463
  %v3486 = vsel %vm3466, %v3463, %v3465
  %v3488 = vsel %vm122, %v3391, 0
  %v3490 = vsel %vm126, %v3467, 0
  %v3492 = vsel %vm126, %v3468, 0
  %v3494 = vsel %vm126, %v3469, 0
  %v3496 = vsel %vm126, %v3470, 0
  %v3498 = vsel %vm126, %v3471, 0
  %v3500 = vsel %vm126, %v3472, 0
  %v3502 = vsel %vm126, %v3473, 0
  %v3504 = vsel %vm126, %v3474, 0
  %v3506 = vsel %vm126, %v3475, 0
  %v3508 = vsel %vm126, %v3476, 0
  %v3510 = vsel %vm126, %v3477, 0
  %v3512 = vsel %vm126, %v3478, 0
  %v3514 = vsel %vm126, %v3479, 0
  %v3516 = vsel %vm126, %v3480, 0
  %v3518 = vsel %vm126, %v3481, 0
  %v3520 = vsel %vm126, %v3482, 0
  %v3522 = vsel %vm126, %v3483, 0
  %v3524 = vsel %vm126, %v3484, 0
  %v3526 = vsel %vm126, %v3485, 0
  %v3528 = vsel %vm126, %v3486, 0
  %3530 = vmatprep.subr.mxu0 0.0
  %3531 = vmatpush1.msra.mxu0 0.0
  %3532 = vmatprep.subr.mxu0 0.0
  %3533 = vmatpush1.msra.mxu0 0.0
  %3534 = vmatprep.subr.mxu0 0.0
  %3535 = vmatpush1.msra.mxu0 0.0
  %3536 = vmatprep.subr.mxu0 0.0
  %3537 = vmatpush1.msra.mxu0 0.0
  %3538 = vmatprep.subr.mxu0 0.0
  %3539 = vmatpush1.msra.mxu0 0.0
  %3540 = vmatprep.subr.mxu0 0.0
  %3541 = vmatpush1.msra.mxu0 0.0
  %3542 = vmatprep.subr.mxu0 0.0
  %3543 = vmatpush1.msra.mxu0 0.0
  %3544 = vmatprep.subr.mxu0 0.0
  %3545 = vmatpush1.msra.mxu0 0.0
  %3546 = vmatprep.subr.mxu0 0.0
  %3547 = vmatpush1.msra.mxu0 0.0
  %3548 = vmatprep.subr.mxu0 0.0
  %3549 = vmatpush1.msra.mxu0 0.0
  %3550 = vmatprep.subr.mxu0 0.0
  %3551 = vmatpush1.msra.mxu0 0.0
  %3552 = vmatprep.subr.mxu0 0.0
  %3553 = vmatpush1.msra.mxu0 0.0
  %3554 = vmatprep.subr.mxu0 0.0
  %3555 = vmatpush1.msra.mxu0 0.0
  %3556 = vmatprep.subr.mxu0 0.0
  %3557 = vmatpush1.msra.mxu0 0.0
  %3558 = vmatprep.subr.mxu0 0.0
  %3559 = vmatpush1.msra.mxu0 0.0
  %3560 = vmatprep.subr.mxu0 %v3492
  %3561 = vmatpush1.msra.mxu0 %v3490
  %3562 = vmatprep.subr.mxu0 0.0
  %3563 = vmatpush2.msra.mxu0 0.0
  %3564 = vmatprep.subr.mxu0 0.0
  %3565 = vmatpush2.msra.mxu0 0.0
  %3566 = vmatprep.subr.mxu0 0.0
  %3567 = vmatpush2.msra.mxu0 0.0
  %3568 = vmatprep.subr.mxu0 0.0
  %3569 = vmatpush2.msra.mxu0 0.0
  %3570 = vmatprep.subr.mxu0 0.0
  %3571 = vmatpush2.msra.mxu0 0.0
  %3572 = vmatprep.subr.mxu0 0.0
  %3573 = vmatpush2.msra.mxu0 0.0
  %3574 = vmatprep.subr.mxu0 0.0
  %3575 = vmatpush2.msra.mxu0 0.0
  %3576 = vmatprep.subr.mxu0 0.0
  %3577 = vmatpush2.msra.mxu0 0.0
  %3578 = vmatprep.subr.mxu0 0.0
  %3579 = vmatpush2.msra.mxu0 0.0
  %3580 = vmatprep.subr.mxu0 0.0
  %3581 = vmatpush2.msra.mxu0 0.0
  %3582 = vmatprep.subr.mxu0 0.0
  %3583 = vmatpush2.msra.mxu0 0.0
  %3584 = vmatprep.subr.mxu0 0.0
  %3585 = vmatpush2.msra.mxu0 0.0
  %3586 = vmatprep.subr.mxu0 0.0
  %3587 = vmatpush2.msra.mxu0 0.0
  %3588 = vmatprep.subr.mxu0 0.0
  %3589 = vmatpush2.msra.mxu0 0.0
  %3590 = vmatprep.subr.mxu0 0.0
  %3591 = vmatpush2.msra.mxu0 0.0
  %3592 = vmatprep.subr.mxu0 0.0
  %3593 = vmatpush2.msra.mxu0 0.0
  %3594 = vmatprep.mubr.f32.mxu0 0.0
  %3595 = vmatmul.mubr.f32.gmra.mxu0 %v3488
  %v3596 = vpop.f32.mrf.mxu0
  %v3597 = vadd.f32 0.0, %v3596
  %v3598 = vpop.f32.mrf.mxu0
  %v3599 = vadd.f32 0.0, %v3598
  %3600 = vdwg.mxu0
  %3601 = vmatprep.subr.mxu0 0.0
  %3602 = vmatpush1.msra.mxu0 0.0
  %3603 = vmatprep.subr.mxu0 0.0
  %3604 = vmatpush1.msra.mxu0 0.0
  %3605 = vmatprep.subr.mxu0 0.0
  %3606 = vmatpush1.msra.mxu0 0.0
  %3607 = vmatprep.subr.mxu0 0.0
  %3608 = vmatpush1.msra.mxu0 0.0
  %3609 = vmatprep.subr.mxu0 0.0
  %3610 = vmatpush1.msra.mxu0 0.0
  %3611 = vmatprep.subr.mxu0 0.0
  %3612 = vmatpush1.msra.mxu0 0.0
  %3613 = vmatprep.subr.mxu0 0.0
  %3614 = vmatpush1.msra.mxu0 0.0
  %3615 = vmatprep.subr.mxu0 0.0
  %3616 = vmatpush1.msra.mxu0 0.0
  %3617 = vmatprep.subr.mxu0 0.0
  %3618 = vmatpush1.msra.mxu0 0.0
  %3619 = vmatprep.subr.mxu0 0.0
  %3620 = vmatpush1.msra.mxu0 0.0
  %3621 = vmatprep.subr.mxu0 0.0
  %3622 = vmatpush1.msra.mxu0 0.0
  %3623 = vmatprep.subr.mxu0 0.0
  %3624 = vmatpush1.msra.mxu0 0.0
  %3625 = vmatprep.subr.mxu0 0.0
  %3626 = vmatpush1.msra.mxu0 0.0
  %3627 = vmatprep.subr.mxu0 0.0
  %3628 = vmatpush1.msra.mxu0 0.0
  %3629 = vmatprep.subr.mxu0 0.0
  %3630 = vmatpush1.msra.mxu0 0.0
  %3631 = vmatprep.subr.mxu0 %v3496
  %3632 = vmatpush1.msra.mxu0 %v3494
  %3633 = vmatprep.subr.mxu0 0.0
  %3634 = vmatpush2.msra.mxu0 0.0
  %3635 = vmatprep.subr.mxu0 0.0
  %3636 = vmatpush2.msra.mxu0 0.0
  %3637 = vmatprep.subr.mxu0 0.0
  %3638 = vmatpush2.msra.mxu0 0.0
  %3639 = vmatprep.subr.mxu0 0.0
  %3640 = vmatpush2.msra.mxu0 0.0
  %3641 = vmatprep.subr.mxu0 0.0
  %3642 = vmatpush2.msra.mxu0 0.0
  %3643 = vmatprep.subr.mxu0 0.0
  %3644 = vmatpush2.msra.mxu0 0.0
  %3645 = vmatprep.subr.mxu0 0.0
  %3646 = vmatpush2.msra.mxu0 0.0
  %3647 = vmatprep.subr.mxu0 0.0
  %3648 = vmatpush2.msra.mxu0 0.0
  %3649 = vmatprep.subr.mxu0 0.0
  %3650 = vmatpush2.msra.mxu0 0.0
  %3651 = vmatprep.subr.mxu0 0.0
  %3652 = vmatpush2.msra.mxu0 0.0
  %3653 = vmatprep.subr.mxu0 0.0
  %3654 = vmatpush2.msra.mxu0 0.0
  %3655 = vmatprep.subr.mxu0 0.0
  %3656 = vmatpush2.msra.mxu0 0.0
  %3657 = vmatprep.subr.mxu0 0.0
  %3658 = vmatpush2.msra.mxu0 0.0
  %3659 = vmatprep.subr.mxu0 0.0
  %3660 = vmatpush2.msra.mxu0 0.0
  %3661 = vmatprep.subr.mxu0 0.0
  %3662 = vmatpush2.msra.mxu0 0.0
  %3663 = vmatprep.subr.mxu0 0.0
  %3664 = vmatpush2.msra.mxu0 0.0
  %3665 = vmatprep.mubr.f32.mxu0 0.0
  %3666 = vmatmul.mubr.f32.gmra.mxu0 %v3488
  %v3667 = vpop.f32.mrf.mxu0
  %v3668 = vadd.f32 0.0, %v3667
  %v3669 = vpop.f32.mrf.mxu0
  %v3670 = vadd.f32 0.0, %v3669
  %3671 = vdwg.mxu0
  %3672 = vmatprep.subr.mxu0 0.0
  %3673 = vmatpush1.msra.mxu0 0.0
  %3674 = vmatprep.subr.mxu0 0.0
  %3675 = vmatpush1.msra.mxu0 0.0
  %3676 = vmatprep.subr.mxu0 0.0
  %3677 = vmatpush1.msra.mxu0 0.0
  %3678 = vmatprep.subr.mxu0 0.0
  %3679 = vmatpush1.msra.mxu0 0.0
  %3680 = vmatprep.subr.mxu0 0.0
  %3681 = vmatpush1.msra.mxu0 0.0
  %3682 = vmatprep.subr.mxu0 0.0
  %3683 = vmatpush1.msra.mxu0 0.0
  %3684 = vmatprep.subr.mxu0 0.0
  %3685 = vmatpush1.msra.mxu0 0.0
  %3686 = vmatprep.subr.mxu0 0.0
  %3687 = vmatpush1.msra.mxu0 0.0
  %3688 = vmatprep.subr.mxu0 0.0
  %3689 = vmatpush1.msra.mxu0 0.0
  %3690 = vmatprep.subr.mxu0 0.0
  %3691 = vmatpush1.msra.mxu0 0.0
  %3692 = vmatprep.subr.mxu0 0.0
  %3693 = vmatpush1.msra.mxu0 0.0
  %3694 = vmatprep.subr.mxu0 0.0
  %3695 = vmatpush1.msra.mxu0 0.0
  %3696 = vmatprep.subr.mxu0 0.0
  %3697 = vmatpush1.msra.mxu0 0.0
  %3698 = vmatprep.subr.mxu0 0.0
  %3699 = vmatpush1.msra.mxu0 0.0
  %3700 = vmatprep.subr.mxu0 0.0
  %3701 = vmatpush1.msra.mxu0 0.0
  %3702 = vmatprep.subr.mxu0 %v3500
  %3703 = vmatpush1.msra.mxu0 %v3498
  %3704 = vmatprep.subr.mxu0 0.0
  %3705 = vmatpush2.msra.mxu0 0.0
  %3706 = vmatprep.subr.mxu0 0.0
  %3707 = vmatpush2.msra.mxu0 0.0
  %3708 = vmatprep.subr.mxu0 0.0
  %3709 = vmatpush2.msra.mxu0 0.0
  %3710 = vmatprep.subr.mxu0 0.0
  %3711 = vmatpush2.msra.mxu0 0.0
  %3712 = vmatprep.subr.mxu0 0.0
  %3713 = vmatpush2.msra.mxu0 0.0
  %3714 = vmatprep.subr.mxu0 0.0
  %3715 = vmatpush2.msra.mxu0 0.0
  %3716 = vmatprep.subr.mxu0 0.0
  %3717 = vmatpush2.msra.mxu0 0.0
  %3718 = vmatprep.subr.mxu0 0.0
  %3719 = vmatpush2.msra.mxu0 0.0
  %3720 = vmatprep.subr.mxu0 0.0
  %3721 = vmatpush2.msra.mxu0 0.0
  %3722 = vmatprep.subr.mxu0 0.0
  %3723 = vmatpush2.msra.mxu0 0.0
  %3724 = vmatprep.subr.mxu0 0.0
  %3725 = vmatpush2.msra.mxu0 0.0
  %3726 = vmatprep.subr.mxu0 0.0
  %3727 = vmatpush2.msra.mxu0 0.0
  %3728 = vmatprep.subr.mxu0 0.0
  %3729 = vmatpush2.msra.mxu0 0.0
  %3730 = vmatprep.subr.mxu0 0.0
  %3731 = vmatpush2.msra.mxu0 0.0
  %3732 = vmatprep.subr.mxu0 0.0
  %3733 = vmatpush2.msra.mxu0 0.0
  %3734 = vmatprep.subr.mxu0 0.0
  %3735 = vmatpush2.msra.mxu0 0.0
  %3736 = vmatprep.mubr.f32.mxu0 0.0
  %3737 = vmatmul.mubr.f32.gmra.mxu0 %v3488
  %v3738 = vpop.f32.mrf.mxu0
  %v3739 = vadd.f32 0.0, %v3738
  %v3740 = vpop.f32.mrf.mxu0
  %v3741 = vadd.f32 0.0, %v3740
  %3742 = vdwg.mxu0
  %3743 = vmatprep.subr.mxu0 0.0
  %3744 = vmatpush1.msra.mxu0 0.0
  %3745 = vmatprep.subr.mxu0 0.0
  %3746 = vmatpush1.msra.mxu0 0.0
  %3747 = vmatprep.subr.mxu0 0.0
  %3748 = vmatpush1.msra.mxu0 0.0
  %3749 = vmatprep.subr.mxu0 0.0
  %3750 = vmatpush1.msra.mxu0 0.0
  %3751 = vmatprep.subr.mxu0 0.0
  %3752 = vmatpush1.msra.mxu0 0.0
  %3753 = vmatprep.subr.mxu0 0.0
  %3754 = vmatpush1.msra.mxu0 0.0
  %3755 = vmatprep.subr.mxu0 0.0
  %3756 = vmatpush1.msra.mxu0 0.0
  %3757 = vmatprep.subr.mxu0 0.0
  %3758 = vmatpush1.msra.mxu0 0.0
  %3759 = vmatprep.subr.mxu0 0.0
  %3760 = vmatpush1.msra.mxu0 0.0
  %3761 = vmatprep.subr.mxu0 0.0
  %3762 = vmatpush1.msra.mxu0 0.0
  %3763 = vmatprep.subr.mxu0 0.0
  %3764 = vmatpush1.msra.mxu0 0.0
  %3765 = vmatprep.subr.mxu0 0.0
  %3766 = vmatpush1.msra.mxu0 0.0
  %3767 = vmatprep.subr.mxu0 0.0
  %3768 = vmatpush1.msra.mxu0 0.0
  %3769 = vmatprep.subr.mxu0 0.0
  %3770 = vmatpush1.msra.mxu0 0.0
  %3771 = vmatprep.subr.mxu0 0.0
  %3772 = vmatpush1.msra.mxu0 0.0
  %3773 = vmatprep.subr.mxu0 %v3504
  %3774 = vmatpush1.msra.mxu0 %v3502
  %3775 = vmatprep.subr.mxu0 0.0
  %3776 = vmatpush2.msra.mxu0 0.0
  %3777 = vmatprep.subr.mxu0 0.0
  %3778 = vmatpush2.msra.mxu0 0.0
  %3779 = vmatprep.subr.mxu0 0.0
  %3780 = vmatpush2.msra.mxu0 0.0
  %3781 = vmatprep.subr.mxu0 0.0
  %3782 = vmatpush2.msra.mxu0 0.0
  %3783 = vmatprep.subr.mxu0 0.0
  %3784 = vmatpush2.msra.mxu0 0.0
  %3785 = vmatprep.subr.mxu0 0.0
  %3786 = vmatpush2.msra.mxu0 0.0
  %3787 = vmatprep.subr.mxu0 0.0
  %3788 = vmatpush2.msra.mxu0 0.0
  %3789 = vmatprep.subr.mxu0 0.0
  %3790 = vmatpush2.msra.mxu0 0.0
  %3791 = vmatprep.subr.mxu0 0.0
  %3792 = vmatpush2.msra.mxu0 0.0
  %3793 = vmatprep.subr.mxu0 0.0
  %3794 = vmatpush2.msra.mxu0 0.0
  %3795 = vmatprep.subr.mxu0 0.0
  %3796 = vmatpush2.msra.mxu0 0.0
  %3797 = vmatprep.subr.mxu0 0.0
  %3798 = vmatpush2.msra.mxu0 0.0
  %3799 = vmatprep.subr.mxu0 0.0
  %3800 = vmatpush2.msra.mxu0 0.0
  %3801 = vmatprep.subr.mxu0 0.0
  %3802 = vmatpush2.msra.mxu0 0.0
  %3803 = vmatprep.subr.mxu0 0.0
  %3804 = vmatpush2.msra.mxu0 0.0
  %3805 = vmatprep.subr.mxu0 0.0
  %3806 = vmatpush2.msra.mxu0 0.0
  %3807 = vmatprep.mubr.f32.mxu0 0.0
  %3808 = vmatmul.mubr.f32.gmra.mxu0 %v3488
  %v3809 = vpop.f32.mrf.mxu0
  %v3810 = vadd.f32 0.0, %v3809
  %v3811 = vpop.f32.mrf.mxu0
  %v3812 = vadd.f32 0.0, %v3811
  %3813 = vdwg.mxu0
  %3814 = vmatprep.subr.mxu0 0.0
  %3815 = vmatpush1.msra.mxu0 0.0
  %3816 = vmatprep.subr.mxu0 0.0
  %3817 = vmatpush1.msra.mxu0 0.0
  %3818 = vmatprep.subr.mxu0 0.0
  %3819 = vmatpush1.msra.mxu0 0.0
  %3820 = vmatprep.subr.mxu0 0.0
  %3821 = vmatpush1.msra.mxu0 0.0
  %3822 = vmatprep.subr.mxu0 0.0
  %3823 = vmatpush1.msra.mxu0 0.0
  %3824 = vmatprep.subr.mxu0 0.0
  %3825 = vmatpush1.msra.mxu0 0.0
  %3826 = vmatprep.subr.mxu0 0.0
  %3827 = vmatpush1.msra.mxu0 0.0
  %3828 = vmatprep.subr.mxu0 0.0
  %3829 = vmatpush1.msra.mxu0 0.0
  %3830 = vmatprep.subr.mxu0 0.0
  %3831 = vmatpush1.msra.mxu0 0.0
  %3832 = vmatprep.subr.mxu0 0.0
  %3833 = vmatpush1.msra.mxu0 0.0
  %3834 = vmatprep.subr.mxu0 0.0
  %3835 = vmatpush1.msra.mxu0 0.0
  %3836 = vmatprep.subr.mxu0 0.0
  %3837 = vmatpush1.msra.mxu0 0.0
  %3838 = vmatprep.subr.mxu0 0.0
  %3839 = vmatpush1.msra.mxu0 0.0
  %3840 = vmatprep.subr.mxu0 0.0
  %3841 = vmatpush1.msra.mxu0 0.0
  %3842 = vmatprep.subr.mxu0 0.0
  %3843 = vmatpush1.msra.mxu0 0.0
  %3844 = vmatprep.subr.mxu0 %v3508
  %3845 = vmatpush1.msra.mxu0 %v3506
  %3846 = vmatprep.subr.mxu0 0.0
  %3847 = vmatpush2.msra.mxu0 0.0
  %3848 = vmatprep.subr.mxu0 0.0
  %3849 = vmatpush2.msra.mxu0 0.0
  %3850 = vmatprep.subr.mxu0 0.0
  %3851 = vmatpush2.msra.mxu0 0.0
  %3852 = vmatprep.subr.mxu0 0.0
  %3853 = vmatpush2.msra.mxu0 0.0
  %3854 = vmatprep.subr.mxu0 0.0
  %3855 = vmatpush2.msra.mxu0 0.0
  %3856 = vmatprep.subr.mxu0 0.0
  %3857 = vmatpush2.msra.mxu0 0.0
  %3858 = vmatprep.subr.mxu0 0.0
  %3859 = vmatpush2.msra.mxu0 0.0
  %3860 = vmatprep.subr.mxu0 0.0
  %3861 = vmatpush2.msra.mxu0 0.0
  %3862 = vmatprep.subr.mxu0 0.0
  %3863 = vmatpush2.msra.mxu0 0.0
  %3864 = vmatprep.subr.mxu0 0.0
  %3865 = vmatpush2.msra.mxu0 0.0
  %3866 = vmatprep.subr.mxu0 0.0
  %3867 = vmatpush2.msra.mxu0 0.0
  %3868 = vmatprep.subr.mxu0 0.0
  %3869 = vmatpush2.msra.mxu0 0.0
  %3870 = vmatprep.subr.mxu0 0.0
  %3871 = vmatpush2.msra.mxu0 0.0
  %3872 = vmatprep.subr.mxu0 0.0
  %3873 = vmatpush2.msra.mxu0 0.0
  %3874 = vmatprep.subr.mxu0 0.0
  %3875 = vmatpush2.msra.mxu0 0.0
  %3876 = vmatprep.subr.mxu0 0.0
  %3877 = vmatpush2.msra.mxu0 0.0
  %3878 = vmatprep.mubr.f32.mxu0 0.0
  %3879 = vmatmul.mubr.f32.gmra.mxu0 %v3488
  %v3880 = vpop.f32.mrf.mxu0
  %v3881 = vadd.f32 0.0, %v3880
  %v3882 = vpop.f32.mrf.mxu0
  %v3883 = vadd.f32 0.0, %v3882
  %3884 = vdwg.mxu0
  %3885 = vmatprep.subr.mxu0 0.0
  %3886 = vmatpush1.msra.mxu0 0.0
  %3887 = vmatprep.subr.mxu0 0.0
  %3888 = vmatpush1.msra.mxu0 0.0
  %3889 = vmatprep.subr.mxu0 0.0
  %3890 = vmatpush1.msra.mxu0 0.0
  %3891 = vmatprep.subr.mxu0 0.0
  %3892 = vmatpush1.msra.mxu0 0.0
  %3893 = vmatprep.subr.mxu0 0.0
  %3894 = vmatpush1.msra.mxu0 0.0
  %3895 = vmatprep.subr.mxu0 0.0
  %3896 = vmatpush1.msra.mxu0 0.0
  %3897 = vmatprep.subr.mxu0 0.0
  %3898 = vmatpush1.msra.mxu0 0.0
  %3899 = vmatprep.subr.mxu0 0.0
  %3900 = vmatpush1.msra.mxu0 0.0
  %3901 = vmatprep.subr.mxu0 0.0
  %3902 = vmatpush1.msra.mxu0 0.0
  %3903 = vmatprep.subr.mxu0 0.0
  %3904 = vmatpush1.msra.mxu0 0.0
  %3905 = vmatprep.subr.mxu0 0.0
  %3906 = vmatpush1.msra.mxu0 0.0
  %3907 = vmatprep.subr.mxu0 0.0
  %3908 = vmatpush1.msra.mxu0 0.0
  %3909 = vmatprep.subr.mxu0 0.0
  %3910 = vmatpush1.msra.mxu0 0.0
  %3911 = vmatprep.subr.mxu0 0.0
  %3912 = vmatpush1.msra.mxu0 0.0
  %3913 = vmatprep.subr.mxu0 0.0
  %3914 = vmatpush1.msra.mxu0 0.0
  %3915 = vmatprep.subr.mxu0 %v3512
  %3916 = vmatpush1.msra.mxu0 %v3510
  %3917 = vmatprep.subr.mxu0 0.0
  %3918 = vmatpush2.msra.mxu0 0.0
  %3919 = vmatprep.subr.mxu0 0.0
  %3920 = vmatpush2.msra.mxu0 0.0
  %3921 = vmatprep.subr.mxu0 0.0
  %3922 = vmatpush2.msra.mxu0 0.0
  %3923 = vmatprep.subr.mxu0 0.0
  %3924 = vmatpush2.msra.mxu0 0.0
  %3925 = vmatprep.subr.mxu0 0.0
  %3926 = vmatpush2.msra.mxu0 0.0
  %3927 = vmatprep.subr.mxu0 0.0
  %3928 = vmatpush2.msra.mxu0 0.0
  %3929 = vmatprep.subr.mxu0 0.0
  %3930 = vmatpush2.msra.mxu0 0.0
  %3931 = vmatprep.subr.mxu0 0.0
  %3932 = vmatpush2.msra.mxu0 0.0
  %3933 = vmatprep.subr.mxu0 0.0
  %3934 = vmatpush2.msra.mxu0 0.0
  %3935 = vmatprep.subr.mxu0 0.0
  %3936 = vmatpush2.msra.mxu0 0.0
  %3937 = vmatprep.subr.mxu0 0.0
  %3938 = vmatpush2.msra.mxu0 0.0
  %3939 = vmatprep.subr.mxu0 0.0
  %3940 = vmatpush2.msra.mxu0 0.0
  %3941 = vmatprep.subr.mxu0 0.0
  %3942 = vmatpush2.msra.mxu0 0.0
  %3943 = vmatprep.subr.mxu0 0.0
  %3944 = vmatpush2.msra.mxu0 0.0
  %3945 = vmatprep.subr.mxu0 0.0
  %3946 = vmatpush2.msra.mxu0 0.0
  %3947 = vmatprep.subr.mxu0 0.0
  %3948 = vmatpush2.msra.mxu0 0.0
  %3949 = vmatprep.mubr.f32.mxu0 0.0
  %3950 = vmatmul.mubr.f32.gmra.mxu0 %v3488
  %v3951 = vpop.f32.mrf.mxu0
  %v3952 = vadd.f32 0.0, %v3951
  %v3953 = vpop.f32.mrf.mxu0
  %v3954 = vadd.f32 0.0, %v3953
  %3955 = vdwg.mxu0
  %3956 = vmatprep.subr.mxu0 0.0
  %3957 = vmatpush1.msra.mxu0 0.0
  %3958 = vmatprep.subr.mxu0 0.0
  %3959 = vmatpush1.msra.mxu0 0.0
  %3960 = vmatprep.subr.mxu0 0.0
  %3961 = vmatpush1.msra.mxu0 0.0
  %3962 = vmatprep.subr.mxu0 0.0
  %3963 = vmatpush1.msra.mxu0 0.0
  %3964 = vmatprep.subr.mxu0 0.0
  %3965 = vmatpush1.msra.mxu0 0.0
  %3966 = vmatprep.subr.mxu0 0.0
  %3967 = vmatpush1.msra.mxu0 0.0
  %3968 = vmatprep.subr.mxu0 0.0
  %3969 = vmatpush1.msra.mxu0 0.0
  %3970 = vmatprep.subr.mxu0 0.0
  %3971 = vmatpush1.msra.mxu0 0.0
  %3972 = vmatprep.subr.mxu0 0.0
  %3973 = vmatpush1.msra.mxu0 0.0
  %3974 = vmatprep.subr.mxu0 0.0
  %3975 = vmatpush1.msra.mxu0 0.0
  %3976 = vmatprep.subr.mxu0 0.0
  %3977 = vmatpush1.msra.mxu0 0.0
  %3978 = vmatprep.subr.mxu0 0.0
  %3979 = vmatpush1.msra.mxu0 0.0
  %3980 = vmatprep.subr.mxu0 0.0
  %3981 = vmatpush1.msra.mxu0 0.0
  %3982 = vmatprep.subr.mxu0 0.0
  %3983 = vmatpush1.msra.mxu0 0.0
  %3984 = vmatprep.subr.mxu0 0.0
  %3985 = vmatpush1.msra.mxu0 0.0
  %3986 = vmatprep.subr.mxu0 %v3516
  %3987 = vmatpush1.msra.mxu0 %v3514
  %3988 = vmatprep.subr.mxu0 0.0
  %3989 = vmatpush2.msra.mxu0 0.0
  %3990 = vmatprep.subr.mxu0 0.0
  %3991 = vmatpush2.msra.mxu0 0.0
  %3992 = vmatprep.subr.mxu0 0.0
  %3993 = vmatpush2.msra.mxu0 0.0
  %3994 = vmatprep.subr.mxu0 0.0
  %3995 = vmatpush2.msra.mxu0 0.0
  %3996 = vmatprep.subr.mxu0 0.0
  %3997 = vmatpush2.msra.mxu0 0.0
  %3998 = vmatprep.subr.mxu0 0.0
  %3999 = vmatpush2.msra.mxu0 0.0
  %4000 = vmatprep.subr.mxu0 0.0
  %4001 = vmatpush2.msra.mxu0 0.0
  %4002 = vmatprep.subr.mxu0 0.0
  %4003 = vmatpush2.msra.mxu0 0.0
  %4004 = vmatprep.subr.mxu0 0.0
  %4005 = vmatpush2.msra.mxu0 0.0
  %4006 = vmatprep.subr.mxu0 0.0
  %4007 = vmatpush2.msra.mxu0 0.0
  %4008 = vmatprep.subr.mxu0 0.0
  %4009 = vmatpush2.msra.mxu0 0.0
  %4010 = vmatprep.subr.mxu0 0.0
  %4011 = vmatpush2.msra.mxu0 0.0
  %4012 = vmatprep.subr.mxu0 0.0
  %4013 = vmatpush2.msra.mxu0 0.0
  %4014 = vmatprep.subr.mxu0 0.0
  %4015 = vmatpush2.msra.mxu0 0.0
  %4016 = vmatprep.subr.mxu0 0.0
  %4017 = vmatpush2.msra.mxu0 0.0
  %4018 = vmatprep.subr.mxu0 0.0
  %4019 = vmatpush2.msra.mxu0 0.0
  %4020 = vmatprep.mubr.f32.mxu0 0.0
  %4021 = vmatmul.mubr.f32.gmra.mxu0 %v3488
  %v4022 = vpop.f32.mrf.mxu0
  %v4023 = vadd.f32 0.0, %v4022
  %v4024 = vpop.f32.mrf.mxu0
  %v4025 = vadd.f32 0.0, %v4024
  %4026 = vdwg.mxu0
  %4027 = vmatprep.subr.mxu0 0.0
  %4028 = vmatpush1.msra.mxu0 0.0
  %4029 = vmatprep.subr.mxu0 0.0
  %4030 = vmatpush1.msra.mxu0 0.0
  %4031 = vmatprep.subr.mxu0 0.0
  %4032 = vmatpush1.msra.mxu0 0.0
  %4033 = vmatprep.subr.mxu0 0.0
  %4034 = vmatpush1.msra.mxu0 0.0
  %4035 = vmatprep.subr.mxu0 0.0
  %4036 = vmatpush1.msra.mxu0 0.0
  %4037 = vmatprep.subr.mxu0 0.0
  %4038 = vmatpush1.msra.mxu0 0.0
  %4039 = vmatprep.subr.mxu0 0.0
  %4040 = vmatpush1.msra.mxu0 0.0
  %4041 = vmatprep.subr.mxu0 0.0
  %4042 = vmatpush1.msra.mxu0 0.0
  %4043 = vmatprep.subr.mxu0 0.0
  %4044 = vmatpush1.msra.mxu0 0.0
  %4045 = vmatprep.subr.mxu0 0.0
  %4046 = vmatpush1.msra.mxu0 0.0
  %4047 = vmatprep.subr.mxu0 0.0
  %4048 = vmatpush1.msra.mxu0 0.0
  %4049 = vmatprep.subr.mxu0 0.0
  %4050 = vmatpush1.msra.mxu0 0.0
  %4051 = vmatprep.subr.mxu0 0.0
  %4052 = vmatpush1.msra.mxu0 0.0
  %4053 = vmatprep.subr.mxu0 0.0
  %4054 = vmatpush1.msra.mxu0 0.0
  %4055 = vmatprep.subr.mxu0 0.0
  %4056 = vmatpush1.msra.mxu0 0.0
  %4057 = vmatprep.subr.mxu0 %v3520
  %4058 = vmatpush1.msra.mxu0 %v3518
  %4059 = vmatprep.subr.mxu0 0.0
  %4060 = vmatpush2.msra.mxu0 0.0
  %4061 = vmatprep.subr.mxu0 0.0
  %4062 = vmatpush2.msra.mxu0 0.0
  %4063 = vmatprep.subr.mxu0 0.0
  %4064 = vmatpush2.msra.mxu0 0.0
  %4065 = vmatprep.subr.mxu0 0.0
  %4066 = vmatpush2.msra.mxu0 0.0
  %4067 = vmatprep.subr.mxu0 0.0
  %4068 = vmatpush2.msra.mxu0 0.0
  %4069 = vmatprep.subr.mxu0 0.0
  %4070 = vmatpush2.msra.mxu0 0.0
  %4071 = vmatprep.subr.mxu0 0.0
  %4072 = vmatpush2.msra.mxu0 0.0
  %4073 = vmatprep.subr.mxu0 0.0
  %4074 = vmatpush2.msra.mxu0 0.0
  %4075 = vmatprep.subr.mxu0 0.0
  %4076 = vmatpush2.msra.mxu0 0.0
  %4077 = vmatprep.subr.mxu0 0.0
  %4078 = vmatpush2.msra.mxu0 0.0
  %4079 = vmatprep.subr.mxu0 0.0
  %4080 = vmatpush2.msra.mxu0 0.0
  %4081 = vmatprep.subr.mxu0 0.0
  %4082 = vmatpush2.msra.mxu0 0.0
  %4083 = vmatprep.subr.mxu0 0.0
  %4084 = vmatpush2.msra.mxu0 0.0
  %4085 = vmatprep.subr.mxu0 0.0
  %4086 = vmatpush2.msra.mxu0 0.0
  %4087 = vmatprep.subr.mxu0 0.0
  %4088 = vmatpush2.msra.mxu0 0.0
  %4089 = vmatprep.subr.mxu0 0.0
  %4090 = vmatpush2.msra.mxu0 0.0
  %4091 = vmatprep.mubr.f32.mxu0 0.0
  %4092 = vmatmul.mubr.f32.gmra.mxu0 %v3488
  %v4093 = vpop.f32.mrf.mxu0
  %v4094 = vadd.f32 0.0, %v4093
  %v4095 = vpop.f32.mrf.mxu0
  %v4096 = vadd.f32 0.0, %v4095
  %4097 = vdwg.mxu0
  %4098 = vmatprep.subr.mxu0 0.0
  %4099 = vmatpush1.msra.mxu0 0.0
  %4100 = vmatprep.subr.mxu0 0.0
  %4101 = vmatpush1.msra.mxu0 0.0
  %4102 = vmatprep.subr.mxu0 0.0
  %4103 = vmatpush1.msra.mxu0 0.0
  %4104 = vmatprep.subr.mxu0 0.0
  %4105 = vmatpush1.msra.mxu0 0.0
  %4106 = vmatprep.subr.mxu0 0.0
  %4107 = vmatpush1.msra.mxu0 0.0
  %4108 = vmatprep.subr.mxu0 0.0
  %4109 = vmatpush1.msra.mxu0 0.0
  %4110 = vmatprep.subr.mxu0 0.0
  %4111 = vmatpush1.msra.mxu0 0.0
  %4112 = vmatprep.subr.mxu0 0.0
  %4113 = vmatpush1.msra.mxu0 0.0
  %4114 = vmatprep.subr.mxu0 0.0
  %4115 = vmatpush1.msra.mxu0 0.0
  %4116 = vmatprep.subr.mxu0 0.0
  %4117 = vmatpush1.msra.mxu0 0.0
  %4118 = vmatprep.subr.mxu0 0.0
  %4119 = vmatpush1.msra.mxu0 0.0
  %4120 = vmatprep.subr.mxu0 0.0
  %4121 = vmatpush1.msra.mxu0 0.0
  %4122 = vmatprep.subr.mxu0 0.0
  %4123 = vmatpush1.msra.mxu0 0.0
  %4124 = vmatprep.subr.mxu0 0.0
  %4125 = vmatpush1.msra.mxu0 0.0
  %4126 = vmatprep.subr.mxu0 0.0
  %4127 = vmatpush1.msra.mxu0 0.0
  %4128 = vmatprep.subr.mxu0 %v3524
  %4129 = vmatpush1.msra.mxu0 %v3522
  %4130 = vmatprep.subr.mxu0 0.0
  %4131 = vmatpush2.msra.mxu0 0.0
  %4132 = vmatprep.subr.mxu0 0.0
  %4133 = vmatpush2.msra.mxu0 0.0
  %4134 = vmatprep.subr.mxu0 0.0
  %4135 = vmatpush2.msra.mxu0 0.0
  %4136 = vmatprep.subr.mxu0 0.0
  %4137 = vmatpush2.msra.mxu0 0.0
  %4138 = vmatprep.subr.mxu0 0.0
  %4139 = vmatpush2.msra.mxu0 0.0
  %4140 = vmatprep.subr.mxu0 0.0
  %4141 = vmatpush2.msra.mxu0 0.0
  %4142 = vmatprep.subr.mxu0 0.0
  %4143 = vmatpush2.msra.mxu0 0.0
  %4144 = vmatprep.subr.mxu0 0.0
  %4145 = vmatpush2.msra.mxu0 0.0
  %4146 = vmatprep.subr.mxu0 0.0
  %4147 = vmatpush2.msra.mxu0 0.0
  %4148 = vmatprep.subr.mxu0 0.0
  %4149 = vmatpush2.msra.mxu0 0.0
  %4150 = vmatprep.subr.mxu0 0.0
  %4151 = vmatpush2.msra.mxu0 0.0
  %4152 = vmatprep.subr.mxu0 0.0
  %4153 = vmatpush2.msra.mxu0 0.0
  %4154 = vmatprep.subr.mxu0 0.0
  %4155 = vmatpush2.msra.mxu0 0.0
  %4156 = vmatprep.subr.mxu0 0.0
  %4157 = vmatpush2.msra.mxu0 0.0
  %4158 = vmatprep.subr.mxu0 0.0
  %4159 = vmatpush2.msra.mxu0 0.0
  %4160 = vmatprep.subr.mxu0 0.0
  %4161 = vmatpush2.msra.mxu0 0.0
  %4162 = vmatprep.mubr.f32.mxu0 0.0
  %4163 = vmatmul.mubr.f32.gmra.mxu0 %v3488
  %v4164 = vpop.f32.mrf.mxu0
  %v4165 = vadd.f32 0.0, %v4164
  %v4166 = vpop.f32.mrf.mxu0
  %v4167 = vadd.f32 0.0, %v4166
  %4168 = vdwg.mxu0
  %4169 = vmatprep.subr.mxu0 0.0
  %4170 = vmatpush1.msra.mxu0 0.0
  %4171 = vmatprep.subr.mxu0 0.0
  %4172 = vmatpush1.msra.mxu0 0.0
  %4173 = vmatprep.subr.mxu0 0.0
  %4174 = vmatpush1.msra.mxu0 0.0
  %4175 = vmatprep.subr.mxu0 0.0
  %4176 = vmatpush1.msra.mxu0 0.0
  %4177 = vmatprep.subr.mxu0 0.0
  %4178 = vmatpush1.msra.mxu0 0.0
  %4179 = vmatprep.subr.mxu0 0.0
  %4180 = vmatpush1.msra.mxu0 0.0
  %4181 = vmatprep.subr.mxu0 0.0
  %4182 = vmatpush1.msra.mxu0 0.0
  %4183 = vmatprep.subr.mxu0 0.0
  %4184 = vmatpush1.msra.mxu0 0.0
  %4185 = vmatprep.subr.mxu0 0.0
  %4186 = vmatpush1.msra.mxu0 0.0
  %4187 = vmatprep.subr.mxu0 0.0
  %4188 = vmatpush1.msra.mxu0 0.0
  %4189 = vmatprep.subr.mxu0 0.0
  %4190 = vmatpush1.msra.mxu0 0.0
  %4191 = vmatprep.subr.mxu0 0.0
  %4192 = vmatpush1.msra.mxu0 0.0
  %4193 = vmatprep.subr.mxu0 0.0
  %4194 = vmatpush1.msra.mxu0 0.0
  %4195 = vmatprep.subr.mxu0 0.0
  %4196 = vmatpush1.msra.mxu0 0.0
  %4197 = vmatprep.subr.mxu0 0.0
  %4198 = vmatpush1.msra.mxu0 0.0
  %4199 = vmatprep.subr.mxu0 %v3528
  %4200 = vmatpush1.msra.mxu0 %v3526
  %4201 = vmatprep.subr.mxu0 0.0
  %4202 = vmatpush2.msra.mxu0 0.0
  %4203 = vmatprep.subr.mxu0 0.0
  %4204 = vmatpush2.msra.mxu0 0.0
  %4205 = vmatprep.subr.mxu0 0.0
  %4206 = vmatpush2.msra.mxu0 0.0
  %4207 = vmatprep.subr.mxu0 0.0
  %4208 = vmatpush2.msra.mxu0 0.0
  %4209 = vmatprep.subr.mxu0 0.0
  %4210 = vmatpush2.msra.mxu0 0.0
  %4211 = vmatprep.subr.mxu0 0.0
  %4212 = vmatpush2.msra.mxu0 0.0
  %4213 = vmatprep.subr.mxu0 0.0
  %4214 = vmatpush2.msra.mxu0 0.0
  %4215 = vmatprep.subr.mxu0 0.0
  %4216 = vmatpush2.msra.mxu0 0.0
  %4217 = vmatprep.subr.mxu0 0.0
  %4218 = vmatpush2.msra.mxu0 0.0
  %4219 = vmatprep.subr.mxu0 0.0
  %4220 = vmatpush2.msra.mxu0 0.0
  %4221 = vmatprep.subr.mxu0 0.0
  %4222 = vmatpush2.msra.mxu0 0.0
  %4223 = vmatprep.subr.mxu0 0.0
  %4224 = vmatpush2.msra.mxu0 0.0
  %4225 = vmatprep.subr.mxu0 0.0
  %4226 = vmatpush2.msra.mxu0 0.0
  %4227 = vmatprep.subr.mxu0 0.0
  %4228 = vmatpush2.msra.mxu0 0.0
  %4229 = vmatprep.subr.mxu0 0.0
  %4230 = vmatpush2.msra.mxu0 0.0
  %4231 = vmatprep.subr.mxu0 0.0
  %4232 = vmatpush2.msra.mxu0 0.0
  %4233 = vmatprep.mubr.f32.mxu0 0.0
  %4234 = vmatmul.mubr.f32.gmra.mxu0 %v3488
  %v4235 = vpop.f32.mrf.mxu0
  %v4236 = vadd.f32 0.0, %v4235
  %v4237 = vpop.f32.mrf.mxu0
  %v4238 = vadd.f32 0.0, %v4237
  %4239 = vdwg.mxu0
  %v4240 = vadd.f32 %v3370, %v3597
  %v4241 = vadd.f32 %v3371, %v3599
  %v4242 = vadd.f32 %v3372, %v3668
  %v4243 = vadd.f32 %v3373, %v3670
  %v4244 = vadd.f32 %v3374, %v3739
  %v4245 = vadd.f32 %v3375, %v3741
  %v4246 = vadd.f32 %v3376, %v3810
  %v4247 = vadd.f32 %v3377, %v3812
  %v4248 = vadd.f32 %v3378, %v3881
  %v4249 = vadd.f32 %v3379, %v3883
  %v4250 = vadd.f32 %v3380, %v3952
  %v4251 = vadd.f32 %v3381, %v3954
  %v4252 = vadd.f32 %v3382, %v4023
  %v4253 = vadd.f32 %v3383, %v4025
  %v4254 = vadd.f32 %v3384, %v4094
  %v4255 = vadd.f32 %v3385, %v4096
  %v4256 = vadd.f32 %v3386, %v4165
  %v4257 = vadd.f32 %v3387, %v4167
  %v4258 = vadd.f32 %v3388, %v4236
  %v4259 = vadd.f32 %v3389, %v4238
  %s4260 = scalar_lea.vmem %s1, 40
  %v4261 = vld [vmem:[%s4260] sm:$0xff]
  %v4262 = vld [vmem:[%s0] sm:$0xff]
  %v4263 = vld [vmem:[%s0 + $0x8] sm:$0xff]
  %v4264 = vld [vmem:[%s0 + $0x10] sm:$0xff]
  %v4265 = vld [vmem:[%s0 + $0x18] sm:$0xff]
  %v4266 = vld [vmem:[%s0 + $0x20] sm:$0xff]
  %v4267 = vld [vmem:[%s0 + $0x28] sm:$0xff]
  %v4268 = vld [vmem:[%s0 + $0x30] sm:$0xff]
  %v4269 = vld [vmem:[%s0 + $0x38] sm:$0xff]
  %v4270 = vld [vmem:[%s0 + $0x40] sm:$0xff]
  %v4271 = vld [vmem:[%s0 + $0x48] sm:$0xff]
  %v4272 = vld [vmem:[%s0 + $0x50] sm:$0xf]
  %v4284 = vcombine.high %v4262, %v4262
  %v4285 = vcombine.high %v4263, %v4263
  %v4286 = vcombine.high %v4264, %v4264
  %v4287 = vcombine.high %v4265, %v4265
  %v4288 = vcombine.high %v4266, %v4266
  %v4289 = vcombine.high %v4267, %v4267
  %v4290 = vcombine.high %v4268, %v4268
  %v4291 = vcombine.high %v4269, %v4269
  %v4292 = vcombine.high %v4270, %v4270
  %v4293 = vcombine.high %v4271, %v4271
  %4294 = vrot.lane.b32.xlu0 %v4262, 92
  %v4295 = vpop.permute.xlu0 %4294
  %4296 = vrot.lane.b32.xlu0 %v4284, 92
  %v4297 = vpop.permute.xlu0 %4296
  %4298 = vrot.lane.b32.xlu0 %v4263, 92
  %v4299 = vpop.permute.xlu0 %4298
  %4300 = vrot.lane.b32.xlu0 %v4285, 92
  %v4301 = vpop.permute.xlu0 %4300
  %4302 = vrot.lane.b32.xlu0 %v4264, 92
  %v4303 = vpop.permute.xlu0 %4302
  %4304 = vrot.lane.b32.xlu0 %v4286, 92
  %v4305 = vpop.permute.xlu0 %4304
  %4306 = vrot.lane.b32.xlu0 %v4265, 92
  %v4307 = vpop.permute.xlu0 %4306
  %4308 = vrot.lane.b32.xlu0 %v4287, 92
  %v4309 = vpop.permute.xlu0 %4308
  %4310 = vrot.lane.b32.xlu0 %v4266, 92
  %v4311 = vpop.permute.xlu0 %4310
  %4312 = vrot.lane.b32.xlu0 %v4288, 92
  %v4313 = vpop.permute.xlu0 %4312
  %4314 = vrot.lane.b32.xlu0 %v4267, 92
  %v4315 = vpop.permute.xlu0 %4314
  %4316 = vrot.lane.b32.xlu0 %v4289, 92
  %v4317 = vpop.permute.xlu0 %4316
  %4318 = vrot.lane.b32.xlu0 %v4268, 92
  %v4319 = vpop.permute.xlu0 %4318
  %4320 = vrot.lane.b32.xlu0 %v4290, 92
  %v4321 = vpop.permute.xlu0 %4320
  %4322 = vrot.lane.b32.xlu0 %v4269, 92
  %v4323 = vpop.permute.xlu0 %4322
  %4324 = vrot.lane.b32.xlu0 %v4291, 92
  %v4325 = vpop.permute.xlu0 %4324
  %4326 = vrot.lane.b32.xlu0 %v4270, 92
  %v4327 = vpop.permute.xlu0 %4326
  %4328 = vrot.lane.b32.xlu0 %v4292, 92
  %v4329 = vpop.permute.xlu0 %4328
  %4330 = vrot.lane.b32.xlu0 %v4271, 92
  %v4331 = vpop.permute.xlu0 %4330
  %4332 = vrot.lane.b32.xlu0 %v4293, 92
  %v4333 = vpop.permute.xlu0 %4332
  %4334 = vrot.lane.b32.xlu0 %v4272, 92
  %v4335 = vpop.permute.xlu0 %4334
  %vm4336 = vcmask 752640
  %v4337 = vsel %vm4336, %v4295, %v4297
  %v4338 = vsel %vm4336, %v4297, %v4299
  %v4339 = vsel %vm4336, %v4299, %v4301
  %v4340 = vsel %vm4336, %v4301, %v4303
  %v4341 = vsel %vm4336, %v4303, %v4305
  %v4342 = vsel %vm4336, %v4305, %v4307
  %v4343 = vsel %vm4336, %v4307, %v4309
  %v4344 = vsel %vm4336, %v4309, %v4311
  %v4345 = vsel %vm4336, %v4311, %v4313
  %v4346 = vsel %vm4336, %v4313, %v4315
  %v4347 = vsel %vm4336, %v4315, %v4317
  %v4348 = vsel %vm4336, %v4317, %v4319
  %v4349 = vsel %vm4336, %v4319, %v4321
  %v4350 = vsel %vm4336, %v4321, %v4323
  %v4351 = vsel %vm4336, %v4323, %v4325
  %v4352 = vsel %vm4336, %v4325, %v4327
  %v4353 = vsel %vm4336, %v4327, %v4329
  %v4354 = vsel %vm4336, %v4329, %v4331
  %v4355 = vsel %vm4336, %v4331, %v4333
  %v4356 = vsel %vm4336, %v4333, %v4335
  %v4358 = vsel %vm122, %v4261, 0
  %v4360 = vsel %vm126, %v4337, 0
  %v4362 = vsel %vm126, %v4338, 0
  %v4364 = vsel %vm126, %v4339, 0
  %v4366 = vsel %vm126, %v4340, 0
  %v4368 = vsel %vm126, %v4341, 0
  %v4370 = vsel %vm126, %v4342, 0
  %v4372 = vsel %vm126, %v4343, 0
  %v4374 = vsel %vm126, %v4344, 0
  %v4376 = vsel %vm126, %v4345, 0
  %v4378 = vsel %vm126, %v4346, 0
  %v4380 = vsel %vm126, %v4347, 0
  %v4382 = vsel %vm126, %v4348, 0
  %v4384 = vsel %vm126, %v4349, 0
  %v4386 = vsel %vm126, %v4350, 0
  %v4388 = vsel %vm126, %v4351, 0
  %v4390 = vsel %vm126, %v4352, 0
  %v4392 = vsel %vm126, %v4353, 0
  %v4394 = vsel %vm126, %v4354, 0
  %v4396 = vsel %vm126, %v4355, 0
  %v4398 = vsel %vm126, %v4356, 0
  %4400 = vmatprep.subr.mxu0 0.0
  %4401 = vmatpush1.msra.mxu0 0.0
  %4402 = vmatprep.subr.mxu0 0.0
  %4403 = vmatpush1.msra.mxu0 0.0
  %4404 = vmatprep.subr.mxu0 0.0
  %4405 = vmatpush1.msra.mxu0 0.0
  %4406 = vmatprep.subr.mxu0 0.0
  %4407 = vmatpush1.msra.mxu0 0.0
  %4408 = vmatprep.subr.mxu0 0.0
  %4409 = vmatpush1.msra.mxu0 0.0
  %4410 = vmatprep.subr.mxu0 0.0
  %4411 = vmatpush1.msra.mxu0 0.0
  %4412 = vmatprep.subr.mxu0 0.0
  %4413 = vmatpush1.msra.mxu0 0.0
  %4414 = vmatprep.subr.mxu0 0.0
  %4415 = vmatpush1.msra.mxu0 0.0
  %4416 = vmatprep.subr.mxu0 0.0
  %4417 = vmatpush1.msra.mxu0 0.0
  %4418 = vmatprep.subr.mxu0 0.0
  %4419 = vmatpush1.msra.mxu0 0.0
  %4420 = vmatprep.subr.mxu0 0.0
  %4421 = vmatpush1.msra.mxu0 0.0
  %4422 = vmatprep.subr.mxu0 0.0
  %4423 = vmatpush1.msra.mxu0 0.0
  %4424 = vmatprep.subr.mxu0 0.0
  %4425 = vmatpush1.msra.mxu0 0.0
  %4426 = vmatprep.subr.mxu0 0.0
  %4427 = vmatpush1.msra.mxu0 0.0
  %4428 = vmatprep.subr.mxu0 0.0
  %4429 = vmatpush1.msra.mxu0 0.0
  %4430 = vmatprep.subr.mxu0 %v4362
  %4431 = vmatpush1.msra.mxu0 %v4360
  %4432 = vmatprep.subr.mxu0 0.0
  %4433 = vmatpush2.msra.mxu0 0.0
  %4434 = vmatprep.subr.mxu0 0.0
  %4435 = vmatpush2.msra.mxu0 0.0
  %4436 = vmatprep.subr.mxu0 0.0
  %4437 = vmatpush2.msra.mxu0 0.0
  %4438 = vmatprep.subr.mxu0 0.0
  %4439 = vmatpush2.msra.mxu0 0.0
  %4440 = vmatprep.subr.mxu0 0.0
  %4441 = vmatpush2.msra.mxu0 0.0
  %4442 = vmatprep.subr.mxu0 0.0
  %4443 = vmatpush2.msra.mxu0 0.0
  %4444 = vmatprep.subr.mxu0 0.0
  %4445 = vmatpush2.msra.mxu0 0.0
  %4446 = vmatprep.subr.mxu0 0.0
  %4447 = vmatpush2.msra.mxu0 0.0
  %4448 = vmatprep.subr.mxu0 0.0
  %4449 = vmatpush2.msra.mxu0 0.0
  %4450 = vmatprep.subr.mxu0 0.0
  %4451 = vmatpush2.msra.mxu0 0.0
  %4452 = vmatprep.subr.mxu0 0.0
  %4453 = vmatpush2.msra.mxu0 0.0
  %4454 = vmatprep.subr.mxu0 0.0
  %4455 = vmatpush2.msra.mxu0 0.0
  %4456 = vmatprep.subr.mxu0 0.0
  %4457 = vmatpush2.msra.mxu0 0.0
  %4458 = vmatprep.subr.mxu0 0.0
  %4459 = vmatpush2.msra.mxu0 0.0
  %4460 = vmatprep.subr.mxu0 0.0
  %4461 = vmatpush2.msra.mxu0 0.0
  %4462 = vmatprep.subr.mxu0 0.0
  %4463 = vmatpush2.msra.mxu0 0.0
  %4464 = vmatprep.mubr.f32.mxu0 0.0
  %4465 = vmatmul.mubr.f32.gmra.mxu0 %v4358
  %v4466 = vpop.f32.mrf.mxu0
  %v4467 = vadd.f32 0.0, %v4466
  %v4468 = vpop.f32.mrf.mxu0
  %v4469 = vadd.f32 0.0, %v4468
  %4470 = vdwg.mxu0
  %4471 = vmatprep.subr.mxu0 0.0
  %4472 = vmatpush1.msra.mxu0 0.0
  %4473 = vmatprep.subr.mxu0 0.0
  %4474 = vmatpush1.msra.mxu0 0.0
  %4475 = vmatprep.subr.mxu0 0.0
  %4476 = vmatpush1.msra.mxu0 0.0
  %4477 = vmatprep.subr.mxu0 0.0
  %4478 = vmatpush1.msra.mxu0 0.0
  %4479 = vmatprep.subr.mxu0 0.0
  %4480 = vmatpush1.msra.mxu0 0.0
  %4481 = vmatprep.subr.mxu0 0.0
  %4482 = vmatpush1.msra.mxu0 0.0
  %4483 = vmatprep.subr.mxu0 0.0
  %4484 = vmatpush1.msra.mxu0 0.0
  %4485 = vmatprep.subr.mxu0 0.0
  %4486 = vmatpush1.msra.mxu0 0.0
  %4487 = vmatprep.subr.mxu0 0.0
  %4488 = vmatpush1.msra.mxu0 0.0
  %4489 = vmatprep.subr.mxu0 0.0
  %4490 = vmatpush1.msra.mxu0 0.0
  %4491 = vmatprep.subr.mxu0 0.0
  %4492 = vmatpush1.msra.mxu0 0.0
  %4493 = vmatprep.subr.mxu0 0.0
  %4494 = vmatpush1.msra.mxu0 0.0
  %4495 = vmatprep.subr.mxu0 0.0
  %4496 = vmatpush1.msra.mxu0 0.0
  %4497 = vmatprep.subr.mxu0 0.0
  %4498 = vmatpush1.msra.mxu0 0.0
  %4499 = vmatprep.subr.mxu0 0.0
  %4500 = vmatpush1.msra.mxu0 0.0
  %4501 = vmatprep.subr.mxu0 %v4366
  %4502 = vmatpush1.msra.mxu0 %v4364
  %4503 = vmatprep.subr.mxu0 0.0
  %4504 = vmatpush2.msra.mxu0 0.0
  %4505 = vmatprep.subr.mxu0 0.0
  %4506 = vmatpush2.msra.mxu0 0.0
  %4507 = vmatprep.subr.mxu0 0.0
  %4508 = vmatpush2.msra.mxu0 0.0
  %4509 = vmatprep.subr.mxu0 0.0
  %4510 = vmatpush2.msra.mxu0 0.0
  %4511 = vmatprep.subr.mxu0 0.0
  %4512 = vmatpush2.msra.mxu0 0.0
  %4513 = vmatprep.subr.mxu0 0.0
  %4514 = vmatpush2.msra.mxu0 0.0
  %4515 = vmatprep.subr.mxu0 0.0
  %4516 = vmatpush2.msra.mxu0 0.0
  %4517 = vmatprep.subr.mxu0 0.0
  %4518 = vmatpush2.msra.mxu0 0.0
  %4519 = vmatprep.subr.mxu0 0.0
  %4520 = vmatpush2.msra.mxu0 0.0
  %4521 = vmatprep.subr.mxu0 0.0
  %4522 = vmatpush2.msra.mxu0 0.0
  %4523 = vmatprep.subr.mxu0 0.0
  %4524 = vmatpush2.msra.mxu0 0.0
  %4525 = vmatprep.subr.mxu0 0.0
  %4526 = vmatpush2.msra.mxu0 0.0
  %4527 = vmatprep.subr.mxu0 0.0
  %4528 = vmatpush2.msra.mxu0 0.0
  %4529 = vmatprep.subr.mxu0 0.0
  %4530 = vmatpush2.msra.mxu0 0.0
  %4531 = vmatprep.subr.mxu0 0.0
  %4532 = vmatpush2.msra.mxu0 0.0
  %4533 = vmatprep.subr.mxu0 0.0
  %4534 = vmatpush2.msra.mxu0 0.0
  %4535 = vmatprep.mubr.f32.mxu0 0.0
  %4536 = vmatmul.mubr.f32.gmra.mxu0 %v4358
  %v4537 = vpop.f32.mrf.mxu0
  %v4538 = vadd.f32 0.0, %v4537
  %v4539 = vpop.f32.mrf.mxu0
  %v4540 = vadd.f32 0.0, %v4539
  %4541 = vdwg.mxu0
  %4542 = vmatprep.subr.mxu0 0.0
  %4543 = vmatpush1.msra.mxu0 0.0
  %4544 = vmatprep.subr.mxu0 0.0
  %4545 = vmatpush1.msra.mxu0 0.0
  %4546 = vmatprep.subr.mxu0 0.0
  %4547 = vmatpush1.msra.mxu0 0.0
  %4548 = vmatprep.subr.mxu0 0.0
  %4549 = vmatpush1.msra.mxu0 0.0
  %4550 = vmatprep.subr.mxu0 0.0
  %4551 = vmatpush1.msra.mxu0 0.0
  %4552 = vmatprep.subr.mxu0 0.0
  %4553 = vmatpush1.msra.mxu0 0.0
  %4554 = vmatprep.subr.mxu0 0.0
  %4555 = vmatpush1.msra.mxu0 0.0
  %4556 = vmatprep.subr.mxu0 0.0
  %4557 = vmatpush1.msra.mxu0 0.0
  %4558 = vmatprep.subr.mxu0 0.0
  %4559 = vmatpush1.msra.mxu0 0.0
  %4560 = vmatprep.subr.mxu0 0.0
  %4561 = vmatpush1.msra.mxu0 0.0
  %4562 = vmatprep.subr.mxu0 0.0
  %4563 = vmatpush1.msra.mxu0 0.0
  %4564 = vmatprep.subr.mxu0 0.0
  %4565 = vmatpush1.msra.mxu0 0.0
  %4566 = vmatprep.subr.mxu0 0.0
  %4567 = vmatpush1.msra.mxu0 0.0
  %4568 = vmatprep.subr.mxu0 0.0
  %4569 = vmatpush1.msra.mxu0 0.0
  %4570 = vmatprep.subr.mxu0 0.0
  %4571 = vmatpush1.msra.mxu0 0.0
  %4572 = vmatprep.subr.mxu0 %v4370
  %4573 = vmatpush1.msra.mxu0 %v4368
  %4574 = vmatprep.subr.mxu0 0.0
  %4575 = vmatpush2.msra.mxu0 0.0
  %4576 = vmatprep.subr.mxu0 0.0
  %4577 = vmatpush2.msra.mxu0 0.0
  %4578 = vmatprep.subr.mxu0 0.0
  %4579 = vmatpush2.msra.mxu0 0.0
  %4580 = vmatprep.subr.mxu0 0.0
  %4581 = vmatpush2.msra.mxu0 0.0
  %4582 = vmatprep.subr.mxu0 0.0
  %4583 = vmatpush2.msra.mxu0 0.0
  %4584 = vmatprep.subr.mxu0 0.0
  %4585 = vmatpush2.msra.mxu0 0.0
  %4586 = vmatprep.subr.mxu0 0.0
  %4587 = vmatpush2.msra.mxu0 0.0
  %4588 = vmatprep.subr.mxu0 0.0
  %4589 = vmatpush2.msra.mxu0 0.0
  %4590 = vmatprep.subr.mxu0 0.0
  %4591 = vmatpush2.msra.mxu0 0.0
  %4592 = vmatprep.subr.mxu0 0.0
  %4593 = vmatpush2.msra.mxu0 0.0
  %4594 = vmatprep.subr.mxu0 0.0
  %4595 = vmatpush2.msra.mxu0 0.0
  %4596 = vmatprep.subr.mxu0 0.0
  %4597 = vmatpush2.msra.mxu0 0.0
  %4598 = vmatprep.subr.mxu0 0.0
  %4599 = vmatpush2.msra.mxu0 0.0
  %4600 = vmatprep.subr.mxu0 0.0
  %4601 = vmatpush2.msra.mxu0 0.0
  %4602 = vmatprep.subr.mxu0 0.0
  %4603 = vmatpush2.msra.mxu0 0.0
  %4604 = vmatprep.subr.mxu0 0.0
  %4605 = vmatpush2.msra.mxu0 0.0
  %4606 = vmatprep.mubr.f32.mxu0 0.0
  %4607 = vmatmul.mubr.f32.gmra.mxu0 %v4358
  %v4608 = vpop.f32.mrf.mxu0
  %v4609 = vadd.f32 0.0, %v4608
  %v4610 = vpop.f32.mrf.mxu0
  %v4611 = vadd.f32 0.0, %v4610
  %4612 = vdwg.mxu0
  %4613 = vmatprep.subr.mxu0 0.0
  %4614 = vmatpush1.msra.mxu0 0.0
  %4615 = vmatprep.subr.mxu0 0.0
  %4616 = vmatpush1.msra.mxu0 0.0
  %4617 = vmatprep.subr.mxu0 0.0
  %4618 = vmatpush1.msra.mxu0 0.0
  %4619 = vmatprep.subr.mxu0 0.0
  %4620 = vmatpush1.msra.mxu0 0.0
  %4621 = vmatprep.subr.mxu0 0.0
  %4622 = vmatpush1.msra.mxu0 0.0
  %4623 = vmatprep.subr.mxu0 0.0
  %4624 = vmatpush1.msra.mxu0 0.0
  %4625 = vmatprep.subr.mxu0 0.0
  %4626 = vmatpush1.msra.mxu0 0.0
  %4627 = vmatprep.subr.mxu0 0.0
  %4628 = vmatpush1.msra.mxu0 0.0
  %4629 = vmatprep.subr.mxu0 0.0
  %4630 = vmatpush1.msra.mxu0 0.0
  %4631 = vmatprep.subr.mxu0 0.0
  %4632 = vmatpush1.msra.mxu0 0.0
  %4633 = vmatprep.subr.mxu0 0.0
  %4634 = vmatpush1.msra.mxu0 0.0
  %4635 = vmatprep.subr.mxu0 0.0
  %4636 = vmatpush1.msra.mxu0 0.0
  %4637 = vmatprep.subr.mxu0 0.0
  %4638 = vmatpush1.msra.mxu0 0.0
  %4639 = vmatprep.subr.mxu0 0.0
  %4640 = vmatpush1.msra.mxu0 0.0
  %4641 = vmatprep.subr.mxu0 0.0
  %4642 = vmatpush1.msra.mxu0 0.0
  %4643 = vmatprep.subr.mxu0 %v4374
  %4644 = vmatpush1.msra.mxu0 %v4372
  %4645 = vmatprep.subr.mxu0 0.0
  %4646 = vmatpush2.msra.mxu0 0.0
  %4647 = vmatprep.subr.mxu0 0.0
  %4648 = vmatpush2.msra.mxu0 0.0
  %4649 = vmatprep.subr.mxu0 0.0
  %4650 = vmatpush2.msra.mxu0 0.0
  %4651 = vmatprep.subr.mxu0 0.0
  %4652 = vmatpush2.msra.mxu0 0.0
  %4653 = vmatprep.subr.mxu0 0.0
  %4654 = vmatpush2.msra.mxu0 0.0
  %4655 = vmatprep.subr.mxu0 0.0
  %4656 = vmatpush2.msra.mxu0 0.0
  %4657 = vmatprep.subr.mxu0 0.0
  %4658 = vmatpush2.msra.mxu0 0.0
  %4659 = vmatprep.subr.mxu0 0.0
  %4660 = vmatpush2.msra.mxu0 0.0
  %4661 = vmatprep.subr.mxu0 0.0
  %4662 = vmatpush2.msra.mxu0 0.0
  %4663 = vmatprep.subr.mxu0 0.0
  %4664 = vmatpush2.msra.mxu0 0.0
  %4665 = vmatprep.subr.mxu0 0.0
  %4666 = vmatpush2.msra.mxu0 0.0
  %4667 = vmatprep.subr.mxu0 0.0
  %4668 = vmatpush2.msra.mxu0 0.0
  %4669 = vmatprep.subr.mxu0 0.0
  %4670 = vmatpush2.msra.mxu0 0.0
  %4671 = vmatprep.subr.mxu0 0.0
  %4672 = vmatpush2.msra.mxu0 0.0
  %4673 = vmatprep.subr.mxu0 0.0
  %4674 = vmatpush2.msra.mxu0 0.0
  %4675 = vmatprep.subr.mxu0 0.0
  %4676 = vmatpush2.msra.mxu0 0.0
  %4677 = vmatprep.mubr.f32.mxu0 0.0
  %4678 = vmatmul.mubr.f32.gmra.mxu0 %v4358
  %v4679 = vpop.f32.mrf.mxu0
  %v4680 = vadd.f32 0.0, %v4679
  %v4681 = vpop.f32.mrf.mxu0
  %v4682 = vadd.f32 0.0, %v4681
  %4683 = vdwg.mxu0
  %4684 = vmatprep.subr.mxu0 0.0
  %4685 = vmatpush1.msra.mxu0 0.0
  %4686 = vmatprep.subr.mxu0 0.0
  %4687 = vmatpush1.msra.mxu0 0.0
  %4688 = vmatprep.subr.mxu0 0.0
  %4689 = vmatpush1.msra.mxu0 0.0
  %4690 = vmatprep.subr.mxu0 0.0
  %4691 = vmatpush1.msra.mxu0 0.0
  %4692 = vmatprep.subr.mxu0 0.0
  %4693 = vmatpush1.msra.mxu0 0.0
  %4694 = vmatprep.subr.mxu0 0.0
  %4695 = vmatpush1.msra.mxu0 0.0
  %4696 = vmatprep.subr.mxu0 0.0
  %4697 = vmatpush1.msra.mxu0 0.0
  %4698 = vmatprep.subr.mxu0 0.0
  %4699 = vmatpush1.msra.mxu0 0.0
  %4700 = vmatprep.subr.mxu0 0.0
  %4701 = vmatpush1.msra.mxu0 0.0
  %4702 = vmatprep.subr.mxu0 0.0
  %4703 = vmatpush1.msra.mxu0 0.0
  %4704 = vmatprep.subr.mxu0 0.0
  %4705 = vmatpush1.msra.mxu0 0.0
  %4706 = vmatprep.subr.mxu0 0.0
  %4707 = vmatpush1.msra.mxu0 0.0
  %4708 = vmatprep.subr.mxu0 0.0
  %4709 = vmatpush1.msra.mxu0 0.0
  %4710 = vmatprep.subr.mxu0 0.0
  %4711 = vmatpush1.msra.mxu0 0.0
  %4712 = vmatprep.subr.mxu0 0.0
  %4713 = vmatpush1.msra.mxu0 0.0
  %4714 = vmatprep.subr.mxu0 %v4378
  %4715 = vmatpush1.msra.mxu0 %v4376
  %4716 = vmatprep.subr.mxu0 0.0
  %4717 = vmatpush2.msra.mxu0 0.0
  %4718 = vmatprep.subr.mxu0 0.0
  %4719 = vmatpush2.msra.mxu0 0.0
  %4720 = vmatprep.subr.mxu0 0.0
  %4721 = vmatpush2.msra.mxu0 0.0
  %4722 = vmatprep.subr.mxu0 0.0
  %4723 = vmatpush2.msra.mxu0 0.0
  %4724 = vmatprep.subr.mxu0 0.0
  %4725 = vmatpush2.msra.mxu0 0.0
  %4726 = vmatprep.subr.mxu0 0.0
  %4727 = vmatpush2.msra.mxu0 0.0
  %4728 = vmatprep.subr.mxu0 0.0
  %4729 = vmatpush2.msra.mxu0 0.0
  %4730 = vmatprep.subr.mxu0 0.0
  %4731 = vmatpush2.msra.mxu0 0.0
  %4732 = vmatprep.subr.mxu0 0.0
  %4733 = vmatpush2.msra.mxu0 0.0
  %4734 = vmatprep.subr.mxu0 0.0
  %4735 = vmatpush2.msra.mxu0 0.0
  %4736 = vmatprep.subr.mxu0 0.0
  %4737 = vmatpush2.msra.mxu0 0.0
  %4738 = vmatprep.subr.mxu0 0.0
  %4739 = vmatpush2.msra.mxu0 0.0
  %4740 = vmatprep.subr.mxu0 0.0
  %4741 = vmatpush2.msra.mxu0 0.0
  %4742 = vmatprep.subr.mxu0 0.0
  %4743 = vmatpush2.msra.mxu0 0.0
  %4744 = vmatprep.subr.mxu0 0.0
  %4745 = vmatpush2.msra.mxu0 0.0
  %4746 = vmatprep.subr.mxu0 0.0
  %4747 = vmatpush2.msra.mxu0 0.0
  %4748 = vmatprep.mubr.f32.mxu0 0.0
  %4749 = vmatmul.mubr.f32.gmra.mxu0 %v4358
  %v4750 = vpop.f32.mrf.mxu0
  %v4751 = vadd.f32 0.0, %v4750
  %v4752 = vpop.f32.mrf.mxu0
  %v4753 = vadd.f32 0.0, %v4752
  %4754 = vdwg.mxu0
  %4755 = vmatprep.subr.mxu0 0.0
  %4756 = vmatpush1.msra.mxu0 0.0
  %4757 = vmatprep.subr.mxu0 0.0
  %4758 = vmatpush1.msra.mxu0 0.0
  %4759 = vmatprep.subr.mxu0 0.0
  %4760 = vmatpush1.msra.mxu0 0.0
  %4761 = vmatprep.subr.mxu0 0.0
  %4762 = vmatpush1.msra.mxu0 0.0
  %4763 = vmatprep.subr.mxu0 0.0
  %4764 = vmatpush1.msra.mxu0 0.0
  %4765 = vmatprep.subr.mxu0 0.0
  %4766 = vmatpush1.msra.mxu0 0.0
  %4767 = vmatprep.subr.mxu0 0.0
  %4768 = vmatpush1.msra.mxu0 0.0
  %4769 = vmatprep.subr.mxu0 0.0
  %4770 = vmatpush1.msra.mxu0 0.0
  %4771 = vmatprep.subr.mxu0 0.0
  %4772 = vmatpush1.msra.mxu0 0.0
  %4773 = vmatprep.subr.mxu0 0.0
  %4774 = vmatpush1.msra.mxu0 0.0
  %4775 = vmatprep.subr.mxu0 0.0
  %4776 = vmatpush1.msra.mxu0 0.0
  %4777 = vmatprep.subr.mxu0 0.0
  %4778 = vmatpush1.msra.mxu0 0.0
  %4779 = vmatprep.subr.mxu0 0.0
  %4780 = vmatpush1.msra.mxu0 0.0
  %4781 = vmatprep.subr.mxu0 0.0
  %4782 = vmatpush1.msra.mxu0 0.0
  %4783 = vmatprep.subr.mxu0 0.0
  %4784 = vmatpush1.msra.mxu0 0.0
  %4785 = vmatprep.subr.mxu0 %v4382
  %4786 = vmatpush1.msra.mxu0 %v4380
  %4787 = vmatprep.subr.mxu0 0.0
  %4788 = vmatpush2.msra.mxu0 0.0
  %4789 = vmatprep.subr.mxu0 0.0
  %4790 = vmatpush2.msra.mxu0 0.0
  %4791 = vmatprep.subr.mxu0 0.0
  %4792 = vmatpush2.msra.mxu0 0.0
  %4793 = vmatprep.subr.mxu0 0.0
  %4794 = vmatpush2.msra.mxu0 0.0
  %4795 = vmatprep.subr.mxu0 0.0
  %4796 = vmatpush2.msra.mxu0 0.0
  %4797 = vmatprep.subr.mxu0 0.0
  %4798 = vmatpush2.msra.mxu0 0.0
  %4799 = vmatprep.subr.mxu0 0.0
  %4800 = vmatpush2.msra.mxu0 0.0
  %4801 = vmatprep.subr.mxu0 0.0
  %4802 = vmatpush2.msra.mxu0 0.0
  %4803 = vmatprep.subr.mxu0 0.0
  %4804 = vmatpush2.msra.mxu0 0.0
  %4805 = vmatprep.subr.mxu0 0.0
  %4806 = vmatpush2.msra.mxu0 0.0
  %4807 = vmatprep.subr.mxu0 0.0
  %4808 = vmatpush2.msra.mxu0 0.0
  %4809 = vmatprep.subr.mxu0 0.0
  %4810 = vmatpush2.msra.mxu0 0.0
  %4811 = vmatprep.subr.mxu0 0.0
  %4812 = vmatpush2.msra.mxu0 0.0
  %4813 = vmatprep.subr.mxu0 0.0
  %4814 = vmatpush2.msra.mxu0 0.0
  %4815 = vmatprep.subr.mxu0 0.0
  %4816 = vmatpush2.msra.mxu0 0.0
  %4817 = vmatprep.subr.mxu0 0.0
  %4818 = vmatpush2.msra.mxu0 0.0
  %4819 = vmatprep.mubr.f32.mxu0 0.0
  %4820 = vmatmul.mubr.f32.gmra.mxu0 %v4358
  %v4821 = vpop.f32.mrf.mxu0
  %v4822 = vadd.f32 0.0, %v4821
  %v4823 = vpop.f32.mrf.mxu0
  %v4824 = vadd.f32 0.0, %v4823
  %4825 = vdwg.mxu0
  %4826 = vmatprep.subr.mxu0 0.0
  %4827 = vmatpush1.msra.mxu0 0.0
  %4828 = vmatprep.subr.mxu0 0.0
  %4829 = vmatpush1.msra.mxu0 0.0
  %4830 = vmatprep.subr.mxu0 0.0
  %4831 = vmatpush1.msra.mxu0 0.0
  %4832 = vmatprep.subr.mxu0 0.0
  %4833 = vmatpush1.msra.mxu0 0.0
  %4834 = vmatprep.subr.mxu0 0.0
  %4835 = vmatpush1.msra.mxu0 0.0
  %4836 = vmatprep.subr.mxu0 0.0
  %4837 = vmatpush1.msra.mxu0 0.0
  %4838 = vmatprep.subr.mxu0 0.0
  %4839 = vmatpush1.msra.mxu0 0.0
  %4840 = vmatprep.subr.mxu0 0.0
  %4841 = vmatpush1.msra.mxu0 0.0
  %4842 = vmatprep.subr.mxu0 0.0
  %4843 = vmatpush1.msra.mxu0 0.0
  %4844 = vmatprep.subr.mxu0 0.0
  %4845 = vmatpush1.msra.mxu0 0.0
  %4846 = vmatprep.subr.mxu0 0.0
  %4847 = vmatpush1.msra.mxu0 0.0
  %4848 = vmatprep.subr.mxu0 0.0
  %4849 = vmatpush1.msra.mxu0 0.0
  %4850 = vmatprep.subr.mxu0 0.0
  %4851 = vmatpush1.msra.mxu0 0.0
  %4852 = vmatprep.subr.mxu0 0.0
  %4853 = vmatpush1.msra.mxu0 0.0
  %4854 = vmatprep.subr.mxu0 0.0
  %4855 = vmatpush1.msra.mxu0 0.0
  %4856 = vmatprep.subr.mxu0 %v4386
  %4857 = vmatpush1.msra.mxu0 %v4384
  %4858 = vmatprep.subr.mxu0 0.0
  %4859 = vmatpush2.msra.mxu0 0.0
  %4860 = vmatprep.subr.mxu0 0.0
  %4861 = vmatpush2.msra.mxu0 0.0
  %4862 = vmatprep.subr.mxu0 0.0
  %4863 = vmatpush2.msra.mxu0 0.0
  %4864 = vmatprep.subr.mxu0 0.0
  %4865 = vmatpush2.msra.mxu0 0.0
  %4866 = vmatprep.subr.mxu0 0.0
  %4867 = vmatpush2.msra.mxu0 0.0
  %4868 = vmatprep.subr.mxu0 0.0
  %4869 = vmatpush2.msra.mxu0 0.0
  %4870 = vmatprep.subr.mxu0 0.0
  %4871 = vmatpush2.msra.mxu0 0.0
  %4872 = vmatprep.subr.mxu0 0.0
  %4873 = vmatpush2.msra.mxu0 0.0
  %4874 = vmatprep.subr.mxu0 0.0
  %4875 = vmatpush2.msra.mxu0 0.0
  %4876 = vmatprep.subr.mxu0 0.0
  %4877 = vmatpush2.msra.mxu0 0.0
  %4878 = vmatprep.subr.mxu0 0.0
  %4879 = vmatpush2.msra.mxu0 0.0
  %4880 = vmatprep.subr.mxu0 0.0
  %4881 = vmatpush2.msra.mxu0 0.0
  %4882 = vmatprep.subr.mxu0 0.0
  %4883 = vmatpush2.msra.mxu0 0.0
  %4884 = vmatprep.subr.mxu0 0.0
  %4885 = vmatpush2.msra.mxu0 0.0
  %4886 = vmatprep.subr.mxu0 0.0
  %4887 = vmatpush2.msra.mxu0 0.0
  %4888 = vmatprep.subr.mxu0 0.0
  %4889 = vmatpush2.msra.mxu0 0.0
  %4890 = vmatprep.mubr.f32.mxu0 0.0
  %4891 = vmatmul.mubr.f32.gmra.mxu0 %v4358
  %v4892 = vpop.f32.mrf.mxu0
  %v4893 = vadd.f32 0.0, %v4892
  %v4894 = vpop.f32.mrf.mxu0
  %v4895 = vadd.f32 0.0, %v4894
  %4896 = vdwg.mxu0
  %4897 = vmatprep.subr.mxu0 0.0
  %4898 = vmatpush1.msra.mxu0 0.0
  %4899 = vmatprep.subr.mxu0 0.0
  %4900 = vmatpush1.msra.mxu0 0.0
  %4901 = vmatprep.subr.mxu0 0.0
  %4902 = vmatpush1.msra.mxu0 0.0
  %4903 = vmatprep.subr.mxu0 0.0
  %4904 = vmatpush1.msra.mxu0 0.0
  %4905 = vmatprep.subr.mxu0 0.0
  %4906 = vmatpush1.msra.mxu0 0.0
  %4907 = vmatprep.subr.mxu0 0.0
  %4908 = vmatpush1.msra.mxu0 0.0
  %4909 = vmatprep.subr.mxu0 0.0
  %4910 = vmatpush1.msra.mxu0 0.0
  %4911 = vmatprep.subr.mxu0 0.0
  %4912 = vmatpush1.msra.mxu0 0.0
  %4913 = vmatprep.subr.mxu0 0.0
  %4914 = vmatpush1.msra.mxu0 0.0
  %4915 = vmatprep.subr.mxu0 0.0
  %4916 = vmatpush1.msra.mxu0 0.0
  %4917 = vmatprep.subr.mxu0 0.0
  %4918 = vmatpush1.msra.mxu0 0.0
  %4919 = vmatprep.subr.mxu0 0.0
  %4920 = vmatpush1.msra.mxu0 0.0
  %4921 = vmatprep.subr.mxu0 0.0
  %4922 = vmatpush1.msra.mxu0 0.0
  %4923 = vmatprep.subr.mxu0 0.0
  %4924 = vmatpush1.msra.mxu0 0.0
  %4925 = vmatprep.subr.mxu0 0.0
  %4926 = vmatpush1.msra.mxu0 0.0
  %4927 = vmatprep.subr.mxu0 %v4390
  %4928 = vmatpush1.msra.mxu0 %v4388
  %4929 = vmatprep.subr.mxu0 0.0
  %4930 = vmatpush2.msra.mxu0 0.0
  %4931 = vmatprep.subr.mxu0 0.0
  %4932 = vmatpush2.msra.mxu0 0.0
  %4933 = vmatprep.subr.mxu0 0.0
  %4934 = vmatpush2.msra.mxu0 0.0
  %4935 = vmatprep.subr.mxu0 0.0
  %4936 = vmatpush2.msra.mxu0 0.0
  %4937 = vmatprep.subr.mxu0 0.0
  %4938 = vmatpush2.msra.mxu0 0.0
  %4939 = vmatprep.subr.mxu0 0.0
  %4940 = vmatpush2.msra.mxu0 0.0
  %4941 = vmatprep.subr.mxu0 0.0
  %4942 = vmatpush2.msra.mxu0 0.0
  %4943 = vmatprep.subr.mxu0 0.0
  %4944 = vmatpush2.msra.mxu0 0.0
  %4945 = vmatprep.subr.mxu0 0.0
  %4946 = vmatpush2.msra.mxu0 0.0
  %4947 = vmatprep.subr.mxu0 0.0
  %4948 = vmatpush2.msra.mxu0 0.0
  %4949 = vmatprep.subr.mxu0 0.0
  %4950 = vmatpush2.msra.mxu0 0.0
  %4951 = vmatprep.subr.mxu0 0.0
  %4952 = vmatpush2.msra.mxu0 0.0
  %4953 = vmatprep.subr.mxu0 0.0
  %4954 = vmatpush2.msra.mxu0 0.0
  %4955 = vmatprep.subr.mxu0 0.0
  %4956 = vmatpush2.msra.mxu0 0.0
  %4957 = vmatprep.subr.mxu0 0.0
  %4958 = vmatpush2.msra.mxu0 0.0
  %4959 = vmatprep.subr.mxu0 0.0
  %4960 = vmatpush2.msra.mxu0 0.0
  %4961 = vmatprep.mubr.f32.mxu0 0.0
  %4962 = vmatmul.mubr.f32.gmra.mxu0 %v4358
  %v4963 = vpop.f32.mrf.mxu0
  %v4964 = vadd.f32 0.0, %v4963
  %v4965 = vpop.f32.mrf.mxu0
  %v4966 = vadd.f32 0.0, %v4965
  %4967 = vdwg.mxu0
  %4968 = vmatprep.subr.mxu0 0.0
  %4969 = vmatpush1.msra.mxu0 0.0
  %4970 = vmatprep.subr.mxu0 0.0
  %4971 = vmatpush1.msra.mxu0 0.0
  %4972 = vmatprep.subr.mxu0 0.0
  %4973 = vmatpush1.msra.mxu0 0.0
  %4974 = vmatprep.subr.mxu0 0.0
  %4975 = vmatpush1.msra.mxu0 0.0
  %4976 = vmatprep.subr.mxu0 0.0
  %4977 = vmatpush1.msra.mxu0 0.0
  %4978 = vmatprep.subr.mxu0 0.0
  %4979 = vmatpush1.msra.mxu0 0.0
  %4980 = vmatprep.subr.mxu0 0.0
  %4981 = vmatpush1.msra.mxu0 0.0
  %4982 = vmatprep.subr.mxu0 0.0
  %4983 = vmatpush1.msra.mxu0 0.0
  %4984 = vmatprep.subr.mxu0 0.0
  %4985 = vmatpush1.msra.mxu0 0.0
  %4986 = vmatprep.subr.mxu0 0.0
  %4987 = vmatpush1.msra.mxu0 0.0
  %4988 = vmatprep.subr.mxu0 0.0
  %4989 = vmatpush1.msra.mxu0 0.0
  %4990 = vmatprep.subr.mxu0 0.0
  %4991 = vmatpush1.msra.mxu0 0.0
  %4992 = vmatprep.subr.mxu0 0.0
  %4993 = vmatpush1.msra.mxu0 0.0
  %4994 = vmatprep.subr.mxu0 0.0
  %4995 = vmatpush1.msra.mxu0 0.0
  %4996 = vmatprep.subr.mxu0 0.0
  %4997 = vmatpush1.msra.mxu0 0.0
  %4998 = vmatprep.subr.mxu0 %v4394
  %4999 = vmatpush1.msra.mxu0 %v4392
  %5000 = vmatprep.subr.mxu0 0.0
  %5001 = vmatpush2.msra.mxu0 0.0
  %5002 = vmatprep.subr.mxu0 0.0
  %5003 = vmatpush2.msra.mxu0 0.0
  %5004 = vmatprep.subr.mxu0 0.0
  %5005 = vmatpush2.msra.mxu0 0.0
  %5006 = vmatprep.subr.mxu0 0.0
  %5007 = vmatpush2.msra.mxu0 0.0
  %5008 = vmatprep.subr.mxu0 0.0
  %5009 = vmatpush2.msra.mxu0 0.0
  %5010 = vmatprep.subr.mxu0 0.0
  %5011 = vmatpush2.msra.mxu0 0.0
  %5012 = vmatprep.subr.mxu0 0.0
  %5013 = vmatpush2.msra.mxu0 0.0
  %5014 = vmatprep.subr.mxu0 0.0
  %5015 = vmatpush2.msra.mxu0 0.0
  %5016 = vmatprep.subr.mxu0 0.0
  %5017 = vmatpush2.msra.mxu0 0.0
  %5018 = vmatprep.subr.mxu0 0.0
  %5019 = vmatpush2.msra.mxu0 0.0
  %5020 = vmatprep.subr.mxu0 0.0
  %5021 = vmatpush2.msra.mxu0 0.0
  %5022 = vmatprep.subr.mxu0 0.0
  %5023 = vmatpush2.msra.mxu0 0.0
  %5024 = vmatprep.subr.mxu0 0.0
  %5025 = vmatpush2.msra.mxu0 0.0
  %5026 = vmatprep.subr.mxu0 0.0
  %5027 = vmatpush2.msra.mxu0 0.0
  %5028 = vmatprep.subr.mxu0 0.0
  %5029 = vmatpush2.msra.mxu0 0.0
  %5030 = vmatprep.subr.mxu0 0.0
  %5031 = vmatpush2.msra.mxu0 0.0
  %5032 = vmatprep.mubr.f32.mxu0 0.0
  %5033 = vmatmul.mubr.f32.gmra.mxu0 %v4358
  %v5034 = vpop.f32.mrf.mxu0
  %v5035 = vadd.f32 0.0, %v5034
  %v5036 = vpop.f32.mrf.mxu0
  %v5037 = vadd.f32 0.0, %v5036
  %5038 = vdwg.mxu0
  %5039 = vmatprep.subr.mxu0 0.0
  %5040 = vmatpush1.msra.mxu0 0.0
  %5041 = vmatprep.subr.mxu0 0.0
  %5042 = vmatpush1.msra.mxu0 0.0
  %5043 = vmatprep.subr.mxu0 0.0
  %5044 = vmatpush1.msra.mxu0 0.0
  %5045 = vmatprep.subr.mxu0 0.0
  %5046 = vmatpush1.msra.mxu0 0.0
  %5047 = vmatprep.subr.mxu0 0.0
  %5048 = vmatpush1.msra.mxu0 0.0
  %5049 = vmatprep.subr.mxu0 0.0
  %5050 = vmatpush1.msra.mxu0 0.0
  %5051 = vmatprep.subr.mxu0 0.0
  %5052 = vmatpush1.msra.mxu0 0.0
  %5053 = vmatprep.subr.mxu0 0.0
  %5054 = vmatpush1.msra.mxu0 0.0
  %5055 = vmatprep.subr.mxu0 0.0
  %5056 = vmatpush1.msra.mxu0 0.0
  %5057 = vmatprep.subr.mxu0 0.0
  %5058 = vmatpush1.msra.mxu0 0.0
  %5059 = vmatprep.subr.mxu0 0.0
  %5060 = vmatpush1.msra.mxu0 0.0
  %5061 = vmatprep.subr.mxu0 0.0
  %5062 = vmatpush1.msra.mxu0 0.0
  %5063 = vmatprep.subr.mxu0 0.0
  %5064 = vmatpush1.msra.mxu0 0.0
  %5065 = vmatprep.subr.mxu0 0.0
  %5066 = vmatpush1.msra.mxu0 0.0
  %5067 = vmatprep.subr.mxu0 0.0
  %5068 = vmatpush1.msra.mxu0 0.0
  %5069 = vmatprep.subr.mxu0 %v4398
  %5070 = vmatpush1.msra.mxu0 %v4396
  %5071 = vmatprep.subr.mxu0 0.0
  %5072 = vmatpush2.msra.mxu0 0.0
  %5073 = vmatprep.subr.mxu0 0.0
  %5074 = vmatpush2.msra.mxu0 0.0
  %5075 = vmatprep.subr.mxu0 0.0
  %5076 = vmatpush2.msra.mxu0 0.0
  %5077 = vmatprep.subr.mxu0 0.0
  %5078 = vmatpush2.msra.mxu0 0.0
  %5079 = vmatprep.subr.mxu0 0.0
  %5080 = vmatpush2.msra.mxu0 0.0
  %5081 = vmatprep.subr.mxu0 0.0
  %5082 = vmatpush2.msra.mxu0 0.0
  %5083 = vmatprep.subr.mxu0 0.0
  %5084 = vmatpush2.msra.mxu0 0.0
  %5085 = vmatprep.subr.mxu0 0.0
  %5086 = vmatpush2.msra.mxu0 0.0
  %5087 = vmatprep.subr.mxu0 0.0
  %5088 = vmatpush2.msra.mxu0 0.0
  %5089 = vmatprep.subr.mxu0 0.0
  %5090 = vmatpush2.msra.mxu0 0.0
  %5091 = vmatprep.subr.mxu0 0.0
  %5092 = vmatpush2.msra.mxu0 0.0
  %5093 = vmatprep.subr.mxu0 0.0
  %5094 = vmatpush2.msra.mxu0 0.0
  %5095 = vmatprep.subr.mxu0 0.0
  %5096 = vmatpush2.msra.mxu0 0.0
  %5097 = vmatprep.subr.mxu0 0.0
  %5098 = vmatpush2.msra.mxu0 0.0
  %5099 = vmatprep.subr.mxu0 0.0
  %5100 = vmatpush2.msra.mxu0 0.0
  %5101 = vmatprep.subr.mxu0 0.0
  %5102 = vmatpush2.msra.mxu0 0.0
  %5103 = vmatprep.mubr.f32.mxu0 0.0
  %5104 = vmatmul.mubr.f32.gmra.mxu0 %v4358
  %v5105 = vpop.f32.mrf.mxu0
  %v5106 = vadd.f32 0.0, %v5105
  %v5107 = vpop.f32.mrf.mxu0
  %v5108 = vadd.f32 0.0, %v5107
  %5109 = vdwg.mxu0
  %v5110 = vadd.f32 %v4240, %v4467
  %v5111 = vadd.f32 %v4241, %v4469
  %v5112 = vadd.f32 %v4242, %v4538
  %v5113 = vadd.f32 %v4243, %v4540
  %v5114 = vadd.f32 %v4244, %v4609
  %v5115 = vadd.f32 %v4245, %v4611
  %v5116 = vadd.f32 %v4246, %v4680
  %v5117 = vadd.f32 %v4247, %v4682
  %v5118 = vadd.f32 %v4248, %v4751
  %v5119 = vadd.f32 %v4249, %v4753
  %v5120 = vadd.f32 %v4250, %v4822
  %v5121 = vadd.f32 %v4251, %v4824
  %v5122 = vadd.f32 %v4252, %v4893
  %v5123 = vadd.f32 %v4253, %v4895
  %v5124 = vadd.f32 %v4254, %v4964
  %v5125 = vadd.f32 %v4255, %v4966
  %v5126 = vadd.f32 %v4256, %v5035
  %v5127 = vadd.f32 %v4257, %v5037
  %v5128 = vadd.f32 %v4258, %v5106
  %v5129 = vadd.f32 %v4259, %v5108
  %s5130 = scalar_lea.vmem %s1, 48
  %v5131 = vld [vmem:[%s5130] sm:$0xff]
  %v5132 = vld [vmem:[%s0] sm:$0xff]
  %v5133 = vld [vmem:[%s0 + $0x8] sm:$0xff]
  %v5134 = vld [vmem:[%s0 + $0x10] sm:$0xff]
  %v5135 = vld [vmem:[%s0 + $0x18] sm:$0xff]
  %v5136 = vld [vmem:[%s0 + $0x20] sm:$0xff]
  %v5137 = vld [vmem:[%s0 + $0x28] sm:$0xff]
  %v5138 = vld [vmem:[%s0 + $0x30] sm:$0xff]
  %v5139 = vld [vmem:[%s0 + $0x38] sm:$0xff]
  %v5140 = vld [vmem:[%s0 + $0x40] sm:$0xff]
  %v5141 = vld [vmem:[%s0 + $0x48] sm:$0xff]
  %v5142 = vld [vmem:[%s0 + $0x50] sm:$0xf]
  %v5154 = vcombine.high %v5132, %v5132
  %v5155 = vcombine.high %v5133, %v5133
  %v5156 = vcombine.high %v5134, %v5134
  %v5157 = vcombine.high %v5135, %v5135
  %v5158 = vcombine.high %v5136, %v5136
  %v5159 = vcombine.high %v5137, %v5137
  %v5160 = vcombine.high %v5138, %v5138
  %v5161 = vcombine.high %v5139, %v5139
  %v5162 = vcombine.high %v5140, %v5140
  %v5163 = vcombine.high %v5141, %v5141
  %5164 = vrot.lane.b32.xlu0 %v5132, 60
  %v5165 = vpop.permute.xlu0 %5164
  %5166 = vrot.lane.b32.xlu0 %v5154, 60
  %v5167 = vpop.permute.xlu0 %5166
  %5168 = vrot.lane.b32.xlu0 %v5133, 60
  %v5169 = vpop.permute.xlu0 %5168
  %5170 = vrot.lane.b32.xlu0 %v5155, 60
  %v5171 = vpop.permute.xlu0 %5170
  %5172 = vrot.lane.b32.xlu0 %v5134, 60
  %v5173 = vpop.permute.xlu0 %5172
  %5174 = vrot.lane.b32.xlu0 %v5156, 60
  %v5175 = vpop.permute.xlu0 %5174
  %5176 = vrot.lane.b32.xlu0 %v5135, 60
  %v5177 = vpop.permute.xlu0 %5176
  %5178 = vrot.lane.b32.xlu0 %v5157, 60
  %v5179 = vpop.permute.xlu0 %5178
  %5180 = vrot.lane.b32.xlu0 %v5136, 60
  %v5181 = vpop.permute.xlu0 %5180
  %5182 = vrot.lane.b32.xlu0 %v5158, 60
  %v5183 = vpop.permute.xlu0 %5182
  %5184 = vrot.lane.b32.xlu0 %v5137, 60
  %v5185 = vpop.permute.xlu0 %5184
  %5186 = vrot.lane.b32.xlu0 %v5159, 60
  %v5187 = vpop.permute.xlu0 %5186
  %5188 = vrot.lane.b32.xlu0 %v5138, 60
  %v5189 = vpop.permute.xlu0 %5188
  %5190 = vrot.lane.b32.xlu0 %v5160, 60
  %v5191 = vpop.permute.xlu0 %5190
  %5192 = vrot.lane.b32.xlu0 %v5139, 60
  %v5193 = vpop.permute.xlu0 %5192
  %5194 = vrot.lane.b32.xlu0 %v5161, 60
  %v5195 = vpop.permute.xlu0 %5194
  %5196 = vrot.lane.b32.xlu0 %v5140, 60
  %v5197 = vpop.permute.xlu0 %5196
  %5198 = vrot.lane.b32.xlu0 %v5162, 60
  %v5199 = vpop.permute.xlu0 %5198
  %5200 = vrot.lane.b32.xlu0 %v5141, 60
  %v5201 = vpop.permute.xlu0 %5200
  %5202 = vrot.lane.b32.xlu0 %v5163, 60
  %v5203 = vpop.permute.xlu0 %5202
  %5204 = vrot.lane.b32.xlu0 %v5142, 60
  %v5205 = vpop.permute.xlu0 %5204
  %vm5206 = vcmask 490496
  %v5207 = vsel %vm5206, %v5165, %v5167
  %v5208 = vsel %vm5206, %v5167, %v5169
  %v5209 = vsel %vm5206, %v5169, %v5171
  %v5210 = vsel %vm5206, %v5171, %v5173
  %v5211 = vsel %vm5206, %v5173, %v5175
  %v5212 = vsel %vm5206, %v5175, %v5177
  %v5213 = vsel %vm5206, %v5177, %v5179
  %v5214 = vsel %vm5206, %v5179, %v5181
  %v5215 = vsel %vm5206, %v5181, %v5183
  %v5216 = vsel %vm5206, %v5183, %v5185
  %v5217 = vsel %vm5206, %v5185, %v5187
  %v5218 = vsel %vm5206, %v5187, %v5189
  %v5219 = vsel %vm5206, %v5189, %v5191
  %v5220 = vsel %vm5206, %v5191, %v5193
  %v5221 = vsel %vm5206, %v5193, %v5195
  %v5222 = vsel %vm5206, %v5195, %v5197
  %v5223 = vsel %vm5206, %v5197, %v5199
  %v5224 = vsel %vm5206, %v5199, %v5201
  %v5225 = vsel %vm5206, %v5201, %v5203
  %v5226 = vsel %vm5206, %v5203, %v5205
  %v5228 = vsel %vm122, %v5131, 0
  %v5230 = vsel %vm126, %v5207, 0
  %v5232 = vsel %vm126, %v5208, 0
  %v5234 = vsel %vm126, %v5209, 0
  %v5236 = vsel %vm126, %v5210, 0
  %v5238 = vsel %vm126, %v5211, 0
  %v5240 = vsel %vm126, %v5212, 0
  %v5242 = vsel %vm126, %v5213, 0
  %v5244 = vsel %vm126, %v5214, 0
  %v5246 = vsel %vm126, %v5215, 0
  %v5248 = vsel %vm126, %v5216, 0
  %v5250 = vsel %vm126, %v5217, 0
  %v5252 = vsel %vm126, %v5218, 0
  %v5254 = vsel %vm126, %v5219, 0
  %v5256 = vsel %vm126, %v5220, 0
  %v5258 = vsel %vm126, %v5221, 0
  %v5260 = vsel %vm126, %v5222, 0
  %v5262 = vsel %vm126, %v5223, 0
  %v5264 = vsel %vm126, %v5224, 0
  %v5266 = vsel %vm126, %v5225, 0
  %v5268 = vsel %vm126, %v5226, 0
  %5270 = vmatprep.subr.mxu0 0.0
  %5271 = vmatpush1.msra.mxu0 0.0
  %5272 = vmatprep.subr.mxu0 0.0
  %5273 = vmatpush1.msra.mxu0 0.0
  %5274 = vmatprep.subr.mxu0 0.0
  %5275 = vmatpush1.msra.mxu0 0.0
  %5276 = vmatprep.subr.mxu0 0.0
  %5277 = vmatpush1.msra.mxu0 0.0
  %5278 = vmatprep.subr.mxu0 0.0
  %5279 = vmatpush1.msra.mxu0 0.0
  %5280 = vmatprep.subr.mxu0 0.0
  %5281 = vmatpush1.msra.mxu0 0.0
  %5282 = vmatprep.subr.mxu0 0.0
  %5283 = vmatpush1.msra.mxu0 0.0
  %5284 = vmatprep.subr.mxu0 0.0
  %5285 = vmatpush1.msra.mxu0 0.0
  %5286 = vmatprep.subr.mxu0 0.0
  %5287 = vmatpush1.msra.mxu0 0.0
  %5288 = vmatprep.subr.mxu0 0.0
  %5289 = vmatpush1.msra.mxu0 0.0
  %5290 = vmatprep.subr.mxu0 0.0
  %5291 = vmatpush1.msra.mxu0 0.0
  %5292 = vmatprep.subr.mxu0 0.0
  %5293 = vmatpush1.msra.mxu0 0.0
  %5294 = vmatprep.subr.mxu0 0.0
  %5295 = vmatpush1.msra.mxu0 0.0
  %5296 = vmatprep.subr.mxu0 0.0
  %5297 = vmatpush1.msra.mxu0 0.0
  %5298 = vmatprep.subr.mxu0 0.0
  %5299 = vmatpush1.msra.mxu0 0.0
  %5300 = vmatprep.subr.mxu0 %v5232
  %5301 = vmatpush1.msra.mxu0 %v5230
  %5302 = vmatprep.subr.mxu0 0.0
  %5303 = vmatpush2.msra.mxu0 0.0
  %5304 = vmatprep.subr.mxu0 0.0
  %5305 = vmatpush2.msra.mxu0 0.0
  %5306 = vmatprep.subr.mxu0 0.0
  %5307 = vmatpush2.msra.mxu0 0.0
  %5308 = vmatprep.subr.mxu0 0.0
  %5309 = vmatpush2.msra.mxu0 0.0
  %5310 = vmatprep.subr.mxu0 0.0
  %5311 = vmatpush2.msra.mxu0 0.0
  %5312 = vmatprep.subr.mxu0 0.0
  %5313 = vmatpush2.msra.mxu0 0.0
  %5314 = vmatprep.subr.mxu0 0.0
  %5315 = vmatpush2.msra.mxu0 0.0
  %5316 = vmatprep.subr.mxu0 0.0
  %5317 = vmatpush2.msra.mxu0 0.0
  %5318 = vmatprep.subr.mxu0 0.0
  %5319 = vmatpush2.msra.mxu0 0.0
  %5320 = vmatprep.subr.mxu0 0.0
  %5321 = vmatpush2.msra.mxu0 0.0
  %5322 = vmatprep.subr.mxu0 0.0
  %5323 = vmatpush2.msra.mxu0 0.0
  %5324 = vmatprep.subr.mxu0 0.0
  %5325 = vmatpush2.msra.mxu0 0.0
  %5326 = vmatprep.subr.mxu0 0.0
  %5327 = vmatpush2.msra.mxu0 0.0
  %5328 = vmatprep.subr.mxu0 0.0
  %5329 = vmatpush2.msra.mxu0 0.0
  %5330 = vmatprep.subr.mxu0 0.0
  %5331 = vmatpush2.msra.mxu0 0.0
  %5332 = vmatprep.subr.mxu0 0.0
  %5333 = vmatpush2.msra.mxu0 0.0
  %5334 = vmatprep.mubr.f32.mxu0 0.0
  %5335 = vmatmul.mubr.f32.gmra.mxu0 %v5228
  %v5336 = vpop.f32.mrf.mxu0
  %v5337 = vadd.f32 0.0, %v5336
  %v5338 = vpop.f32.mrf.mxu0
  %v5339 = vadd.f32 0.0, %v5338
  %5340 = vdwg.mxu0
  %5341 = vmatprep.subr.mxu0 0.0
  %5342 = vmatpush1.msra.mxu0 0.0
  %5343 = vmatprep.subr.mxu0 0.0
  %5344 = vmatpush1.msra.mxu0 0.0
  %5345 = vmatprep.subr.mxu0 0.0
  %5346 = vmatpush1.msra.mxu0 0.0
  %5347 = vmatprep.subr.mxu0 0.0
  %5348 = vmatpush1.msra.mxu0 0.0
  %5349 = vmatprep.subr.mxu0 0.0
  %5350 = vmatpush1.msra.mxu0 0.0
  %5351 = vmatprep.subr.mxu0 0.0
  %5352 = vmatpush1.msra.mxu0 0.0
  %5353 = vmatprep.subr.mxu0 0.0
  %5354 = vmatpush1.msra.mxu0 0.0
  %5355 = vmatprep.subr.mxu0 0.0
  %5356 = vmatpush1.msra.mxu0 0.0
  %5357 = vmatprep.subr.mxu0 0.0
  %5358 = vmatpush1.msra.mxu0 0.0
  %5359 = vmatprep.subr.mxu0 0.0
  %5360 = vmatpush1.msra.mxu0 0.0
  %5361 = vmatprep.subr.mxu0 0.0
  %5362 = vmatpush1.msra.mxu0 0.0
  %5363 = vmatprep.subr.mxu0 0.0
  %5364 = vmatpush1.msra.mxu0 0.0
  %5365 = vmatprep.subr.mxu0 0.0
  %5366 = vmatpush1.msra.mxu0 0.0
  %5367 = vmatprep.subr.mxu0 0.0
  %5368 = vmatpush1.msra.mxu0 0.0
  %5369 = vmatprep.subr.mxu0 0.0
  %5370 = vmatpush1.msra.mxu0 0.0
  %5371 = vmatprep.subr.mxu0 %v5236
  %5372 = vmatpush1.msra.mxu0 %v5234
  %5373 = vmatprep.subr.mxu0 0.0
  %5374 = vmatpush2.msra.mxu0 0.0
  %5375 = vmatprep.subr.mxu0 0.0
  %5376 = vmatpush2.msra.mxu0 0.0
  %5377 = vmatprep.subr.mxu0 0.0
  %5378 = vmatpush2.msra.mxu0 0.0
  %5379 = vmatprep.subr.mxu0 0.0
  %5380 = vmatpush2.msra.mxu0 0.0
  %5381 = vmatprep.subr.mxu0 0.0
  %5382 = vmatpush2.msra.mxu0 0.0
  %5383 = vmatprep.subr.mxu0 0.0
  %5384 = vmatpush2.msra.mxu0 0.0
  %5385 = vmatprep.subr.mxu0 0.0
  %5386 = vmatpush2.msra.mxu0 0.0
  %5387 = vmatprep.subr.mxu0 0.0
  %5388 = vmatpush2.msra.mxu0 0.0
  %5389 = vmatprep.subr.mxu0 0.0
  %5390 = vmatpush2.msra.mxu0 0.0
  %5391 = vmatprep.subr.mxu0 0.0
  %5392 = vmatpush2.msra.mxu0 0.0
  %5393 = vmatprep.subr.mxu0 0.0
  %5394 = vmatpush2.msra.mxu0 0.0
  %5395 = vmatprep.subr.mxu0 0.0
  %5396 = vmatpush2.msra.mxu0 0.0
  %5397 = vmatprep.subr.mxu0 0.0
  %5398 = vmatpush2.msra.mxu0 0.0
  %5399 = vmatprep.subr.mxu0 0.0
  %5400 = vmatpush2.msra.mxu0 0.0
  %5401 = vmatprep.subr.mxu0 0.0
  %5402 = vmatpush2.msra.mxu0 0.0
  %5403 = vmatprep.subr.mxu0 0.0
  %5404 = vmatpush2.msra.mxu0 0.0
  %5405 = vmatprep.mubr.f32.mxu0 0.0
  %5406 = vmatmul.mubr.f32.gmra.mxu0 %v5228
  %v5407 = vpop.f32.mrf.mxu0
  %v5408 = vadd.f32 0.0, %v5407
  %v5409 = vpop.f32.mrf.mxu0
  %v5410 = vadd.f32 0.0, %v5409
  %5411 = vdwg.mxu0
  %5412 = vmatprep.subr.mxu0 0.0
  %5413 = vmatpush1.msra.mxu0 0.0
  %5414 = vmatprep.subr.mxu0 0.0
  %5415 = vmatpush1.msra.mxu0 0.0
  %5416 = vmatprep.subr.mxu0 0.0
  %5417 = vmatpush1.msra.mxu0 0.0
  %5418 = vmatprep.subr.mxu0 0.0
  %5419 = vmatpush1.msra.mxu0 0.0
  %5420 = vmatprep.subr.mxu0 0.0
  %5421 = vmatpush1.msra.mxu0 0.0
  %5422 = vmatprep.subr.mxu0 0.0
  %5423 = vmatpush1.msra.mxu0 0.0
  %5424 = vmatprep.subr.mxu0 0.0
  %5425 = vmatpush1.msra.mxu0 0.0
  %5426 = vmatprep.subr.mxu0 0.0
  %5427 = vmatpush1.msra.mxu0 0.0
  %5428 = vmatprep.subr.mxu0 0.0
  %5429 = vmatpush1.msra.mxu0 0.0
  %5430 = vmatprep.subr.mxu0 0.0
  %5431 = vmatpush1.msra.mxu0 0.0
  %5432 = vmatprep.subr.mxu0 0.0
  %5433 = vmatpush1.msra.mxu0 0.0
  %5434 = vmatprep.subr.mxu0 0.0
  %5435 = vmatpush1.msra.mxu0 0.0
  %5436 = vmatprep.subr.mxu0 0.0
  %5437 = vmatpush1.msra.mxu0 0.0
  %5438 = vmatprep.subr.mxu0 0.0
  %5439 = vmatpush1.msra.mxu0 0.0
  %5440 = vmatprep.subr.mxu0 0.0
  %5441 = vmatpush1.msra.mxu0 0.0
  %5442 = vmatprep.subr.mxu0 %v5240
  %5443 = vmatpush1.msra.mxu0 %v5238
  %5444 = vmatprep.subr.mxu0 0.0
  %5445 = vmatpush2.msra.mxu0 0.0
  %5446 = vmatprep.subr.mxu0 0.0
  %5447 = vmatpush2.msra.mxu0 0.0
  %5448 = vmatprep.subr.mxu0 0.0
  %5449 = vmatpush2.msra.mxu0 0.0
  %5450 = vmatprep.subr.mxu0 0.0
  %5451 = vmatpush2.msra.mxu0 0.0
  %5452 = vmatprep.subr.mxu0 0.0
  %5453 = vmatpush2.msra.mxu0 0.0
  %5454 = vmatprep.subr.mxu0 0.0
  %5455 = vmatpush2.msra.mxu0 0.0
  %5456 = vmatprep.subr.mxu0 0.0
  %5457 = vmatpush2.msra.mxu0 0.0
  %5458 = vmatprep.subr.mxu0 0.0
  %5459 = vmatpush2.msra.mxu0 0.0
  %5460 = vmatprep.subr.mxu0 0.0
  %5461 = vmatpush2.msra.mxu0 0.0
  %5462 = vmatprep.subr.mxu0 0.0
  %5463 = vmatpush2.msra.mxu0 0.0
  %5464 = vmatprep.subr.mxu0 0.0
  %5465 = vmatpush2.msra.mxu0 0.0
  %5466 = vmatprep.subr.mxu0 0.0
  %5467 = vmatpush2.msra.mxu0 0.0
  %5468 = vmatprep.subr.mxu0 0.0
  %5469 = vmatpush2.msra.mxu0 0.0
  %5470 = vmatprep.subr.mxu0 0.0
  %5471 = vmatpush2.msra.mxu0 0.0
  %5472 = vmatprep.subr.mxu0 0.0
  %5473 = vmatpush2.msra.mxu0 0.0
  %5474 = vmatprep.subr.mxu0 0.0
  %5475 = vmatpush2.msra.mxu0 0.0
  %5476 = vmatprep.mubr.f32.mxu0 0.0
  %5477 = vmatmul.mubr.f32.gmra.mxu0 %v5228
  %v5478 = vpop.f32.mrf.mxu0
  %v5479 = vadd.f32 0.0, %v5478
  %v5480 = vpop.f32.mrf.mxu0
  %v5481 = vadd.f32 0.0, %v5480
  %5482 = vdwg.mxu0
  %5483 = vmatprep.subr.mxu0 0.0
  %5484 = vmatpush1.msra.mxu0 0.0
  %5485 = vmatprep.subr.mxu0 0.0
  %5486 = vmatpush1.msra.mxu0 0.0
  %5487 = vmatprep.subr.mxu0 0.0
  %5488 = vmatpush1.msra.mxu0 0.0
  %5489 = vmatprep.subr.mxu0 0.0
  %5490 = vmatpush1.msra.mxu0 0.0
  %5491 = vmatprep.subr.mxu0 0.0
  %5492 = vmatpush1.msra.mxu0 0.0
  %5493 = vmatprep.subr.mxu0 0.0
  %5494 = vmatpush1.msra.mxu0 0.0
  %5495 = vmatprep.subr.mxu0 0.0
  %5496 = vmatpush1.msra.mxu0 0.0
  %5497 = vmatprep.subr.mxu0 0.0
  %5498 = vmatpush1.msra.mxu0 0.0
  %5499 = vmatprep.subr.mxu0 0.0
  %5500 = vmatpush1.msra.mxu0 0.0
  %5501 = vmatprep.subr.mxu0 0.0
  %5502 = vmatpush1.msra.mxu0 0.0
  %5503 = vmatprep.subr.mxu0 0.0
  %5504 = vmatpush1.msra.mxu0 0.0
  %5505 = vmatprep.subr.mxu0 0.0
  %5506 = vmatpush1.msra.mxu0 0.0
  %5507 = vmatprep.subr.mxu0 0.0
  %5508 = vmatpush1.msra.mxu0 0.0
  %5509 = vmatprep.subr.mxu0 0.0
  %5510 = vmatpush1.msra.mxu0 0.0
  %5511 = vmatprep.subr.mxu0 0.0
  %5512 = vmatpush1.msra.mxu0 0.0
  %5513 = vmatprep.subr.mxu0 %v5244
  %5514 = vmatpush1.msra.mxu0 %v5242
  %5515 = vmatprep.subr.mxu0 0.0
  %5516 = vmatpush2.msra.mxu0 0.0
  %5517 = vmatprep.subr.mxu0 0.0
  %5518 = vmatpush2.msra.mxu0 0.0
  %5519 = vmatprep.subr.mxu0 0.0
  %5520 = vmatpush2.msra.mxu0 0.0
  %5521 = vmatprep.subr.mxu0 0.0
  %5522 = vmatpush2.msra.mxu0 0.0
  %5523 = vmatprep.subr.mxu0 0.0
  %5524 = vmatpush2.msra.mxu0 0.0
  %5525 = vmatprep.subr.mxu0 0.0
  %5526 = vmatpush2.msra.mxu0 0.0
  %5527 = vmatprep.subr.mxu0 0.0
  %5528 = vmatpush2.msra.mxu0 0.0
  %5529 = vmatprep.subr.mxu0 0.0
  %5530 = vmatpush2.msra.mxu0 0.0
  %5531 = vmatprep.subr.mxu0 0.0
  %5532 = vmatpush2.msra.mxu0 0.0
  %5533 = vmatprep.subr.mxu0 0.0
  %5534 = vmatpush2.msra.mxu0 0.0
  %5535 = vmatprep.subr.mxu0 0.0
  %5536 = vmatpush2.msra.mxu0 0.0
  %5537 = vmatprep.subr.mxu0 0.0
  %5538 = vmatpush2.msra.mxu0 0.0
  %5539 = vmatprep.subr.mxu0 0.0
  %5540 = vmatpush2.msra.mxu0 0.0
  %5541 = vmatprep.subr.mxu0 0.0
  %5542 = vmatpush2.msra.mxu0 0.0
  %5543 = vmatprep.subr.mxu0 0.0
  %5544 = vmatpush2.msra.mxu0 0.0
  %5545 = vmatprep.subr.mxu0 0.0
  %5546 = vmatpush2.msra.mxu0 0.0
  %5547 = vmatprep.mubr.f32.mxu0 0.0
  %5548 = vmatmul.mubr.f32.gmra.mxu0 %v5228
  %v5549 = vpop.f32.mrf.mxu0
  %v5550 = vadd.f32 0.0, %v5549
  %v5551 = vpop.f32.mrf.mxu0
  %v5552 = vadd.f32 0.0, %v5551
  %5553 = vdwg.mxu0
  %5554 = vmatprep.subr.mxu0 0.0
  %5555 = vmatpush1.msra.mxu0 0.0
  %5556 = vmatprep.subr.mxu0 0.0
  %5557 = vmatpush1.msra.mxu0 0.0
  %5558 = vmatprep.subr.mxu0 0.0
  %5559 = vmatpush1.msra.mxu0 0.0
  %5560 = vmatprep.subr.mxu0 0.0
  %5561 = vmatpush1.msra.mxu0 0.0
  %5562 = vmatprep.subr.mxu0 0.0
  %5563 = vmatpush1.msra.mxu0 0.0
  %5564 = vmatprep.subr.mxu0 0.0
  %5565 = vmatpush1.msra.mxu0 0.0
  %5566 = vmatprep.subr.mxu0 0.0
  %5567 = vmatpush1.msra.mxu0 0.0
  %5568 = vmatprep.subr.mxu0 0.0
  %5569 = vmatpush1.msra.mxu0 0.0
  %5570 = vmatprep.subr.mxu0 0.0
  %5571 = vmatpush1.msra.mxu0 0.0
  %5572 = vmatprep.subr.mxu0 0.0
  %5573 = vmatpush1.msra.mxu0 0.0
  %5574 = vmatprep.subr.mxu0 0.0
  %5575 = vmatpush1.msra.mxu0 0.0
  %5576 = vmatprep.subr.mxu0 0.0
  %5577 = vmatpush1.msra.mxu0 0.0
  %5578 = vmatprep.subr.mxu0 0.0
  %5579 = vmatpush1.msra.mxu0 0.0
  %5580 = vmatprep.subr.mxu0 0.0
  %5581 = vmatpush1.msra.mxu0 0.0
  %5582 = vmatprep.subr.mxu0 0.0
  %5583 = vmatpush1.msra.mxu0 0.0
  %5584 = vmatprep.subr.mxu0 %v5248
  %5585 = vmatpush1.msra.mxu0 %v5246
  %5586 = vmatprep.subr.mxu0 0.0
  %5587 = vmatpush2.msra.mxu0 0.0
  %5588 = vmatprep.subr.mxu0 0.0
  %5589 = vmatpush2.msra.mxu0 0.0
  %5590 = vmatprep.subr.mxu0 0.0
  %5591 = vmatpush2.msra.mxu0 0.0
  %5592 = vmatprep.subr.mxu0 0.0
  %5593 = vmatpush2.msra.mxu0 0.0
  %5594 = vmatprep.subr.mxu0 0.0
  %5595 = vmatpush2.msra.mxu0 0.0
  %5596 = vmatprep.subr.mxu0 0.0
  %5597 = vmatpush2.msra.mxu0 0.0
  %5598 = vmatprep.subr.mxu0 0.0
  %5599 = vmatpush2.msra.mxu0 0.0
  %5600 = vmatprep.subr.mxu0 0.0
  %5601 = vmatpush2.msra.mxu0 0.0
  %5602 = vmatprep.subr.mxu0 0.0
  %5603 = vmatpush2.msra.mxu0 0.0
  %5604 = vmatprep.subr.mxu0 0.0
  %5605 = vmatpush2.msra.mxu0 0.0
  %5606 = vmatprep.subr.mxu0 0.0
  %5607 = vmatpush2.msra.mxu0 0.0
  %5608 = vmatprep.subr.mxu0 0.0
  %5609 = vmatpush2.msra.mxu0 0.0
  %5610 = vmatprep.subr.mxu0 0.0
  %5611 = vmatpush2.msra.mxu0 0.0
  %5612 = vmatprep.subr.mxu0 0.0
  %5613 = vmatpush2.msra.mxu0 0.0
  %5614 = vmatprep.subr.mxu0 0.0
  %5615 = vmatpush2.msra.mxu0 0.0
  %5616 = vmatprep.subr.mxu0 0.0
  %5617 = vmatpush2.msra.mxu0 0.0
  %5618 = vmatprep.mubr.f32.mxu0 0.0
  %5619 = vmatmul.mubr.f32.gmra.mxu0 %v5228
  %v5620 = vpop.f32.mrf.mxu0
  %v5621 = vadd.f32 0.0, %v5620
  %v5622 = vpop.f32.mrf.mxu0
  %v5623 = vadd.f32 0.0, %v5622
  %5624 = vdwg.mxu0
  %5625 = vmatprep.subr.mxu0 0.0
  %5626 = vmatpush1.msra.mxu0 0.0
  %5627 = vmatprep.subr.mxu0 0.0
  %5628 = vmatpush1.msra.mxu0 0.0
  %5629 = vmatprep.subr.mxu0 0.0
  %5630 = vmatpush1.msra.mxu0 0.0
  %5631 = vmatprep.subr.mxu0 0.0
  %5632 = vmatpush1.msra.mxu0 0.0
  %5633 = vmatprep.subr.mxu0 0.0
  %5634 = vmatpush1.msra.mxu0 0.0
  %5635 = vmatprep.subr.mxu0 0.0
  %5636 = vmatpush1.msra.mxu0 0.0
  %5637 = vmatprep.subr.mxu0 0.0
  %5638 = vmatpush1.msra.mxu0 0.0
  %5639 = vmatprep.subr.mxu0 0.0
  %5640 = vmatpush1.msra.mxu0 0.0
  %5641 = vmatprep.subr.mxu0 0.0
  %5642 = vmatpush1.msra.mxu0 0.0
  %5643 = vmatprep.subr.mxu0 0.0
  %5644 = vmatpush1.msra.mxu0 0.0
  %5645 = vmatprep.subr.mxu0 0.0
  %5646 = vmatpush1.msra.mxu0 0.0
  %5647 = vmatprep.subr.mxu0 0.0
  %5648 = vmatpush1.msra.mxu0 0.0
  %5649 = vmatprep.subr.mxu0 0.0
  %5650 = vmatpush1.msra.mxu0 0.0
  %5651 = vmatprep.subr.mxu0 0.0
  %5652 = vmatpush1.msra.mxu0 0.0
  %5653 = vmatprep.subr.mxu0 0.0
  %5654 = vmatpush1.msra.mxu0 0.0
  %5655 = vmatprep.subr.mxu0 %v5252
  %5656 = vmatpush1.msra.mxu0 %v5250
  %5657 = vmatprep.subr.mxu0 0.0
  %5658 = vmatpush2.msra.mxu0 0.0
  %5659 = vmatprep.subr.mxu0 0.0
  %5660 = vmatpush2.msra.mxu0 0.0
  %5661 = vmatprep.subr.mxu0 0.0
  %5662 = vmatpush2.msra.mxu0 0.0
  %5663 = vmatprep.subr.mxu0 0.0
  %5664 = vmatpush2.msra.mxu0 0.0
  %5665 = vmatprep.subr.mxu0 0.0
  %5666 = vmatpush2.msra.mxu0 0.0
  %5667 = vmatprep.subr.mxu0 0.0
  %5668 = vmatpush2.msra.mxu0 0.0
  %5669 = vmatprep.subr.mxu0 0.0
  %5670 = vmatpush2.msra.mxu0 0.0
  %5671 = vmatprep.subr.mxu0 0.0
  %5672 = vmatpush2.msra.mxu0 0.0
  %5673 = vmatprep.subr.mxu0 0.0
  %5674 = vmatpush2.msra.mxu0 0.0
  %5675 = vmatprep.subr.mxu0 0.0
  %5676 = vmatpush2.msra.mxu0 0.0
  %5677 = vmatprep.subr.mxu0 0.0
  %5678 = vmatpush2.msra.mxu0 0.0
  %5679 = vmatprep.subr.mxu0 0.0
  %5680 = vmatpush2.msra.mxu0 0.0
  %5681 = vmatprep.subr.mxu0 0.0
  %5682 = vmatpush2.msra.mxu0 0.0
  %5683 = vmatprep.subr.mxu0 0.0
  %5684 = vmatpush2.msra.mxu0 0.0
  %5685 = vmatprep.subr.mxu0 0.0
  %5686 = vmatpush2.msra.mxu0 0.0
  %5687 = vmatprep.subr.mxu0 0.0
  %5688 = vmatpush2.msra.mxu0 0.0
  %5689 = vmatprep.mubr.f32.mxu0 0.0
  %5690 = vmatmul.mubr.f32.gmra.mxu0 %v5228
  %v5691 = vpop.f32.mrf.mxu0
  %v5692 = vadd.f32 0.0, %v5691
  %v5693 = vpop.f32.mrf.mxu0
  %v5694 = vadd.f32 0.0, %v5693
  %5695 = vdwg.mxu0
  %5696 = vmatprep.subr.mxu0 0.0
  %5697 = vmatpush1.msra.mxu0 0.0
  %5698 = vmatprep.subr.mxu0 0.0
  %5699 = vmatpush1.msra.mxu0 0.0
  %5700 = vmatprep.subr.mxu0 0.0
  %5701 = vmatpush1.msra.mxu0 0.0
  %5702 = vmatprep.subr.mxu0 0.0
  %5703 = vmatpush1.msra.mxu0 0.0
  %5704 = vmatprep.subr.mxu0 0.0
  %5705 = vmatpush1.msra.mxu0 0.0
  %5706 = vmatprep.subr.mxu0 0.0
  %5707 = vmatpush1.msra.mxu0 0.0
  %5708 = vmatprep.subr.mxu0 0.0
  %5709 = vmatpush1.msra.mxu0 0.0
  %5710 = vmatprep.subr.mxu0 0.0
  %5711 = vmatpush1.msra.mxu0 0.0
  %5712 = vmatprep.subr.mxu0 0.0
  %5713 = vmatpush1.msra.mxu0 0.0
  %5714 = vmatprep.subr.mxu0 0.0
  %5715 = vmatpush1.msra.mxu0 0.0
  %5716 = vmatprep.subr.mxu0 0.0
  %5717 = vmatpush1.msra.mxu0 0.0
  %5718 = vmatprep.subr.mxu0 0.0
  %5719 = vmatpush1.msra.mxu0 0.0
  %5720 = vmatprep.subr.mxu0 0.0
  %5721 = vmatpush1.msra.mxu0 0.0
  %5722 = vmatprep.subr.mxu0 0.0
  %5723 = vmatpush1.msra.mxu0 0.0
  %5724 = vmatprep.subr.mxu0 0.0
  %5725 = vmatpush1.msra.mxu0 0.0
  %5726 = vmatprep.subr.mxu0 %v5256
  %5727 = vmatpush1.msra.mxu0 %v5254
  %5728 = vmatprep.subr.mxu0 0.0
  %5729 = vmatpush2.msra.mxu0 0.0
  %5730 = vmatprep.subr.mxu0 0.0
  %5731 = vmatpush2.msra.mxu0 0.0
  %5732 = vmatprep.subr.mxu0 0.0
  %5733 = vmatpush2.msra.mxu0 0.0
  %5734 = vmatprep.subr.mxu0 0.0
  %5735 = vmatpush2.msra.mxu0 0.0
  %5736 = vmatprep.subr.mxu0 0.0
  %5737 = vmatpush2.msra.mxu0 0.0
  %5738 = vmatprep.subr.mxu0 0.0
  %5739 = vmatpush2.msra.mxu0 0.0
  %5740 = vmatprep.subr.mxu0 0.0
  %5741 = vmatpush2.msra.mxu0 0.0
  %5742 = vmatprep.subr.mxu0 0.0
  %5743 = vmatpush2.msra.mxu0 0.0
  %5744 = vmatprep.subr.mxu0 0.0
  %5745 = vmatpush2.msra.mxu0 0.0
  %5746 = vmatprep.subr.mxu0 0.0
  %5747 = vmatpush2.msra.mxu0 0.0
  %5748 = vmatprep.subr.mxu0 0.0
  %5749 = vmatpush2.msra.mxu0 0.0
  %5750 = vmatprep.subr.mxu0 0.0
  %5751 = vmatpush2.msra.mxu0 0.0
  %5752 = vmatprep.subr.mxu0 0.0
  %5753 = vmatpush2.msra.mxu0 0.0
  %5754 = vmatprep.subr.mxu0 0.0
  %5755 = vmatpush2.msra.mxu0 0.0
  %5756 = vmatprep.subr.mxu0 0.0
  %5757 = vmatpush2.msra.mxu0 0.0
  %5758 = vmatprep.subr.mxu0 0.0
  %5759 = vmatpush2.msra.mxu0 0.0
  %5760 = vmatprep.mubr.f32.mxu0 0.0
  %5761 = vmatmul.mubr.f32.gmra.mxu0 %v5228
  %v5762 = vpop.f32.mrf.mxu0
  %v5763 = vadd.f32 0.0, %v5762
  %v5764 = vpop.f32.mrf.mxu0
  %v5765 = vadd.f32 0.0, %v5764
  %5766 = vdwg.mxu0
  %5767 = vmatprep.subr.mxu0 0.0
  %5768 = vmatpush1.msra.mxu0 0.0
  %5769 = vmatprep.subr.mxu0 0.0
  %5770 = vmatpush1.msra.mxu0 0.0
  %5771 = vmatprep.subr.mxu0 0.0
  %5772 = vmatpush1.msra.mxu0 0.0
  %5773 = vmatprep.subr.mxu0 0.0
  %5774 = vmatpush1.msra.mxu0 0.0
  %5775 = vmatprep.subr.mxu0 0.0
  %5776 = vmatpush1.msra.mxu0 0.0
  %5777 = vmatprep.subr.mxu0 0.0
  %5778 = vmatpush1.msra.mxu0 0.0
  %5779 = vmatprep.subr.mxu0 0.0
  %5780 = vmatpush1.msra.mxu0 0.0
  %5781 = vmatprep.subr.mxu0 0.0
  %5782 = vmatpush1.msra.mxu0 0.0
  %5783 = vmatprep.subr.mxu0 0.0
  %5784 = vmatpush1.msra.mxu0 0.0
  %5785 = vmatprep.subr.mxu0 0.0
  %5786 = vmatpush1.msra.mxu0 0.0
  %5787 = vmatprep.subr.mxu0 0.0
  %5788 = vmatpush1.msra.mxu0 0.0
  %5789 = vmatprep.subr.mxu0 0.0
  %5790 = vmatpush1.msra.mxu0 0.0
  %5791 = vmatprep.subr.mxu0 0.0
  %5792 = vmatpush1.msra.mxu0 0.0
  %5793 = vmatprep.subr.mxu0 0.0
  %5794 = vmatpush1.msra.mxu0 0.0
  %5795 = vmatprep.subr.mxu0 0.0
  %5796 = vmatpush1.msra.mxu0 0.0
  %5797 = vmatprep.subr.mxu0 %v5260
  %5798 = vmatpush1.msra.mxu0 %v5258
  %5799 = vmatprep.subr.mxu0 0.0
  %5800 = vmatpush2.msra.mxu0 0.0
  %5801 = vmatprep.subr.mxu0 0.0
  %5802 = vmatpush2.msra.mxu0 0.0
  %5803 = vmatprep.subr.mxu0 0.0
  %5804 = vmatpush2.msra.mxu0 0.0
  %5805 = vmatprep.subr.mxu0 0.0
  %5806 = vmatpush2.msra.mxu0 0.0
  %5807 = vmatprep.subr.mxu0 0.0
  %5808 = vmatpush2.msra.mxu0 0.0
  %5809 = vmatprep.subr.mxu0 0.0
  %5810 = vmatpush2.msra.mxu0 0.0
  %5811 = vmatprep.subr.mxu0 0.0
  %5812 = vmatpush2.msra.mxu0 0.0
  %5813 = vmatprep.subr.mxu0 0.0
  %5814 = vmatpush2.msra.mxu0 0.0
  %5815 = vmatprep.subr.mxu0 0.0
  %5816 = vmatpush2.msra.mxu0 0.0
  %5817 = vmatprep.subr.mxu0 0.0
  %5818 = vmatpush2.msra.mxu0 0.0
  %5819 = vmatprep.subr.mxu0 0.0
  %5820 = vmatpush2.msra.mxu0 0.0
  %5821 = vmatprep.subr.mxu0 0.0
  %5822 = vmatpush2.msra.mxu0 0.0
  %5823 = vmatprep.subr.mxu0 0.0
  %5824 = vmatpush2.msra.mxu0 0.0
  %5825 = vmatprep.subr.mxu0 0.0
  %5826 = vmatpush2.msra.mxu0 0.0
  %5827 = vmatprep.subr.mxu0 0.0
  %5828 = vmatpush2.msra.mxu0 0.0
  %5829 = vmatprep.subr.mxu0 0.0
  %5830 = vmatpush2.msra.mxu0 0.0
  %5831 = vmatprep.mubr.f32.mxu0 0.0
  %5832 = vmatmul.mubr.f32.gmra.mxu0 %v5228
  %v5833 = vpop.f32.mrf.mxu0
  %v5834 = vadd.f32 0.0, %v5833
  %v5835 = vpop.f32.mrf.mxu0
  %v5836 = vadd.f32 0.0, %v5835
  %5837 = vdwg.mxu0
  %5838 = vmatprep.subr.mxu0 0.0
  %5839 = vmatpush1.msra.mxu0 0.0
  %5840 = vmatprep.subr.mxu0 0.0
  %5841 = vmatpush1.msra.mxu0 0.0
  %5842 = vmatprep.subr.mxu0 0.0
  %5843 = vmatpush1.msra.mxu0 0.0
  %5844 = vmatprep.subr.mxu0 0.0
  %5845 = vmatpush1.msra.mxu0 0.0
  %5846 = vmatprep.subr.mxu0 0.0
  %5847 = vmatpush1.msra.mxu0 0.0
  %5848 = vmatprep.subr.mxu0 0.0
  %5849 = vmatpush1.msra.mxu0 0.0
  %5850 = vmatprep.subr.mxu0 0.0
  %5851 = vmatpush1.msra.mxu0 0.0
  %5852 = vmatprep.subr.mxu0 0.0
  %5853 = vmatpush1.msra.mxu0 0.0
  %5854 = vmatprep.subr.mxu0 0.0
  %5855 = vmatpush1.msra.mxu0 0.0
  %5856 = vmatprep.subr.mxu0 0.0
  %5857 = vmatpush1.msra.mxu0 0.0
  %5858 = vmatprep.subr.mxu0 0.0
  %5859 = vmatpush1.msra.mxu0 0.0
  %5860 = vmatprep.subr.mxu0 0.0
  %5861 = vmatpush1.msra.mxu0 0.0
  %5862 = vmatprep.subr.mxu0 0.0
  %5863 = vmatpush1.msra.mxu0 0.0
  %5864 = vmatprep.subr.mxu0 0.0
  %5865 = vmatpush1.msra.mxu0 0.0
  %5866 = vmatprep.subr.mxu0 0.0
  %5867 = vmatpush1.msra.mxu0 0.0
  %5868 = vmatprep.subr.mxu0 %v5264
  %5869 = vmatpush1.msra.mxu0 %v5262
  %5870 = vmatprep.subr.mxu0 0.0
  %5871 = vmatpush2.msra.mxu0 0.0
  %5872 = vmatprep.subr.mxu0 0.0
  %5873 = vmatpush2.msra.mxu0 0.0
  %5874 = vmatprep.subr.mxu0 0.0
  %5875 = vmatpush2.msra.mxu0 0.0
  %5876 = vmatprep.subr.mxu0 0.0
  %5877 = vmatpush2.msra.mxu0 0.0
  %5878 = vmatprep.subr.mxu0 0.0
  %5879 = vmatpush2.msra.mxu0 0.0
  %5880 = vmatprep.subr.mxu0 0.0
  %5881 = vmatpush2.msra.mxu0 0.0
  %5882 = vmatprep.subr.mxu0 0.0
  %5883 = vmatpush2.msra.mxu0 0.0
  %5884 = vmatprep.subr.mxu0 0.0
  %5885 = vmatpush2.msra.mxu0 0.0
  %5886 = vmatprep.subr.mxu0 0.0
  %5887 = vmatpush2.msra.mxu0 0.0
  %5888 = vmatprep.subr.mxu0 0.0
  %5889 = vmatpush2.msra.mxu0 0.0
  %5890 = vmatprep.subr.mxu0 0.0
  %5891 = vmatpush2.msra.mxu0 0.0
  %5892 = vmatprep.subr.mxu0 0.0
  %5893 = vmatpush2.msra.mxu0 0.0
  %5894 = vmatprep.subr.mxu0 0.0
  %5895 = vmatpush2.msra.mxu0 0.0
  %5896 = vmatprep.subr.mxu0 0.0
  %5897 = vmatpush2.msra.mxu0 0.0
  %5898 = vmatprep.subr.mxu0 0.0
  %5899 = vmatpush2.msra.mxu0 0.0
  %5900 = vmatprep.subr.mxu0 0.0
  %5901 = vmatpush2.msra.mxu0 0.0
  %5902 = vmatprep.mubr.f32.mxu0 0.0
  %5903 = vmatmul.mubr.f32.gmra.mxu0 %v5228
  %v5904 = vpop.f32.mrf.mxu0
  %v5905 = vadd.f32 0.0, %v5904
  %v5906 = vpop.f32.mrf.mxu0
  %v5907 = vadd.f32 0.0, %v5906
  %5908 = vdwg.mxu0
  %5909 = vmatprep.subr.mxu0 0.0
  %5910 = vmatpush1.msra.mxu0 0.0
  %5911 = vmatprep.subr.mxu0 0.0
  %5912 = vmatpush1.msra.mxu0 0.0
  %5913 = vmatprep.subr.mxu0 0.0
  %5914 = vmatpush1.msra.mxu0 0.0
  %5915 = vmatprep.subr.mxu0 0.0
  %5916 = vmatpush1.msra.mxu0 0.0
  %5917 = vmatprep.subr.mxu0 0.0
  %5918 = vmatpush1.msra.mxu0 0.0
  %5919 = vmatprep.subr.mxu0 0.0
  %5920 = vmatpush1.msra.mxu0 0.0
  %5921 = vmatprep.subr.mxu0 0.0
  %5922 = vmatpush1.msra.mxu0 0.0
  %5923 = vmatprep.subr.mxu0 0.0
  %5924 = vmatpush1.msra.mxu0 0.0
  %5925 = vmatprep.subr.mxu0 0.0
  %5926 = vmatpush1.msra.mxu0 0.0
  %5927 = vmatprep.subr.mxu0 0.0
  %5928 = vmatpush1.msra.mxu0 0.0
  %5929 = vmatprep.subr.mxu0 0.0
  %5930 = vmatpush1.msra.mxu0 0.0
  %5931 = vmatprep.subr.mxu0 0.0
  %5932 = vmatpush1.msra.mxu0 0.0
  %5933 = vmatprep.subr.mxu0 0.0
  %5934 = vmatpush1.msra.mxu0 0.0
  %5935 = vmatprep.subr.mxu0 0.0
  %5936 = vmatpush1.msra.mxu0 0.0
  %5937 = vmatprep.subr.mxu0 0.0
  %5938 = vmatpush1.msra.mxu0 0.0
  %5939 = vmatprep.subr.mxu0 %v5268
  %5940 = vmatpush1.msra.mxu0 %v5266
  %5941 = vmatprep.subr.mxu0 0.0
  %5942 = vmatpush2.msra.mxu0 0.0
  %5943 = vmatprep.subr.mxu0 0.0
  %5944 = vmatpush2.msra.mxu0 0.0
  %5945 = vmatprep.subr.mxu0 0.0
  %5946 = vmatpush2.msra.mxu0 0.0
  %5947 = vmatprep.subr.mxu0 0.0
  %5948 = vmatpush2.msra.mxu0 0.0
  %5949 = vmatprep.subr.mxu0 0.0
  %5950 = vmatpush2.msra.mxu0 0.0
  %5951 = vmatprep.subr.mxu0 0.0
  %5952 = vmatpush2.msra.mxu0 0.0
  %5953 = vmatprep.subr.mxu0 0.0
  %5954 = vmatpush2.msra.mxu0 0.0
  %5955 = vmatprep.subr.mxu0 0.0
  %5956 = vmatpush2.msra.mxu0 0.0
  %5957 = vmatprep.subr.mxu0 0.0
  %5958 = vmatpush2.msra.mxu0 0.0
  %5959 = vmatprep.subr.mxu0 0.0
  %5960 = vmatpush2.msra.mxu0 0.0
  %5961 = vmatprep.subr.mxu0 0.0
  %5962 = vmatpush2.msra.mxu0 0.0
  %5963 = vmatprep.subr.mxu0 0.0
  %5964 = vmatpush2.msra.mxu0 0.0
  %5965 = vmatprep.subr.mxu0 0.0
  %5966 = vmatpush2.msra.mxu0 0.0
  %5967 = vmatprep.subr.mxu0 0.0
  %5968 = vmatpush2.msra.mxu0 0.0
  %5969 = vmatprep.subr.mxu0 0.0
  %5970 = vmatpush2.msra.mxu0 0.0
  %5971 = vmatprep.subr.mxu0 0.0
  %5972 = vmatpush2.msra.mxu0 0.0
  %5973 = vmatprep.mubr.f32.mxu0 0.0
  %5974 = vmatmul.mubr.f32.gmra.mxu0 %v5228
  %v5975 = vpop.f32.mrf.mxu0
  %v5976 = vadd.f32 0.0, %v5975
  %v5977 = vpop.f32.mrf.mxu0
  %v5978 = vadd.f32 0.0, %v5977
  %5979 = vdwg.mxu0
  %v5980 = vadd.f32 %v5110, %v5337
  %v5981 = vadd.f32 %v5111, %v5339
  %v5982 = vadd.f32 %v5112, %v5408
  %v5983 = vadd.f32 %v5113, %v5410
  %v5984 = vadd.f32 %v5114, %v5479
  %v5985 = vadd.f32 %v5115, %v5481
  %v5986 = vadd.f32 %v5116, %v5550
  %v5987 = vadd.f32 %v5117, %v5552
  %v5988 = vadd.f32 %v5118, %v5621
  %v5989 = vadd.f32 %v5119, %v5623
  %v5990 = vadd.f32 %v5120, %v5692
  %v5991 = vadd.f32 %v5121, %v5694
  %v5992 = vadd.f32 %v5122, %v5763
  %v5993 = vadd.f32 %v5123, %v5765
  %v5994 = vadd.f32 %v5124, %v5834
  %v5995 = vadd.f32 %v5125, %v5836
  %v5996 = vadd.f32 %v5126, %v5905
  %v5997 = vadd.f32 %v5127, %v5907
  %v5998 = vadd.f32 %v5128, %v5976
  %v5999 = vadd.f32 %v5129, %v5978
  %s6000 = scalar_lea.vmem %s1, 56
  %v6001 = vld [vmem:[%s6000] sm:$0xff]
  %v6002 = vld [vmem:[%s0] sm:$0xff]
  %v6003 = vld [vmem:[%s0 + $0x8] sm:$0xff]
  %v6004 = vld [vmem:[%s0 + $0x10] sm:$0xff]
  %v6005 = vld [vmem:[%s0 + $0x18] sm:$0xff]
  %v6006 = vld [vmem:[%s0 + $0x20] sm:$0xff]
  %v6007 = vld [vmem:[%s0 + $0x28] sm:$0xff]
  %v6008 = vld [vmem:[%s0 + $0x30] sm:$0xff]
  %v6009 = vld [vmem:[%s0 + $0x38] sm:$0xff]
  %v6010 = vld [vmem:[%s0 + $0x40] sm:$0xff]
  %v6011 = vld [vmem:[%s0 + $0x48] sm:$0xff]
  %v6012 = vld [vmem:[%s0 + $0x50] sm:$0xf]
  %v6024 = vcombine.high %v6002, %v6002
  %v6025 = vcombine.high %v6003, %v6003
  %v6026 = vcombine.high %v6004, %v6004
  %v6027 = vcombine.high %v6005, %v6005
  %v6028 = vcombine.high %v6006, %v6006
  %v6029 = vcombine.high %v6007, %v6007
  %v6030 = vcombine.high %v6008, %v6008
  %v6031 = vcombine.high %v6009, %v6009
  %v6032 = vcombine.high %v6010, %v6010
  %v6033 = vcombine.high %v6011, %v6011
  %6034 = vrot.lane.b32.xlu0 %v6002, 59
  %v6035 = vpop.permute.xlu0 %6034
  %6036 = vrot.lane.b32.xlu0 %v6024, 59
  %v6037 = vpop.permute.xlu0 %6036
  %6038 = vrot.lane.b32.xlu0 %v6003, 59
  %v6039 = vpop.permute.xlu0 %6038
  %6040 = vrot.lane.b32.xlu0 %v6025, 59
  %v6041 = vpop.permute.xlu0 %6040
  %6042 = vrot.lane.b32.xlu0 %v6004, 59
  %v6043 = vpop.permute.xlu0 %6042
  %6044 = vrot.lane.b32.xlu0 %v6026, 59
  %v6045 = vpop.permute.xlu0 %6044
  %6046 = vrot.lane.b32.xlu0 %v6005, 59
  %v6047 = vpop.permute.xlu0 %6046
  %6048 = vrot.lane.b32.xlu0 %v6027, 59
  %v6049 = vpop.permute.xlu0 %6048
  %6050 = vrot.lane.b32.xlu0 %v6006, 59
  %v6051 = vpop.permute.xlu0 %6050
  %6052 = vrot.lane.b32.xlu0 %v6028, 59
  %v6053 = vpop.permute.xlu0 %6052
  %6054 = vrot.lane.b32.xlu0 %v6007, 59
  %v6055 = vpop.permute.xlu0 %6054
  %6056 = vrot.lane.b32.xlu0 %v6029, 59
  %v6057 = vpop.permute.xlu0 %6056
  %6058 = vrot.lane.b32.xlu0 %v6008, 59
  %v6059 = vpop.permute.xlu0 %6058
  %6060 = vrot.lane.b32.xlu0 %v6030, 59
  %v6061 = vpop.permute.xlu0 %6060
  %6062 = vrot.lane.b32.xlu0 %v6009, 59
  %v6063 = vpop.permute.xlu0 %6062
  %6064 = vrot.lane.b32.xlu0 %v6031, 59
  %v6065 = vpop.permute.xlu0 %6064
  %6066 = vrot.lane.b32.xlu0 %v6010, 59
  %v6067 = vpop.permute.xlu0 %6066
  %6068 = vrot.lane.b32.xlu0 %v6032, 59
  %v6069 = vpop.permute.xlu0 %6068
  %6070 = vrot.lane.b32.xlu0 %v6011, 59
  %v6071 = vpop.permute.xlu0 %6070
  %6072 = vrot.lane.b32.xlu0 %v6033, 59
  %v6073 = vpop.permute.xlu0 %6072
  %6074 = vrot.lane.b32.xlu0 %v6012, 59
  %v6075 = vpop.permute.xlu0 %6074
  %vm6076 = vcmask 482304
  %v6077 = vsel %vm6076, %v6035, %v6037
  %v6078 = vsel %vm6076, %v6037, %v6039
  %v6079 = vsel %vm6076, %v6039, %v6041
  %v6080 = vsel %vm6076, %v6041, %v6043
  %v6081 = vsel %vm6076, %v6043, %v6045
  %v6082 = vsel %vm6076, %v6045, %v6047
  %v6083 = vsel %vm6076, %v6047, %v6049
  %v6084 = vsel %vm6076, %v6049, %v6051
  %v6085 = vsel %vm6076, %v6051, %v6053
  %v6086 = vsel %vm6076, %v6053, %v6055
  %v6087 = vsel %vm6076, %v6055, %v6057
  %v6088 = vsel %vm6076, %v6057, %v6059
  %v6089 = vsel %vm6076, %v6059, %v6061
  %v6090 = vsel %vm6076, %v6061, %v6063
  %v6091 = vsel %vm6076, %v6063, %v6065
  %v6092 = vsel %vm6076, %v6065, %v6067
  %v6093 = vsel %vm6076, %v6067, %v6069
  %v6094 = vsel %vm6076, %v6069, %v6071
  %v6095 = vsel %vm6076, %v6071, %v6073
  %v6096 = vsel %vm6076, %v6073, %v6075
  %v6098 = vsel %vm122, %v6001, 0
  %v6100 = vsel %vm126, %v6077, 0
  %v6102 = vsel %vm126, %v6078, 0
  %v6104 = vsel %vm126, %v6079, 0
  %v6106 = vsel %vm126, %v6080, 0
  %v6108 = vsel %vm126, %v6081, 0
  %v6110 = vsel %vm126, %v6082, 0
  %v6112 = vsel %vm126, %v6083, 0
  %v6114 = vsel %vm126, %v6084, 0
  %v6116 = vsel %vm126, %v6085, 0
  %v6118 = vsel %vm126, %v6086, 0
  %v6120 = vsel %vm126, %v6087, 0
  %v6122 = vsel %vm126, %v6088, 0
  %v6124 = vsel %vm126, %v6089, 0
  %v6126 = vsel %vm126, %v6090, 0
  %v6128 = vsel %vm126, %v6091, 0
  %v6130 = vsel %vm126, %v6092, 0
  %v6132 = vsel %vm126, %v6093, 0
  %v6134 = vsel %vm126, %v6094, 0
  %v6136 = vsel %vm126, %v6095, 0
  %v6138 = vsel %vm126, %v6096, 0
  %6140 = vmatprep.subr.mxu0 0.0
  %6141 = vmatpush1.msra.mxu0 0.0
  %6142 = vmatprep.subr.mxu0 0.0
  %6143 = vmatpush1.msra.mxu0 0.0
  %6144 = vmatprep.subr.mxu0 0.0
  %6145 = vmatpush1.msra.mxu0 0.0
  %6146 = vmatprep.subr.mxu0 0.0
  %6147 = vmatpush1.msra.mxu0 0.0
  %6148 = vmatprep.subr.mxu0 0.0
  %6149 = vmatpush1.msra.mxu0 0.0
  %6150 = vmatprep.subr.mxu0 0.0
  %6151 = vmatpush1.msra.mxu0 0.0
  %6152 = vmatprep.subr.mxu0 0.0
  %6153 = vmatpush1.msra.mxu0 0.0
  %6154 = vmatprep.subr.mxu0 0.0
  %6155 = vmatpush1.msra.mxu0 0.0
  %6156 = vmatprep.subr.mxu0 0.0
  %6157 = vmatpush1.msra.mxu0 0.0
  %6158 = vmatprep.subr.mxu0 0.0
  %6159 = vmatpush1.msra.mxu0 0.0
  %6160 = vmatprep.subr.mxu0 0.0
  %6161 = vmatpush1.msra.mxu0 0.0
  %6162 = vmatprep.subr.mxu0 0.0
  %6163 = vmatpush1.msra.mxu0 0.0
  %6164 = vmatprep.subr.mxu0 0.0
  %6165 = vmatpush1.msra.mxu0 0.0
  %6166 = vmatprep.subr.mxu0 0.0
  %6167 = vmatpush1.msra.mxu0 0.0
  %6168 = vmatprep.subr.mxu0 0.0
  %6169 = vmatpush1.msra.mxu0 0.0
  %6170 = vmatprep.subr.mxu0 %v6102
  %6171 = vmatpush1.msra.mxu0 %v6100
  %6172 = vmatprep.subr.mxu0 0.0
  %6173 = vmatpush2.msra.mxu0 0.0
  %6174 = vmatprep.subr.mxu0 0.0
  %6175 = vmatpush2.msra.mxu0 0.0
  %6176 = vmatprep.subr.mxu0 0.0
  %6177 = vmatpush2.msra.mxu0 0.0
  %6178 = vmatprep.subr.mxu0 0.0
  %6179 = vmatpush2.msra.mxu0 0.0
  %6180 = vmatprep.subr.mxu0 0.0
  %6181 = vmatpush2.msra.mxu0 0.0
  %6182 = vmatprep.subr.mxu0 0.0
  %6183 = vmatpush2.msra.mxu0 0.0
  %6184 = vmatprep.subr.mxu0 0.0
  %6185 = vmatpush2.msra.mxu0 0.0
  %6186 = vmatprep.subr.mxu0 0.0
  %6187 = vmatpush2.msra.mxu0 0.0
  %6188 = vmatprep.subr.mxu0 0.0
  %6189 = vmatpush2.msra.mxu0 0.0
  %6190 = vmatprep.subr.mxu0 0.0
  %6191 = vmatpush2.msra.mxu0 0.0
  %6192 = vmatprep.subr.mxu0 0.0
  %6193 = vmatpush2.msra.mxu0 0.0
  %6194 = vmatprep.subr.mxu0 0.0
  %6195 = vmatpush2.msra.mxu0 0.0
  %6196 = vmatprep.subr.mxu0 0.0
  %6197 = vmatpush2.msra.mxu0 0.0
  %6198 = vmatprep.subr.mxu0 0.0
  %6199 = vmatpush2.msra.mxu0 0.0
  %6200 = vmatprep.subr.mxu0 0.0
  %6201 = vmatpush2.msra.mxu0 0.0
  %6202 = vmatprep.subr.mxu0 0.0
  %6203 = vmatpush2.msra.mxu0 0.0
  %6204 = vmatprep.mubr.f32.mxu0 0.0
  %6205 = vmatmul.mubr.f32.gmra.mxu0 %v6098
  %v6206 = vpop.f32.mrf.mxu0
  %v6207 = vadd.f32 0.0, %v6206
  %v6208 = vpop.f32.mrf.mxu0
  %v6209 = vadd.f32 0.0, %v6208
  %6210 = vdwg.mxu0
  %6211 = vmatprep.subr.mxu0 0.0
  %6212 = vmatpush1.msra.mxu0 0.0
  %6213 = vmatprep.subr.mxu0 0.0
  %6214 = vmatpush1.msra.mxu0 0.0
  %6215 = vmatprep.subr.mxu0 0.0
  %6216 = vmatpush1.msra.mxu0 0.0
  %6217 = vmatprep.subr.mxu0 0.0
  %6218 = vmatpush1.msra.mxu0 0.0
  %6219 = vmatprep.subr.mxu0 0.0
  %6220 = vmatpush1.msra.mxu0 0.0
  %6221 = vmatprep.subr.mxu0 0.0
  %6222 = vmatpush1.msra.mxu0 0.0
  %6223 = vmatprep.subr.mxu0 0.0
  %6224 = vmatpush1.msra.mxu0 0.0
  %6225 = vmatprep.subr.mxu0 0.0
  %6226 = vmatpush1.msra.mxu0 0.0
  %6227 = vmatprep.subr.mxu0 0.0
  %6228 = vmatpush1.msra.mxu0 0.0
  %6229 = vmatprep.subr.mxu0 0.0
  %6230 = vmatpush1.msra.mxu0 0.0
  %6231 = vmatprep.subr.mxu0 0.0
  %6232 = vmatpush1.msra.mxu0 0.0
  %6233 = vmatprep.subr.mxu0 0.0
  %6234 = vmatpush1.msra.mxu0 0.0
  %6235 = vmatprep.subr.mxu0 0.0
  %6236 = vmatpush1.msra.mxu0 0.0
  %6237 = vmatprep.subr.mxu0 0.0
  %6238 = vmatpush1.msra.mxu0 0.0
  %6239 = vmatprep.subr.mxu0 0.0
  %6240 = vmatpush1.msra.mxu0 0.0
  %6241 = vmatprep.subr.mxu0 %v6106
  %6242 = vmatpush1.msra.mxu0 %v6104
  %6243 = vmatprep.subr.mxu0 0.0
  %6244 = vmatpush2.msra.mxu0 0.0
  %6245 = vmatprep.subr.mxu0 0.0
  %6246 = vmatpush2.msra.mxu0 0.0
  %6247 = vmatprep.subr.mxu0 0.0
  %6248 = vmatpush2.msra.mxu0 0.0
  %6249 = vmatprep.subr.mxu0 0.0
  %6250 = vmatpush2.msra.mxu0 0.0
  %6251 = vmatprep.subr.mxu0 0.0
  %6252 = vmatpush2.msra.mxu0 0.0
  %6253 = vmatprep.subr.mxu0 0.0
  %6254 = vmatpush2.msra.mxu0 0.0
  %6255 = vmatprep.subr.mxu0 0.0
  %6256 = vmatpush2.msra.mxu0 0.0
  %6257 = vmatprep.subr.mxu0 0.0
  %6258 = vmatpush2.msra.mxu0 0.0
  %6259 = vmatprep.subr.mxu0 0.0
  %6260 = vmatpush2.msra.mxu0 0.0
  %6261 = vmatprep.subr.mxu0 0.0
  %6262 = vmatpush2.msra.mxu0 0.0
  %6263 = vmatprep.subr.mxu0 0.0
  %6264 = vmatpush2.msra.mxu0 0.0
  %6265 = vmatprep.subr.mxu0 0.0
  %6266 = vmatpush2.msra.mxu0 0.0
  %6267 = vmatprep.subr.mxu0 0.0
  %6268 = vmatpush2.msra.mxu0 0.0
  %6269 = vmatprep.subr.mxu0 0.0
  %6270 = vmatpush2.msra.mxu0 0.0
  %6271 = vmatprep.subr.mxu0 0.0
  %6272 = vmatpush2.msra.mxu0 0.0
  %6273 = vmatprep.subr.mxu0 0.0
  %6274 = vmatpush2.msra.mxu0 0.0
  %6275 = vmatprep.mubr.f32.mxu0 0.0
  %6276 = vmatmul.mubr.f32.gmra.mxu0 %v6098
  %v6277 = vpop.f32.mrf.mxu0
  %v6278 = vadd.f32 0.0, %v6277
  %v6279 = vpop.f32.mrf.mxu0
  %v6280 = vadd.f32 0.0, %v6279
  %6281 = vdwg.mxu0
  %6282 = vmatprep.subr.mxu0 0.0
  %6283 = vmatpush1.msra.mxu0 0.0
  %6284 = vmatprep.subr.mxu0 0.0
  %6285 = vmatpush1.msra.mxu0 0.0
  %6286 = vmatprep.subr.mxu0 0.0
  %6287 = vmatpush1.msra.mxu0 0.0
  %6288 = vmatprep.subr.mxu0 0.0
  %6289 = vmatpush1.msra.mxu0 0.0
  %6290 = vmatprep.subr.mxu0 0.0
  %6291 = vmatpush1.msra.mxu0 0.0
  %6292 = vmatprep.subr.mxu0 0.0
  %6293 = vmatpush1.msra.mxu0 0.0
  %6294 = vmatprep.subr.mxu0 0.0
  %6295 = vmatpush1.msra.mxu0 0.0
  %6296 = vmatprep.subr.mxu0 0.0
  %6297 = vmatpush1.msra.mxu0 0.0
  %6298 = vmatprep.subr.mxu0 0.0
  %6299 = vmatpush1.msra.mxu0 0.0
  %6300 = vmatprep.subr.mxu0 0.0
  %6301 = vmatpush1.msra.mxu0 0.0
  %6302 = vmatprep.subr.mxu0 0.0
  %6303 = vmatpush1.msra.mxu0 0.0
  %6304 = vmatprep.subr.mxu0 0.0
  %6305 = vmatpush1.msra.mxu0 0.0
  %6306 = vmatprep.subr.mxu0 0.0
  %6307 = vmatpush1.msra.mxu0 0.0
  %6308 = vmatprep.subr.mxu0 0.0
  %6309 = vmatpush1.msra.mxu0 0.0
  %6310 = vmatprep.subr.mxu0 0.0
  %6311 = vmatpush1.msra.mxu0 0.0
  %6312 = vmatprep.subr.mxu0 %v6110
  %6313 = vmatpush1.msra.mxu0 %v6108
  %6314 = vmatprep.subr.mxu0 0.0
  %6315 = vmatpush2.msra.mxu0 0.0
  %6316 = vmatprep.subr.mxu0 0.0
  %6317 = vmatpush2.msra.mxu0 0.0
  %6318 = vmatprep.subr.mxu0 0.0
  %6319 = vmatpush2.msra.mxu0 0.0
  %6320 = vmatprep.subr.mxu0 0.0
  %6321 = vmatpush2.msra.mxu0 0.0
  %6322 = vmatprep.subr.mxu0 0.0
  %6323 = vmatpush2.msra.mxu0 0.0
  %6324 = vmatprep.subr.mxu0 0.0
  %6325 = vmatpush2.msra.mxu0 0.0
  %6326 = vmatprep.subr.mxu0 0.0
  %6327 = vmatpush2.msra.mxu0 0.0
  %6328 = vmatprep.subr.mxu0 0.0
  %6329 = vmatpush2.msra.mxu0 0.0
  %6330 = vmatprep.subr.mxu0 0.0
  %6331 = vmatpush2.msra.mxu0 0.0
  %6332 = vmatprep.subr.mxu0 0.0
  %6333 = vmatpush2.msra.mxu0 0.0
  %6334 = vmatprep.subr.mxu0 0.0
  %6335 = vmatpush2.msra.mxu0 0.0
  %6336 = vmatprep.subr.mxu0 0.0
  %6337 = vmatpush2.msra.mxu0 0.0
  %6338 = vmatprep.subr.mxu0 0.0
  %6339 = vmatpush2.msra.mxu0 0.0
  %6340 = vmatprep.subr.mxu0 0.0
  %6341 = vmatpush2.msra.mxu0 0.0
  %6342 = vmatprep.subr.mxu0 0.0
  %6343 = vmatpush2.msra.mxu0 0.0
  %6344 = vmatprep.subr.mxu0 0.0
  %6345 = vmatpush2.msra.mxu0 0.0
  %6346 = vmatprep.mubr.f32.mxu0 0.0
  %6347 = vmatmul.mubr.f32.gmra.mxu0 %v6098
  %v6348 = vpop.f32.mrf.mxu0
  %v6349 = vadd.f32 0.0, %v6348
  %v6350 = vpop.f32.mrf.mxu0
  %v6351 = vadd.f32 0.0, %v6350
  %6352 = vdwg.mxu0
  %6353 = vmatprep.subr.mxu0 0.0
  %6354 = vmatpush1.msra.mxu0 0.0
  %6355 = vmatprep.subr.mxu0 0.0
  %6356 = vmatpush1.msra.mxu0 0.0
  %6357 = vmatprep.subr.mxu0 0.0
  %6358 = vmatpush1.msra.mxu0 0.0
  %6359 = vmatprep.subr.mxu0 0.0
  %6360 = vmatpush1.msra.mxu0 0.0
  %6361 = vmatprep.subr.mxu0 0.0
  %6362 = vmatpush1.msra.mxu0 0.0
  %6363 = vmatprep.subr.mxu0 0.0
  %6364 = vmatpush1.msra.mxu0 0.0
  %6365 = vmatprep.subr.mxu0 0.0
  %6366 = vmatpush1.msra.mxu0 0.0
  %6367 = vmatprep.subr.mxu0 0.0
  %6368 = vmatpush1.msra.mxu0 0.0
  %6369 = vmatprep.subr.mxu0 0.0
  %6370 = vmatpush1.msra.mxu0 0.0
  %6371 = vmatprep.subr.mxu0 0.0
  %6372 = vmatpush1.msra.mxu0 0.0
  %6373 = vmatprep.subr.mxu0 0.0
  %6374 = vmatpush1.msra.mxu0 0.0
  %6375 = vmatprep.subr.mxu0 0.0
  %6376 = vmatpush1.msra.mxu0 0.0
  %6377 = vmatprep.subr.mxu0 0.0
  %6378 = vmatpush1.msra.mxu0 0.0
  %6379 = vmatprep.subr.mxu0 0.0
  %6380 = vmatpush1.msra.mxu0 0.0
  %6381 = vmatprep.subr.mxu0 0.0
  %6382 = vmatpush1.msra.mxu0 0.0
  %6383 = vmatprep.subr.mxu0 %v6114
  %6384 = vmatpush1.msra.mxu0 %v6112
  %6385 = vmatprep.subr.mxu0 0.0
  %6386 = vmatpush2.msra.mxu0 0.0
  %6387 = vmatprep.subr.mxu0 0.0
  %6388 = vmatpush2.msra.mxu0 0.0
  %6389 = vmatprep.subr.mxu0 0.0
  %6390 = vmatpush2.msra.mxu0 0.0
  %6391 = vmatprep.subr.mxu0 0.0
  %6392 = vmatpush2.msra.mxu0 0.0
  %6393 = vmatprep.subr.mxu0 0.0
  %6394 = vmatpush2.msra.mxu0 0.0
  %6395 = vmatprep.subr.mxu0 0.0
  %6396 = vmatpush2.msra.mxu0 0.0
  %6397 = vmatprep.subr.mxu0 0.0
  %6398 = vmatpush2.msra.mxu0 0.0
  %6399 = vmatprep.subr.mxu0 0.0
  %6400 = vmatpush2.msra.mxu0 0.0
  %6401 = vmatprep.subr.mxu0 0.0
  %6402 = vmatpush2.msra.mxu0 0.0
  %6403 = vmatprep.subr.mxu0 0.0
  %6404 = vmatpush2.msra.mxu0 0.0
  %6405 = vmatprep.subr.mxu0 0.0
  %6406 = vmatpush2.msra.mxu0 0.0
  %6407 = vmatprep.subr.mxu0 0.0
  %6408 = vmatpush2.msra.mxu0 0.0
  %6409 = vmatprep.subr.mxu0 0.0
  %6410 = vmatpush2.msra.mxu0 0.0
  %6411 = vmatprep.subr.mxu0 0.0
  %6412 = vmatpush2.msra.mxu0 0.0
  %6413 = vmatprep.subr.mxu0 0.0
  %6414 = vmatpush2.msra.mxu0 0.0
  %6415 = vmatprep.subr.mxu0 0.0
  %6416 = vmatpush2.msra.mxu0 0.0
  %6417 = vmatprep.mubr.f32.mxu0 0.0
  %6418 = vmatmul.mubr.f32.gmra.mxu0 %v6098
  %v6419 = vpop.f32.mrf.mxu0
  %v6420 = vadd.f32 0.0, %v6419
  %v6421 = vpop.f32.mrf.mxu0
  %v6422 = vadd.f32 0.0, %v6421
  %6423 = vdwg.mxu0
  %6424 = vmatprep.subr.mxu0 0.0
  %6425 = vmatpush1.msra.mxu0 0.0
  %6426 = vmatprep.subr.mxu0 0.0
  %6427 = vmatpush1.msra.mxu0 0.0
  %6428 = vmatprep.subr.mxu0 0.0
  %6429 = vmatpush1.msra.mxu0 0.0
  %6430 = vmatprep.subr.mxu0 0.0
  %6431 = vmatpush1.msra.mxu0 0.0
  %6432 = vmatprep.subr.mxu0 0.0
  %6433 = vmatpush1.msra.mxu0 0.0
  %6434 = vmatprep.subr.mxu0 0.0
  %6435 = vmatpush1.msra.mxu0 0.0
  %6436 = vmatprep.subr.mxu0 0.0
  %6437 = vmatpush1.msra.mxu0 0.0
  %6438 = vmatprep.subr.mxu0 0.0
  %6439 = vmatpush1.msra.mxu0 0.0
  %6440 = vmatprep.subr.mxu0 0.0
  %6441 = vmatpush1.msra.mxu0 0.0
  %6442 = vmatprep.subr.mxu0 0.0
  %6443 = vmatpush1.msra.mxu0 0.0
  %6444 = vmatprep.subr.mxu0 0.0
  %6445 = vmatpush1.msra.mxu0 0.0
  %6446 = vmatprep.subr.mxu0 0.0
  %6447 = vmatpush1.msra.mxu0 0.0
  %6448 = vmatprep.subr.mxu0 0.0
  %6449 = vmatpush1.msra.mxu0 0.0
  %6450 = vmatprep.subr.mxu0 0.0
  %6451 = vmatpush1.msra.mxu0 0.0
  %6452 = vmatprep.subr.mxu0 0.0
  %6453 = vmatpush1.msra.mxu0 0.0
  %6454 = vmatprep.subr.mxu0 %v6118
  %6455 = vmatpush1.msra.mxu0 %v6116
  %6456 = vmatprep.subr.mxu0 0.0
  %6457 = vmatpush2.msra.mxu0 0.0
  %6458 = vmatprep.subr.mxu0 0.0
  %6459 = vmatpush2.msra.mxu0 0.0
  %6460 = vmatprep.subr.mxu0 0.0
  %6461 = vmatpush2.msra.mxu0 0.0
  %6462 = vmatprep.subr.mxu0 0.0
  %6463 = vmatpush2.msra.mxu0 0.0
  %6464 = vmatprep.subr.mxu0 0.0
  %6465 = vmatpush2.msra.mxu0 0.0
  %6466 = vmatprep.subr.mxu0 0.0
  %6467 = vmatpush2.msra.mxu0 0.0
  %6468 = vmatprep.subr.mxu0 0.0
  %6469 = vmatpush2.msra.mxu0 0.0
  %6470 = vmatprep.subr.mxu0 0.0
  %6471 = vmatpush2.msra.mxu0 0.0
  %6472 = vmatprep.subr.mxu0 0.0
  %6473 = vmatpush2.msra.mxu0 0.0
  %6474 = vmatprep.subr.mxu0 0.0
  %6475 = vmatpush2.msra.mxu0 0.0
  %6476 = vmatprep.subr.mxu0 0.0
  %6477 = vmatpush2.msra.mxu0 0.0
  %6478 = vmatprep.subr.mxu0 0.0
  %6479 = vmatpush2.msra.mxu0 0.0
  %6480 = vmatprep.subr.mxu0 0.0
  %6481 = vmatpush2.msra.mxu0 0.0
  %6482 = vmatprep.subr.mxu0 0.0
  %6483 = vmatpush2.msra.mxu0 0.0
  %6484 = vmatprep.subr.mxu0 0.0
  %6485 = vmatpush2.msra.mxu0 0.0
  %6486 = vmatprep.subr.mxu0 0.0
  %6487 = vmatpush2.msra.mxu0 0.0
  %6488 = vmatprep.mubr.f32.mxu0 0.0
  %6489 = vmatmul.mubr.f32.gmra.mxu0 %v6098
  %v6490 = vpop.f32.mrf.mxu0
  %v6491 = vadd.f32 0.0, %v6490
  %v6492 = vpop.f32.mrf.mxu0
  %v6493 = vadd.f32 0.0, %v6492
  %6494 = vdwg.mxu0
  %6495 = vmatprep.subr.mxu0 0.0
  %6496 = vmatpush1.msra.mxu0 0.0
  %6497 = vmatprep.subr.mxu0 0.0
  %6498 = vmatpush1.msra.mxu0 0.0
  %6499 = vmatprep.subr.mxu0 0.0
  %6500 = vmatpush1.msra.mxu0 0.0
  %6501 = vmatprep.subr.mxu0 0.0
  %6502 = vmatpush1.msra.mxu0 0.0
  %6503 = vmatprep.subr.mxu0 0.0
  %6504 = vmatpush1.msra.mxu0 0.0
  %6505 = vmatprep.subr.mxu0 0.0
  %6506 = vmatpush1.msra.mxu0 0.0
  %6507 = vmatprep.subr.mxu0 0.0
  %6508 = vmatpush1.msra.mxu0 0.0
  %6509 = vmatprep.subr.mxu0 0.0
  %6510 = vmatpush1.msra.mxu0 0.0
  %6511 = vmatprep.subr.mxu0 0.0
  %6512 = vmatpush1.msra.mxu0 0.0
  %6513 = vmatprep.subr.mxu0 0.0
  %6514 = vmatpush1.msra.mxu0 0.0
  %6515 = vmatprep.subr.mxu0 0.0
  %6516 = vmatpush1.msra.mxu0 0.0
  %6517 = vmatprep.subr.mxu0 0.0
  %6518 = vmatpush1.msra.mxu0 0.0
  %6519 = vmatprep.subr.mxu0 0.0
  %6520 = vmatpush1.msra.mxu0 0.0
  %6521 = vmatprep.subr.mxu0 0.0
  %6522 = vmatpush1.msra.mxu0 0.0
  %6523 = vmatprep.subr.mxu0 0.0
  %6524 = vmatpush1.msra.mxu0 0.0
  %6525 = vmatprep.subr.mxu0 %v6122
  %6526 = vmatpush1.msra.mxu0 %v6120
  %6527 = vmatprep.subr.mxu0 0.0
  %6528 = vmatpush2.msra.mxu0 0.0
  %6529 = vmatprep.subr.mxu0 0.0
  %6530 = vmatpush2.msra.mxu0 0.0
  %6531 = vmatprep.subr.mxu0 0.0
  %6532 = vmatpush2.msra.mxu0 0.0
  %6533 = vmatprep.subr.mxu0 0.0
  %6534 = vmatpush2.msra.mxu0 0.0
  %6535 = vmatprep.subr.mxu0 0.0
  %6536 = vmatpush2.msra.mxu0 0.0
  %6537 = vmatprep.subr.mxu0 0.0
  %6538 = vmatpush2.msra.mxu0 0.0
  %6539 = vmatprep.subr.mxu0 0.0
  %6540 = vmatpush2.msra.mxu0 0.0
  %6541 = vmatprep.subr.mxu0 0.0
  %6542 = vmatpush2.msra.mxu0 0.0
  %6543 = vmatprep.subr.mxu0 0.0
  %6544 = vmatpush2.msra.mxu0 0.0
  %6545 = vmatprep.subr.mxu0 0.0
  %6546 = vmatpush2.msra.mxu0 0.0
  %6547 = vmatprep.subr.mxu0 0.0
  %6548 = vmatpush2.msra.mxu0 0.0
  %6549 = vmatprep.subr.mxu0 0.0
  %6550 = vmatpush2.msra.mxu0 0.0
  %6551 = vmatprep.subr.mxu0 0.0
  %6552 = vmatpush2.msra.mxu0 0.0
  %6553 = vmatprep.subr.mxu0 0.0
  %6554 = vmatpush2.msra.mxu0 0.0
  %6555 = vmatprep.subr.mxu0 0.0
  %6556 = vmatpush2.msra.mxu0 0.0
  %6557 = vmatprep.subr.mxu0 0.0
  %6558 = vmatpush2.msra.mxu0 0.0
  %6559 = vmatprep.mubr.f32.mxu0 0.0
  %6560 = vmatmul.mubr.f32.gmra.mxu0 %v6098
  %v6561 = vpop.f32.mrf.mxu0
  %v6562 = vadd.f32 0.0, %v6561
  %v6563 = vpop.f32.mrf.mxu0
  %v6564 = vadd.f32 0.0, %v6563
  %6565 = vdwg.mxu0
  %6566 = vmatprep.subr.mxu0 0.0
  %6567 = vmatpush1.msra.mxu0 0.0
  %6568 = vmatprep.subr.mxu0 0.0
  %6569 = vmatpush1.msra.mxu0 0.0
  %6570 = vmatprep.subr.mxu0 0.0
  %6571 = vmatpush1.msra.mxu0 0.0
  %6572 = vmatprep.subr.mxu0 0.0
  %6573 = vmatpush1.msra.mxu0 0.0
  %6574 = vmatprep.subr.mxu0 0.0
  %6575 = vmatpush1.msra.mxu0 0.0
  %6576 = vmatprep.subr.mxu0 0.0
  %6577 = vmatpush1.msra.mxu0 0.0
  %6578 = vmatprep.subr.mxu0 0.0
  %6579 = vmatpush1.msra.mxu0 0.0
  %6580 = vmatprep.subr.mxu0 0.0
  %6581 = vmatpush1.msra.mxu0 0.0
  %6582 = vmatprep.subr.mxu0 0.0
  %6583 = vmatpush1.msra.mxu0 0.0
  %6584 = vmatprep.subr.mxu0 0.0
  %6585 = vmatpush1.msra.mxu0 0.0
  %6586 = vmatprep.subr.mxu0 0.0
  %6587 = vmatpush1.msra.mxu0 0.0
  %6588 = vmatprep.subr.mxu0 0.0
  %6589 = vmatpush1.msra.mxu0 0.0
  %6590 = vmatprep.subr.mxu0 0.0
  %6591 = vmatpush1.msra.mxu0 0.0
  %6592 = vmatprep.subr.mxu0 0.0
  %6593 = vmatpush1.msra.mxu0 0.0
  %6594 = vmatprep.subr.mxu0 0.0
  %6595 = vmatpush1.msra.mxu0 0.0
  %6596 = vmatprep.subr.mxu0 %v6126
  %6597 = vmatpush1.msra.mxu0 %v6124
  %6598 = vmatprep.subr.mxu0 0.0
  %6599 = vmatpush2.msra.mxu0 0.0
  %6600 = vmatprep.subr.mxu0 0.0
  %6601 = vmatpush2.msra.mxu0 0.0
  %6602 = vmatprep.subr.mxu0 0.0
  %6603 = vmatpush2.msra.mxu0 0.0
  %6604 = vmatprep.subr.mxu0 0.0
  %6605 = vmatpush2.msra.mxu0 0.0
  %6606 = vmatprep.subr.mxu0 0.0
  %6607 = vmatpush2.msra.mxu0 0.0
  %6608 = vmatprep.subr.mxu0 0.0
  %6609 = vmatpush2.msra.mxu0 0.0
  %6610 = vmatprep.subr.mxu0 0.0
  %6611 = vmatpush2.msra.mxu0 0.0
  %6612 = vmatprep.subr.mxu0 0.0
  %6613 = vmatpush2.msra.mxu0 0.0
  %6614 = vmatprep.subr.mxu0 0.0
  %6615 = vmatpush2.msra.mxu0 0.0
  %6616 = vmatprep.subr.mxu0 0.0
  %6617 = vmatpush2.msra.mxu0 0.0
  %6618 = vmatprep.subr.mxu0 0.0
  %6619 = vmatpush2.msra.mxu0 0.0
  %6620 = vmatprep.subr.mxu0 0.0
  %6621 = vmatpush2.msra.mxu0 0.0
  %6622 = vmatprep.subr.mxu0 0.0
  %6623 = vmatpush2.msra.mxu0 0.0
  %6624 = vmatprep.subr.mxu0 0.0
  %6625 = vmatpush2.msra.mxu0 0.0
  %6626 = vmatprep.subr.mxu0 0.0
  %6627 = vmatpush2.msra.mxu0 0.0
  %6628 = vmatprep.subr.mxu0 0.0
  %6629 = vmatpush2.msra.mxu0 0.0
  %6630 = vmatprep.mubr.f32.mxu0 0.0
  %6631 = vmatmul.mubr.f32.gmra.mxu0 %v6098
  %v6632 = vpop.f32.mrf.mxu0
  %v6633 = vadd.f32 0.0, %v6632
  %v6634 = vpop.f32.mrf.mxu0
  %v6635 = vadd.f32 0.0, %v6634
  %6636 = vdwg.mxu0
  %6637 = vmatprep.subr.mxu0 0.0
  %6638 = vmatpush1.msra.mxu0 0.0
  %6639 = vmatprep.subr.mxu0 0.0
  %6640 = vmatpush1.msra.mxu0 0.0
  %6641 = vmatprep.subr.mxu0 0.0
  %6642 = vmatpush1.msra.mxu0 0.0
  %6643 = vmatprep.subr.mxu0 0.0
  %6644 = vmatpush1.msra.mxu0 0.0
  %6645 = vmatprep.subr.mxu0 0.0
  %6646 = vmatpush1.msra.mxu0 0.0
  %6647 = vmatprep.subr.mxu0 0.0
  %6648 = vmatpush1.msra.mxu0 0.0
  %6649 = vmatprep.subr.mxu0 0.0
  %6650 = vmatpush1.msra.mxu0 0.0
  %6651 = vmatprep.subr.mxu0 0.0
  %6652 = vmatpush1.msra.mxu0 0.0
  %6653 = vmatprep.subr.mxu0 0.0
  %6654 = vmatpush1.msra.mxu0 0.0
  %6655 = vmatprep.subr.mxu0 0.0
  %6656 = vmatpush1.msra.mxu0 0.0
  %6657 = vmatprep.subr.mxu0 0.0
  %6658 = vmatpush1.msra.mxu0 0.0
  %6659 = vmatprep.subr.mxu0 0.0
  %6660 = vmatpush1.msra.mxu0 0.0
  %6661 = vmatprep.subr.mxu0 0.0
  %6662 = vmatpush1.msra.mxu0 0.0
  %6663 = vmatprep.subr.mxu0 0.0
  %6664 = vmatpush1.msra.mxu0 0.0
  %6665 = vmatprep.subr.mxu0 0.0
  %6666 = vmatpush1.msra.mxu0 0.0
  %6667 = vmatprep.subr.mxu0 %v6130
  %6668 = vmatpush1.msra.mxu0 %v6128
  %6669 = vmatprep.subr.mxu0 0.0
  %6670 = vmatpush2.msra.mxu0 0.0
  %6671 = vmatprep.subr.mxu0 0.0
  %6672 = vmatpush2.msra.mxu0 0.0
  %6673 = vmatprep.subr.mxu0 0.0
  %6674 = vmatpush2.msra.mxu0 0.0
  %6675 = vmatprep.subr.mxu0 0.0
  %6676 = vmatpush2.msra.mxu0 0.0
  %6677 = vmatprep.subr.mxu0 0.0
  %6678 = vmatpush2.msra.mxu0 0.0
  %6679 = vmatprep.subr.mxu0 0.0
  %6680 = vmatpush2.msra.mxu0 0.0
  %6681 = vmatprep.subr.mxu0 0.0
  %6682 = vmatpush2.msra.mxu0 0.0
  %6683 = vmatprep.subr.mxu0 0.0
  %6684 = vmatpush2.msra.mxu0 0.0
  %6685 = vmatprep.subr.mxu0 0.0
  %6686 = vmatpush2.msra.mxu0 0.0
  %6687 = vmatprep.subr.mxu0 0.0
  %6688 = vmatpush2.msra.mxu0 0.0
  %6689 = vmatprep.subr.mxu0 0.0
  %6690 = vmatpush2.msra.mxu0 0.0
  %6691 = vmatprep.subr.mxu0 0.0
  %6692 = vmatpush2.msra.mxu0 0.0
  %6693 = vmatprep.subr.mxu0 0.0
  %6694 = vmatpush2.msra.mxu0 0.0
  %6695 = vmatprep.subr.mxu0 0.0
  %6696 = vmatpush2.msra.mxu0 0.0
  %6697 = vmatprep.subr.mxu0 0.0
  %6698 = vmatpush2.msra.mxu0 0.0
  %6699 = vmatprep.subr.mxu0 0.0
  %6700 = vmatpush2.msra.mxu0 0.0
  %6701 = vmatprep.mubr.f32.mxu0 0.0
  %6702 = vmatmul.mubr.f32.gmra.mxu0 %v6098
  %v6703 = vpop.f32.mrf.mxu0
  %v6704 = vadd.f32 0.0, %v6703
  %v6705 = vpop.f32.mrf.mxu0
  %v6706 = vadd.f32 0.0, %v6705
  %6707 = vdwg.mxu0
  %6708 = vmatprep.subr.mxu0 0.0
  %6709 = vmatpush1.msra.mxu0 0.0
  %6710 = vmatprep.subr.mxu0 0.0
  %6711 = vmatpush1.msra.mxu0 0.0
  %6712 = vmatprep.subr.mxu0 0.0
  %6713 = vmatpush1.msra.mxu0 0.0
  %6714 = vmatprep.subr.mxu0 0.0
  %6715 = vmatpush1.msra.mxu0 0.0
  %6716 = vmatprep.subr.mxu0 0.0
  %6717 = vmatpush1.msra.mxu0 0.0
  %6718 = vmatprep.subr.mxu0 0.0
  %6719 = vmatpush1.msra.mxu0 0.0
  %6720 = vmatprep.subr.mxu0 0.0
  %6721 = vmatpush1.msra.mxu0 0.0
  %6722 = vmatprep.subr.mxu0 0.0
  %6723 = vmatpush1.msra.mxu0 0.0
  %6724 = vmatprep.subr.mxu0 0.0
  %6725 = vmatpush1.msra.mxu0 0.0
  %6726 = vmatprep.subr.mxu0 0.0
  %6727 = vmatpush1.msra.mxu0 0.0
  %6728 = vmatprep.subr.mxu0 0.0
  %6729 = vmatpush1.msra.mxu0 0.0
  %6730 = vmatprep.subr.mxu0 0.0
  %6731 = vmatpush1.msra.mxu0 0.0
  %6732 = vmatprep.subr.mxu0 0.0
  %6733 = vmatpush1.msra.mxu0 0.0
  %6734 = vmatprep.subr.mxu0 0.0
  %6735 = vmatpush1.msra.mxu0 0.0
  %6736 = vmatprep.subr.mxu0 0.0
  %6737 = vmatpush1.msra.mxu0 0.0
  %6738 = vmatprep.subr.mxu0 %v6134
  %6739 = vmatpush1.msra.mxu0 %v6132
  %6740 = vmatprep.subr.mxu0 0.0
  %6741 = vmatpush2.msra.mxu0 0.0
  %6742 = vmatprep.subr.mxu0 0.0
  %6743 = vmatpush2.msra.mxu0 0.0
  %6744 = vmatprep.subr.mxu0 0.0
  %6745 = vmatpush2.msra.mxu0 0.0
  %6746 = vmatprep.subr.mxu0 0.0
  %6747 = vmatpush2.msra.mxu0 0.0
  %6748 = vmatprep.subr.mxu0 0.0
  %6749 = vmatpush2.msra.mxu0 0.0
  %6750 = vmatprep.subr.mxu0 0.0
  %6751 = vmatpush2.msra.mxu0 0.0
  %6752 = vmatprep.subr.mxu0 0.0
  %6753 = vmatpush2.msra.mxu0 0.0
  %6754 = vmatprep.subr.mxu0 0.0
  %6755 = vmatpush2.msra.mxu0 0.0
  %6756 = vmatprep.subr.mxu0 0.0
  %6757 = vmatpush2.msra.mxu0 0.0
  %6758 = vmatprep.subr.mxu0 0.0
  %6759 = vmatpush2.msra.mxu0 0.0
  %6760 = vmatprep.subr.mxu0 0.0
  %6761 = vmatpush2.msra.mxu0 0.0
  %6762 = vmatprep.subr.mxu0 0.0
  %6763 = vmatpush2.msra.mxu0 0.0
  %6764 = vmatprep.subr.mxu0 0.0
  %6765 = vmatpush2.msra.mxu0 0.0
  %6766 = vmatprep.subr.mxu0 0.0
  %6767 = vmatpush2.msra.mxu0 0.0
  %6768 = vmatprep.subr.mxu0 0.0
  %6769 = vmatpush2.msra.mxu0 0.0
  %6770 = vmatprep.subr.mxu0 0.0
  %6771 = vmatpush2.msra.mxu0 0.0
  %6772 = vmatprep.mubr.f32.mxu0 0.0
  %6773 = vmatmul.mubr.f32.gmra.mxu0 %v6098
  %v6774 = vpop.f32.mrf.mxu0
  %v6775 = vadd.f32 0.0, %v6774
  %v6776 = vpop.f32.mrf.mxu0
  %v6777 = vadd.f32 0.0, %v6776
  %6778 = vdwg.mxu0
  %6779 = vmatprep.subr.mxu0 0.0
  %6780 = vmatpush1.msra.mxu0 0.0
  %6781 = vmatprep.subr.mxu0 0.0
  %6782 = vmatpush1.msra.mxu0 0.0
  %6783 = vmatprep.subr.mxu0 0.0
  %6784 = vmatpush1.msra.mxu0 0.0
  %6785 = vmatprep.subr.mxu0 0.0
  %6786 = vmatpush1.msra.mxu0 0.0
  %6787 = vmatprep.subr.mxu0 0.0
  %6788 = vmatpush1.msra.mxu0 0.0
  %6789 = vmatprep.subr.mxu0 0.0
  %6790 = vmatpush1.msra.mxu0 0.0
  %6791 = vmatprep.subr.mxu0 0.0
  %6792 = vmatpush1.msra.mxu0 0.0
  %6793 = vmatprep.subr.mxu0 0.0
  %6794 = vmatpush1.msra.mxu0 0.0
  %6795 = vmatprep.subr.mxu0 0.0
  %6796 = vmatpush1.msra.mxu0 0.0
  %6797 = vmatprep.subr.mxu0 0.0
  %6798 = vmatpush1.msra.mxu0 0.0
  %6799 = vmatprep.subr.mxu0 0.0
  %6800 = vmatpush1.msra.mxu0 0.0
  %6801 = vmatprep.subr.mxu0 0.0
  %6802 = vmatpush1.msra.mxu0 0.0
  %6803 = vmatprep.subr.mxu0 0.0
  %6804 = vmatpush1.msra.mxu0 0.0
  %6805 = vmatprep.subr.mxu0 0.0
  %6806 = vmatpush1.msra.mxu0 0.0
  %6807 = vmatprep.subr.mxu0 0.0
  %6808 = vmatpush1.msra.mxu0 0.0
  %6809 = vmatprep.subr.mxu0 %v6138
  %6810 = vmatpush1.msra.mxu0 %v6136
  %6811 = vmatprep.subr.mxu0 0.0
  %6812 = vmatpush2.msra.mxu0 0.0
  %6813 = vmatprep.subr.mxu0 0.0
  %6814 = vmatpush2.msra.mxu0 0.0
  %6815 = vmatprep.subr.mxu0 0.0
  %6816 = vmatpush2.msra.mxu0 0.0
  %6817 = vmatprep.subr.mxu0 0.0
  %6818 = vmatpush2.msra.mxu0 0.0
  %6819 = vmatprep.subr.mxu0 0.0
  %6820 = vmatpush2.msra.mxu0 0.0
  %6821 = vmatprep.subr.mxu0 0.0
  %6822 = vmatpush2.msra.mxu0 0.0
  %6823 = vmatprep.subr.mxu0 0.0
  %6824 = vmatpush2.msra.mxu0 0.0
  %6825 = vmatprep.subr.mxu0 0.0
  %6826 = vmatpush2.msra.mxu0 0.0
  %6827 = vmatprep.subr.mxu0 0.0
  %6828 = vmatpush2.msra.mxu0 0.0
  %6829 = vmatprep.subr.mxu0 0.0
  %6830 = vmatpush2.msra.mxu0 0.0
  %6831 = vmatprep.subr.mxu0 0.0
  %6832 = vmatpush2.msra.mxu0 0.0
  %6833 = vmatprep.subr.mxu0 0.0
  %6834 = vmatpush2.msra.mxu0 0.0
  %6835 = vmatprep.subr.mxu0 0.0
  %6836 = vmatpush2.msra.mxu0 0.0
  %6837 = vmatprep.subr.mxu0 0.0
  %6838 = vmatpush2.msra.mxu0 0.0
  %6839 = vmatprep.subr.mxu0 0.0
  %6840 = vmatpush2.msra.mxu0 0.0
  %6841 = vmatprep.subr.mxu0 0.0
  %6842 = vmatpush2.msra.mxu0 0.0
  %6843 = vmatprep.mubr.f32.mxu0 0.0
  %6844 = vmatmul.mubr.f32.gmra.mxu0 %v6098
  %v6845 = vpop.f32.mrf.mxu0
  %v6846 = vadd.f32 0.0, %v6845
  %v6847 = vpop.f32.mrf.mxu0
  %v6848 = vadd.f32 0.0, %v6847
  %6849 = vdwg.mxu0
  %v6850 = vadd.f32 %v5980, %v6207
  %v6851 = vadd.f32 %v5981, %v6209
  %v6852 = vadd.f32 %v5982, %v6278
  %v6853 = vadd.f32 %v5983, %v6280
  %v6854 = vadd.f32 %v5984, %v6349
  %v6855 = vadd.f32 %v5985, %v6351
  %v6856 = vadd.f32 %v5986, %v6420
  %v6857 = vadd.f32 %v5987, %v6422
  %v6858 = vadd.f32 %v5988, %v6491
  %v6859 = vadd.f32 %v5989, %v6493
  %v6860 = vadd.f32 %v5990, %v6562
  %v6861 = vadd.f32 %v5991, %v6564
  %v6862 = vadd.f32 %v5992, %v6633
  %v6863 = vadd.f32 %v5993, %v6635
  %v6864 = vadd.f32 %v5994, %v6704
  %v6865 = vadd.f32 %v5995, %v6706
  %v6866 = vadd.f32 %v5996, %v6775
  %v6867 = vadd.f32 %v5997, %v6777
  %v6868 = vadd.f32 %v5998, %v6846
  %v6869 = vadd.f32 %v5999, %v6848
  %s6870 = scalar_lea.vmem %s1, 64
  %v6871 = vld [vmem:[%s6870] sm:$0xff]
  %v6872 = vld [vmem:[%s0] sm:$0xff]
  %v6873 = vld [vmem:[%s0 + $0x8] sm:$0xff]
  %v6874 = vld [vmem:[%s0 + $0x10] sm:$0xff]
  %v6875 = vld [vmem:[%s0 + $0x18] sm:$0xff]
  %v6876 = vld [vmem:[%s0 + $0x20] sm:$0xff]
  %v6877 = vld [vmem:[%s0 + $0x28] sm:$0xff]
  %v6878 = vld [vmem:[%s0 + $0x30] sm:$0xff]
  %v6879 = vld [vmem:[%s0 + $0x38] sm:$0xff]
  %v6880 = vld [vmem:[%s0 + $0x40] sm:$0xff]
  %v6881 = vld [vmem:[%s0 + $0x48] sm:$0xff]
  %v6882 = vld [vmem:[%s0 + $0x50] sm:$0xf]
  %v6894 = vcombine.high %v6872, %v6872
  %v6895 = vcombine.high %v6873, %v6873
  %v6896 = vcombine.high %v6874, %v6874
  %v6897 = vcombine.high %v6875, %v6875
  %v6898 = vcombine.high %v6876, %v6876
  %v6899 = vcombine.high %v6877, %v6877
  %v6900 = vcombine.high %v6878, %v6878
  %v6901 = vcombine.high %v6879, %v6879
  %v6902 = vcombine.high %v6880, %v6880
  %v6903 = vcombine.high %v6881, %v6881
  %6904 = vrot.lane.b32.xlu0 %v6872, 58
  %v6905 = vpop.permute.xlu0 %6904
  %6906 = vrot.lane.b32.xlu0 %v6894, 58
  %v6907 = vpop.permute.xlu0 %6906
  %6908 = vrot.lane.b32.xlu0 %v6873, 58
  %v6909 = vpop.permute.xlu0 %6908
  %6910 = vrot.lane.b32.xlu0 %v6895, 58
  %v6911 = vpop.permute.xlu0 %6910
  %6912 = vrot.lane.b32.xlu0 %v6874, 58
  %v6913 = vpop.permute.xlu0 %6912
  %6914 = vrot.lane.b32.xlu0 %v6896, 58
  %v6915 = vpop.permute.xlu0 %6914
  %6916 = vrot.lane.b32.xlu0 %v6875, 58
  %v6917 = vpop.permute.xlu0 %6916
  %6918 = vrot.lane.b32.xlu0 %v6897, 58
  %v6919 = vpop.permute.xlu0 %6918
  %6920 = vrot.lane.b32.xlu0 %v6876, 58
  %v6921 = vpop.permute.xlu0 %6920
  %6922 = vrot.lane.b32.xlu0 %v6898, 58
  %v6923 = vpop.permute.xlu0 %6922
  %6924 = vrot.lane.b32.xlu0 %v6877, 58
  %v6925 = vpop.permute.xlu0 %6924
  %6926 = vrot.lane.b32.xlu0 %v6899, 58
  %v6927 = vpop.permute.xlu0 %6926
  %6928 = vrot.lane.b32.xlu0 %v6878, 58
  %v6929 = vpop.permute.xlu0 %6928
  %6930 = vrot.lane.b32.xlu0 %v6900, 58
  %v6931 = vpop.permute.xlu0 %6930
  %6932 = vrot.lane.b32.xlu0 %v6879, 58
  %v6933 = vpop.permute.xlu0 %6932
  %6934 = vrot.lane.b32.xlu0 %v6901, 58
  %v6935 = vpop.permute.xlu0 %6934
  %6936 = vrot.lane.b32.xlu0 %v6880, 58
  %v6937 = vpop.permute.xlu0 %6936
  %6938 = vrot.lane.b32.xlu0 %v6902, 58
  %v6939 = vpop.permute.xlu0 %6938
  %6940 = vrot.lane.b32.xlu0 %v6881, 58
  %v6941 = vpop.permute.xlu0 %6940
  %6942 = vrot.lane.b32.xlu0 %v6903, 58
  %v6943 = vpop.permute.xlu0 %6942
  %6944 = vrot.lane.b32.xlu0 %v6882, 58
  %v6945 = vpop.permute.xlu0 %6944
  %vm6946 = vcmask 474112
  %v6947 = vsel %vm6946, %v6905, %v6907
  %v6948 = vsel %vm6946, %v6907, %v6909
  %v6949 = vsel %vm6946, %v6909, %v6911
  %v6950 = vsel %vm6946, %v6911, %v6913
  %v6951 = vsel %vm6946, %v6913, %v6915
  %v6952 = vsel %vm6946, %v6915, %v6917
  %v6953 = vsel %vm6946, %v6917, %v6919
  %v6954 = vsel %vm6946, %v6919, %v6921
  %v6955 = vsel %vm6946, %v6921, %v6923
  %v6956 = vsel %vm6946, %v6923, %v6925
  %v6957 = vsel %vm6946, %v6925, %v6927
  %v6958 = vsel %vm6946, %v6927, %v6929
  %v6959 = vsel %vm6946, %v6929, %v6931
  %v6960 = vsel %vm6946, %v6931, %v6933
  %v6961 = vsel %vm6946, %v6933, %v6935
  %v6962 = vsel %vm6946, %v6935, %v6937
  %v6963 = vsel %vm6946, %v6937, %v6939
  %v6964 = vsel %vm6946, %v6939, %v6941
  %v6965 = vsel %vm6946, %v6941, %v6943
  %v6966 = vsel %vm6946, %v6943, %v6945
  %v6968 = vsel %vm122, %v6871, 0
  %v6970 = vsel %vm126, %v6947, 0
  %v6972 = vsel %vm126, %v6948, 0
  %v6974 = vsel %vm126, %v6949, 0
  %v6976 = vsel %vm126, %v6950, 0
  %v6978 = vsel %vm126, %v6951, 0
  %v6980 = vsel %vm126, %v6952, 0
  %v6982 = vsel %vm126, %v6953, 0
  %v6984 = vsel %vm126, %v6954, 0
  %v6986 = vsel %vm126, %v6955, 0
  %v6988 = vsel %vm126, %v6956, 0
  %v6990 = vsel %vm126, %v6957, 0
  %v6992 = vsel %vm126, %v6958, 0
  %v6994 = vsel %vm126, %v6959, 0
  %v6996 = vsel %vm126, %v6960, 0
  %v6998 = vsel %vm126, %v6961, 0
  %v7000 = vsel %vm126, %v6962, 0
  %v7002 = vsel %vm126, %v6963, 0
  %v7004 = vsel %vm126, %v6964, 0
  %v7006 = vsel %vm126, %v6965, 0
  %v7008 = vsel %vm126, %v6966, 0
  %7010 = vmatprep.subr.mxu0 0.0
  %7011 = vmatpush1.msra.mxu0 0.0
  %7012 = vmatprep.subr.mxu0 0.0
  %7013 = vmatpush1.msra.mxu0 0.0
  %7014 = vmatprep.subr.mxu0 0.0
  %7015 = vmatpush1.msra.mxu0 0.0
  %7016 = vmatprep.subr.mxu0 0.0
  %7017 = vmatpush1.msra.mxu0 0.0
  %7018 = vmatprep.subr.mxu0 0.0
  %7019 = vmatpush1.msra.mxu0 0.0
  %7020 = vmatprep.subr.mxu0 0.0
  %7021 = vmatpush1.msra.mxu0 0.0
  %7022 = vmatprep.subr.mxu0 0.0
  %7023 = vmatpush1.msra.mxu0 0.0
  %7024 = vmatprep.subr.mxu0 0.0
  %7025 = vmatpush1.msra.mxu0 0.0
  %7026 = vmatprep.subr.mxu0 0.0
  %7027 = vmatpush1.msra.mxu0 0.0
  %7028 = vmatprep.subr.mxu0 0.0
  %7029 = vmatpush1.msra.mxu0 0.0
  %7030 = vmatprep.subr.mxu0 0.0
  %7031 = vmatpush1.msra.mxu0 0.0
  %7032 = vmatprep.subr.mxu0 0.0
  %7033 = vmatpush1.msra.mxu0 0.0
  %7034 = vmatprep.subr.mxu0 0.0
  %7035 = vmatpush1.msra.mxu0 0.0
  %7036 = vmatprep.subr.mxu0 0.0
  %7037 = vmatpush1.msra.mxu0 0.0
  %7038 = vmatprep.subr.mxu0 0.0
  %7039 = vmatpush1.msra.mxu0 0.0
  %7040 = vmatprep.subr.mxu0 %v6972
  %7041 = vmatpush1.msra.mxu0 %v6970
  %7042 = vmatprep.subr.mxu0 0.0
  %7043 = vmatpush2.msra.mxu0 0.0
  %7044 = vmatprep.subr.mxu0 0.0
  %7045 = vmatpush2.msra.mxu0 0.0
  %7046 = vmatprep.subr.mxu0 0.0
  %7047 = vmatpush2.msra.mxu0 0.0
  %7048 = vmatprep.subr.mxu0 0.0
  %7049 = vmatpush2.msra.mxu0 0.0
  %7050 = vmatprep.subr.mxu0 0.0
  %7051 = vmatpush2.msra.mxu0 0.0
  %7052 = vmatprep.subr.mxu0 0.0
  %7053 = vmatpush2.msra.mxu0 0.0
  %7054 = vmatprep.subr.mxu0 0.0
  %7055 = vmatpush2.msra.mxu0 0.0
  %7056 = vmatprep.subr.mxu0 0.0
  %7057 = vmatpush2.msra.mxu0 0.0
  %7058 = vmatprep.subr.mxu0 0.0
  %7059 = vmatpush2.msra.mxu0 0.0
  %7060 = vmatprep.subr.mxu0 0.0
  %7061 = vmatpush2.msra.mxu0 0.0
  %7062 = vmatprep.subr.mxu0 0.0
  %7063 = vmatpush2.msra.mxu0 0.0
  %7064 = vmatprep.subr.mxu0 0.0
  %7065 = vmatpush2.msra.mxu0 0.0
  %7066 = vmatprep.subr.mxu0 0.0
  %7067 = vmatpush2.msra.mxu0 0.0
  %7068 = vmatprep.subr.mxu0 0.0
  %7069 = vmatpush2.msra.mxu0 0.0
  %7070 = vmatprep.subr.mxu0 0.0
  %7071 = vmatpush2.msra.mxu0 0.0
  %7072 = vmatprep.subr.mxu0 0.0
  %7073 = vmatpush2.msra.mxu0 0.0
  %7074 = vmatprep.mubr.f32.mxu0 0.0
  %7075 = vmatmul.mubr.f32.gmra.mxu0 %v6968
  %v7076 = vpop.f32.mrf.mxu0
  %v7077 = vadd.f32 0.0, %v7076
  %v7078 = vpop.f32.mrf.mxu0
  %v7079 = vadd.f32 0.0, %v7078
  %7080 = vdwg.mxu0
  %7081 = vmatprep.subr.mxu0 0.0
  %7082 = vmatpush1.msra.mxu0 0.0
  %7083 = vmatprep.subr.mxu0 0.0
  %7084 = vmatpush1.msra.mxu0 0.0
  %7085 = vmatprep.subr.mxu0 0.0
  %7086 = vmatpush1.msra.mxu0 0.0
  %7087 = vmatprep.subr.mxu0 0.0
  %7088 = vmatpush1.msra.mxu0 0.0
  %7089 = vmatprep.subr.mxu0 0.0
  %7090 = vmatpush1.msra.mxu0 0.0
  %7091 = vmatprep.subr.mxu0 0.0
  %7092 = vmatpush1.msra.mxu0 0.0
  %7093 = vmatprep.subr.mxu0 0.0
  %7094 = vmatpush1.msra.mxu0 0.0
  %7095 = vmatprep.subr.mxu0 0.0
  %7096 = vmatpush1.msra.mxu0 0.0
  %7097 = vmatprep.subr.mxu0 0.0
  %7098 = vmatpush1.msra.mxu0 0.0
  %7099 = vmatprep.subr.mxu0 0.0
  %7100 = vmatpush1.msra.mxu0 0.0
  %7101 = vmatprep.subr.mxu0 0.0
  %7102 = vmatpush1.msra.mxu0 0.0
  %7103 = vmatprep.subr.mxu0 0.0
  %7104 = vmatpush1.msra.mxu0 0.0
  %7105 = vmatprep.subr.mxu0 0.0
  %7106 = vmatpush1.msra.mxu0 0.0
  %7107 = vmatprep.subr.mxu0 0.0
  %7108 = vmatpush1.msra.mxu0 0.0
  %7109 = vmatprep.subr.mxu0 0.0
  %7110 = vmatpush1.msra.mxu0 0.0
  %7111 = vmatprep.subr.mxu0 %v6976
  %7112 = vmatpush1.msra.mxu0 %v6974
  %7113 = vmatprep.subr.mxu0 0.0
  %7114 = vmatpush2.msra.mxu0 0.0
  %7115 = vmatprep.subr.mxu0 0.0
  %7116 = vmatpush2.msra.mxu0 0.0
  %7117 = vmatprep.subr.mxu0 0.0
  %7118 = vmatpush2.msra.mxu0 0.0
  %7119 = vmatprep.subr.mxu0 0.0
  %7120 = vmatpush2.msra.mxu0 0.0
  %7121 = vmatprep.subr.mxu0 0.0
  %7122 = vmatpush2.msra.mxu0 0.0
  %7123 = vmatprep.subr.mxu0 0.0
  %7124 = vmatpush2.msra.mxu0 0.0
  %7125 = vmatprep.subr.mxu0 0.0
  %7126 = vmatpush2.msra.mxu0 0.0
  %7127 = vmatprep.subr.mxu0 0.0
  %7128 = vmatpush2.msra.mxu0 0.0
  %7129 = vmatprep.subr.mxu0 0.0
  %7130 = vmatpush2.msra.mxu0 0.0
  %7131 = vmatprep.subr.mxu0 0.0
  %7132 = vmatpush2.msra.mxu0 0.0
  %7133 = vmatprep.subr.mxu0 0.0
  %7134 = vmatpush2.msra.mxu0 0.0
  %7135 = vmatprep.subr.mxu0 0.0
  %7136 = vmatpush2.msra.mxu0 0.0
  %7137 = vmatprep.subr.mxu0 0.0
  %7138 = vmatpush2.msra.mxu0 0.0
  %7139 = vmatprep.subr.mxu0 0.0
  %7140 = vmatpush2.msra.mxu0 0.0
  %7141 = vmatprep.subr.mxu0 0.0
  %7142 = vmatpush2.msra.mxu0 0.0
  %7143 = vmatprep.subr.mxu0 0.0
  %7144 = vmatpush2.msra.mxu0 0.0
  %7145 = vmatprep.mubr.f32.mxu0 0.0
  %7146 = vmatmul.mubr.f32.gmra.mxu0 %v6968
  %v7147 = vpop.f32.mrf.mxu0
  %v7148 = vadd.f32 0.0, %v7147
  %v7149 = vpop.f32.mrf.mxu0
  %v7150 = vadd.f32 0.0, %v7149
  %7151 = vdwg.mxu0
  %7152 = vmatprep.subr.mxu0 0.0
  %7153 = vmatpush1.msra.mxu0 0.0
  %7154 = vmatprep.subr.mxu0 0.0
  %7155 = vmatpush1.msra.mxu0 0.0
  %7156 = vmatprep.subr.mxu0 0.0
  %7157 = vmatpush1.msra.mxu0 0.0
  %7158 = vmatprep.subr.mxu0 0.0
  %7159 = vmatpush1.msra.mxu0 0.0
  %7160 = vmatprep.subr.mxu0 0.0
  %7161 = vmatpush1.msra.mxu0 0.0
  %7162 = vmatprep.subr.mxu0 0.0
  %7163 = vmatpush1.msra.mxu0 0.0
  %7164 = vmatprep.subr.mxu0 0.0
  %7165 = vmatpush1.msra.mxu0 0.0
  %7166 = vmatprep.subr.mxu0 0.0
  %7167 = vmatpush1.msra.mxu0 0.0
  %7168 = vmatprep.subr.mxu0 0.0
  %7169 = vmatpush1.msra.mxu0 0.0
  %7170 = vmatprep.subr.mxu0 0.0
  %7171 = vmatpush1.msra.mxu0 0.0
  %7172 = vmatprep.subr.mxu0 0.0
  %7173 = vmatpush1.msra.mxu0 0.0
  %7174 = vmatprep.subr.mxu0 0.0
  %7175 = vmatpush1.msra.mxu0 0.0
  %7176 = vmatprep.subr.mxu0 0.0
  %7177 = vmatpush1.msra.mxu0 0.0
  %7178 = vmatprep.subr.mxu0 0.0
  %7179 = vmatpush1.msra.mxu0 0.0
  %7180 = vmatprep.subr.mxu0 0.0
  %7181 = vmatpush1.msra.mxu0 0.0
  %7182 = vmatprep.subr.mxu0 %v6980
  %7183 = vmatpush1.msra.mxu0 %v6978
  %7184 = vmatprep.subr.mxu0 0.0
  %7185 = vmatpush2.msra.mxu0 0.0
  %7186 = vmatprep.subr.mxu0 0.0
  %7187 = vmatpush2.msra.mxu0 0.0
  %7188 = vmatprep.subr.mxu0 0.0
  %7189 = vmatpush2.msra.mxu0 0.0
  %7190 = vmatprep.subr.mxu0 0.0
  %7191 = vmatpush2.msra.mxu0 0.0
  %7192 = vmatprep.subr.mxu0 0.0
  %7193 = vmatpush2.msra.mxu0 0.0
  %7194 = vmatprep.subr.mxu0 0.0
  %7195 = vmatpush2.msra.mxu0 0.0
  %7196 = vmatprep.subr.mxu0 0.0
  %7197 = vmatpush2.msra.mxu0 0.0
  %7198 = vmatprep.subr.mxu0 0.0
  %7199 = vmatpush2.msra.mxu0 0.0
  %7200 = vmatprep.subr.mxu0 0.0
  %7201 = vmatpush2.msra.mxu0 0.0
  %7202 = vmatprep.subr.mxu0 0.0
  %7203 = vmatpush2.msra.mxu0 0.0
  %7204 = vmatprep.subr.mxu0 0.0
  %7205 = vmatpush2.msra.mxu0 0.0
  %7206 = vmatprep.subr.mxu0 0.0
  %7207 = vmatpush2.msra.mxu0 0.0
  %7208 = vmatprep.subr.mxu0 0.0
  %7209 = vmatpush2.msra.mxu0 0.0
  %7210 = vmatprep.subr.mxu0 0.0
  %7211 = vmatpush2.msra.mxu0 0.0
  %7212 = vmatprep.subr.mxu0 0.0
  %7213 = vmatpush2.msra.mxu0 0.0
  %7214 = vmatprep.subr.mxu0 0.0
  %7215 = vmatpush2.msra.mxu0 0.0
  %7216 = vmatprep.mubr.f32.mxu0 0.0
  %7217 = vmatmul.mubr.f32.gmra.mxu0 %v6968
  %v7218 = vpop.f32.mrf.mxu0
  %v7219 = vadd.f32 0.0, %v7218
  %v7220 = vpop.f32.mrf.mxu0
  %v7221 = vadd.f32 0.0, %v7220
  %7222 = vdwg.mxu0
  %7223 = vmatprep.subr.mxu0 0.0
  %7224 = vmatpush1.msra.mxu0 0.0
  %7225 = vmatprep.subr.mxu0 0.0
  %7226 = vmatpush1.msra.mxu0 0.0
  %7227 = vmatprep.subr.mxu0 0.0
  %7228 = vmatpush1.msra.mxu0 0.0
  %7229 = vmatprep.subr.mxu0 0.0
  %7230 = vmatpush1.msra.mxu0 0.0
  %7231 = vmatprep.subr.mxu0 0.0
  %7232 = vmatpush1.msra.mxu0 0.0
  %7233 = vmatprep.subr.mxu0 0.0
  %7234 = vmatpush1.msra.mxu0 0.0
  %7235 = vmatprep.subr.mxu0 0.0
  %7236 = vmatpush1.msra.mxu0 0.0
  %7237 = vmatprep.subr.mxu0 0.0
  %7238 = vmatpush1.msra.mxu0 0.0
  %7239 = vmatprep.subr.mxu0 0.0
  %7240 = vmatpush1.msra.mxu0 0.0
  %7241 = vmatprep.subr.mxu0 0.0
  %7242 = vmatpush1.msra.mxu0 0.0
  %7243 = vmatprep.subr.mxu0 0.0
  %7244 = vmatpush1.msra.mxu0 0.0
  %7245 = vmatprep.subr.mxu0 0.0
  %7246 = vmatpush1.msra.mxu0 0.0
  %7247 = vmatprep.subr.mxu0 0.0
  %7248 = vmatpush1.msra.mxu0 0.0
  %7249 = vmatprep.subr.mxu0 0.0
  %7250 = vmatpush1.msra.mxu0 0.0
  %7251 = vmatprep.subr.mxu0 0.0
  %7252 = vmatpush1.msra.mxu0 0.0
  %7253 = vmatprep.subr.mxu0 %v6984
  %7254 = vmatpush1.msra.mxu0 %v6982
  %7255 = vmatprep.subr.mxu0 0.0
  %7256 = vmatpush2.msra.mxu0 0.0
  %7257 = vmatprep.subr.mxu0 0.0
  %7258 = vmatpush2.msra.mxu0 0.0
  %7259 = vmatprep.subr.mxu0 0.0
  %7260 = vmatpush2.msra.mxu0 0.0
  %7261 = vmatprep.subr.mxu0 0.0
  %7262 = vmatpush2.msra.mxu0 0.0
  %7263 = vmatprep.subr.mxu0 0.0
  %7264 = vmatpush2.msra.mxu0 0.0
  %7265 = vmatprep.subr.mxu0 0.0
  %7266 = vmatpush2.msra.mxu0 0.0
  %7267 = vmatprep.subr.mxu0 0.0
  %7268 = vmatpush2.msra.mxu0 0.0
  %7269 = vmatprep.subr.mxu0 0.0
  %7270 = vmatpush2.msra.mxu0 0.0
  %7271 = vmatprep.subr.mxu0 0.0
  %7272 = vmatpush2.msra.mxu0 0.0
  %7273 = vmatprep.subr.mxu0 0.0
  %7274 = vmatpush2.msra.mxu0 0.0
  %7275 = vmatprep.subr.mxu0 0.0
  %7276 = vmatpush2.msra.mxu0 0.0
  %7277 = vmatprep.subr.mxu0 0.0
  %7278 = vmatpush2.msra.mxu0 0.0
  %7279 = vmatprep.subr.mxu0 0.0
  %7280 = vmatpush2.msra.mxu0 0.0
  %7281 = vmatprep.subr.mxu0 0.0
  %7282 = vmatpush2.msra.mxu0 0.0
  %7283 = vmatprep.subr.mxu0 0.0
  %7284 = vmatpush2.msra.mxu0 0.0
  %7285 = vmatprep.subr.mxu0 0.0
  %7286 = vmatpush2.msra.mxu0 0.0
  %7287 = vmatprep.mubr.f32.mxu0 0.0
  %7288 = vmatmul.mubr.f32.gmra.mxu0 %v6968
  %v7289 = vpop.f32.mrf.mxu0
  %v7290 = vadd.f32 0.0, %v7289
  %v7291 = vpop.f32.mrf.mxu0
  %v7292 = vadd.f32 0.0, %v7291
  %7293 = vdwg.mxu0
  %7294 = vmatprep.subr.mxu0 0.0
  %7295 = vmatpush1.msra.mxu0 0.0
  %7296 = vmatprep.subr.mxu0 0.0
  %7297 = vmatpush1.msra.mxu0 0.0
  %7298 = vmatprep.subr.mxu0 0.0
  %7299 = vmatpush1.msra.mxu0 0.0
  %7300 = vmatprep.subr.mxu0 0.0
  %7301 = vmatpush1.msra.mxu0 0.0
  %7302 = vmatprep.subr.mxu0 0.0
  %7303 = vmatpush1.msra.mxu0 0.0
  %7304 = vmatprep.subr.mxu0 0.0
  %7305 = vmatpush1.msra.mxu0 0.0
  %7306 = vmatprep.subr.mxu0 0.0
  %7307 = vmatpush1.msra.mxu0 0.0
  %7308 = vmatprep.subr.mxu0 0.0
  %7309 = vmatpush1.msra.mxu0 0.0
  %7310 = vmatprep.subr.mxu0 0.0
  %7311 = vmatpush1.msra.mxu0 0.0
  %7312 = vmatprep.subr.mxu0 0.0
  %7313 = vmatpush1.msra.mxu0 0.0
  %7314 = vmatprep.subr.mxu0 0.0
  %7315 = vmatpush1.msra.mxu0 0.0
  %7316 = vmatprep.subr.mxu0 0.0
  %7317 = vmatpush1.msra.mxu0 0.0
  %7318 = vmatprep.subr.mxu0 0.0
  %7319 = vmatpush1.msra.mxu0 0.0
  %7320 = vmatprep.subr.mxu0 0.0
  %7321 = vmatpush1.msra.mxu0 0.0
  %7322 = vmatprep.subr.mxu0 0.0
  %7323 = vmatpush1.msra.mxu0 0.0
  %7324 = vmatprep.subr.mxu0 %v6988
  %7325 = vmatpush1.msra.mxu0 %v6986
  %7326 = vmatprep.subr.mxu0 0.0
  %7327 = vmatpush2.msra.mxu0 0.0
  %7328 = vmatprep.subr.mxu0 0.0
  %7329 = vmatpush2.msra.mxu0 0.0
  %7330 = vmatprep.subr.mxu0 0.0
  %7331 = vmatpush2.msra.mxu0 0.0
  %7332 = vmatprep.subr.mxu0 0.0
  %7333 = vmatpush2.msra.mxu0 0.0
  %7334 = vmatprep.subr.mxu0 0.0
  %7335 = vmatpush2.msra.mxu0 0.0
  %7336 = vmatprep.subr.mxu0 0.0
  %7337 = vmatpush2.msra.mxu0 0.0
  %7338 = vmatprep.subr.mxu0 0.0
  %7339 = vmatpush2.msra.mxu0 0.0
  %7340 = vmatprep.subr.mxu0 0.0
  %7341 = vmatpush2.msra.mxu0 0.0
  %7342 = vmatprep.subr.mxu0 0.0
  %7343 = vmatpush2.msra.mxu0 0.0
  %7344 = vmatprep.subr.mxu0 0.0
  %7345 = vmatpush2.msra.mxu0 0.0
  %7346 = vmatprep.subr.mxu0 0.0
  %7347 = vmatpush2.msra.mxu0 0.0
  %7348 = vmatprep.subr.mxu0 0.0
  %7349 = vmatpush2.msra.mxu0 0.0
  %7350 = vmatprep.subr.mxu0 0.0
  %7351 = vmatpush2.msra.mxu0 0.0
  %7352 = vmatprep.subr.mxu0 0.0
  %7353 = vmatpush2.msra.mxu0 0.0
  %7354 = vmatprep.subr.mxu0 0.0
  %7355 = vmatpush2.msra.mxu0 0.0
  %7356 = vmatprep.subr.mxu0 0.0
  %7357 = vmatpush2.msra.mxu0 0.0
  %7358 = vmatprep.mubr.f32.mxu0 0.0
  %7359 = vmatmul.mubr.f32.gmra.mxu0 %v6968
  %v7360 = vpop.f32.mrf.mxu0
  %v7361 = vadd.f32 0.0, %v7360
  %v7362 = vpop.f32.mrf.mxu0
  %v7363 = vadd.f32 0.0, %v7362
  %7364 = vdwg.mxu0
  %7365 = vmatprep.subr.mxu0 0.0
  %7366 = vmatpush1.msra.mxu0 0.0
  %7367 = vmatprep.subr.mxu0 0.0
  %7368 = vmatpush1.msra.mxu0 0.0
  %7369 = vmatprep.subr.mxu0 0.0
  %7370 = vmatpush1.msra.mxu0 0.0
  %7371 = vmatprep.subr.mxu0 0.0
  %7372 = vmatpush1.msra.mxu0 0.0
  %7373 = vmatprep.subr.mxu0 0.0
  %7374 = vmatpush1.msra.mxu0 0.0
  %7375 = vmatprep.subr.mxu0 0.0
  %7376 = vmatpush1.msra.mxu0 0.0
  %7377 = vmatprep.subr.mxu0 0.0
  %7378 = vmatpush1.msra.mxu0 0.0
  %7379 = vmatprep.subr.mxu0 0.0
  %7380 = vmatpush1.msra.mxu0 0.0
  %7381 = vmatprep.subr.mxu0 0.0
  %7382 = vmatpush1.msra.mxu0 0.0
  %7383 = vmatprep.subr.mxu0 0.0
  %7384 = vmatpush1.msra.mxu0 0.0
  %7385 = vmatprep.subr.mxu0 0.0
  %7386 = vmatpush1.msra.mxu0 0.0
  %7387 = vmatprep.subr.mxu0 0.0
  %7388 = vmatpush1.msra.mxu0 0.0
  %7389 = vmatprep.subr.mxu0 0.0
  %7390 = vmatpush1.msra.mxu0 0.0
  %7391 = vmatprep.subr.mxu0 0.0
  %7392 = vmatpush1.msra.mxu0 0.0
  %7393 = vmatprep.subr.mxu0 0.0
  %7394 = vmatpush1.msra.mxu0 0.0
  %7395 = vmatprep.subr.mxu0 %v6992
  %7396 = vmatpush1.msra.mxu0 %v6990
  %7397 = vmatprep.subr.mxu0 0.0
  %7398 = vmatpush2.msra.mxu0 0.0
  %7399 = vmatprep.subr.mxu0 0.0
  %7400 = vmatpush2.msra.mxu0 0.0
  %7401 = vmatprep.subr.mxu0 0.0
  %7402 = vmatpush2.msra.mxu0 0.0
  %7403 = vmatprep.subr.mxu0 0.0
  %7404 = vmatpush2.msra.mxu0 0.0
  %7405 = vmatprep.subr.mxu0 0.0
  %7406 = vmatpush2.msra.mxu0 0.0
  %7407 = vmatprep.subr.mxu0 0.0
  %7408 = vmatpush2.msra.mxu0 0.0
  %7409 = vmatprep.subr.mxu0 0.0
  %7410 = vmatpush2.msra.mxu0 0.0
  %7411 = vmatprep.subr.mxu0 0.0
  %7412 = vmatpush2.msra.mxu0 0.0
  %7413 = vmatprep.subr.mxu0 0.0
  %7414 = vmatpush2.msra.mxu0 0.0
  %7415 = vmatprep.subr.mxu0 0.0
  %7416 = vmatpush2.msra.mxu0 0.0
  %7417 = vmatprep.subr.mxu0 0.0
  %7418 = vmatpush2.msra.mxu0 0.0
  %7419 = vmatprep.subr.mxu0 0.0
  %7420 = vmatpush2.msra.mxu0 0.0
  %7421 = vmatprep.subr.mxu0 0.0
  %7422 = vmatpush2.msra.mxu0 0.0
  %7423 = vmatprep.subr.mxu0 0.0
  %7424 = vmatpush2.msra.mxu0 0.0
  %7425 = vmatprep.subr.mxu0 0.0
  %7426 = vmatpush2.msra.mxu0 0.0
  %7427 = vmatprep.subr.mxu0 0.0
  %7428 = vmatpush2.msra.mxu0 0.0
  %7429 = vmatprep.mubr.f32.mxu0 0.0
  %7430 = vmatmul.mubr.f32.gmra.mxu0 %v6968
  %v7431 = vpop.f32.mrf.mxu0
  %v7432 = vadd.f32 0.0, %v7431
  %v7433 = vpop.f32.mrf.mxu0
  %v7434 = vadd.f32 0.0, %v7433
  %7435 = vdwg.mxu0
  %7436 = vmatprep.subr.mxu0 0.0
  %7437 = vmatpush1.msra.mxu0 0.0
  %7438 = vmatprep.subr.mxu0 0.0
  %7439 = vmatpush1.msra.mxu0 0.0
  %7440 = vmatprep.subr.mxu0 0.0
  %7441 = vmatpush1.msra.mxu0 0.0
  %7442 = vmatprep.subr.mxu0 0.0
  %7443 = vmatpush1.msra.mxu0 0.0
  %7444 = vmatprep.subr.mxu0 0.0
  %7445 = vmatpush1.msra.mxu0 0.0
  %7446 = vmatprep.subr.mxu0 0.0
  %7447 = vmatpush1.msra.mxu0 0.0
  %7448 = vmatprep.subr.mxu0 0.0
  %7449 = vmatpush1.msra.mxu0 0.0
  %7450 = vmatprep.subr.mxu0 0.0
  %7451 = vmatpush1.msra.mxu0 0.0
  %7452 = vmatprep.subr.mxu0 0.0
  %7453 = vmatpush1.msra.mxu0 0.0
  %7454 = vmatprep.subr.mxu0 0.0
  %7455 = vmatpush1.msra.mxu0 0.0
  %7456 = vmatprep.subr.mxu0 0.0
  %7457 = vmatpush1.msra.mxu0 0.0
  %7458 = vmatprep.subr.mxu0 0.0
  %7459 = vmatpush1.msra.mxu0 0.0
  %7460 = vmatprep.subr.mxu0 0.0
  %7461 = vmatpush1.msra.mxu0 0.0
  %7462 = vmatprep.subr.mxu0 0.0
  %7463 = vmatpush1.msra.mxu0 0.0
  %7464 = vmatprep.subr.mxu0 0.0
  %7465 = vmatpush1.msra.mxu0 0.0
  %7466 = vmatprep.subr.mxu0 %v6996
  %7467 = vmatpush1.msra.mxu0 %v6994
  %7468 = vmatprep.subr.mxu0 0.0
  %7469 = vmatpush2.msra.mxu0 0.0
  %7470 = vmatprep.subr.mxu0 0.0
  %7471 = vmatpush2.msra.mxu0 0.0
  %7472 = vmatprep.subr.mxu0 0.0
  %7473 = vmatpush2.msra.mxu0 0.0
  %7474 = vmatprep.subr.mxu0 0.0
  %7475 = vmatpush2.msra.mxu0 0.0
  %7476 = vmatprep.subr.mxu0 0.0
  %7477 = vmatpush2.msra.mxu0 0.0
  %7478 = vmatprep.subr.mxu0 0.0
  %7479 = vmatpush2.msra.mxu0 0.0
  %7480 = vmatprep.subr.mxu0 0.0
  %7481 = vmatpush2.msra.mxu0 0.0
  %7482 = vmatprep.subr.mxu0 0.0
  %7483 = vmatpush2.msra.mxu0 0.0
  %7484 = vmatprep.subr.mxu0 0.0
  %7485 = vmatpush2.msra.mxu0 0.0
  %7486 = vmatprep.subr.mxu0 0.0
  %7487 = vmatpush2.msra.mxu0 0.0
  %7488 = vmatprep.subr.mxu0 0.0
  %7489 = vmatpush2.msra.mxu0 0.0
  %7490 = vmatprep.subr.mxu0 0.0
  %7491 = vmatpush2.msra.mxu0 0.0
  %7492 = vmatprep.subr.mxu0 0.0
  %7493 = vmatpush2.msra.mxu0 0.0
  %7494 = vmatprep.subr.mxu0 0.0
  %7495 = vmatpush2.msra.mxu0 0.0
  %7496 = vmatprep.subr.mxu0 0.0
  %7497 = vmatpush2.msra.mxu0 0.0
  %7498 = vmatprep.subr.mxu0 0.0
  %7499 = vmatpush2.msra.mxu0 0.0
  %7500 = vmatprep.mubr.f32.mxu0 0.0
  %7501 = vmatmul.mubr.f32.gmra.mxu0 %v6968
  %v7502 = vpop.f32.mrf.mxu0
  %v7503 = vadd.f32 0.0, %v7502
  %v7504 = vpop.f32.mrf.mxu0
  %v7505 = vadd.f32 0.0, %v7504
  %7506 = vdwg.mxu0
  %7507 = vmatprep.subr.mxu0 0.0
  %7508 = vmatpush1.msra.mxu0 0.0
  %7509 = vmatprep.subr.mxu0 0.0
  %7510 = vmatpush1.msra.mxu0 0.0
  %7511 = vmatprep.subr.mxu0 0.0
  %7512 = vmatpush1.msra.mxu0 0.0
  %7513 = vmatprep.subr.mxu0 0.0
  %7514 = vmatpush1.msra.mxu0 0.0
  %7515 = vmatprep.subr.mxu0 0.0
  %7516 = vmatpush1.msra.mxu0 0.0
  %7517 = vmatprep.subr.mxu0 0.0
  %7518 = vmatpush1.msra.mxu0 0.0
  %7519 = vmatprep.subr.mxu0 0.0
  %7520 = vmatpush1.msra.mxu0 0.0
  %7521 = vmatprep.subr.mxu0 0.0
  %7522 = vmatpush1.msra.mxu0 0.0
  %7523 = vmatprep.subr.mxu0 0.0
  %7524 = vmatpush1.msra.mxu0 0.0
  %7525 = vmatprep.subr.mxu0 0.0
  %7526 = vmatpush1.msra.mxu0 0.0
  %7527 = vmatprep.subr.mxu0 0.0
  %7528 = vmatpush1.msra.mxu0 0.0
  %7529 = vmatprep.subr.mxu0 0.0
  %7530 = vmatpush1.msra.mxu0 0.0
  %7531 = vmatprep.subr.mxu0 0.0
  %7532 = vmatpush1.msra.mxu0 0.0
  %7533 = vmatprep.subr.mxu0 0.0
  %7534 = vmatpush1.msra.mxu0 0.0
  %7535 = vmatprep.subr.mxu0 0.0
  %7536 = vmatpush1.msra.mxu0 0.0
  %7537 = vmatprep.subr.mxu0 %v7000
  %7538 = vmatpush1.msra.mxu0 %v6998
  %7539 = vmatprep.subr.mxu0 0.0
  %7540 = vmatpush2.msra.mxu0 0.0
  %7541 = vmatprep.subr.mxu0 0.0
  %7542 = vmatpush2.msra.mxu0 0.0
  %7543 = vmatprep.subr.mxu0 0.0
  %7544 = vmatpush2.msra.mxu0 0.0
  %7545 = vmatprep.subr.mxu0 0.0
  %7546 = vmatpush2.msra.mxu0 0.0
  %7547 = vmatprep.subr.mxu0 0.0
  %7548 = vmatpush2.msra.mxu0 0.0
  %7549 = vmatprep.subr.mxu0 0.0
  %7550 = vmatpush2.msra.mxu0 0.0
  %7551 = vmatprep.subr.mxu0 0.0
  %7552 = vmatpush2.msra.mxu0 0.0
  %7553 = vmatprep.subr.mxu0 0.0
  %7554 = vmatpush2.msra.mxu0 0.0
  %7555 = vmatprep.subr.mxu0 0.0
  %7556 = vmatpush2.msra.mxu0 0.0
  %7557 = vmatprep.subr.mxu0 0.0
  %7558 = vmatpush2.msra.mxu0 0.0
  %7559 = vmatprep.subr.mxu0 0.0
  %7560 = vmatpush2.msra.mxu0 0.0
  %7561 = vmatprep.subr.mxu0 0.0
  %7562 = vmatpush2.msra.mxu0 0.0
  %7563 = vmatprep.subr.mxu0 0.0
  %7564 = vmatpush2.msra.mxu0 0.0
  %7565 = vmatprep.subr.mxu0 0.0
  %7566 = vmatpush2.msra.mxu0 0.0
  %7567 = vmatprep.subr.mxu0 0.0
  %7568 = vmatpush2.msra.mxu0 0.0
  %7569 = vmatprep.subr.mxu0 0.0
  %7570 = vmatpush2.msra.mxu0 0.0
  %7571 = vmatprep.mubr.f32.mxu0 0.0
  %7572 = vmatmul.mubr.f32.gmra.mxu0 %v6968
  %v7573 = vpop.f32.mrf.mxu0
  %v7574 = vadd.f32 0.0, %v7573
  %v7575 = vpop.f32.mrf.mxu0
  %v7576 = vadd.f32 0.0, %v7575
  %7577 = vdwg.mxu0
  %7578 = vmatprep.subr.mxu0 0.0
  %7579 = vmatpush1.msra.mxu0 0.0
  %7580 = vmatprep.subr.mxu0 0.0
  %7581 = vmatpush1.msra.mxu0 0.0
  %7582 = vmatprep.subr.mxu0 0.0
  %7583 = vmatpush1.msra.mxu0 0.0
  %7584 = vmatprep.subr.mxu0 0.0
  %7585 = vmatpush1.msra.mxu0 0.0
  %7586 = vmatprep.subr.mxu0 0.0
  %7587 = vmatpush1.msra.mxu0 0.0
  %7588 = vmatprep.subr.mxu0 0.0
  %7589 = vmatpush1.msra.mxu0 0.0
  %7590 = vmatprep.subr.mxu0 0.0
  %7591 = vmatpush1.msra.mxu0 0.0
  %7592 = vmatprep.subr.mxu0 0.0
  %7593 = vmatpush1.msra.mxu0 0.0
  %7594 = vmatprep.subr.mxu0 0.0
  %7595 = vmatpush1.msra.mxu0 0.0
  %7596 = vmatprep.subr.mxu0 0.0
  %7597 = vmatpush1.msra.mxu0 0.0
  %7598 = vmatprep.subr.mxu0 0.0
  %7599 = vmatpush1.msra.mxu0 0.0
  %7600 = vmatprep.subr.mxu0 0.0
  %7601 = vmatpush1.msra.mxu0 0.0
  %7602 = vmatprep.subr.mxu0 0.0
  %7603 = vmatpush1.msra.mxu0 0.0
  %7604 = vmatprep.subr.mxu0 0.0
  %7605 = vmatpush1.msra.mxu0 0.0
  %7606 = vmatprep.subr.mxu0 0.0
  %7607 = vmatpush1.msra.mxu0 0.0
  %7608 = vmatprep.subr.mxu0 %v7004
  %7609 = vmatpush1.msra.mxu0 %v7002
  %7610 = vmatprep.subr.mxu0 0.0
  %7611 = vmatpush2.msra.mxu0 0.0
  %7612 = vmatprep.subr.mxu0 0.0
  %7613 = vmatpush2.msra.mxu0 0.0
  %7614 = vmatprep.subr.mxu0 0.0
  %7615 = vmatpush2.msra.mxu0 0.0
  %7616 = vmatprep.subr.mxu0 0.0
  %7617 = vmatpush2.msra.mxu0 0.0
  %7618 = vmatprep.subr.mxu0 0.0
  %7619 = vmatpush2.msra.mxu0 0.0
  %7620 = vmatprep.subr.mxu0 0.0
  %7621 = vmatpush2.msra.mxu0 0.0
  %7622 = vmatprep.subr.mxu0 0.0
  %7623 = vmatpush2.msra.mxu0 0.0
  %7624 = vmatprep.subr.mxu0 0.0
  %7625 = vmatpush2.msra.mxu0 0.0
  %7626 = vmatprep.subr.mxu0 0.0
  %7627 = vmatpush2.msra.mxu0 0.0
  %7628 = vmatprep.subr.mxu0 0.0
  %7629 = vmatpush2.msra.mxu0 0.0
  %7630 = vmatprep.subr.mxu0 0.0
  %7631 = vmatpush2.msra.mxu0 0.0
  %7632 = vmatprep.subr.mxu0 0.0
  %7633 = vmatpush2.msra.mxu0 0.0
  %7634 = vmatprep.subr.mxu0 0.0
  %7635 = vmatpush2.msra.mxu0 0.0
  %7636 = vmatprep.subr.mxu0 0.0
  %7637 = vmatpush2.msra.mxu0 0.0
  %7638 = vmatprep.subr.mxu0 0.0
  %7639 = vmatpush2.msra.mxu0 0.0
  %7640 = vmatprep.subr.mxu0 0.0
  %7641 = vmatpush2.msra.mxu0 0.0
  %7642 = vmatprep.mubr.f32.mxu0 0.0
  %7643 = vmatmul.mubr.f32.gmra.mxu0 %v6968
  %v7644 = vpop.f32.mrf.mxu0
  %v7645 = vadd.f32 0.0, %v7644
  %v7646 = vpop.f32.mrf.mxu0
  %v7647 = vadd.f32 0.0, %v7646
  %7648 = vdwg.mxu0
  %7649 = vmatprep.subr.mxu0 0.0
  %7650 = vmatpush1.msra.mxu0 0.0
  %7651 = vmatprep.subr.mxu0 0.0
  %7652 = vmatpush1.msra.mxu0 0.0
  %7653 = vmatprep.subr.mxu0 0.0
  %7654 = vmatpush1.msra.mxu0 0.0
  %7655 = vmatprep.subr.mxu0 0.0
  %7656 = vmatpush1.msra.mxu0 0.0
  %7657 = vmatprep.subr.mxu0 0.0
  %7658 = vmatpush1.msra.mxu0 0.0
  %7659 = vmatprep.subr.mxu0 0.0
  %7660 = vmatpush1.msra.mxu0 0.0
  %7661 = vmatprep.subr.mxu0 0.0
  %7662 = vmatpush1.msra.mxu0 0.0
  %7663 = vmatprep.subr.mxu0 0.0
  %7664 = vmatpush1.msra.mxu0 0.0
  %7665 = vmatprep.subr.mxu0 0.0
  %7666 = vmatpush1.msra.mxu0 0.0
  %7667 = vmatprep.subr.mxu0 0.0
  %7668 = vmatpush1.msra.mxu0 0.0
  %7669 = vmatprep.subr.mxu0 0.0
  %7670 = vmatpush1.msra.mxu0 0.0
  %7671 = vmatprep.subr.mxu0 0.0
  %7672 = vmatpush1.msra.mxu0 0.0
  %7673 = vmatprep.subr.mxu0 0.0
  %7674 = vmatpush1.msra.mxu0 0.0
  %7675 = vmatprep.subr.mxu0 0.0
  %7676 = vmatpush1.msra.mxu0 0.0
  %7677 = vmatprep.subr.mxu0 0.0
  %7678 = vmatpush1.msra.mxu0 0.0
  %7679 = vmatprep.subr.mxu0 %v7008
  %7680 = vmatpush1.msra.mxu0 %v7006
  %7681 = vmatprep.subr.mxu0 0.0
  %7682 = vmatpush2.msra.mxu0 0.0
  %7683 = vmatprep.subr.mxu0 0.0
  %7684 = vmatpush2.msra.mxu0 0.0
  %7685 = vmatprep.subr.mxu0 0.0
  %7686 = vmatpush2.msra.mxu0 0.0
  %7687 = vmatprep.subr.mxu0 0.0
  %7688 = vmatpush2.msra.mxu0 0.0
  %7689 = vmatprep.subr.mxu0 0.0
  %7690 = vmatpush2.msra.mxu0 0.0
  %7691 = vmatprep.subr.mxu0 0.0
  %7692 = vmatpush2.msra.mxu0 0.0
  %7693 = vmatprep.subr.mxu0 0.0
  %7694 = vmatpush2.msra.mxu0 0.0
  %7695 = vmatprep.subr.mxu0 0.0
  %7696 = vmatpush2.msra.mxu0 0.0
  %7697 = vmatprep.subr.mxu0 0.0
  %7698 = vmatpush2.msra.mxu0 0.0
  %7699 = vmatprep.subr.mxu0 0.0
  %7700 = vmatpush2.msra.mxu0 0.0
  %7701 = vmatprep.subr.mxu0 0.0
  %7702 = vmatpush2.msra.mxu0 0.0
  %7703 = vmatprep.subr.mxu0 0.0
  %7704 = vmatpush2.msra.mxu0 0.0
  %7705 = vmatprep.subr.mxu0 0.0
  %7706 = vmatpush2.msra.mxu0 0.0
  %7707 = vmatprep.subr.mxu0 0.0
  %7708 = vmatpush2.msra.mxu0 0.0
  %7709 = vmatprep.subr.mxu0 0.0
  %7710 = vmatpush2.msra.mxu0 0.0
  %7711 = vmatprep.subr.mxu0 0.0
  %7712 = vmatpush2.msra.mxu0 0.0
  %7713 = vmatprep.mubr.f32.mxu0 0.0
  %7714 = vmatmul.mubr.f32.gmra.mxu0 %v6968
  %v7715 = vpop.f32.mrf.mxu0
  %v7716 = vadd.f32 0.0, %v7715
  %v7717 = vpop.f32.mrf.mxu0
  %v7718 = vadd.f32 0.0, %v7717
  %7719 = vdwg.mxu0
  %v7720 = vadd.f32 %v6850, %v7077
  %v7721 = vadd.f32 %v6851, %v7079
  %v7722 = vadd.f32 %v6852, %v7148
  %v7723 = vadd.f32 %v6853, %v7150
  %v7724 = vadd.f32 %v6854, %v7219
  %v7725 = vadd.f32 %v6855, %v7221
  %v7726 = vadd.f32 %v6856, %v7290
  %v7727 = vadd.f32 %v6857, %v7292
  %v7728 = vadd.f32 %v6858, %v7361
  %v7729 = vadd.f32 %v6859, %v7363
  %v7730 = vadd.f32 %v6860, %v7432
  %v7731 = vadd.f32 %v6861, %v7434
  %v7732 = vadd.f32 %v6862, %v7503
  %v7733 = vadd.f32 %v6863, %v7505
  %v7734 = vadd.f32 %v6864, %v7574
  %v7735 = vadd.f32 %v6865, %v7576
  %v7736 = vadd.f32 %v6866, %v7645
  %v7737 = vadd.f32 %v6867, %v7647
  %v7738 = vadd.f32 %v6868, %v7716
  %v7739 = vadd.f32 %v6869, %v7718
  %v7740 = vld [vmem:[%s2] sm:$0xff]
  %7742 = vset.pattern.permute.xlu0 0
  %7743 = vperm.xlu0 %7742, %v7740
  %v7744 = vpop.permute.xlu0 %7743
  %v7746 = vadd.f32 %v7720, %v7744
  %v7747 = vadd.f32 %v7721, %v7744
  %v7748 = vadd.f32 %v7722, %v7744
  %v7749 = vadd.f32 %v7723, %v7744
  %v7750 = vadd.f32 %v7724, %v7744
  %v7751 = vadd.f32 %v7725, %v7744
  %v7752 = vadd.f32 %v7726, %v7744
  %v7753 = vadd.f32 %v7727, %v7744
  %v7754 = vadd.f32 %v7728, %v7744
  %v7755 = vadd.f32 %v7729, %v7744
  %v7756 = vadd.f32 %v7730, %v7744
  %v7757 = vadd.f32 %v7731, %v7744
  %v7758 = vadd.f32 %v7732, %v7744
  %v7759 = vadd.f32 %v7733, %v7744
  %v7760 = vadd.f32 %v7734, %v7744
  %v7761 = vadd.f32 %v7735, %v7744
  %v7762 = vadd.f32 %v7736, %v7744
  %v7763 = vadd.f32 %v7737, %v7744
  %v7764 = vadd.f32 %v7738, %v7744
  %v7765 = vadd.f32 %v7739, %v7744
  %7766 = vst [vmem:[%s3] sm:$0xff] %v7746
  %7767 = vst [vmem:[%s3 + $0x8] sm:$0xff] %v7747
  %7768 = vst [vmem:[%s3 + $0x10] sm:$0xff] %v7748
  %7769 = vst [vmem:[%s3 + $0x18] sm:$0xff] %v7749
  %7770 = vst [vmem:[%s3 + $0x20] sm:$0xff] %v7750
  %7771 = vst [vmem:[%s3 + $0x28] sm:$0xff] %v7751
  %7772 = vst [vmem:[%s3 + $0x30] sm:$0xff] %v7752
  %7773 = vst [vmem:[%s3 + $0x38] sm:$0xff] %v7753
  %7774 = vst [vmem:[%s3 + $0x40] sm:$0xff] %v7754
  %7775 = vst [vmem:[%s3 + $0x48] sm:$0xff] %v7755
  %7776 = vst [vmem:[%s3 + $0x50] sm:$0xff] %v7756
  %7777 = vst [vmem:[%s3 + $0x58] sm:$0xff] %v7757
  %7778 = vst [vmem:[%s3 + $0x60] sm:$0xff] %v7758
  %7779 = vst [vmem:[%s3 + $0x68] sm:$0xff] %v7759
  %7780 = vst [vmem:[%s3 + $0x70] sm:$0xff] %v7760
  %7781 = vst [vmem:[%s3 + $0x78] sm:$0xff] %v7761
  %7782 = vst [vmem:[%s3 + $0x80] sm:$0xff] %v7762
  %7783 = vst [vmem:[%s3 + $0x88] sm:$0xff] %v7763
  %7784 = vst [vmem:[%s3 + $0x90] sm:$0xff] %v7764
  %7785 = vst [vmem:[%s3 + $0x98] sm:$0xff] %v7765
  // Predicated region
  $region14: #{upsample_conv_layer.1} parent=0 // pred_check
    _
  $region15: #{upsample_conv_layer.1} parent=0 // pred_check_branch
    %7787 = sbr.rel (0) target = $region17
  $region16: #{upsample_conv_layer.1} parent=0 // pred_region
    _
  $region17: #{upsample_conv_layer.1} parent=0 // pred_fallthru
    _
  // Predicated region
  $region18: #{upsample_conv_layer.1} parent=0 // pred_check
    _
  $region19: #{upsample_conv_layer.1} parent=0 // pred_check_branch
    %7789 = sbr.rel (0) target = $region21
  $region20: #{upsample_conv_layer.1} parent=0 // pred_region
    _
  $region21: #{upsample_conv_layer.1} parent=0 // pred_fallthru
    _

</llo_original>
